<compile_context>
chip_gen: v7x
topology: tpu7x:2x2x1
jax: 0.10.0
libtpu: 0.0.40
codegen_flags: <defaults>
</compile_context>

<pallas_src>
import numpy as np

import jax
import jax.numpy as jnp
from jax import lax
from jax.experimental import pallas as pl
from jax.experimental.pallas import tpu as pltpu

_TAPS = tuple((dh, dw) for dh in range(3) for dw in range(3))
_VMEM_LIMIT_BYTES = 40 * 1024 * 1024


# --------------------------- weight repacking --------------------------------
def _pack_convt_weight(w):
    """ConvTranspose2d weight (Cin, Cout, 4, 4) -> (9, Cin, 4*Cout) bf16.

    Tap t = dh*3 + dw holds, for output parity p = 2*rh + rw, the kernel entry
    w[:, :, 3 + rh - 2*dh, 3 + rw - 2*dw] (zero if outside [0, 4)).  With
    x_pad = pad(x, 1):
      out[2i+rh, 2j+rw, co] =
          sum_{dh,dw,ci} x_pad[i+dh, j+dw, ci] * wp[dh*3+dw, ci, p*Cout+co]
    which equals PyTorch ConvTranspose2d(k=4, s=2, p=1, bias=False).
    """
    w = np.asarray(w, np.float32)
    cin, cout = w.shape[:2]
    wp = np.zeros((9, cin, 4 * cout), np.float32)
    for t, (dh, dw) in enumerate(_TAPS):
        for rh in (0, 1):
            for rw in (0, 1):
                kh, kw = 3 + rh - 2 * dh, 3 + rw - 2 * dw
                if 0 <= kh < 4 and 0 <= kw < 4:
                    p = 2 * rh + rw
                    wp[t, :, p * cout:(p + 1) * cout] = w[:, :, kh, kw]
    return jnp.asarray(wp, jnp.bfloat16)


# ------------------------------- kernels --------------------------------------
def _make_stats_kernel(nh, nw):
    """Sub-pixel ConvTranspose for one image + fused BN sum / sum-of-squares.

    x_ref: (nh+2, nw+2, Cin) bf16 padded image (VMEM window)
    w_ref: (9, Cin, 4*Cout)  bf16 packed taps (resident)
    y_ref: (nh, nw, 4*Cout)  bf16 raw conv output (parity folded into N)
    s_ref/q_ref: (1, 4*Cout) f32 per-image sum / sum-of-squares
    """
    def kernel(x_ref, w_ref, y_ref, s_ref, q_ref):
        s_ref[...] = jnp.zeros_like(s_ref)
        q_ref[...] = jnp.zeros_like(q_ref)

        def row(i, carry):
            acc = None
            for t, (dh, dw) in enumerate(_TAPS):
                slab = x_ref[i + dh, pl.ds(dw, nw), :]              # (nw, Cin)
                part = jnp.dot(slab, w_ref[t],
                               preferred_element_type=jnp.float32)  # (nw, 4*Cout)
                acc = part if acc is None else acc + part
            s_ref[...] += jnp.sum(acc, axis=0, keepdims=True)
            q_ref[...] += jnp.sum(acc * acc, axis=0, keepdims=True)
            y_ref[i] = acc.astype(y_ref.dtype)
            return carry

        lax.fori_loop(0, nh, row, 0)

    return kernel


def _make_sigmoid_kernel(nh, nw):
    """Final layer: sub-pixel ConvTranspose + fused Sigmoid."""
    def kernel(x_ref, w_ref, y_ref):
        def row(i, carry):
            acc = None
            for t, (dh, dw) in enumerate(_TAPS):
                slab = x_ref[i + dh, pl.ds(dw, nw), :]
                part = jnp.dot(slab, w_ref[t],
                               preferred_element_type=jnp.float32)
                acc = part if acc is None else acc + part
            # sigmoid: exp on the EUP + exact reciprocal (stays within [0, 1]).
            y_ref[i] = pl.reciprocal(1.0 + jnp.exp(-acc), approx=False)
            return carry

        lax.fori_loop(0, nh, row, 0)

    return kernel


# --------------------------- per-layer wrapper --------------------------------
def _convt_layer(x_pad, w_packed, *, final):
    """x_pad: (B, H+2, W+2, Cin) bf16 padded NHWC activations.
    Returns (y, sum, sum_sq):
      y: (B, H, W, 4*Cout) raw conv output, parity-packed along the last dim
         (bf16 for BN layers, f32+sigmoid for the final layer).
    """
    b, hp, wp, cin = x_pad.shape
    nh, nw = hp - 2, wp - 2
    ncol = w_packed.shape[-1]                       # 4 * Cout
    assert w_packed.shape == (9, cin, ncol)

    in_specs = [
        pl.BlockSpec((None, hp, wp, cin), lambda i: (i, 0, 0, 0)),
        pl.BlockSpec((9, cin, ncol), lambda i: (0, 0, 0)),   # weights resident
    ]
    cparams = pltpu.CompilerParams(
        dimension_semantics=("parallel",),          # batch -> both v7x cores
        vmem_limit_bytes=_VMEM_LIMIT_BYTES)

    if final:
        y = pl.pallas_call(
            _make_sigmoid_kernel(nh, nw),
            out_shape=jax.ShapeDtypeStruct((b, nh, nw, ncol), jnp.float32),
            grid=(b,),
            in_specs=in_specs,
            out_specs=pl.BlockSpec((None, nh, nw, ncol), lambda i: (i, 0, 0, 0)),
            compiler_params=cparams,
        )(x_pad, w_packed)
        return y, None, None

    y, s, q = pl.pallas_call(
        _make_stats_kernel(nh, nw),
        out_shape=(jax.ShapeDtypeStruct((b, nh, nw, ncol), jnp.bfloat16),
                   jax.ShapeDtypeStruct((b, 1, ncol), jnp.float32),
                   jax.ShapeDtypeStruct((b, 1, ncol), jnp.float32)),
        grid=(b,),
        in_specs=in_specs,
        out_specs=(pl.BlockSpec((None, nh, nw, ncol), lambda i: (i, 0, 0, 0)),
                   pl.BlockSpec((None, 1, ncol), lambda i: (i, 0, 0)),
                   pl.BlockSpec((None, 1, ncol), lambda i: (i, 0, 0))),
        compiler_params=cparams,
    )(x_pad, w_packed)
    return y, s, q


# ------------------------ inter-layer JAX glue --------------------------------
def _bn_relu_depth_to_space_pad(y, s, q, gamma, beta, eps):
    """BN (training batch stats) + ReLU + 2x depth-to-space + pad(1) producing
    the next layer's padded bf16 NHWC input.  Pure elementwise / layout work
    that XLA fuses into a single pass; kept outside the kernels on purpose."""
    b, nh, nw, ncol = y.shape
    cout = ncol // 4
    cnt = b * nh * nw * 4                                   # B * 2H * 2W
    ssum = jnp.sum(s, axis=(0, 1)).reshape(4, cout).sum(axis=0)
    qsum = jnp.sum(q, axis=(0, 1)).reshape(4, cout).sum(axis=0)
    mean = ssum / cnt
    var = jnp.maximum(qsum / cnt - mean * mean, 0.0)        # biased (train-mode BN)
    scale = gamma * lax.rsqrt(var + eps)
    shift = beta - mean * scale

    yf = y.astype(jnp.float32).reshape(b, nh, nw, 2, 2, cout)
    act = jnp.maximum(yf * scale + shift, 0.0)
    act = act.transpose(0, 1, 3, 2, 4, 5).reshape(b, 2 * nh, 2 * nw, cout)
    act = jnp.pad(act, ((0, 0), (1, 1), (1, 1), (0, 0)))
    return act.astype(jnp.bfloat16)


# ------------------------------ decoder forward --------------------------------
def decoder_forward(x, params, eps=1e-5):
    b = x.shape[0]
    h = x.reshape(b, 512, 7, 7).transpose(0, 2, 3, 1)       # latent NCHW -> NHWC
    h = jnp.pad(h, ((0, 0), (1, 1), (1, 1), (0, 0))).astype(jnp.bfloat16)

    for i in range(1, 5):                                   # conv1..4 + BN + ReLU
        y, s, q = _convt_layer(h, params[f"pw{i}"], final=False)
        h = _bn_relu_depth_to_space_pad(y, s, q,
                                        params[f"g{i}"], params[f"b{i}"], eps)

    y5, _, _ = _convt_layer(h, params["pw5"], final=True)   # conv5 + sigmoid
    b, nh, nw, ncol = y5.shape
    cout = ncol // 4
    out = (y5.reshape(b, nh, nw, 2, 2, cout)
              .transpose(0, 5, 1, 3, 2, 4)
              .reshape(b, cout, 2 * nh, 2 * nw))            # NCHW f32
    return out


# --------------------------------- params --------------------------------------
def init_raw_params(key, channel_factor=4):
    chans = [512, channel_factor * 8, channel_factor * 4,
             channel_factor * 2, channel_factor, 3]
    keys = jax.random.split(key, 13)
    p = {}
    for i in range(5):
        cin, cout = chans[i], chans[i + 1]
        scale = 0.5 if i == 4 else 0.05   # larger last-layer scale -> spread sigmoid
        p[f"w{i + 1}"] = (jax.random.normal(keys[i], (cin, cout, 4, 4),
                                            jnp.float32) * scale)
    for i in range(4):
        cout = chans[i + 1]
        p[f"g{i + 1}"] = 1.0 + 0.1 * jax.random.normal(keys[5 + i], (cout,), jnp.float32)
        p[f"b{i + 1}"] = 0.1 * jax.random.normal(keys[9 + i], (cout,), jnp.float32)
    return p


def pack_params(raw):
    """Weight repacking hoisted out of the jitted forward (done once)."""
    packed = {f"pw{i}": _pack_convt_weight(raw[f"w{i}"]) for i in range(1, 6)}
    for i in range(1, 5):
        packed[f"g{i}"] = raw[f"g{i}"]
        packed[f"b{i}"] = raw[f"b{i}"]
    return packed


# --------------------------- pure-XLA reference --------------------------------
def _ref_conv_transpose(h, w):
    """PyTorch ConvTranspose2d(4, 2, 1, bias=False) via dilated conv, with the
    same bf16 operand casts as the kernel path."""
    lhs = h.astype(jnp.bfloat16)
    rhs = jnp.transpose(w[:, :, ::-1, ::-1], (1, 0, 2, 3)).astype(jnp.bfloat16)
    return lax.conv_general_dilated(
        lhs, rhs, window_strides=(1, 1), padding=((2, 2), (2, 2)),
        lhs_dilation=(2, 2), dimension_numbers=("NCHW", "OIHW", "NCHW"),
        preferred_element_type=jnp.float32)


def decoder_reference(x, raw, eps=1e-5):
    b = x.shape[0]
    h = x.reshape(b, 512, 7, 7)
    for i in range(1, 5):
        y = _ref_conv_transpose(h, raw[f"w{i}"])
        mean = jnp.mean(y, axis=(0, 2, 3))
        var = jnp.maximum(jnp.mean(y * y, axis=(0, 2, 3)) - mean * mean, 0.0)
        scale = raw[f"g{i}"] * lax.rsqrt(var + eps)
        shift = raw[f"b{i}"] - mean * scale
        yq = y.astype(jnp.bfloat16).astype(jnp.float32)   # mirror bf16 writeback
        h = jnp.maximum(yq * scale[None, :, None, None]
                        + shift[None, :, None, None], 0.0)
    return jax.nn.sigmoid(_ref_conv_transpose(h, raw["w5"]))


# ----------------------------------- main ---------------------------------------
if __name__ == "__main__":
    key = jax.random.PRNGKey(0)
    kx, kp = jax.random.split(key)

    batch = 2
    channel_factor = 4            # small channels; 512x7x7 latent fixed by view()

    x = jax.random.normal(kx, (batch, 512 * 7 * 7), jnp.float32)
    raw = init_raw_params(kp, channel_factor=channel_factor)
    params = pack_params(raw)

    fwd = jax.jit(decoder_forward)
    out = jax.block_until_ready(fwd(x, params))

    assert out.shape == (batch, 3, 224, 224), out.shape
    assert out.dtype == jnp.float32
    assert bool(jnp.all(jnp.isfinite(out)))
    # sigmoid range (tolerate reciprocal rounding at exactly-saturated values)
    assert bool(jnp.all(out >= 0.0)) and bool(jnp.all(out <= 1.0 + 1e-6))

    # Numeric parity vs. a pure-XLA ConvTranspose2d/BN/ReLU/Sigmoid reference
    # (same bf16 casts -> structural check of tap/parity/BN arithmetic).
    ref = jax.block_until_ready(jax.jit(decoder_reference)(x, raw))
    max_err = float(jnp.max(jnp.abs(out - ref)))
    assert max_err < 2e-2, f"max |out - ref| = {max_err}"

    print("KERNEL_OK")
</pallas_src>

<mosaic_0001>
module attributes {stable_mosaic.version = 11 : i64} {
  func.func @kernel(%arg0: i32, %arg1: memref<1x9x9x512xbf16, #tpu.memory_space<vmem>>, %arg2: memref<9x512x128xbf16, #tpu.memory_space<vmem>>, %arg3: memref<1x7x7x128xbf16, #tpu.memory_space<vmem>>, %arg4: memref<1x1x128xf32, #tpu.memory_space<vmem>>, %arg5: memref<1x1x128xf32, #tpu.memory_space<vmem>>) attributes {dimension_semantics = [#tpu.dimension_semantics<parallel>], iteration_bounds = array<i64: 2>, scalar_prefetch = 0 : i64, scratch_operands = 0 : i64, tpu.core_type = #tpu.core_type<tc>, window_params = [{transform_indices = @transform_0, window_bounds = array<i64: 1, 9, 9, 512>}, {pipeline_mode = #tpu.pipeline_mode<synchronous>, transform_indices = @transform_1, window_bounds = array<i64: 9, 512, 128>}, {transform_indices = @transform_2, window_bounds = array<i64: 1, 7, 7, 128>}, {transform_indices = @transform_3, window_bounds = array<i64: 1, 1, 128>}, {transform_indices = @transform_4, window_bounds = array<i64: 1, 1, 128>}]} {
    %cst = arith.constant 0.000000e+00 : f32
    %0 = vector.broadcast %cst : f32 to vector<1x128xf32>
    %c0 = arith.constant 0 : index
    %c0_0 = arith.constant 0 : index
    %c0_1 = arith.constant 0 : index
    %1 = vector.load %arg4[%c0, %c0_0, %c0_1] : memref<1x1x128xf32, #tpu.memory_space<vmem>>, vector<1x1x128xf32>
    %2 = vector.shape_cast %1 : vector<1x1x128xf32> to vector<1x128xf32>
    %3 = vector.shape_cast %0 : vector<1x128xf32> to vector<1x1x128xf32>
    tpu.vector_store %arg4[%c0, %c0_0, %c0_1], %3 {strides = array<i32>} : memref<1x1x128xf32, #tpu.memory_space<vmem>>, vector<1x1x128xf32>,
    %cst_2 = arith.constant 0.000000e+00 : f32
    %4 = vector.broadcast %cst_2 : f32 to vector<1x128xf32>
    %c0_3 = arith.constant 0 : index
    %c0_4 = arith.constant 0 : index
    %c0_5 = arith.constant 0 : index
    %5 = vector.load %arg5[%c0_3, %c0_4, %c0_5] : memref<1x1x128xf32, #tpu.memory_space<vmem>>, vector<1x1x128xf32>
    %6 = vector.shape_cast %5 : vector<1x1x128xf32> to vector<1x128xf32>
    %7 = vector.shape_cast %4 : vector<1x128xf32> to vector<1x1x128xf32>
    tpu.vector_store %arg5[%c0_3, %c0_4, %c0_5], %7 {strides = array<i32>} : memref<1x1x128xf32, #tpu.memory_space<vmem>>, vector<1x1x128xf32>,
    %c0_i32 = arith.constant 0 : i32
    %c7_i32 = arith.constant 7 : i32
    %8 = arith.addi %c0_i32, %c7_i32 : i32
    %c1_i32 = arith.constant 1 : i32
    scf.for %arg6 = %c0_i32 to %8 step %c1_i32  : i32 {
      %c0_i32_7 = arith.constant 0 : i32
      %9 = arith.addi %arg6, %c0_i32_7 : i32
      %c0_8 = arith.constant 0 : index
      %10 = arith.index_cast %9 : i32 to index
      %c0_9 = arith.constant 0 : index
      %c0_10 = arith.constant 0 : index
      %11 = vector.load %arg1[%c0_8, %10, %c0_9, %c0_10] : memref<1x9x9x512xbf16, #tpu.memory_space<vmem>>, vector<1x1x7x512xbf16>
      %12 = vector.shape_cast %11 : vector<1x1x7x512xbf16> to vector<7x512xbf16>
      %c0_11 = arith.constant 0 : index
      %c0_12 = arith.constant 0 : index
      %c0_13 = arith.constant 0 : index
      %13 = vector.load %arg2[%c0_11, %c0_12, %c0_13] : memref<9x512x128xbf16, #tpu.memory_space<vmem>>, vector<1x512x128xbf16>
      %14 = vector.shape_cast %13 : vector<1x512x128xbf16> to vector<512x128xbf16>
      %cst_14 = arith.constant dense<0.000000e+00> : vector<7x128xf32>
      %15 = tpu.matmul %12, %14, %cst_14 {dimension_numbers = #tpu.dot_dimension_numbers<[1], [0], [0], [1], [0, 0, 1, 1], [], []>} : vector<7x512xbf16>, vector<512x128xbf16>, vector<7x128xf32> -> vector<7x128xf32>
      %c0_i32_15 = arith.constant 0 : i32
      %16 = arith.addi %arg6, %c0_i32_15 : i32
      %c0_16 = arith.constant 0 : index
      %17 = arith.index_cast %16 : i32 to index
      %c1 = arith.constant 1 : index
      %c0_17 = arith.constant 0 : index
      %18 = vector.load %arg1[%c0_16, %17, %c1, %c0_17] : memref<1x9x9x512xbf16, #tpu.memory_space<vmem>>, vector<1x1x7x512xbf16>
      %19 = vector.shape_cast %18 : vector<1x1x7x512xbf16> to vector<7x512xbf16>
      %c1_18 = arith.constant 1 : index
      %c0_19 = arith.constant 0 : index
      %c0_20 = arith.constant 0 : index
      %20 = vector.load %arg2[%c1_18, %c0_19, %c0_20] : memref<9x512x128xbf16, #tpu.memory_space<vmem>>, vector<1x512x128xbf16>
      %21 = vector.shape_cast %20 : vector<1x512x128xbf16> to vector<512x128xbf16>
      %cst_21 = arith.constant dense<0.000000e+00> : vector<7x128xf32>
      %22 = tpu.matmul %19, %21, %cst_21 {dimension_numbers = #tpu.dot_dimension_numbers<[1], [0], [0], [1], [0, 0, 1, 1], [], []>} : vector<7x512xbf16>, vector<512x128xbf16>, vector<7x128xf32> -> vector<7x128xf32>
      %23 = arith.addf %15, %22 : vector<7x128xf32>
      %c0_i32_22 = arith.constant 0 : i32
      %24 = arith.addi %arg6, %c0_i32_22 : i32
      %c0_23 = arith.constant 0 : index
      %25 = arith.index_cast %24 : i32 to index
      %c2 = arith.constant 2 : index
      %c0_24 = arith.constant 0 : index
      %26 = vector.load %arg1[%c0_23, %25, %c2, %c0_24] : memref<1x9x9x512xbf16, #tpu.memory_space<vmem>>, vector<1x1x7x512xbf16>
      %27 = vector.shape_cast %26 : vector<1x1x7x512xbf16> to vector<7x512xbf16>
      %c2_25 = arith.constant 2 : index
      %c0_26 = arith.constant 0 : index
      %c0_27 = arith.constant 0 : index
      %28 = vector.load %arg2[%c2_25, %c0_26, %c0_27] : memref<9x512x128xbf16, #tpu.memory_space<vmem>>, vector<1x512x128xbf16>
      %29 = vector.shape_cast %28 : vector<1x512x128xbf16> to vector<512x128xbf16>
      %cst_28 = arith.constant dense<0.000000e+00> : vector<7x128xf32>
      %30 = tpu.matmul %27, %29, %cst_28 {dimension_numbers = #tpu.dot_dimension_numbers<[1], [0], [0], [1], [0, 0, 1, 1], [], []>} : vector<7x512xbf16>, vector<512x128xbf16>, vector<7x128xf32> -> vector<7x128xf32>
      %31 = arith.addf %23, %30 : vector<7x128xf32>
      %c1_i32_29 = arith.constant 1 : i32
      %32 = arith.addi %arg6, %c1_i32_29 : i32
      %c0_30 = arith.constant 0 : index
      %33 = arith.index_cast %32 : i32 to index
      %c0_31 = arith.constant 0 : index
      %c0_32 = arith.constant 0 : index
      %34 = vector.load %arg1[%c0_30, %33, %c0_31, %c0_32] : memref<1x9x9x512xbf16, #tpu.memory_space<vmem>>, vector<1x1x7x512xbf16>
      %35 = vector.shape_cast %34 : vector<1x1x7x512xbf16> to vector<7x512xbf16>
      %c3 = arith.constant 3 : index
      %c0_33 = arith.constant 0 : index
      %c0_34 = arith.constant 0 : index
      %36 = vector.load %arg2[%c3, %c0_33, %c0_34] : memref<9x512x128xbf16, #tpu.memory_space<vmem>>, vector<1x512x128xbf16>
      %37 = vector.shape_cast %36 : vector<1x512x128xbf16> to vector<512x128xbf16>
      %cst_35 = arith.constant dense<0.000000e+00> : vector<7x128xf32>
      %38 = tpu.matmul %35, %37, %cst_35 {dimension_numbers = #tpu.dot_dimension_numbers<[1], [0], [0], [1], [0, 0, 1, 1], [], []>} : vector<7x512xbf16>, vector<512x128xbf16>, vector<7x128xf32> -> vector<7x128xf32>
      %39 = arith.addf %31, %38 : vector<7x128xf32>
      %c1_i32_36 = arith.constant 1 : i32
      %40 = arith.addi %arg6, %c1_i32_36 : i32
      %c0_37 = arith.constant 0 : index
      %41 = arith.index_cast %40 : i32 to index
      %c1_38 = arith.constant 1 : index
      %c0_39 = arith.constant 0 : index
      %42 = vector.load %arg1[%c0_37, %41, %c1_38, %c0_39] : memref<1x9x9x512xbf16, #tpu.memory_space<vmem>>, vector<1x1x7x512xbf16>
      %43 = vector.shape_cast %42 : vector<1x1x7x512xbf16> to vector<7x512xbf16>
      %c4 = arith.constant 4 : index
      %c0_40 = arith.constant 0 : index
      %c0_41 = arith.constant 0 : index
      %44 = vector.load %arg2[%c4, %c0_40, %c0_41] : memref<9x512x128xbf16, #tpu.memory_space<vmem>>, vector<1x512x128xbf16>
      %45 = vector.shape_cast %44 : vector<1x512x128xbf16> to vector<512x128xbf16>
      %cst_42 = arith.constant dense<0.000000e+00> : vector<7x128xf32>
      %46 = tpu.matmul %43, %45, %cst_42 {dimension_numbers = #tpu.dot_dimension_numbers<[1], [0], [0], [1], [0, 0, 1, 1], [], []>} : vector<7x512xbf16>, vector<512x128xbf16>, vector<7x128xf32> -> vector<7x128xf32>
      %47 = arith.addf %39, %46 : vector<7x128xf32>
      %c1_i32_43 = arith.constant 1 : i32
      %48 = arith.addi %arg6, %c1_i32_43 : i32
      %c0_44 = arith.constant 0 : index
      %49 = arith.index_cast %48 : i32 to index
      %c2_45 = arith.constant 2 : index
      %c0_46 = arith.constant 0 : index
      %50 = vector.load %arg1[%c0_44, %49, %c2_45, %c0_46] : memref<1x9x9x512xbf16, #tpu.memory_space<vmem>>, vector<1x1x7x512xbf16>
      %51 = vector.shape_cast %50 : vector<1x1x7x512xbf16> to vector<7x512xbf16>
      %c5 = arith.constant 5 : index
      %c0_47 = arith.constant 0 : index
      %c0_48 = arith.constant 0 : index
      %52 = vector.load %arg2[%c5, %c0_47, %c0_48] : memref<9x512x128xbf16, #tpu.memory_space<vmem>>, vector<1x512x128xbf16>
      %53 = vector.shape_cast %52 : vector<1x512x128xbf16> to vector<512x128xbf16>
      %cst_49 = arith.constant dense<0.000000e+00> : vector<7x128xf32>
      %54 = tpu.matmul %51, %53, %cst_49 {dimension_numbers = #tpu.dot_dimension_numbers<[1], [0], [0], [1], [0, 0, 1, 1], [], []>} : vector<7x512xbf16>, vector<512x128xbf16>, vector<7x128xf32> -> vector<7x128xf32>
      %55 = arith.addf %47, %54 : vector<7x128xf32>
      %c2_i32 = arith.constant 2 : i32
      %56 = arith.addi %arg6, %c2_i32 : i32
      %c0_50 = arith.constant 0 : index
      %57 = arith.index_cast %56 : i32 to index
      %c0_51 = arith.constant 0 : index
      %c0_52 = arith.constant 0 : index
      %58 = vector.load %arg1[%c0_50, %57, %c0_51, %c0_52] : memref<1x9x9x512xbf16, #tpu.memory_space<vmem>>, vector<1x1x7x512xbf16>
      %59 = vector.shape_cast %58 : vector<1x1x7x512xbf16> to vector<7x512xbf16>
      %c6 = arith.constant 6 : index
      %c0_53 = arith.constant 0 : index
      %c0_54 = arith.constant 0 : index
      %60 = vector.load %arg2[%c6, %c0_53, %c0_54] : memref<9x512x128xbf16, #tpu.memory_space<vmem>>, vector<1x512x128xbf16>
      %61 = vector.shape_cast %60 : vector<1x512x128xbf16> to vector<512x128xbf16>
      %cst_55 = arith.constant dense<0.000000e+00> : vector<7x128xf32>
      %62 = tpu.matmul %59, %61, %cst_55 {dimension_numbers = #tpu.dot_dimension_numbers<[1], [0], [0], [1], [0, 0, 1, 1], [], []>} : vector<7x512xbf16>, vector<512x128xbf16>, vector<7x128xf32> -> vector<7x128xf32>
      %63 = arith.addf %55, %62 : vector<7x128xf32>
      %c2_i32_56 = arith.constant 2 : i32
      %64 = arith.addi %arg6, %c2_i32_56 : i32
      %c0_57 = arith.constant 0 : index
      %65 = arith.index_cast %64 : i32 to index
      %c1_58 = arith.constant 1 : index
      %c0_59 = arith.constant 0 : index
      %66 = vector.load %arg1[%c0_57, %65, %c1_58, %c0_59] : memref<1x9x9x512xbf16, #tpu.memory_space<vmem>>, vector<1x1x7x512xbf16>
      %67 = vector.shape_cast %66 : vector<1x1x7x512xbf16> to vector<7x512xbf16>
      %c7 = arith.constant 7 : index
      %c0_60 = arith.constant 0 : index
      %c0_61 = arith.constant 0 : index
      %68 = vector.load %arg2[%c7, %c0_60, %c0_61] : memref<9x512x128xbf16, #tpu.memory_space<vmem>>, vector<1x512x128xbf16>
      %69 = vector.shape_cast %68 : vector<1x512x128xbf16> to vector<512x128xbf16>
      %cst_62 = arith.constant dense<0.000000e+00> : vector<7x128xf32>
      %70 = tpu.matmul %67, %69, %cst_62 {dimension_numbers = #tpu.dot_dimension_numbers<[1], [0], [0], [1], [0, 0, 1, 1], [], []>} : vector<7x512xbf16>, vector<512x128xbf16>, vector<7x128xf32> -> vector<7x128xf32>
      %71 = arith.addf %63, %70 : vector<7x128xf32>
      %c2_i32_63 = arith.constant 2 : i32
      %72 = arith.addi %arg6, %c2_i32_63 : i32
      %c0_64 = arith.constant 0 : index
      %73 = arith.index_cast %72 : i32 to index
      %c2_65 = arith.constant 2 : index
      %c0_66 = arith.constant 0 : index
      %74 = vector.load %arg1[%c0_64, %73, %c2_65, %c0_66] : memref<1x9x9x512xbf16, #tpu.memory_space<vmem>>, vector<1x1x7x512xbf16>
      %75 = vector.shape_cast %74 : vector<1x1x7x512xbf16> to vector<7x512xbf16>
      %c8 = arith.constant 8 : index
      %c0_67 = arith.constant 0 : index
      %c0_68 = arith.constant 0 : index
      %76 = vector.load %arg2[%c8, %c0_67, %c0_68] : memref<9x512x128xbf16, #tpu.memory_space<vmem>>, vector<1x512x128xbf16>
      %77 = vector.shape_cast %76 : vector<1x512x128xbf16> to vector<512x128xbf16>
      %cst_69 = arith.constant dense<0.000000e+00> : vector<7x128xf32>
      %78 = tpu.matmul %75, %77, %cst_69 {dimension_numbers = #tpu.dot_dimension_numbers<[1], [0], [0], [1], [0, 0, 1, 1], [], []>} : vector<7x512xbf16>, vector<512x128xbf16>, vector<7x128xf32> -> vector<7x128xf32>
      %79 = arith.addf %71, %78 : vector<7x128xf32>
      %c0_70 = arith.constant 0 : index
      %c0_71 = arith.constant 0 : index
      %c0_72 = arith.constant 0 : index
      %80 = vector.load %arg4[%c0_70, %c0_71, %c0_72] : memref<1x1x128xf32, #tpu.memory_space<vmem>>, vector<1x1x128xf32>
      %81 = vector.shape_cast %80 : vector<1x1x128xf32> to vector<1x128xf32>
      %cst_73 = arith.constant dense<0.000000e+00> : vector<128xf32>
      %82 = vector.multi_reduction <add>, %79, %cst_73 [0] : vector<7x128xf32> to vector<128xf32>
      %83 = vector.shape_cast %82 : vector<128xf32> to vector<1x128xf32>
      %84 = arith.addf %81, %83 : vector<1x128xf32>
      %c0_74 = arith.constant 0 : index
      %c0_75 = arith.constant 0 : index
      %c0_76 = arith.constant 0 : index
      %85 = vector.load %arg4[%c0_74, %c0_75, %c0_76] : memref<1x1x128xf32, #tpu.memory_space<vmem>>, vector<1x1x128xf32>
      %86 = vector.shape_cast %85 : vector<1x1x128xf32> to vector<1x128xf32>
      %87 = vector.shape_cast %84 : vector<1x128xf32> to vector<1x1x128xf32>
      tpu.vector_store %arg4[%c0_74, %c0_75, %c0_76], %87 {strides = array<i32>} : memref<1x1x128xf32, #tpu.memory_space<vmem>>, vector<1x1x128xf32>,
      %c0_77 = arith.constant 0 : index
      %c0_78 = arith.constant 0 : index
      %c0_79 = arith.constant 0 : index
      %88 = vector.load %arg5[%c0_77, %c0_78, %c0_79] : memref<1x1x128xf32, #tpu.memory_space<vmem>>, vector<1x1x128xf32>
      %89 = vector.shape_cast %88 : vector<1x1x128xf32> to vector<1x128xf32>
      %90 = arith.mulf %79, %79 : vector<7x128xf32>
      %cst_80 = arith.constant dense<0.000000e+00> : vector<128xf32>
      %91 = vector.multi_reduction <add>, %90, %cst_80 [0] : vector<7x128xf32> to vector<128xf32>
      %92 = vector.shape_cast %91 : vector<128xf32> to vector<1x128xf32>
      %93 = arith.addf %89, %92 : vector<1x128xf32>
      %c0_81 = arith.constant 0 : index
      %c0_82 = arith.constant 0 : index
      %c0_83 = arith.constant 0 : index
      %94 = vector.load %arg5[%c0_81, %c0_82, %c0_83] : memref<1x1x128xf32, #tpu.memory_space<vmem>>, vector<1x1x128xf32>
      %95 = vector.shape_cast %94 : vector<1x1x128xf32> to vector<1x128xf32>
      %96 = vector.shape_cast %93 : vector<1x128xf32> to vector<1x1x128xf32>
      tpu.vector_store %arg5[%c0_81, %c0_82, %c0_83], %96 {strides = array<i32>} : memref<1x1x128xf32, #tpu.memory_space<vmem>>, vector<1x1x128xf32>,
      %97 = arith.truncf %79 : vector<7x128xf32> to vector<7x128xbf16>
      %c0_84 = arith.constant 0 : index
      %98 = arith.index_cast %arg6 : i32 to index
      %c0_85 = arith.constant 0 : index
      %c0_86 = arith.constant 0 : index
      %99 = vector.load %arg3[%c0_84, %98, %c0_85, %c0_86] : memref<1x7x7x128xbf16, #tpu.memory_space<vmem>>, vector<1x1x7x128xbf16>
      %100 = vector.shape_cast %99 : vector<1x1x7x128xbf16> to vector<7x128xbf16>
      %101 = vector.shape_cast %97 : vector<7x128xbf16> to vector<1x1x7x128xbf16>
      tpu.vector_store %arg3[%c0_84, %98, %c0_85, %c0_86], %101 {strides = array<i32>} : memref<1x7x7x128xbf16, #tpu.memory_space<vmem>>, vector<1x1x7x128xbf16>,
    }
    %c7_i32_6 = arith.constant 7 : i32
    return
  }
  func.func @transform_0(%arg0: i32) -> (i32, i32, i32, i32) {
    %c0_i32 = arith.constant 0 : i32
    %c0_i32_0 = arith.constant 0 : i32
    %c0_i32_1 = arith.constant 0 : i32
    %c0_i32_2 = arith.constant 0 : i32
    return %arg0, %c0_i32, %c0_i32_0, %c0_i32_1 : i32, i32, i32, i32
  }
  func.func @transform_1(%arg0: i32) -> (i32, i32, i32) {
    %c0_i32 = arith.constant 0 : i32
    %c0_i32_0 = arith.constant 0 : i32
    %c0_i32_1 = arith.constant 0 : i32
    %c0_i32_2 = arith.constant 0 : i32
    return %c0_i32, %c0_i32_0, %c0_i32_1 : i32, i32, i32
  }
  func.func @transform_2(%arg0: i32) -> (i32, i32, i32, i32) {
    %c0_i32 = arith.constant 0 : i32
    %c0_i32_0 = arith.constant 0 : i32
    %c0_i32_1 = arith.constant 0 : i32
    %c0_i32_2 = arith.constant 0 : i32
    return %arg0, %c0_i32, %c0_i32_0, %c0_i32_1 : i32, i32, i32, i32
  }
  func.func @transform_3(%arg0: i32) -> (i32, i32, i32) {
    %c0_i32 = arith.constant 0 : i32
    %c0_i32_0 = arith.constant 0 : i32
    %c0_i32_1 = arith.constant 0 : i32
    return %arg0, %c0_i32, %c0_i32_0 : i32, i32, i32
  }
  func.func @transform_4(%arg0: i32) -> (i32, i32, i32) {
    %c0_i32 = arith.constant 0 : i32
    %c0_i32_0 = arith.constant 0 : i32
    %c0_i32_1 = arith.constant 0 : i32
    return %arg0, %c0_i32, %c0_i32_0 : i32, i32, i32
  }
}

module attributes {stable_mosaic.version = 11 : i64} {
  func.func @kernel(%arg0: i32, %arg1: memref<1x16x16x32xbf16, #tpu.memory_space<vmem>>, %arg2: memref<9x32x64xbf16, #tpu.memory_space<vmem>>, %arg3: memref<1x14x14x64xbf16, #tpu.memory_space<vmem>>, %arg4: memref<1x1x64xf32, #tpu.memory_space<vmem>>, %arg5: memref<1x1x64xf32, #tpu.memory_space<vmem>>) attributes {dimension_semantics = [#tpu.dimension_semantics<parallel>], iteration_bounds = array<i64: 2>, scalar_prefetch = 0 : i64, scratch_operands = 0 : i64, tpu.core_type = #tpu.core_type<tc>, window_params = [{transform_indices = @transform_0, window_bounds = array<i64: 1, 16, 16, 32>}, {pipeline_mode = #tpu.pipeline_mode<synchronous>, transform_indices = @transform_1, window_bounds = array<i64: 9, 32, 64>}, {transform_indices = @transform_2, window_bounds = array<i64: 1, 14, 14, 64>}, {transform_indices = @transform_3, window_bounds = array<i64: 1, 1, 64>}, {transform_indices = @transform_4, window_bounds = array<i64: 1, 1, 64>}]} {
    %cst = arith.constant 0.000000e+00 : f32
    %0 = vector.broadcast %cst : f32 to vector<1x64xf32>
    %c0 = arith.constant 0 : index
    %c0_0 = arith.constant 0 : index
    %c0_1 = arith.constant 0 : index
    %1 = vector.load %arg4[%c0, %c0_0, %c0_1] : memref<1x1x64xf32, #tpu.memory_space<vmem>>, vector<1x1x64xf32>
    %2 = vector.shape_cast %1 : vector<1x1x64xf32> to vector<1x64xf32>
    %3 = vector.shape_cast %0 : vector<1x64xf32> to vector<1x1x64xf32>
    tpu.vector_store %arg4[%c0, %c0_0, %c0_1], %3 {strides = array<i32>} : memref<1x1x64xf32, #tpu.memory_space<vmem>>, vector<1x1x64xf32>,
    %cst_2 = arith.constant 0.000000e+00 : f32
    %4 = vector.broadcast %cst_2 : f32 to vector<1x64xf32>
    %c0_3 = arith.constant 0 : index
    %c0_4 = arith.constant 0 : index
    %c0_5 = arith.constant 0 : index
    %5 = vector.load %arg5[%c0_3, %c0_4, %c0_5] : memref<1x1x64xf32, #tpu.memory_space<vmem>>, vector<1x1x64xf32>
    %6 = vector.shape_cast %5 : vector<1x1x64xf32> to vector<1x64xf32>
    %7 = vector.shape_cast %4 : vector<1x64xf32> to vector<1x1x64xf32>
    tpu.vector_store %arg5[%c0_3, %c0_4, %c0_5], %7 {strides = array<i32>} : memref<1x1x64xf32, #tpu.memory_space<vmem>>, vector<1x1x64xf32>,
    %c0_i32 = arith.constant 0 : i32
    %c14_i32 = arith.constant 14 : i32
    %8 = arith.addi %c0_i32, %c14_i32 : i32
    %c1_i32 = arith.constant 1 : i32
    scf.for %arg6 = %c0_i32 to %8 step %c1_i32  : i32 {
      %c0_i32_7 = arith.constant 0 : i32
      %9 = arith.addi %arg6, %c0_i32_7 : i32
      %c0_8 = arith.constant 0 : index
      %10 = arith.index_cast %9 : i32 to index
      %c0_9 = arith.constant 0 : index
      %c0_10 = arith.constant 0 : index
      %11 = vector.load %arg1[%c0_8, %10, %c0_9, %c0_10] : memref<1x16x16x32xbf16, #tpu.memory_space<vmem>>, vector<1x1x14x32xbf16>
      %12 = vector.shape_cast %11 : vector<1x1x14x32xbf16> to vector<14x32xbf16>
      %c0_11 = arith.constant 0 : index
      %c0_12 = arith.constant 0 : index
      %c0_13 = arith.constant 0 : index
      %13 = vector.load %arg2[%c0_11, %c0_12, %c0_13] : memref<9x32x64xbf16, #tpu.memory_space<vmem>>, vector<1x32x64xbf16>
      %14 = vector.shape_cast %13 : vector<1x32x64xbf16> to vector<32x64xbf16>
      %cst_14 = arith.constant dense<0.000000e+00> : vector<14x64xf32>
      %15 = tpu.matmul %12, %14, %cst_14 {dimension_numbers = #tpu.dot_dimension_numbers<[1], [0], [0], [1], [0, 0, 1, 1], [], []>} : vector<14x32xbf16>, vector<32x64xbf16>, vector<14x64xf32> -> vector<14x64xf32>
      %c0_i32_15 = arith.constant 0 : i32
      %16 = arith.addi %arg6, %c0_i32_15 : i32
      %c0_16 = arith.constant 0 : index
      %17 = arith.index_cast %16 : i32 to index
      %c1 = arith.constant 1 : index
      %c0_17 = arith.constant 0 : index
      %18 = vector.load %arg1[%c0_16, %17, %c1, %c0_17] : memref<1x16x16x32xbf16, #tpu.memory_space<vmem>>, vector<1x1x14x32xbf16>
      %19 = vector.shape_cast %18 : vector<1x1x14x32xbf16> to vector<14x32xbf16>
      %c1_18 = arith.constant 1 : index
      %c0_19 = arith.constant 0 : index
      %c0_20 = arith.constant 0 : index
      %20 = vector.load %arg2[%c1_18, %c0_19, %c0_20] : memref<9x32x64xbf16, #tpu.memory_space<vmem>>, vector<1x32x64xbf16>
      %21 = vector.shape_cast %20 : vector<1x32x64xbf16> to vector<32x64xbf16>
      %cst_21 = arith.constant dense<0.000000e+00> : vector<14x64xf32>
      %22 = tpu.matmul %19, %21, %cst_21 {dimension_numbers = #tpu.dot_dimension_numbers<[1], [0], [0], [1], [0, 0, 1, 1], [], []>} : vector<14x32xbf16>, vector<32x64xbf16>, vector<14x64xf32> -> vector<14x64xf32>
      %23 = arith.addf %15, %22 : vector<14x64xf32>
      %c0_i32_22 = arith.constant 0 : i32
      %24 = arith.addi %arg6, %c0_i32_22 : i32
      %c0_23 = arith.constant 0 : index
      %25 = arith.index_cast %24 : i32 to index
      %c2 = arith.constant 2 : index
      %c0_24 = arith.constant 0 : index
      %26 = vector.load %arg1[%c0_23, %25, %c2, %c0_24] : memref<1x16x16x32xbf16, #tpu.memory_space<vmem>>, vector<1x1x14x32xbf16>
      %27 = vector.shape_cast %26 : vector<1x1x14x32xbf16> to vector<14x32xbf16>
      %c2_25 = arith.constant 2 : index
      %c0_26 = arith.constant 0 : index
      %c0_27 = arith.constant 0 : index
      %28 = vector.load %arg2[%c2_25, %c0_26, %c0_27] : memref<9x32x64xbf16, #tpu.memory_space<vmem>>, vector<1x32x64xbf16>
      %29 = vector.shape_cast %28 : vector<1x32x64xbf16> to vector<32x64xbf16>
      %cst_28 = arith.constant dense<0.000000e+00> : vector<14x64xf32>
      %30 = tpu.matmul %27, %29, %cst_28 {dimension_numbers = #tpu.dot_dimension_numbers<[1], [0], [0], [1], [0, 0, 1, 1], [], []>} : vector<14x32xbf16>, vector<32x64xbf16>, vector<14x64xf32> -> vector<14x64xf32>
      %31 = arith.addf %23, %30 : vector<14x64xf32>
      %c1_i32_29 = arith.constant 1 : i32
      %32 = arith.addi %arg6, %c1_i32_29 : i32
      %c0_30 = arith.constant 0 : index
      %33 = arith.index_cast %32 : i32 to index
      %c0_31 = arith.constant 0 : index
      %c0_32 = arith.constant 0 : index
      %34 = vector.load %arg1[%c0_30, %33, %c0_31, %c0_32] : memref<1x16x16x32xbf16, #tpu.memory_space<vmem>>, vector<1x1x14x32xbf16>
      %35 = vector.shape_cast %34 : vector<1x1x14x32xbf16> to vector<14x32xbf16>
      %c3 = arith.constant 3 : index
      %c0_33 = arith.constant 0 : index
      %c0_34 = arith.constant 0 : index
      %36 = vector.load %arg2[%c3, %c0_33, %c0_34] : memref<9x32x64xbf16, #tpu.memory_space<vmem>>, vector<1x32x64xbf16>
      %37 = vector.shape_cast %36 : vector<1x32x64xbf16> to vector<32x64xbf16>
      %cst_35 = arith.constant dense<0.000000e+00> : vector<14x64xf32>
      %38 = tpu.matmul %35, %37, %cst_35 {dimension_numbers = #tpu.dot_dimension_numbers<[1], [0], [0], [1], [0, 0, 1, 1], [], []>} : vector<14x32xbf16>, vector<32x64xbf16>, vector<14x64xf32> -> vector<14x64xf32>
      %39 = arith.addf %31, %38 : vector<14x64xf32>
      %c1_i32_36 = arith.constant 1 : i32
      %40 = arith.addi %arg6, %c1_i32_36 : i32
      %c0_37 = arith.constant 0 : index
      %41 = arith.index_cast %40 : i32 to index
      %c1_38 = arith.constant 1 : index
      %c0_39 = arith.constant 0 : index
      %42 = vector.load %arg1[%c0_37, %41, %c1_38, %c0_39] : memref<1x16x16x32xbf16, #tpu.memory_space<vmem>>, vector<1x1x14x32xbf16>
      %43 = vector.shape_cast %42 : vector<1x1x14x32xbf16> to vector<14x32xbf16>
      %c4 = arith.constant 4 : index
      %c0_40 = arith.constant 0 : index
      %c0_41 = arith.constant 0 : index
      %44 = vector.load %arg2[%c4, %c0_40, %c0_41] : memref<9x32x64xbf16, #tpu.memory_space<vmem>>, vector<1x32x64xbf16>
      %45 = vector.shape_cast %44 : vector<1x32x64xbf16> to vector<32x64xbf16>
      %cst_42 = arith.constant dense<0.000000e+00> : vector<14x64xf32>
      %46 = tpu.matmul %43, %45, %cst_42 {dimension_numbers = #tpu.dot_dimension_numbers<[1], [0], [0], [1], [0, 0, 1, 1], [], []>} : vector<14x32xbf16>, vector<32x64xbf16>, vector<14x64xf32> -> vector<14x64xf32>
      %47 = arith.addf %39, %46 : vector<14x64xf32>
      %c1_i32_43 = arith.constant 1 : i32
      %48 = arith.addi %arg6, %c1_i32_43 : i32
      %c0_44 = arith.constant 0 : index
      %49 = arith.index_cast %48 : i32 to index
      %c2_45 = arith.constant 2 : index
      %c0_46 = arith.constant 0 : index
      %50 = vector.load %arg1[%c0_44, %49, %c2_45, %c0_46] : memref<1x16x16x32xbf16, #tpu.memory_space<vmem>>, vector<1x1x14x32xbf16>
      %51 = vector.shape_cast %50 : vector<1x1x14x32xbf16> to vector<14x32xbf16>
      %c5 = arith.constant 5 : index
      %c0_47 = arith.constant 0 : index
      %c0_48 = arith.constant 0 : index
      %52 = vector.load %arg2[%c5, %c0_47, %c0_48] : memref<9x32x64xbf16, #tpu.memory_space<vmem>>, vector<1x32x64xbf16>
      %53 = vector.shape_cast %52 : vector<1x32x64xbf16> to vector<32x64xbf16>
      %cst_49 = arith.constant dense<0.000000e+00> : vector<14x64xf32>
      %54 = tpu.matmul %51, %53, %cst_49 {dimension_numbers = #tpu.dot_dimension_numbers<[1], [0], [0], [1], [0, 0, 1, 1], [], []>} : vector<14x32xbf16>, vector<32x64xbf16>, vector<14x64xf32> -> vector<14x64xf32>
      %55 = arith.addf %47, %54 : vector<14x64xf32>
      %c2_i32 = arith.constant 2 : i32
      %56 = arith.addi %arg6, %c2_i32 : i32
      %c0_50 = arith.constant 0 : index
      %57 = arith.index_cast %56 : i32 to index
      %c0_51 = arith.constant 0 : index
      %c0_52 = arith.constant 0 : index
      %58 = vector.load %arg1[%c0_50, %57, %c0_51, %c0_52] : memref<1x16x16x32xbf16, #tpu.memory_space<vmem>>, vector<1x1x14x32xbf16>
      %59 = vector.shape_cast %58 : vector<1x1x14x32xbf16> to vector<14x32xbf16>
      %c6 = arith.constant 6 : index
      %c0_53 = arith.constant 0 : index
      %c0_54 = arith.constant 0 : index
      %60 = vector.load %arg2[%c6, %c0_53, %c0_54] : memref<9x32x64xbf16, #tpu.memory_space<vmem>>, vector<1x32x64xbf16>
      %61 = vector.shape_cast %60 : vector<1x32x64xbf16> to vector<32x64xbf16>
      %cst_55 = arith.constant dense<0.000000e+00> : vector<14x64xf32>
      %62 = tpu.matmul %59, %61, %cst_55 {dimension_numbers = #tpu.dot_dimension_numbers<[1], [0], [0], [1], [0, 0, 1, 1], [], []>} : vector<14x32xbf16>, vector<32x64xbf16>, vector<14x64xf32> -> vector<14x64xf32>
      %63 = arith.addf %55, %62 : vector<14x64xf32>
      %c2_i32_56 = arith.constant 2 : i32
      %64 = arith.addi %arg6, %c2_i32_56 : i32
      %c0_57 = arith.constant 0 : index
      %65 = arith.index_cast %64 : i32 to index
      %c1_58 = arith.constant 1 : index
      %c0_59 = arith.constant 0 : index
      %66 = vector.load %arg1[%c0_57, %65, %c1_58, %c0_59] : memref<1x16x16x32xbf16, #tpu.memory_space<vmem>>, vector<1x1x14x32xbf16>
      %67 = vector.shape_cast %66 : vector<1x1x14x32xbf16> to vector<14x32xbf16>
      %c7 = arith.constant 7 : index
      %c0_60 = arith.constant 0 : index
      %c0_61 = arith.constant 0 : index
      %68 = vector.load %arg2[%c7, %c0_60, %c0_61] : memref<9x32x64xbf16, #tpu.memory_space<vmem>>, vector<1x32x64xbf16>
      %69 = vector.shape_cast %68 : vector<1x32x64xbf16> to vector<32x64xbf16>
      %cst_62 = arith.constant dense<0.000000e+00> : vector<14x64xf32>
      %70 = tpu.matmul %67, %69, %cst_62 {dimension_numbers = #tpu.dot_dimension_numbers<[1], [0], [0], [1], [0, 0, 1, 1], [], []>} : vector<14x32xbf16>, vector<32x64xbf16>, vector<14x64xf32> -> vector<14x64xf32>
      %71 = arith.addf %63, %70 : vector<14x64xf32>
      %c2_i32_63 = arith.constant 2 : i32
      %72 = arith.addi %arg6, %c2_i32_63 : i32
      %c0_64 = arith.constant 0 : index
      %73 = arith.index_cast %72 : i32 to index
      %c2_65 = arith.constant 2 : index
      %c0_66 = arith.constant 0 : index
      %74 = vector.load %arg1[%c0_64, %73, %c2_65, %c0_66] : memref<1x16x16x32xbf16, #tpu.memory_space<vmem>>, vector<1x1x14x32xbf16>
      %75 = vector.shape_cast %74 : vector<1x1x14x32xbf16> to vector<14x32xbf16>
      %c8 = arith.constant 8 : index
      %c0_67 = arith.constant 0 : index
      %c0_68 = arith.constant 0 : index
      %76 = vector.load %arg2[%c8, %c0_67, %c0_68] : memref<9x32x64xbf16, #tpu.memory_space<vmem>>, vector<1x32x64xbf16>
      %77 = vector.shape_cast %76 : vector<1x32x64xbf16> to vector<32x64xbf16>
      %cst_69 = arith.constant dense<0.000000e+00> : vector<14x64xf32>
      %78 = tpu.matmul %75, %77, %cst_69 {dimension_numbers = #tpu.dot_dimension_numbers<[1], [0], [0], [1], [0, 0, 1, 1], [], []>} : vector<14x32xbf16>, vector<32x64xbf16>, vector<14x64xf32> -> vector<14x64xf32>
      %79 = arith.addf %71, %78 : vector<14x64xf32>
      %c0_70 = arith.constant 0 : index
      %c0_71 = arith.constant 0 : index
      %c0_72 = arith.constant 0 : index
      %80 = vector.load %arg4[%c0_70, %c0_71, %c0_72] : memref<1x1x64xf32, #tpu.memory_space<vmem>>, vector<1x1x64xf32>
      %81 = vector.shape_cast %80 : vector<1x1x64xf32> to vector<1x64xf32>
      %cst_73 = arith.constant dense<0.000000e+00> : vector<64xf32>
      %82 = vector.multi_reduction <add>, %79, %cst_73 [0] : vector<14x64xf32> to vector<64xf32>
      %83 = vector.shape_cast %82 : vector<64xf32> to vector<1x64xf32>
      %84 = arith.addf %81, %83 : vector<1x64xf32>
      %c0_74 = arith.constant 0 : index
      %c0_75 = arith.constant 0 : index
      %c0_76 = arith.constant 0 : index
      %85 = vector.load %arg4[%c0_74, %c0_75, %c0_76] : memref<1x1x64xf32, #tpu.memory_space<vmem>>, vector<1x1x64xf32>
      %86 = vector.shape_cast %85 : vector<1x1x64xf32> to vector<1x64xf32>
      %87 = vector.shape_cast %84 : vector<1x64xf32> to vector<1x1x64xf32>
      tpu.vector_store %arg4[%c0_74, %c0_75, %c0_76], %87 {strides = array<i32>} : memref<1x1x64xf32, #tpu.memory_space<vmem>>, vector<1x1x64xf32>,
      %c0_77 = arith.constant 0 : index
      %c0_78 = arith.constant 0 : index
      %c0_79 = arith.constant 0 : index
      %88 = vector.load %arg5[%c0_77, %c0_78, %c0_79] : memref<1x1x64xf32, #tpu.memory_space<vmem>>, vector<1x1x64xf32>
      %89 = vector.shape_cast %88 : vector<1x1x64xf32> to vector<1x64xf32>
      %90 = arith.mulf %79, %79 : vector<14x64xf32>
      %cst_80 = arith.constant dense<0.000000e+00> : vector<64xf32>
      %91 = vector.multi_reduction <add>, %90, %cst_80 [0] : vector<14x64xf32> to vector<64xf32>
      %92 = vector.shape_cast %91 : vector<64xf32> to vector<1x64xf32>
      %93 = arith.addf %89, %92 : vector<1x64xf32>
      %c0_81 = arith.constant 0 : index
      %c0_82 = arith.constant 0 : index
      %c0_83 = arith.constant 0 : index
      %94 = vector.load %arg5[%c0_81, %c0_82, %c0_83] : memref<1x1x64xf32, #tpu.memory_space<vmem>>, vector<1x1x64xf32>
      %95 = vector.shape_cast %94 : vector<1x1x64xf32> to vector<1x64xf32>
      %96 = vector.shape_cast %93 : vector<1x64xf32> to vector<1x1x64xf32>
      tpu.vector_store %arg5[%c0_81, %c0_82, %c0_83], %96 {strides = array<i32>} : memref<1x1x64xf32, #tpu.memory_space<vmem>>, vector<1x1x64xf32>,
      %97 = arith.truncf %79 : vector<14x64xf32> to vector<14x64xbf16>
      %c0_84 = arith.constant 0 : index
      %98 = arith.index_cast %arg6 : i32 to index
      %c0_85 = arith.constant 0 : index
      %c0_86 = arith.constant 0 : index
      %99 = vector.load %arg3[%c0_84, %98, %c0_85, %c0_86] : memref<1x14x14x64xbf16, #tpu.memory_space<vmem>>, vector<1x1x14x64xbf16>
      %100 = vector.shape_cast %99 : vector<1x1x14x64xbf16> to vector<14x64xbf16>
      %101 = vector.shape_cast %97 : vector<14x64xbf16> to vector<1x1x14x64xbf16>
      tpu.vector_store %arg3[%c0_84, %98, %c0_85, %c0_86], %101 {strides = array<i32>} : memref<1x14x14x64xbf16, #tpu.memory_space<vmem>>, vector<1x1x14x64xbf16>,
    }
    %c14_i32_6 = arith.constant 14 : i32
    return
  }
  func.func @transform_0(%arg0: i32) -> (i32, i32, i32, i32) {
    %c0_i32 = arith.constant 0 : i32
    %c0_i32_0 = arith.constant 0 : i32
    %c0_i32_1 = arith.constant 0 : i32
    %c0_i32_2 = arith.constant 0 : i32
    return %arg0, %c0_i32, %c0_i32_0, %c0_i32_1 : i32, i32, i32, i32
  }
  func.func @transform_1(%arg0: i32) -> (i32, i32, i32) {
    %c0_i32 = arith.constant 0 : i32
    %c0_i32_0 = arith.constant 0 : i32
    %c0_i32_1 = arith.constant 0 : i32
    %c0_i32_2 = arith.constant 0 : i32
    return %c0_i32, %c0_i32_0, %c0_i32_1 : i32, i32, i32
  }
  func.func @transform_2(%arg0: i32) -> (i32, i32, i32, i32) {
    %c0_i32 = arith.constant 0 : i32
    %c0_i32_0 = arith.constant 0 : i32
    %c0_i32_1 = arith.constant 0 : i32
    %c0_i32_2 = arith.constant 0 : i32
    return %arg0, %c0_i32, %c0_i32_0, %c0_i32_1 : i32, i32, i32, i32
  }
  func.func @transform_3(%arg0: i32) -> (i32, i32, i32) {
    %c0_i32 = arith.constant 0 : i32
    %c0_i32_0 = arith.constant 0 : i32
    %c0_i32_1 = arith.constant 0 : i32
    return %arg0, %c0_i32, %c0_i32_0 : i32, i32, i32
  }
  func.func @transform_4(%arg0: i32) -> (i32, i32, i32) {
    %c0_i32 = arith.constant 0 : i32
    %c0_i32_0 = arith.constant 0 : i32
    %c0_i32_1 = arith.constant 0 : i32
    return %arg0, %c0_i32, %c0_i32_0 : i32, i32, i32
  }
}

module attributes {stable_mosaic.version = 11 : i64} {
  func.func @kernel(%arg0: i32, %arg1: memref<1x30x30x16xbf16, #tpu.memory_space<vmem>>, %arg2: memref<9x16x32xbf16, #tpu.memory_space<vmem>>, %arg3: memref<1x28x28x32xbf16, #tpu.memory_space<vmem>>, %arg4: memref<1x1x32xf32, #tpu.memory_space<vmem>>, %arg5: memref<1x1x32xf32, #tpu.memory_space<vmem>>) attributes {dimension_semantics = [#tpu.dimension_semantics<parallel>], iteration_bounds = array<i64: 2>, scalar_prefetch = 0 : i64, scratch_operands = 0 : i64, tpu.core_type = #tpu.core_type<tc>, window_params = [{transform_indices = @transform_0, window_bounds = array<i64: 1, 30, 30, 16>}, {pipeline_mode = #tpu.pipeline_mode<synchronous>, transform_indices = @transform_1, window_bounds = array<i64: 9, 16, 32>}, {transform_indices = @transform_2, window_bounds = array<i64: 1, 28, 28, 32>}, {transform_indices = @transform_3, window_bounds = array<i64: 1, 1, 32>}, {transform_indices = @transform_4, window_bounds = array<i64: 1, 1, 32>}]} {
    %cst = arith.constant 0.000000e+00 : f32
    %0 = vector.broadcast %cst : f32 to vector<1x32xf32>
    %c0 = arith.constant 0 : index
    %c0_0 = arith.constant 0 : index
    %c0_1 = arith.constant 0 : index
    %1 = vector.load %arg4[%c0, %c0_0, %c0_1] : memref<1x1x32xf32, #tpu.memory_space<vmem>>, vector<1x1x32xf32>
    %2 = vector.shape_cast %1 : vector<1x1x32xf32> to vector<1x32xf32>
    %3 = vector.shape_cast %0 : vector<1x32xf32> to vector<1x1x32xf32>
    tpu.vector_store %arg4[%c0, %c0_0, %c0_1], %3 {strides = array<i32>} : memref<1x1x32xf32, #tpu.memory_space<vmem>>, vector<1x1x32xf32>,
    %cst_2 = arith.constant 0.000000e+00 : f32
    %4 = vector.broadcast %cst_2 : f32 to vector<1x32xf32>
    %c0_3 = arith.constant 0 : index
    %c0_4 = arith.constant 0 : index
    %c0_5 = arith.constant 0 : index
    %5 = vector.load %arg5[%c0_3, %c0_4, %c0_5] : memref<1x1x32xf32, #tpu.memory_space<vmem>>, vector<1x1x32xf32>
    %6 = vector.shape_cast %5 : vector<1x1x32xf32> to vector<1x32xf32>
    %7 = vector.shape_cast %4 : vector<1x32xf32> to vector<1x1x32xf32>
    tpu.vector_store %arg5[%c0_3, %c0_4, %c0_5], %7 {strides = array<i32>} : memref<1x1x32xf32, #tpu.memory_space<vmem>>, vector<1x1x32xf32>,
    %c0_i32 = arith.constant 0 : i32
    %c28_i32 = arith.constant 28 : i32
    %8 = arith.addi %c0_i32, %c28_i32 : i32
    %c1_i32 = arith.constant 1 : i32
    scf.for %arg6 = %c0_i32 to %8 step %c1_i32  : i32 {
      %c0_i32_7 = arith.constant 0 : i32
      %9 = arith.addi %arg6, %c0_i32_7 : i32
      %c0_8 = arith.constant 0 : index
      %10 = arith.index_cast %9 : i32 to index
      %c0_9 = arith.constant 0 : index
      %c0_10 = arith.constant 0 : index
      %11 = vector.load %arg1[%c0_8, %10, %c0_9, %c0_10] : memref<1x30x30x16xbf16, #tpu.memory_space<vmem>>, vector<1x1x28x16xbf16>
      %12 = vector.shape_cast %11 : vector<1x1x28x16xbf16> to vector<28x16xbf16>
      %c0_11 = arith.constant 0 : index
      %c0_12 = arith.constant 0 : index
      %c0_13 = arith.constant 0 : index
      %13 = vector.load %arg2[%c0_11, %c0_12, %c0_13] : memref<9x16x32xbf16, #tpu.memory_space<vmem>>, vector<1x16x32xbf16>
      %14 = vector.shape_cast %13 : vector<1x16x32xbf16> to vector<16x32xbf16>
      %cst_14 = arith.constant dense<0.000000e+00> : vector<28x32xf32>
      %15 = tpu.matmul %12, %14, %cst_14 {dimension_numbers = #tpu.dot_dimension_numbers<[1], [0], [0], [1], [0, 0, 1, 1], [], []>} : vector<28x16xbf16>, vector<16x32xbf16>, vector<28x32xf32> -> vector<28x32xf32>
      %c0_i32_15 = arith.constant 0 : i32
      %16 = arith.addi %arg6, %c0_i32_15 : i32
      %c0_16 = arith.constant 0 : index
      %17 = arith.index_cast %16 : i32 to index
      %c1 = arith.constant 1 : index
      %c0_17 = arith.constant 0 : index
      %18 = vector.load %arg1[%c0_16, %17, %c1, %c0_17] : memref<1x30x30x16xbf16, #tpu.memory_space<vmem>>, vector<1x1x28x16xbf16>
      %19 = vector.shape_cast %18 : vector<1x1x28x16xbf16> to vector<28x16xbf16>
      %c1_18 = arith.constant 1 : index
      %c0_19 = arith.constant 0 : index
      %c0_20 = arith.constant 0 : index
      %20 = vector.load %arg2[%c1_18, %c0_19, %c0_20] : memref<9x16x32xbf16, #tpu.memory_space<vmem>>, vector<1x16x32xbf16>
      %21 = vector.shape_cast %20 : vector<1x16x32xbf16> to vector<16x32xbf16>
      %cst_21 = arith.constant dense<0.000000e+00> : vector<28x32xf32>
      %22 = tpu.matmul %19, %21, %cst_21 {dimension_numbers = #tpu.dot_dimension_numbers<[1], [0], [0], [1], [0, 0, 1, 1], [], []>} : vector<28x16xbf16>, vector<16x32xbf16>, vector<28x32xf32> -> vector<28x32xf32>
      %23 = arith.addf %15, %22 : vector<28x32xf32>
      %c0_i32_22 = arith.constant 0 : i32
      %24 = arith.addi %arg6, %c0_i32_22 : i32
      %c0_23 = arith.constant 0 : index
      %25 = arith.index_cast %24 : i32 to index
      %c2 = arith.constant 2 : index
      %c0_24 = arith.constant 0 : index
      %26 = vector.load %arg1[%c0_23, %25, %c2, %c0_24] : memref<1x30x30x16xbf16, #tpu.memory_space<vmem>>, vector<1x1x28x16xbf16>
      %27 = vector.shape_cast %26 : vector<1x1x28x16xbf16> to vector<28x16xbf16>
      %c2_25 = arith.constant 2 : index
      %c0_26 = arith.constant 0 : index
      %c0_27 = arith.constant 0 : index
      %28 = vector.load %arg2[%c2_25, %c0_26, %c0_27] : memref<9x16x32xbf16, #tpu.memory_space<vmem>>, vector<1x16x32xbf16>
      %29 = vector.shape_cast %28 : vector<1x16x32xbf16> to vector<16x32xbf16>
      %cst_28 = arith.constant dense<0.000000e+00> : vector<28x32xf32>
      %30 = tpu.matmul %27, %29, %cst_28 {dimension_numbers = #tpu.dot_dimension_numbers<[1], [0], [0], [1], [0, 0, 1, 1], [], []>} : vector<28x16xbf16>, vector<16x32xbf16>, vector<28x32xf32> -> vector<28x32xf32>
      %31 = arith.addf %23, %30 : vector<28x32xf32>
      %c1_i32_29 = arith.constant 1 : i32
      %32 = arith.addi %arg6, %c1_i32_29 : i32
      %c0_30 = arith.constant 0 : index
      %33 = arith.index_cast %32 : i32 to index
      %c0_31 = arith.constant 0 : index
      %c0_32 = arith.constant 0 : index
      %34 = vector.load %arg1[%c0_30, %33, %c0_31, %c0_32] : memref<1x30x30x16xbf16, #tpu.memory_space<vmem>>, vector<1x1x28x16xbf16>
      %35 = vector.shape_cast %34 : vector<1x1x28x16xbf16> to vector<28x16xbf16>
      %c3 = arith.constant 3 : index
      %c0_33 = arith.constant 0 : index
      %c0_34 = arith.constant 0 : index
      %36 = vector.load %arg2[%c3, %c0_33, %c0_34] : memref<9x16x32xbf16, #tpu.memory_space<vmem>>, vector<1x16x32xbf16>
      %37 = vector.shape_cast %36 : vector<1x16x32xbf16> to vector<16x32xbf16>
      %cst_35 = arith.constant dense<0.000000e+00> : vector<28x32xf32>
      %38 = tpu.matmul %35, %37, %cst_35 {dimension_numbers = #tpu.dot_dimension_numbers<[1], [0], [0], [1], [0, 0, 1, 1], [], []>} : vector<28x16xbf16>, vector<16x32xbf16>, vector<28x32xf32> -> vector<28x32xf32>
      %39 = arith.addf %31, %38 : vector<28x32xf32>
      %c1_i32_36 = arith.constant 1 : i32
      %40 = arith.addi %arg6, %c1_i32_36 : i32
      %c0_37 = arith.constant 0 : index
      %41 = arith.index_cast %40 : i32 to index
      %c1_38 = arith.constant 1 : index
      %c0_39 = arith.constant 0 : index
      %42 = vector.load %arg1[%c0_37, %41, %c1_38, %c0_39] : memref<1x30x30x16xbf16, #tpu.memory_space<vmem>>, vector<1x1x28x16xbf16>
      %43 = vector.shape_cast %42 : vector<1x1x28x16xbf16> to vector<28x16xbf16>
      %c4 = arith.constant 4 : index
      %c0_40 = arith.constant 0 : index
      %c0_41 = arith.constant 0 : index
      %44 = vector.load %arg2[%c4, %c0_40, %c0_41] : memref<9x16x32xbf16, #tpu.memory_space<vmem>>, vector<1x16x32xbf16>
      %45 = vector.shape_cast %44 : vector<1x16x32xbf16> to vector<16x32xbf16>
      %cst_42 = arith.constant dense<0.000000e+00> : vector<28x32xf32>
      %46 = tpu.matmul %43, %45, %cst_42 {dimension_numbers = #tpu.dot_dimension_numbers<[1], [0], [0], [1], [0, 0, 1, 1], [], []>} : vector<28x16xbf16>, vector<16x32xbf16>, vector<28x32xf32> -> vector<28x32xf32>
      %47 = arith.addf %39, %46 : vector<28x32xf32>
      %c1_i32_43 = arith.constant 1 : i32
      %48 = arith.addi %arg6, %c1_i32_43 : i32
      %c0_44 = arith.constant 0 : index
      %49 = arith.index_cast %48 : i32 to index
      %c2_45 = arith.constant 2 : index
      %c0_46 = arith.constant 0 : index
      %50 = vector.load %arg1[%c0_44, %49, %c2_45, %c0_46] : memref<1x30x30x16xbf16, #tpu.memory_space<vmem>>, vector<1x1x28x16xbf16>
      %51 = vector.shape_cast %50 : vector<1x1x28x16xbf16> to vector<28x16xbf16>
      %c5 = arith.constant 5 : index
      %c0_47 = arith.constant 0 : index
      %c0_48 = arith.constant 0 : index
      %52 = vector.load %arg2[%c5, %c0_47, %c0_48] : memref<9x16x32xbf16, #tpu.memory_space<vmem>>, vector<1x16x32xbf16>
      %53 = vector.shape_cast %52 : vector<1x16x32xbf16> to vector<16x32xbf16>
      %cst_49 = arith.constant dense<0.000000e+00> : vector<28x32xf32>
      %54 = tpu.matmul %51, %53, %cst_49 {dimension_numbers = #tpu.dot_dimension_numbers<[1], [0], [0], [1], [0, 0, 1, 1], [], []>} : vector<28x16xbf16>, vector<16x32xbf16>, vector<28x32xf32> -> vector<28x32xf32>
      %55 = arith.addf %47, %54 : vector<28x32xf32>
      %c2_i32 = arith.constant 2 : i32
      %56 = arith.addi %arg6, %c2_i32 : i32
      %c0_50 = arith.constant 0 : index
      %57 = arith.index_cast %56 : i32 to index
      %c0_51 = arith.constant 0 : index
      %c0_52 = arith.constant 0 : index
      %58 = vector.load %arg1[%c0_50, %57, %c0_51, %c0_52] : memref<1x30x30x16xbf16, #tpu.memory_space<vmem>>, vector<1x1x28x16xbf16>
      %59 = vector.shape_cast %58 : vector<1x1x28x16xbf16> to vector<28x16xbf16>
      %c6 = arith.constant 6 : index
      %c0_53 = arith.constant 0 : index
      %c0_54 = arith.constant 0 : index
      %60 = vector.load %arg2[%c6, %c0_53, %c0_54] : memref<9x16x32xbf16, #tpu.memory_space<vmem>>, vector<1x16x32xbf16>
      %61 = vector.shape_cast %60 : vector<1x16x32xbf16> to vector<16x32xbf16>
      %cst_55 = arith.constant dense<0.000000e+00> : vector<28x32xf32>
      %62 = tpu.matmul %59, %61, %cst_55 {dimension_numbers = #tpu.dot_dimension_numbers<[1], [0], [0], [1], [0, 0, 1, 1], [], []>} : vector<28x16xbf16>, vector<16x32xbf16>, vector<28x32xf32> -> vector<28x32xf32>
      %63 = arith.addf %55, %62 : vector<28x32xf32>
      %c2_i32_56 = arith.constant 2 : i32
      %64 = arith.addi %arg6, %c2_i32_56 : i32
      %c0_57 = arith.constant 0 : index
      %65 = arith.index_cast %64 : i32 to index
      %c1_58 = arith.constant 1 : index
      %c0_59 = arith.constant 0 : index
      %66 = vector.load %arg1[%c0_57, %65, %c1_58, %c0_59] : memref<1x30x30x16xbf16, #tpu.memory_space<vmem>>, vector<1x1x28x16xbf16>
      %67 = vector.shape_cast %66 : vector<1x1x28x16xbf16> to vector<28x16xbf16>
      %c7 = arith.constant 7 : index
      %c0_60 = arith.constant 0 : index
      %c0_61 = arith.constant 0 : index
      %68 = vector.load %arg2[%c7, %c0_60, %c0_61] : memref<9x16x32xbf16, #tpu.memory_space<vmem>>, vector<1x16x32xbf16>
      %69 = vector.shape_cast %68 : vector<1x16x32xbf16> to vector<16x32xbf16>
      %cst_62 = arith.constant dense<0.000000e+00> : vector<28x32xf32>
      %70 = tpu.matmul %67, %69, %cst_62 {dimension_numbers = #tpu.dot_dimension_numbers<[1], [0], [0], [1], [0, 0, 1, 1], [], []>} : vector<28x16xbf16>, vector<16x32xbf16>, vector<28x32xf32> -> vector<28x32xf32>
      %71 = arith.addf %63, %70 : vector<28x32xf32>
      %c2_i32_63 = arith.constant 2 : i32
      %72 = arith.addi %arg6, %c2_i32_63 : i32
      %c0_64 = arith.constant 0 : index
      %73 = arith.index_cast %72 : i32 to index
      %c2_65 = arith.constant 2 : index
      %c0_66 = arith.constant 0 : index
      %74 = vector.load %arg1[%c0_64, %73, %c2_65, %c0_66] : memref<1x30x30x16xbf16, #tpu.memory_space<vmem>>, vector<1x1x28x16xbf16>
      %75 = vector.shape_cast %74 : vector<1x1x28x16xbf16> to vector<28x16xbf16>
      %c8 = arith.constant 8 : index
      %c0_67 = arith.constant 0 : index
      %c0_68 = arith.constant 0 : index
      %76 = vector.load %arg2[%c8, %c0_67, %c0_68] : memref<9x16x32xbf16, #tpu.memory_space<vmem>>, vector<1x16x32xbf16>
      %77 = vector.shape_cast %76 : vector<1x16x32xbf16> to vector<16x32xbf16>
      %cst_69 = arith.constant dense<0.000000e+00> : vector<28x32xf32>
      %78 = tpu.matmul %75, %77, %cst_69 {dimension_numbers = #tpu.dot_dimension_numbers<[1], [0], [0], [1], [0, 0, 1, 1], [], []>} : vector<28x16xbf16>, vector<16x32xbf16>, vector<28x32xf32> -> vector<28x32xf32>
      %79 = arith.addf %71, %78 : vector<28x32xf32>
      %c0_70 = arith.constant 0 : index
      %c0_71 = arith.constant 0 : index
      %c0_72 = arith.constant 0 : index
      %80 = vector.load %arg4[%c0_70, %c0_71, %c0_72] : memref<1x1x32xf32, #tpu.memory_space<vmem>>, vector<1x1x32xf32>
      %81 = vector.shape_cast %80 : vector<1x1x32xf32> to vector<1x32xf32>
      %cst_73 = arith.constant dense<0.000000e+00> : vector<32xf32>
      %82 = vector.multi_reduction <add>, %79, %cst_73 [0] : vector<28x32xf32> to vector<32xf32>
      %83 = vector.shape_cast %82 : vector<32xf32> to vector<1x32xf32>
      %84 = arith.addf %81, %83 : vector<1x32xf32>
      %c0_74 = arith.constant 0 : index
      %c0_75 = arith.constant 0 : index
      %c0_76 = arith.constant 0 : index
      %85 = vector.load %arg4[%c0_74, %c0_75, %c0_76] : memref<1x1x32xf32, #tpu.memory_space<vmem>>, vector<1x1x32xf32>
      %86 = vector.shape_cast %85 : vector<1x1x32xf32> to vector<1x32xf32>
      %87 = vector.shape_cast %84 : vector<1x32xf32> to vector<1x1x32xf32>
      tpu.vector_store %arg4[%c0_74, %c0_75, %c0_76], %87 {strides = array<i32>} : memref<1x1x32xf32, #tpu.memory_space<vmem>>, vector<1x1x32xf32>,
      %c0_77 = arith.constant 0 : index
      %c0_78 = arith.constant 0 : index
      %c0_79 = arith.constant 0 : index
      %88 = vector.load %arg5[%c0_77, %c0_78, %c0_79] : memref<1x1x32xf32, #tpu.memory_space<vmem>>, vector<1x1x32xf32>
      %89 = vector.shape_cast %88 : vector<1x1x32xf32> to vector<1x32xf32>
      %90 = arith.mulf %79, %79 : vector<28x32xf32>
      %cst_80 = arith.constant dense<0.000000e+00> : vector<32xf32>
      %91 = vector.multi_reduction <add>, %90, %cst_80 [0] : vector<28x32xf32> to vector<32xf32>
      %92 = vector.shape_cast %91 : vector<32xf32> to vector<1x32xf32>
      %93 = arith.addf %89, %92 : vector<1x32xf32>
      %c0_81 = arith.constant 0 : index
      %c0_82 = arith.constant 0 : index
      %c0_83 = arith.constant 0 : index
      %94 = vector.load %arg5[%c0_81, %c0_82, %c0_83] : memref<1x1x32xf32, #tpu.memory_space<vmem>>, vector<1x1x32xf32>
      %95 = vector.shape_cast %94 : vector<1x1x32xf32> to vector<1x32xf32>
      %96 = vector.shape_cast %93 : vector<1x32xf32> to vector<1x1x32xf32>
      tpu.vector_store %arg5[%c0_81, %c0_82, %c0_83], %96 {strides = array<i32>} : memref<1x1x32xf32, #tpu.memory_space<vmem>>, vector<1x1x32xf32>,
      %97 = arith.truncf %79 : vector<28x32xf32> to vector<28x32xbf16>
      %c0_84 = arith.constant 0 : index
      %98 = arith.index_cast %arg6 : i32 to index
      %c0_85 = arith.constant 0 : index
      %c0_86 = arith.constant 0 : index
      %99 = vector.load %arg3[%c0_84, %98, %c0_85, %c0_86] : memref<1x28x28x32xbf16, #tpu.memory_space<vmem>>, vector<1x1x28x32xbf16>
      %100 = vector.shape_cast %99 : vector<1x1x28x32xbf16> to vector<28x32xbf16>
      %101 = vector.shape_cast %97 : vector<28x32xbf16> to vector<1x1x28x32xbf16>
      tpu.vector_store %arg3[%c0_84, %98, %c0_85, %c0_86], %101 {strides = array<i32>} : memref<1x28x28x32xbf16, #tpu.memory_space<vmem>>, vector<1x1x28x32xbf16>,
    }
    %c28_i32_6 = arith.constant 28 : i32
    return
  }
  func.func @transform_0(%arg0: i32) -> (i32, i32, i32, i32) {
    %c0_i32 = arith.constant 0 : i32
    %c0_i32_0 = arith.constant 0 : i32
    %c0_i32_1 = arith.constant 0 : i32
    %c0_i32_2 = arith.constant 0 : i32
    return %arg0, %c0_i32, %c0_i32_0, %c0_i32_1 : i32, i32, i32, i32
  }
  func.func @transform_1(%arg0: i32) -> (i32, i32, i32) {
    %c0_i32 = arith.constant 0 : i32
    %c0_i32_0 = arith.constant 0 : i32
    %c0_i32_1 = arith.constant 0 : i32
    %c0_i32_2 = arith.constant 0 : i32
    return %c0_i32, %c0_i32_0, %c0_i32_1 : i32, i32, i32
  }
  func.func @transform_2(%arg0: i32) -> (i32, i32, i32, i32) {
    %c0_i32 = arith.constant 0 : i32
    %c0_i32_0 = arith.constant 0 : i32
    %c0_i32_1 = arith.constant 0 : i32
    %c0_i32_2 = arith.constant 0 : i32
    return %arg0, %c0_i32, %c0_i32_0, %c0_i32_1 : i32, i32, i32, i32
  }
  func.func @transform_3(%arg0: i32) -> (i32, i32, i32) {
    %c0_i32 = arith.constant 0 : i32
    %c0_i32_0 = arith.constant 0 : i32
    %c0_i32_1 = arith.constant 0 : i32
    return %arg0, %c0_i32, %c0_i32_0 : i32, i32, i32
  }
  func.func @transform_4(%arg0: i32) -> (i32, i32, i32) {
    %c0_i32 = arith.constant 0 : i32
    %c0_i32_0 = arith.constant 0 : i32
    %c0_i32_1 = arith.constant 0 : i32
    return %arg0, %c0_i32, %c0_i32_0 : i32, i32, i32
  }
}

module attributes {stable_mosaic.version = 11 : i64} {
  func.func @kernel(%arg0: i32, %arg1: memref<1x58x58x8xbf16, #tpu.memory_space<vmem>>, %arg2: memref<9x8x16xbf16, #tpu.memory_space<vmem>>, %arg3: memref<1x56x56x16xbf16, #tpu.memory_space<vmem>>, %arg4: memref<1x1x16xf32, #tpu.memory_space<vmem>>, %arg5: memref<1x1x16xf32, #tpu.memory_space<vmem>>) attributes {dimension_semantics = [#tpu.dimension_semantics<parallel>], iteration_bounds = array<i64: 2>, scalar_prefetch = 0 : i64, scratch_operands = 0 : i64, tpu.core_type = #tpu.core_type<tc>, window_params = [{transform_indices = @transform_0, window_bounds = array<i64: 1, 58, 58, 8>}, {pipeline_mode = #tpu.pipeline_mode<synchronous>, transform_indices = @transform_1, window_bounds = array<i64: 9, 8, 16>}, {transform_indices = @transform_2, window_bounds = array<i64: 1, 56, 56, 16>}, {transform_indices = @transform_3, window_bounds = array<i64: 1, 1, 16>}, {transform_indices = @transform_4, window_bounds = array<i64: 1, 1, 16>}]} {
    %cst = arith.constant 0.000000e+00 : f32
    %0 = vector.broadcast %cst : f32 to vector<1x16xf32>
    %c0 = arith.constant 0 : index
    %c0_0 = arith.constant 0 : index
    %c0_1 = arith.constant 0 : index
    %1 = vector.load %arg4[%c0, %c0_0, %c0_1] : memref<1x1x16xf32, #tpu.memory_space<vmem>>, vector<1x1x16xf32>
    %2 = vector.shape_cast %1 : vector<1x1x16xf32> to vector<1x16xf32>
    %3 = vector.shape_cast %0 : vector<1x16xf32> to vector<1x1x16xf32>
    tpu.vector_store %arg4[%c0, %c0_0, %c0_1], %3 {strides = array<i32>} : memref<1x1x16xf32, #tpu.memory_space<vmem>>, vector<1x1x16xf32>,
    %cst_2 = arith.constant 0.000000e+00 : f32
    %4 = vector.broadcast %cst_2 : f32 to vector<1x16xf32>
    %c0_3 = arith.constant 0 : index
    %c0_4 = arith.constant 0 : index
    %c0_5 = arith.constant 0 : index
    %5 = vector.load %arg5[%c0_3, %c0_4, %c0_5] : memref<1x1x16xf32, #tpu.memory_space<vmem>>, vector<1x1x16xf32>
    %6 = vector.shape_cast %5 : vector<1x1x16xf32> to vector<1x16xf32>
    %7 = vector.shape_cast %4 : vector<1x16xf32> to vector<1x1x16xf32>
    tpu.vector_store %arg5[%c0_3, %c0_4, %c0_5], %7 {strides = array<i32>} : memref<1x1x16xf32, #tpu.memory_space<vmem>>, vector<1x1x16xf32>,
    %c0_i32 = arith.constant 0 : i32
    %c56_i32 = arith.constant 56 : i32
    %8 = arith.addi %c0_i32, %c56_i32 : i32
    %c1_i32 = arith.constant 1 : i32
    scf.for %arg6 = %c0_i32 to %8 step %c1_i32  : i32 {
      %c0_i32_7 = arith.constant 0 : i32
      %9 = arith.addi %arg6, %c0_i32_7 : i32
      %c0_8 = arith.constant 0 : index
      %10 = arith.index_cast %9 : i32 to index
      %c0_9 = arith.constant 0 : index
      %c0_10 = arith.constant 0 : index
      %11 = vector.load %arg1[%c0_8, %10, %c0_9, %c0_10] : memref<1x58x58x8xbf16, #tpu.memory_space<vmem>>, vector<1x1x56x8xbf16>
      %12 = vector.shape_cast %11 : vector<1x1x56x8xbf16> to vector<56x8xbf16>
      %c0_11 = arith.constant 0 : index
      %c0_12 = arith.constant 0 : index
      %c0_13 = arith.constant 0 : index
      %13 = vector.load %arg2[%c0_11, %c0_12, %c0_13] : memref<9x8x16xbf16, #tpu.memory_space<vmem>>, vector<1x8x16xbf16>
      %14 = vector.shape_cast %13 : vector<1x8x16xbf16> to vector<8x16xbf16>
      %cst_14 = arith.constant dense<0.000000e+00> : vector<56x16xf32>
      %15 = tpu.matmul %12, %14, %cst_14 {dimension_numbers = #tpu.dot_dimension_numbers<[1], [0], [0], [1], [0, 0, 1, 1], [], []>} : vector<56x8xbf16>, vector<8x16xbf16>, vector<56x16xf32> -> vector<56x16xf32>
      %c0_i32_15 = arith.constant 0 : i32
      %16 = arith.addi %arg6, %c0_i32_15 : i32
      %c0_16 = arith.constant 0 : index
      %17 = arith.index_cast %16 : i32 to index
      %c1 = arith.constant 1 : index
      %c0_17 = arith.constant 0 : index
      %18 = vector.load %arg1[%c0_16, %17, %c1, %c0_17] : memref<1x58x58x8xbf16, #tpu.memory_space<vmem>>, vector<1x1x56x8xbf16>
      %19 = vector.shape_cast %18 : vector<1x1x56x8xbf16> to vector<56x8xbf16>
      %c1_18 = arith.constant 1 : index
      %c0_19 = arith.constant 0 : index
      %c0_20 = arith.constant 0 : index
      %20 = vector.load %arg2[%c1_18, %c0_19, %c0_20] : memref<9x8x16xbf16, #tpu.memory_space<vmem>>, vector<1x8x16xbf16>
      %21 = vector.shape_cast %20 : vector<1x8x16xbf16> to vector<8x16xbf16>
      %cst_21 = arith.constant dense<0.000000e+00> : vector<56x16xf32>
      %22 = tpu.matmul %19, %21, %cst_21 {dimension_numbers = #tpu.dot_dimension_numbers<[1], [0], [0], [1], [0, 0, 1, 1], [], []>} : vector<56x8xbf16>, vector<8x16xbf16>, vector<56x16xf32> -> vector<56x16xf32>
      %23 = arith.addf %15, %22 : vector<56x16xf32>
      %c0_i32_22 = arith.constant 0 : i32
      %24 = arith.addi %arg6, %c0_i32_22 : i32
      %c0_23 = arith.constant 0 : index
      %25 = arith.index_cast %24 : i32 to index
      %c2 = arith.constant 2 : index
      %c0_24 = arith.constant 0 : index
      %26 = vector.load %arg1[%c0_23, %25, %c2, %c0_24] : memref<1x58x58x8xbf16, #tpu.memory_space<vmem>>, vector<1x1x56x8xbf16>
      %27 = vector.shape_cast %26 : vector<1x1x56x8xbf16> to vector<56x8xbf16>
      %c2_25 = arith.constant 2 : index
      %c0_26 = arith.constant 0 : index
      %c0_27 = arith.constant 0 : index
      %28 = vector.load %arg2[%c2_25, %c0_26, %c0_27] : memref<9x8x16xbf16, #tpu.memory_space<vmem>>, vector<1x8x16xbf16>
      %29 = vector.shape_cast %28 : vector<1x8x16xbf16> to vector<8x16xbf16>
      %cst_28 = arith.constant dense<0.000000e+00> : vector<56x16xf32>
      %30 = tpu.matmul %27, %29, %cst_28 {dimension_numbers = #tpu.dot_dimension_numbers<[1], [0], [0], [1], [0, 0, 1, 1], [], []>} : vector<56x8xbf16>, vector<8x16xbf16>, vector<56x16xf32> -> vector<56x16xf32>
      %31 = arith.addf %23, %30 : vector<56x16xf32>
      %c1_i32_29 = arith.constant 1 : i32
      %32 = arith.addi %arg6, %c1_i32_29 : i32
      %c0_30 = arith.constant 0 : index
      %33 = arith.index_cast %32 : i32 to index
      %c0_31 = arith.constant 0 : index
      %c0_32 = arith.constant 0 : index
      %34 = vector.load %arg1[%c0_30, %33, %c0_31, %c0_32] : memref<1x58x58x8xbf16, #tpu.memory_space<vmem>>, vector<1x1x56x8xbf16>
      %35 = vector.shape_cast %34 : vector<1x1x56x8xbf16> to vector<56x8xbf16>
      %c3 = arith.constant 3 : index
      %c0_33 = arith.constant 0 : index
      %c0_34 = arith.constant 0 : index
      %36 = vector.load %arg2[%c3, %c0_33, %c0_34] : memref<9x8x16xbf16, #tpu.memory_space<vmem>>, vector<1x8x16xbf16>
      %37 = vector.shape_cast %36 : vector<1x8x16xbf16> to vector<8x16xbf16>
      %cst_35 = arith.constant dense<0.000000e+00> : vector<56x16xf32>
      %38 = tpu.matmul %35, %37, %cst_35 {dimension_numbers = #tpu.dot_dimension_numbers<[1], [0], [0], [1], [0, 0, 1, 1], [], []>} : vector<56x8xbf16>, vector<8x16xbf16>, vector<56x16xf32> -> vector<56x16xf32>
      %39 = arith.addf %31, %38 : vector<56x16xf32>
      %c1_i32_36 = arith.constant 1 : i32
      %40 = arith.addi %arg6, %c1_i32_36 : i32
      %c0_37 = arith.constant 0 : index
      %41 = arith.index_cast %40 : i32 to index
      %c1_38 = arith.constant 1 : index
      %c0_39 = arith.constant 0 : index
      %42 = vector.load %arg1[%c0_37, %41, %c1_38, %c0_39] : memref<1x58x58x8xbf16, #tpu.memory_space<vmem>>, vector<1x1x56x8xbf16>
      %43 = vector.shape_cast %42 : vector<1x1x56x8xbf16> to vector<56x8xbf16>
      %c4 = arith.constant 4 : index
      %c0_40 = arith.constant 0 : index
      %c0_41 = arith.constant 0 : index
      %44 = vector.load %arg2[%c4, %c0_40, %c0_41] : memref<9x8x16xbf16, #tpu.memory_space<vmem>>, vector<1x8x16xbf16>
      %45 = vector.shape_cast %44 : vector<1x8x16xbf16> to vector<8x16xbf16>
      %cst_42 = arith.constant dense<0.000000e+00> : vector<56x16xf32>
      %46 = tpu.matmul %43, %45, %cst_42 {dimension_numbers = #tpu.dot_dimension_numbers<[1], [0], [0], [1], [0, 0, 1, 1], [], []>} : vector<56x8xbf16>, vector<8x16xbf16>, vector<56x16xf32> -> vector<56x16xf32>
      %47 = arith.addf %39, %46 : vector<56x16xf32>
      %c1_i32_43 = arith.constant 1 : i32
      %48 = arith.addi %arg6, %c1_i32_43 : i32
      %c0_44 = arith.constant 0 : index
      %49 = arith.index_cast %48 : i32 to index
      %c2_45 = arith.constant 2 : index
      %c0_46 = arith.constant 0 : index
      %50 = vector.load %arg1[%c0_44, %49, %c2_45, %c0_46] : memref<1x58x58x8xbf16, #tpu.memory_space<vmem>>, vector<1x1x56x8xbf16>
      %51 = vector.shape_cast %50 : vector<1x1x56x8xbf16> to vector<56x8xbf16>
      %c5 = arith.constant 5 : index
      %c0_47 = arith.constant 0 : index
      %c0_48 = arith.constant 0 : index
      %52 = vector.load %arg2[%c5, %c0_47, %c0_48] : memref<9x8x16xbf16, #tpu.memory_space<vmem>>, vector<1x8x16xbf16>
      %53 = vector.shape_cast %52 : vector<1x8x16xbf16> to vector<8x16xbf16>
      %cst_49 = arith.constant dense<0.000000e+00> : vector<56x16xf32>
      %54 = tpu.matmul %51, %53, %cst_49 {dimension_numbers = #tpu.dot_dimension_numbers<[1], [0], [0], [1], [0, 0, 1, 1], [], []>} : vector<56x8xbf16>, vector<8x16xbf16>, vector<56x16xf32> -> vector<56x16xf32>
      %55 = arith.addf %47, %54 : vector<56x16xf32>
      %c2_i32 = arith.constant 2 : i32
      %56 = arith.addi %arg6, %c2_i32 : i32
      %c0_50 = arith.constant 0 : index
      %57 = arith.index_cast %56 : i32 to index
      %c0_51 = arith.constant 0 : index
      %c0_52 = arith.constant 0 : index
      %58 = vector.load %arg1[%c0_50, %57, %c0_51, %c0_52] : memref<1x58x58x8xbf16, #tpu.memory_space<vmem>>, vector<1x1x56x8xbf16>
      %59 = vector.shape_cast %58 : vector<1x1x56x8xbf16> to vector<56x8xbf16>
      %c6 = arith.constant 6 : index
      %c0_53 = arith.constant 0 : index
      %c0_54 = arith.constant 0 : index
      %60 = vector.load %arg2[%c6, %c0_53, %c0_54] : memref<9x8x16xbf16, #tpu.memory_space<vmem>>, vector<1x8x16xbf16>
      %61 = vector.shape_cast %60 : vector<1x8x16xbf16> to vector<8x16xbf16>
      %cst_55 = arith.constant dense<0.000000e+00> : vector<56x16xf32>
      %62 = tpu.matmul %59, %61, %cst_55 {dimension_numbers = #tpu.dot_dimension_numbers<[1], [0], [0], [1], [0, 0, 1, 1], [], []>} : vector<56x8xbf16>, vector<8x16xbf16>, vector<56x16xf32> -> vector<56x16xf32>
      %63 = arith.addf %55, %62 : vector<56x16xf32>
      %c2_i32_56 = arith.constant 2 : i32
      %64 = arith.addi %arg6, %c2_i32_56 : i32
      %c0_57 = arith.constant 0 : index
      %65 = arith.index_cast %64 : i32 to index
      %c1_58 = arith.constant 1 : index
      %c0_59 = arith.constant 0 : index
      %66 = vector.load %arg1[%c0_57, %65, %c1_58, %c0_59] : memref<1x58x58x8xbf16, #tpu.memory_space<vmem>>, vector<1x1x56x8xbf16>
      %67 = vector.shape_cast %66 : vector<1x1x56x8xbf16> to vector<56x8xbf16>
      %c7 = arith.constant 7 : index
      %c0_60 = arith.constant 0 : index
      %c0_61 = arith.constant 0 : index
      %68 = vector.load %arg2[%c7, %c0_60, %c0_61] : memref<9x8x16xbf16, #tpu.memory_space<vmem>>, vector<1x8x16xbf16>
      %69 = vector.shape_cast %68 : vector<1x8x16xbf16> to vector<8x16xbf16>
      %cst_62 = arith.constant dense<0.000000e+00> : vector<56x16xf32>
      %70 = tpu.matmul %67, %69, %cst_62 {dimension_numbers = #tpu.dot_dimension_numbers<[1], [0], [0], [1], [0, 0, 1, 1], [], []>} : vector<56x8xbf16>, vector<8x16xbf16>, vector<56x16xf32> -> vector<56x16xf32>
      %71 = arith.addf %63, %70 : vector<56x16xf32>
      %c2_i32_63 = arith.constant 2 : i32
      %72 = arith.addi %arg6, %c2_i32_63 : i32
      %c0_64 = arith.constant 0 : index
      %73 = arith.index_cast %72 : i32 to index
      %c2_65 = arith.constant 2 : index
      %c0_66 = arith.constant 0 : index
      %74 = vector.load %arg1[%c0_64, %73, %c2_65, %c0_66] : memref<1x58x58x8xbf16, #tpu.memory_space<vmem>>, vector<1x1x56x8xbf16>
      %75 = vector.shape_cast %74 : vector<1x1x56x8xbf16> to vector<56x8xbf16>
      %c8 = arith.constant 8 : index
      %c0_67 = arith.constant 0 : index
      %c0_68 = arith.constant 0 : index
      %76 = vector.load %arg2[%c8, %c0_67, %c0_68] : memref<9x8x16xbf16, #tpu.memory_space<vmem>>, vector<1x8x16xbf16>
      %77 = vector.shape_cast %76 : vector<1x8x16xbf16> to vector<8x16xbf16>
      %cst_69 = arith.constant dense<0.000000e+00> : vector<56x16xf32>
      %78 = tpu.matmul %75, %77, %cst_69 {dimension_numbers = #tpu.dot_dimension_numbers<[1], [0], [0], [1], [0, 0, 1, 1], [], []>} : vector<56x8xbf16>, vector<8x16xbf16>, vector<56x16xf32> -> vector<56x16xf32>
      %79 = arith.addf %71, %78 : vector<56x16xf32>
      %c0_70 = arith.constant 0 : index
      %c0_71 = arith.constant 0 : index
      %c0_72 = arith.constant 0 : index
      %80 = vector.load %arg4[%c0_70, %c0_71, %c0_72] : memref<1x1x16xf32, #tpu.memory_space<vmem>>, vector<1x1x16xf32>
      %81 = vector.shape_cast %80 : vector<1x1x16xf32> to vector<1x16xf32>
      %cst_73 = arith.constant dense<0.000000e+00> : vector<16xf32>
      %82 = vector.multi_reduction <add>, %79, %cst_73 [0] : vector<56x16xf32> to vector<16xf32>
      %83 = vector.shape_cast %82 : vector<16xf32> to vector<1x16xf32>
      %84 = arith.addf %81, %83 : vector<1x16xf32>
      %c0_74 = arith.constant 0 : index
      %c0_75 = arith.constant 0 : index
      %c0_76 = arith.constant 0 : index
      %85 = vector.load %arg4[%c0_74, %c0_75, %c0_76] : memref<1x1x16xf32, #tpu.memory_space<vmem>>, vector<1x1x16xf32>
      %86 = vector.shape_cast %85 : vector<1x1x16xf32> to vector<1x16xf32>
      %87 = vector.shape_cast %84 : vector<1x16xf32> to vector<1x1x16xf32>
      tpu.vector_store %arg4[%c0_74, %c0_75, %c0_76], %87 {strides = array<i32>} : memref<1x1x16xf32, #tpu.memory_space<vmem>>, vector<1x1x16xf32>,
      %c0_77 = arith.constant 0 : index
      %c0_78 = arith.constant 0 : index
      %c0_79 = arith.constant 0 : index
      %88 = vector.load %arg5[%c0_77, %c0_78, %c0_79] : memref<1x1x16xf32, #tpu.memory_space<vmem>>, vector<1x1x16xf32>
      %89 = vector.shape_cast %88 : vector<1x1x16xf32> to vector<1x16xf32>
      %90 = arith.mulf %79, %79 : vector<56x16xf32>
      %cst_80 = arith.constant dense<0.000000e+00> : vector<16xf32>
      %91 = vector.multi_reduction <add>, %90, %cst_80 [0] : vector<56x16xf32> to vector<16xf32>
      %92 = vector.shape_cast %91 : vector<16xf32> to vector<1x16xf32>
      %93 = arith.addf %89, %92 : vector<1x16xf32>
      %c0_81 = arith.constant 0 : index
      %c0_82 = arith.constant 0 : index
      %c0_83 = arith.constant 0 : index
      %94 = vector.load %arg5[%c0_81, %c0_82, %c0_83] : memref<1x1x16xf32, #tpu.memory_space<vmem>>, vector<1x1x16xf32>
      %95 = vector.shape_cast %94 : vector<1x1x16xf32> to vector<1x16xf32>
      %96 = vector.shape_cast %93 : vector<1x16xf32> to vector<1x1x16xf32>
      tpu.vector_store %arg5[%c0_81, %c0_82, %c0_83], %96 {strides = array<i32>} : memref<1x1x16xf32, #tpu.memory_space<vmem>>, vector<1x1x16xf32>,
      %97 = arith.truncf %79 : vector<56x16xf32> to vector<56x16xbf16>
      %c0_84 = arith.constant 0 : index
      %98 = arith.index_cast %arg6 : i32 to index
      %c0_85 = arith.constant 0 : index
      %c0_86 = arith.constant 0 : index
      %99 = vector.load %arg3[%c0_84, %98, %c0_85, %c0_86] : memref<1x56x56x16xbf16, #tpu.memory_space<vmem>>, vector<1x1x56x16xbf16>
      %100 = vector.shape_cast %99 : vector<1x1x56x16xbf16> to vector<56x16xbf16>
      %101 = vector.shape_cast %97 : vector<56x16xbf16> to vector<1x1x56x16xbf16>
      tpu.vector_store %arg3[%c0_84, %98, %c0_85, %c0_86], %101 {strides = array<i32>} : memref<1x56x56x16xbf16, #tpu.memory_space<vmem>>, vector<1x1x56x16xbf16>,
    }
    %c56_i32_6 = arith.constant 56 : i32
    return
  }
  func.func @transform_0(%arg0: i32) -> (i32, i32, i32, i32) {
    %c0_i32 = arith.constant 0 : i32
    %c0_i32_0 = arith.constant 0 : i32
    %c0_i32_1 = arith.constant 0 : i32
    %c0_i32_2 = arith.constant 0 : i32
    return %arg0, %c0_i32, %c0_i32_0, %c0_i32_1 : i32, i32, i32, i32
  }
  func.func @transform_1(%arg0: i32) -> (i32, i32, i32) {
    %c0_i32 = arith.constant 0 : i32
    %c0_i32_0 = arith.constant 0 : i32
    %c0_i32_1 = arith.constant 0 : i32
    %c0_i32_2 = arith.constant 0 : i32
    return %c0_i32, %c0_i32_0, %c0_i32_1 : i32, i32, i32
  }
  func.func @transform_2(%arg0: i32) -> (i32, i32, i32, i32) {
    %c0_i32 = arith.constant 0 : i32
    %c0_i32_0 = arith.constant 0 : i32
    %c0_i32_1 = arith.constant 0 : i32
    %c0_i32_2 = arith.constant 0 : i32
    return %arg0, %c0_i32, %c0_i32_0, %c0_i32_1 : i32, i32, i32, i32
  }
  func.func @transform_3(%arg0: i32) -> (i32, i32, i32) {
    %c0_i32 = arith.constant 0 : i32
    %c0_i32_0 = arith.constant 0 : i32
    %c0_i32_1 = arith.constant 0 : i32
    return %arg0, %c0_i32, %c0_i32_0 : i32, i32, i32
  }
  func.func @transform_4(%arg0: i32) -> (i32, i32, i32) {
    %c0_i32 = arith.constant 0 : i32
    %c0_i32_0 = arith.constant 0 : i32
    %c0_i32_1 = arith.constant 0 : i32
    return %arg0, %c0_i32, %c0_i32_0 : i32, i32, i32
  }
}

module attributes {stable_mosaic.version = 11 : i64} {
  func.func @kernel(%arg0: i32, %arg1: memref<1x114x114x4xbf16, #tpu.memory_space<vmem>>, %arg2: memref<9x4x12xbf16, #tpu.memory_space<vmem>>, %arg3: memref<1x112x112x12xf32, #tpu.memory_space<vmem>>) attributes {dimension_semantics = [#tpu.dimension_semantics<parallel>], iteration_bounds = array<i64: 2>, scalar_prefetch = 0 : i64, scratch_operands = 0 : i64, tpu.core_type = #tpu.core_type<tc>, window_params = [{transform_indices = @transform_0, window_bounds = array<i64: 1, 114, 114, 4>}, {pipeline_mode = #tpu.pipeline_mode<synchronous>, transform_indices = @transform_1, window_bounds = array<i64: 9, 4, 12>}, {transform_indices = @transform_2, window_bounds = array<i64: 1, 112, 112, 12>}]} {
    %c0_i32 = arith.constant 0 : i32
    %c112_i32 = arith.constant 112 : i32
    %0 = arith.addi %c0_i32, %c112_i32 : i32
    %c1_i32 = arith.constant 1 : i32
    scf.for %arg4 = %c0_i32 to %0 step %c1_i32  : i32 {
      %c0_i32_1 = arith.constant 0 : i32
      %1 = arith.addi %arg4, %c0_i32_1 : i32
      %c0 = arith.constant 0 : index
      %2 = arith.index_cast %1 : i32 to index
      %c0_2 = arith.constant 0 : index
      %c0_3 = arith.constant 0 : index
      %3 = vector.load %arg1[%c0, %2, %c0_2, %c0_3] : memref<1x114x114x4xbf16, #tpu.memory_space<vmem>>, vector<1x1x112x4xbf16>
      %4 = vector.shape_cast %3 : vector<1x1x112x4xbf16> to vector<112x4xbf16>
      %c0_4 = arith.constant 0 : index
      %c0_5 = arith.constant 0 : index
      %c0_6 = arith.constant 0 : index
      %5 = vector.load %arg2[%c0_4, %c0_5, %c0_6] : memref<9x4x12xbf16, #tpu.memory_space<vmem>>, vector<1x4x12xbf16>
      %6 = vector.shape_cast %5 : vector<1x4x12xbf16> to vector<4x12xbf16>
      %cst = arith.constant dense<0.000000e+00> : vector<112x12xf32>
      %7 = tpu.matmul %4, %6, %cst {dimension_numbers = #tpu.dot_dimension_numbers<[1], [0], [0], [1], [0, 0, 1, 1], [], []>} : vector<112x4xbf16>, vector<4x12xbf16>, vector<112x12xf32> -> vector<112x12xf32>
      %c0_i32_7 = arith.constant 0 : i32
      %8 = arith.addi %arg4, %c0_i32_7 : i32
      %c0_8 = arith.constant 0 : index
      %9 = arith.index_cast %8 : i32 to index
      %c1 = arith.constant 1 : index
      %c0_9 = arith.constant 0 : index
      %10 = vector.load %arg1[%c0_8, %9, %c1, %c0_9] : memref<1x114x114x4xbf16, #tpu.memory_space<vmem>>, vector<1x1x112x4xbf16>
      %11 = vector.shape_cast %10 : vector<1x1x112x4xbf16> to vector<112x4xbf16>
      %c1_10 = arith.constant 1 : index
      %c0_11 = arith.constant 0 : index
      %c0_12 = arith.constant 0 : index
      %12 = vector.load %arg2[%c1_10, %c0_11, %c0_12] : memref<9x4x12xbf16, #tpu.memory_space<vmem>>, vector<1x4x12xbf16>
      %13 = vector.shape_cast %12 : vector<1x4x12xbf16> to vector<4x12xbf16>
      %cst_13 = arith.constant dense<0.000000e+00> : vector<112x12xf32>
      %14 = tpu.matmul %11, %13, %cst_13 {dimension_numbers = #tpu.dot_dimension_numbers<[1], [0], [0], [1], [0, 0, 1, 1], [], []>} : vector<112x4xbf16>, vector<4x12xbf16>, vector<112x12xf32> -> vector<112x12xf32>
      %15 = arith.addf %7, %14 : vector<112x12xf32>
      %c0_i32_14 = arith.constant 0 : i32
      %16 = arith.addi %arg4, %c0_i32_14 : i32
      %c0_15 = arith.constant 0 : index
      %17 = arith.index_cast %16 : i32 to index
      %c2 = arith.constant 2 : index
      %c0_16 = arith.constant 0 : index
      %18 = vector.load %arg1[%c0_15, %17, %c2, %c0_16] : memref<1x114x114x4xbf16, #tpu.memory_space<vmem>>, vector<1x1x112x4xbf16>
      %19 = vector.shape_cast %18 : vector<1x1x112x4xbf16> to vector<112x4xbf16>
      %c2_17 = arith.constant 2 : index
      %c0_18 = arith.constant 0 : index
      %c0_19 = arith.constant 0 : index
      %20 = vector.load %arg2[%c2_17, %c0_18, %c0_19] : memref<9x4x12xbf16, #tpu.memory_space<vmem>>, vector<1x4x12xbf16>
      %21 = vector.shape_cast %20 : vector<1x4x12xbf16> to vector<4x12xbf16>
      %cst_20 = arith.constant dense<0.000000e+00> : vector<112x12xf32>
      %22 = tpu.matmul %19, %21, %cst_20 {dimension_numbers = #tpu.dot_dimension_numbers<[1], [0], [0], [1], [0, 0, 1, 1], [], []>} : vector<112x4xbf16>, vector<4x12xbf16>, vector<112x12xf32> -> vector<112x12xf32>
      %23 = arith.addf %15, %22 : vector<112x12xf32>
      %c1_i32_21 = arith.constant 1 : i32
      %24 = arith.addi %arg4, %c1_i32_21 : i32
      %c0_22 = arith.constant 0 : index
      %25 = arith.index_cast %24 : i32 to index
      %c0_23 = arith.constant 0 : index
      %c0_24 = arith.constant 0 : index
      %26 = vector.load %arg1[%c0_22, %25, %c0_23, %c0_24] : memref<1x114x114x4xbf16, #tpu.memory_space<vmem>>, vector<1x1x112x4xbf16>
      %27 = vector.shape_cast %26 : vector<1x1x112x4xbf16> to vector<112x4xbf16>
      %c3 = arith.constant 3 : index
      %c0_25 = arith.constant 0 : index
      %c0_26 = arith.constant 0 : index
      %28 = vector.load %arg2[%c3, %c0_25, %c0_26] : memref<9x4x12xbf16, #tpu.memory_space<vmem>>, vector<1x4x12xbf16>
      %29 = vector.shape_cast %28 : vector<1x4x12xbf16> to vector<4x12xbf16>
      %cst_27 = arith.constant dense<0.000000e+00> : vector<112x12xf32>
      %30 = tpu.matmul %27, %29, %cst_27 {dimension_numbers = #tpu.dot_dimension_numbers<[1], [0], [0], [1], [0, 0, 1, 1], [], []>} : vector<112x4xbf16>, vector<4x12xbf16>, vector<112x12xf32> -> vector<112x12xf32>
      %31 = arith.addf %23, %30 : vector<112x12xf32>
      %c1_i32_28 = arith.constant 1 : i32
      %32 = arith.addi %arg4, %c1_i32_28 : i32
      %c0_29 = arith.constant 0 : index
      %33 = arith.index_cast %32 : i32 to index
      %c1_30 = arith.constant 1 : index
      %c0_31 = arith.constant 0 : index
      %34 = vector.load %arg1[%c0_29, %33, %c1_30, %c0_31] : memref<1x114x114x4xbf16, #tpu.memory_space<vmem>>, vector<1x1x112x4xbf16>
      %35 = vector.shape_cast %34 : vector<1x1x112x4xbf16> to vector<112x4xbf16>
      %c4 = arith.constant 4 : index
      %c0_32 = arith.constant 0 : index
      %c0_33 = arith.constant 0 : index
      %36 = vector.load %arg2[%c4, %c0_32, %c0_33] : memref<9x4x12xbf16, #tpu.memory_space<vmem>>, vector<1x4x12xbf16>
      %37 = vector.shape_cast %36 : vector<1x4x12xbf16> to vector<4x12xbf16>
      %cst_34 = arith.constant dense<0.000000e+00> : vector<112x12xf32>
      %38 = tpu.matmul %35, %37, %cst_34 {dimension_numbers = #tpu.dot_dimension_numbers<[1], [0], [0], [1], [0, 0, 1, 1], [], []>} : vector<112x4xbf16>, vector<4x12xbf16>, vector<112x12xf32> -> vector<112x12xf32>
      %39 = arith.addf %31, %38 : vector<112x12xf32>
      %c1_i32_35 = arith.constant 1 : i32
      %40 = arith.addi %arg4, %c1_i32_35 : i32
      %c0_36 = arith.constant 0 : index
      %41 = arith.index_cast %40 : i32 to index
      %c2_37 = arith.constant 2 : index
      %c0_38 = arith.constant 0 : index
      %42 = vector.load %arg1[%c0_36, %41, %c2_37, %c0_38] : memref<1x114x114x4xbf16, #tpu.memory_space<vmem>>, vector<1x1x112x4xbf16>
      %43 = vector.shape_cast %42 : vector<1x1x112x4xbf16> to vector<112x4xbf16>
      %c5 = arith.constant 5 : index
      %c0_39 = arith.constant 0 : index
      %c0_40 = arith.constant 0 : index
      %44 = vector.load %arg2[%c5, %c0_39, %c0_40] : memref<9x4x12xbf16, #tpu.memory_space<vmem>>, vector<1x4x12xbf16>
      %45 = vector.shape_cast %44 : vector<1x4x12xbf16> to vector<4x12xbf16>
      %cst_41 = arith.constant dense<0.000000e+00> : vector<112x12xf32>
      %46 = tpu.matmul %43, %45, %cst_41 {dimension_numbers = #tpu.dot_dimension_numbers<[1], [0], [0], [1], [0, 0, 1, 1], [], []>} : vector<112x4xbf16>, vector<4x12xbf16>, vector<112x12xf32> -> vector<112x12xf32>
      %47 = arith.addf %39, %46 : vector<112x12xf32>
      %c2_i32 = arith.constant 2 : i32
      %48 = arith.addi %arg4, %c2_i32 : i32
      %c0_42 = arith.constant 0 : index
      %49 = arith.index_cast %48 : i32 to index
      %c0_43 = arith.constant 0 : index
      %c0_44 = arith.constant 0 : index
      %50 = vector.load %arg1[%c0_42, %49, %c0_43, %c0_44] : memref<1x114x114x4xbf16, #tpu.memory_space<vmem>>, vector<1x1x112x4xbf16>
      %51 = vector.shape_cast %50 : vector<1x1x112x4xbf16> to vector<112x4xbf16>
      %c6 = arith.constant 6 : index
      %c0_45 = arith.constant 0 : index
      %c0_46 = arith.constant 0 : index
      %52 = vector.load %arg2[%c6, %c0_45, %c0_46] : memref<9x4x12xbf16, #tpu.memory_space<vmem>>, vector<1x4x12xbf16>
      %53 = vector.shape_cast %52 : vector<1x4x12xbf16> to vector<4x12xbf16>
      %cst_47 = arith.constant dense<0.000000e+00> : vector<112x12xf32>
      %54 = tpu.matmul %51, %53, %cst_47 {dimension_numbers = #tpu.dot_dimension_numbers<[1], [0], [0], [1], [0, 0, 1, 1], [], []>} : vector<112x4xbf16>, vector<4x12xbf16>, vector<112x12xf32> -> vector<112x12xf32>
      %55 = arith.addf %47, %54 : vector<112x12xf32>
      %c2_i32_48 = arith.constant 2 : i32
      %56 = arith.addi %arg4, %c2_i32_48 : i32
      %c0_49 = arith.constant 0 : index
      %57 = arith.index_cast %56 : i32 to index
      %c1_50 = arith.constant 1 : index
      %c0_51 = arith.constant 0 : index
      %58 = vector.load %arg1[%c0_49, %57, %c1_50, %c0_51] : memref<1x114x114x4xbf16, #tpu.memory_space<vmem>>, vector<1x1x112x4xbf16>
      %59 = vector.shape_cast %58 : vector<1x1x112x4xbf16> to vector<112x4xbf16>
      %c7 = arith.constant 7 : index
      %c0_52 = arith.constant 0 : index
      %c0_53 = arith.constant 0 : index
      %60 = vector.load %arg2[%c7, %c0_52, %c0_53] : memref<9x4x12xbf16, #tpu.memory_space<vmem>>, vector<1x4x12xbf16>
      %61 = vector.shape_cast %60 : vector<1x4x12xbf16> to vector<4x12xbf16>
      %cst_54 = arith.constant dense<0.000000e+00> : vector<112x12xf32>
      %62 = tpu.matmul %59, %61, %cst_54 {dimension_numbers = #tpu.dot_dimension_numbers<[1], [0], [0], [1], [0, 0, 1, 1], [], []>} : vector<112x4xbf16>, vector<4x12xbf16>, vector<112x12xf32> -> vector<112x12xf32>
      %63 = arith.addf %55, %62 : vector<112x12xf32>
      %c2_i32_55 = arith.constant 2 : i32
      %64 = arith.addi %arg4, %c2_i32_55 : i32
      %c0_56 = arith.constant 0 : index
      %65 = arith.index_cast %64 : i32 to index
      %c2_57 = arith.constant 2 : index
      %c0_58 = arith.constant 0 : index
      %66 = vector.load %arg1[%c0_56, %65, %c2_57, %c0_58] : memref<1x114x114x4xbf16, #tpu.memory_space<vmem>>, vector<1x1x112x4xbf16>
      %67 = vector.shape_cast %66 : vector<1x1x112x4xbf16> to vector<112x4xbf16>
      %c8 = arith.constant 8 : index
      %c0_59 = arith.constant 0 : index
      %c0_60 = arith.constant 0 : index
      %68 = vector.load %arg2[%c8, %c0_59, %c0_60] : memref<9x4x12xbf16, #tpu.memory_space<vmem>>, vector<1x4x12xbf16>
      %69 = vector.shape_cast %68 : vector<1x4x12xbf16> to vector<4x12xbf16>
      %cst_61 = arith.constant dense<0.000000e+00> : vector<112x12xf32>
      %70 = tpu.matmul %67, %69, %cst_61 {dimension_numbers = #tpu.dot_dimension_numbers<[1], [0], [0], [1], [0, 0, 1, 1], [], []>} : vector<112x4xbf16>, vector<4x12xbf16>, vector<112x12xf32> -> vector<112x12xf32>
      %71 = arith.addf %63, %70 : vector<112x12xf32>
      %cst_62 = arith.constant 0.000000e+00 : f32
      %72 = vector.broadcast %cst_62 : f32 to vector<112x12xf32>
      %73 = arith.subf %72, %71 : vector<112x12xf32>
      %74 = math.exp %73 : vector<112x12xf32>
      %cst_63 = arith.constant 1.000000e+00 : f32
      %75 = vector.broadcast %cst_63 : f32 to vector<112x12xf32>
      %76 = arith.addf %75, %74 : vector<112x12xf32>
      %77 = tpu.reciprocal %76 : vector<112x12xf32> -> vector<112x12xf32>
      %c0_64 = arith.constant 0 : index
      %78 = arith.index_cast %arg4 : i32 to index
      %c0_65 = arith.constant 0 : index
      %c0_66 = arith.constant 0 : index
      %79 = vector.load %arg3[%c0_64, %78, %c0_65, %c0_66] : memref<1x112x112x12xf32, #tpu.memory_space<vmem>>, vector<1x1x112x12xf32>
      %80 = vector.shape_cast %79 : vector<1x1x112x12xf32> to vector<112x12xf32>
      %81 = vector.shape_cast %77 : vector<112x12xf32> to vector<1x1x112x12xf32>
      tpu.vector_store %arg3[%c0_64, %78, %c0_65, %c0_66], %81 {strides = array<i32>} : memref<1x112x112x12xf32, #tpu.memory_space<vmem>>, vector<1x1x112x12xf32>,
    }
    %c112_i32_0 = arith.constant 112 : i32
    return
  }
  func.func @transform_0(%arg0: i32) -> (i32, i32, i32, i32) {
    %c0_i32 = arith.constant 0 : i32
    %c0_i32_0 = arith.constant 0 : i32
    %c0_i32_1 = arith.constant 0 : i32
    %c0_i32_2 = arith.constant 0 : i32
    return %arg0, %c0_i32, %c0_i32_0, %c0_i32_1 : i32, i32, i32, i32
  }
  func.func @transform_1(%arg0: i32) -> (i32, i32, i32) {
    %c0_i32 = arith.constant 0 : i32
    %c0_i32_0 = arith.constant 0 : i32
    %c0_i32_1 = arith.constant 0 : i32
    %c0_i32_2 = arith.constant 0 : i32
    return %c0_i32, %c0_i32_0, %c0_i32_1 : i32, i32, i32
  }
  func.func @transform_2(%arg0: i32) -> (i32, i32, i32, i32) {
    %c0_i32 = arith.constant 0 : i32
    %c0_i32_0 = arith.constant 0 : i32
    %c0_i32_1 = arith.constant 0 : i32
    %c0_i32_2 = arith.constant 0 : i32
    return %arg0, %c0_i32, %c0_i32_0, %c0_i32_1 : i32, i32, i32, i32
  }
}

</mosaic_0001>

<llo_original>
// kernel: decoder_forward.5
$region0: #{decoder_forward.5}
  #allocation0 [shape = 'u32[]', space=smem, size = 0x4, offset = 0x4, fixed_abs, tag = 'smem constant byte address 0x4 - core index']
  #allocation1 [shape = 'u32[144,128]{1,0:T(1,128)}', space=vmem, size = 0x12000, scoped, tag = 'internal scratch']
  %s0 = inlined_call_operand.vmem [shape: bf16[2,9,9,512], index: 0, kind: input, shape index: {}]
  %s1 = inlined_call_operand.vmem [shape: bf16[9,512,128], index: 1, kind: input, shape index: {}]
  %s2 = inlined_call_operand.vmem [shape: bf16[2,7,7,128], index: 2, kind: output, shape index: {0}]
  %s3 = inlined_call_operand.vmem [shape: f32[2,1,128], index: 3, kind: output, shape index: {1}]
  %s4 = inlined_call_operand.vmem [shape: f32[2,1,128], index: 4, kind: output, shape index: {2}]
  %5 = xla_tuple %s2, %s3, %s4
  %s6 = sld [smem:[#allocation0]]
  $region64: #{decoder_forward.5} parent=0
    _
  %s8 = ssub.s32 1, %s6
  %s9 = scalar_select 0, %s8, %s6
  loop: start=0, step=1, limit=4
  $region2: #{decoder_forward.5} parent=0 // loop_pre_header
    _
  $region3: #{decoder_forward.5} parent=0 // loop_header
    %s11 = sphi 0, %s15
    %p12 = scmp.ge.s32.totalorder %s11, 4
    %s21 = sphi 0, %s23
    %s24 = sphi 0, %s21
    %s25 = sphi 0, %s24
    %s41 = sphi 0, %s25
    %s45 = sphi 0, %s45
    %s47 = sphi 0, %s45
    %s48 = sphi 0, %s47
    %s62 = sphi 0, %s48
    %s68 = sphi 0, %s70
    %s71 = sphi 0, %s68
    %s72 = sphi 0, %s71
    %s88 = sphi 0, %s72
    %s94 = sphi 0, %s96
    %s97 = sphi 0, %s94
    %s98 = sphi 0, %s97
    %s114 = sphi 0, %s98
    %s120 = sphi 0, %s122
    %s123 = sphi 0, %s120
    %s124 = sphi 0, %s123
    %s140 = sphi 0, %s124
  $region4: #{decoder_forward.5} parent=0 // loop_header_branch
    %14 = sbr.rel (%p12) target = $region8
  $region5: #{decoder_forward.5} parent=0 // loop_body
    %s16 = ssub.s32 %s11, 1
    %s17 = ssub.s32 %s11, 2
    %s18 = sadd.s32 %s11, 1
    %s19 = ssub.s32 %s11, %s18
    %p20 = scmp.eq.s32.totalorder %s19, 0
    %s22 = sadd.s32 %s21, 1
    %s23 = scalar_select %p20, %s21, %s22
    %p26 = pneg %p20
    %p27 = scmp.eq.s32.totalorder %s11, 1
    %p28 = por %p26, %p27
    %p29 = scmp.ne.s32.totalorder %s21, %s24
    %p30 = scmp.eq.s32.totalorder %s11, 0
    %p31 = por %p29, %p30
    %p32 = scmp.ne.s32.totalorder %s21, %s24
    %p33 = scmp.eq.s32.totalorder %s16, 1
    %p34 = por %p32, %p33
    %p35 = scmp.ne.s32.totalorder %s24, %s25
    %p36 = scmp.eq.s32.totalorder %s16, 0
    %p37 = por %p35, %p36
    %p38 = scmp.ne.s32.totalorder %s24, %s25
    %p39 = scmp.eq.s32.totalorder %s17, 1
    %p40 = por %p38, %p39
    %p42 = scmp.ne.s32.totalorder %s25, %s41
    %p43 = scmp.eq.s32.totalorder %s17, 0
    %p44 = por %p42, %p43
    %s46 = sadd.s32 %s45, 1
    %p49 = scmp.eq.s32.totalorder %s11, 1
    %p50 = scmp.ne.s32.totalorder %s45, %s47
    %p51 = scmp.eq.s32.totalorder %s11, 0
    %p52 = por %p50, %p51
    %p53 = scmp.ne.s32.totalorder %s45, %s47
    %p54 = scmp.eq.s32.totalorder %s16, 1
    %p55 = por %p53, %p54
    %p56 = scmp.ne.s32.totalorder %s47, %s48
    %p57 = scmp.eq.s32.totalorder %s16, 0
    %p58 = por %p56, %p57
    %p59 = scmp.ne.s32.totalorder %s47, %s48
    %p60 = scmp.eq.s32.totalorder %s17, 1
    %p61 = por %p59, %p60
    %p63 = scmp.ne.s32.totalorder %s48, %s62
    %p64 = scmp.eq.s32.totalorder %s17, 0
    %p65 = por %p63, %p64
    %s66 = ssub.s32 %s11, %s18
    %p67 = scmp.eq.s32.totalorder %s66, 0
    %s69 = sadd.s32 %s68, 1
    %s70 = scalar_select %p67, %s68, %s69
    %p73 = pneg %p67
    %p74 = scmp.eq.s32.totalorder %s11, 1
    %p75 = por %p73, %p74
    %p76 = scmp.ne.s32.totalorder %s68, %s71
    %p77 = scmp.eq.s32.totalorder %s11, 0
    %p78 = por %p76, %p77
    %p79 = scmp.ne.s32.totalorder %s68, %s71
    %p80 = scmp.eq.s32.totalorder %s16, 1
    %p81 = por %p79, %p80
    %p82 = scmp.ne.s32.totalorder %s71, %s72
    %p83 = scmp.eq.s32.totalorder %s16, 0
    %p84 = por %p82, %p83
    %p85 = scmp.ne.s32.totalorder %s71, %s72
    %p86 = scmp.eq.s32.totalorder %s17, 1
    %p87 = por %p85, %p86
    %p89 = scmp.ne.s32.totalorder %s72, %s88
    %p90 = scmp.eq.s32.totalorder %s17, 0
    %p91 = por %p89, %p90
    %s92 = ssub.s32 %s11, %s18
    %p93 = scmp.eq.s32.totalorder %s92, 0
    %s95 = sadd.s32 %s94, 1
    %s96 = scalar_select %p93, %s94, %s95
    %p99 = pneg %p93
    %p100 = scmp.eq.s32.totalorder %s11, 1
    %p101 = por %p99, %p100
    %p102 = scmp.ne.s32.totalorder %s94, %s97
    %p103 = scmp.eq.s32.totalorder %s11, 0
    %p104 = por %p102, %p103
    %p105 = scmp.ne.s32.totalorder %s94, %s97
    %p106 = scmp.eq.s32.totalorder %s16, 1
    %p107 = por %p105, %p106
    %p108 = scmp.ne.s32.totalorder %s97, %s98
    %p109 = scmp.eq.s32.totalorder %s16, 0
    %p110 = por %p108, %p109
    %p111 = scmp.ne.s32.totalorder %s97, %s98
    %p112 = scmp.eq.s32.totalorder %s17, 1
    %p113 = por %p111, %p112
    %p115 = scmp.ne.s32.totalorder %s98, %s114
    %p116 = scmp.eq.s32.totalorder %s17, 0
    %p117 = por %p115, %p116
    %s118 = ssub.s32 %s11, %s18
    %p119 = scmp.eq.s32.totalorder %s118, 0
    %s121 = sadd.s32 %s120, 1
    %s122 = scalar_select %p119, %s120, %s121
    %p125 = pneg %p119
    %p126 = scmp.eq.s32.totalorder %s11, 1
    %p127 = por %p125, %p126
    %p128 = scmp.ne.s32.totalorder %s120, %s123
    %p129 = scmp.eq.s32.totalorder %s11, 0
    %p130 = por %p128, %p129
    %p131 = scmp.ne.s32.totalorder %s120, %s123
    %p132 = scmp.eq.s32.totalorder %s16, 1
    %p133 = por %p131, %p132
    %p134 = scmp.ne.s32.totalorder %s123, %s124
    %p135 = scmp.eq.s32.totalorder %s16, 0
    %p136 = por %p134, %p135
    %p137 = scmp.ne.s32.totalorder %s123, %s124
    %p138 = scmp.eq.s32.totalorder %s17, 1
    %p139 = por %p137, %p138
    %p141 = scmp.ne.s32.totalorder %s124, %s140
    %p142 = scmp.eq.s32.totalorder %s17, 0
    %p143 = por %p141, %p142
    %p144 = scmp.le.s32.totalorder 1, %s11
    %p145 = scmp.lt.s32.totalorder %s11, 3
    %p146 = pnand %p144, %p145
    %p147 = pneg %p146
    // Predicated region
    $region9: #{decoder_forward.5} parent=5 // pred_check
      _
    $region10: #{decoder_forward.5} parent=5 // pred_check_branch
      %149 = sbr.rel (%p146) target = $region12
    $region11: #{decoder_forward.5} parent=5 // pred_region
      %s150 = ssub.s32 %s11, 1
      // Predicated region
      $region13: #{decoder_forward.5} parent=11 // pred_check
        %p151 = pneg %p58
      $region14: #{decoder_forward.5} parent=11 // pred_check_branch
        %153 = sbr.rel (%p151) target = $region16
      $region15: #{decoder_forward.5} parent=11 // pred_region
        _
      $region16: #{decoder_forward.5} parent=11 // pred_fallthru
        _
    $region12: #{decoder_forward.5} parent=5 // pred_fallthru
      _
    %p154 = scmp.lt.s32.totalorder %s11, 2
    // Predicated region
    $region17: #{decoder_forward.5} parent=5 // pred_check
      %p155 = pneg %p154
    $region18: #{decoder_forward.5} parent=5 // pred_check_branch
      %157 = sbr.rel (%p155) target = $region20
    $region19: #{decoder_forward.5} parent=5 // pred_region
      // Predicated region
      $region21: #{decoder_forward.5} parent=19 // pred_check
        %p158 = pneg %p31
      $region22: #{decoder_forward.5} parent=19 // pred_check_branch
        %160 = sbr.rel (%p158) target = $region24
      $region23: #{decoder_forward.5} parent=19 // pred_region
        %p161 = scmp.lt.s32.totalorder %s11, 1
        %s162 = scalar_select %p161, %s11, 1
        %s163 = smul.addr %s162, 72
        %s164 = smul.addr %s163, 4
        %s165 = scalar_lea.vmem %s0, %s164
      $region24: #{decoder_forward.5} parent=19 // pred_fallthru
        _
    $region20: #{decoder_forward.5} parent=5 // pred_fallthru
      _
    %p166 = scmp.le.s32.totalorder 1, %s11
    %p167 = scmp.lt.s32.totalorder %s11, 3
    %p168 = pnand %p166, %p167
    %p169 = pneg %p168
    // Predicated region
    $region25: #{decoder_forward.5} parent=5 // pred_check
      _
    $region26: #{decoder_forward.5} parent=5 // pred_check_branch
      %171 = sbr.rel (%p168) target = $region28
    $region27: #{decoder_forward.5} parent=5 // pred_region
      %s172 = ssub.s32 %s11, 1
      %p173 = scmp.lt.s32.totalorder %s16, 1
      %s174 = scalar_select %p173, %s16, 1
      %s175 = smul.addr %s174, 72
      %s176 = smul.addr %s175, 4
      %s177 = scalar_lea.vmem %s0, %s176
      %p178 = pneg %p37
      %p179 = pneg %p34
      %p180 = pneg %p58
      %p181 = pneg %p55
      %p182 = pneg %p84
      %p183 = pneg %p81
      %p184 = scmp.lt.s32.totalorder %s16, 1
      %s185 = scalar_select %p184, %s16, 1
      %s186 = smul.addr %s185, 7
      %s187 = smul.addr %s186, 4
      %s188 = scalar_lea.vmem %s2, %s187
      %p189 = pneg %p110
      %p190 = pneg %p107
      %p191 = scmp.lt.s32.totalorder %s16, 1
      %s192 = scalar_select %p191, %s16, 1
      %s193 = scalar_lea.vmem %s3, %s192
      %p194 = pneg %p136
      %p195 = pneg %p133
      %p196 = scmp.lt.s32.totalorder %s16, 1
      %s197 = scalar_select %p196, %s16, 1
      %s198 = scalar_lea.vmem %s4, %s197
      %p199 = scmp.lt.s32.totalorder %s16, 1
      %s200 = scalar_select %p199, %s16, 1
      %s201 = smul.addr %s200, 72
      %s202 = smul.addr %s201, 4
      %s203 = scalar_lea.vmem %s0, %s202
      %p204 = scmp.lt.s32.totalorder %s16, 1
      %s205 = scalar_select %p204, %s16, 1
      %s206 = smul.addr %s205, 7
      %s207 = smul.addr %s206, 4
      %s208 = scalar_lea.vmem %s2, %s207
      %p209 = scmp.lt.s32.totalorder %s16, 1
      %s210 = scalar_select %p209, %s16, 1
      %s211 = scalar_lea.vmem %s3, %s210
      %p212 = scmp.lt.s32.totalorder %s16, 1
      %s213 = scalar_select %p212, %s16, 1
      %s214 = scalar_lea.vmem %s4, %s213
      %216 = vst [vmem:[%s211] sm:$0x1] 0.0
      %217 = vst [vmem:[%s214] sm:$0x1] 0.0
      loop: start=0, step=1, limit=7
      $region29: #{decoder_forward.5} parent=27 // loop_pre_header
        _
      $region30: #{decoder_forward.5} parent=27 // loop_header
        %s219 = sphi 0, %s223
        %p220 = scmp.ge.s32.totalorder %s219, 7
      $region31: #{decoder_forward.5} parent=27 // loop_header_branch
        %222 = sbr.rel (%p220) target = $region35
      $region32: #{decoder_forward.5} parent=27 // loop_body
        %s224 = smul.u32 %s219, 8
        %s225 = smul.addr %s224, 4
        %s226 = scalar_lea.vmem %s203, %s225
        %v227 = vld [vmem:[%s226] sm:$0xff]
        %v228 = vld [vmem:[%s226 + $0x8] sm:$0xff]
        %v229 = vld [vmem:[%s1] sm:$0xf]
        %v230 = vld [vmem:[%s1 + $0x4] sm:$0xf]
        %v231 = vld [vmem:[%s1 + $0x8] sm:$0xf]
        %v232 = vld [vmem:[%s1 + $0xc] sm:$0xf]
        %v233 = vld [vmem:[%s1 + $0x10] sm:$0xf]
        %v234 = vld [vmem:[%s1 + $0x14] sm:$0xf]
        %v235 = vld [vmem:[%s1 + $0x18] sm:$0xf]
        %v236 = vld [vmem:[%s1 + $0x1c] sm:$0xf]
        %v237 = vld [vmem:[%s1 + $0x20] sm:$0xf]
        %v238 = vld [vmem:[%s1 + $0x24] sm:$0xf]
        %v239 = vld [vmem:[%s1 + $0x28] sm:$0xf]
        %v240 = vld [vmem:[%s1 + $0x2c] sm:$0xf]
        %v241 = vld [vmem:[%s1 + $0x30] sm:$0xf]
        %v242 = vld [vmem:[%s1 + $0x34] sm:$0xf]
        %v243 = vld [vmem:[%s1 + $0x38] sm:$0xf]
        %v244 = vld [vmem:[%s1 + $0x3c] sm:$0xf]
        %v245 = vld [vmem:[%s1 + $0x40] sm:$0xf]
        %v246 = vld [vmem:[%s1 + $0x44] sm:$0xf]
        %v247 = vld [vmem:[%s1 + $0x48] sm:$0xf]
        %v248 = vld [vmem:[%s1 + $0x4c] sm:$0xf]
        %v249 = vld [vmem:[%s1 + $0x50] sm:$0xf]
        %v250 = vld [vmem:[%s1 + $0x54] sm:$0xf]
        %v251 = vld [vmem:[%s1 + $0x58] sm:$0xf]
        %v252 = vld [vmem:[%s1 + $0x5c] sm:$0xf]
        %v253 = vld [vmem:[%s1 + $0x60] sm:$0xf]
        %v254 = vld [vmem:[%s1 + $0x64] sm:$0xf]
        %v255 = vld [vmem:[%s1 + $0x68] sm:$0xf]
        %v256 = vld [vmem:[%s1 + $0x6c] sm:$0xf]
        %v257 = vld [vmem:[%s1 + $0x70] sm:$0xf]
        %v258 = vld [vmem:[%s1 + $0x74] sm:$0xf]
        %v259 = vld [vmem:[%s1 + $0x78] sm:$0xf]
        %v260 = vld [vmem:[%s1 + $0x7c] sm:$0xf]
        %v261 = vld [vmem:[%s1 + $0x80] sm:$0xf]
        %v262 = vld [vmem:[%s1 + $0x84] sm:$0xf]
        %v263 = vld [vmem:[%s1 + $0x88] sm:$0xf]
        %v264 = vld [vmem:[%s1 + $0x8c] sm:$0xf]
        %v265 = vld [vmem:[%s1 + $0x90] sm:$0xf]
        %v266 = vld [vmem:[%s1 + $0x94] sm:$0xf]
        %v267 = vld [vmem:[%s1 + $0x98] sm:$0xf]
        %v268 = vld [vmem:[%s1 + $0x9c] sm:$0xf]
        %v269 = vld [vmem:[%s1 + $0xa0] sm:$0xf]
        %v270 = vld [vmem:[%s1 + $0xa4] sm:$0xf]
        %v271 = vld [vmem:[%s1 + $0xa8] sm:$0xf]
        %v272 = vld [vmem:[%s1 + $0xac] sm:$0xf]
        %v273 = vld [vmem:[%s1 + $0xb0] sm:$0xf]
        %v274 = vld [vmem:[%s1 + $0xb4] sm:$0xf]
        %v275 = vld [vmem:[%s1 + $0xb8] sm:$0xf]
        %v276 = vld [vmem:[%s1 + $0xbc] sm:$0xf]
        %v277 = vld [vmem:[%s1 + $0xc0] sm:$0xf]
        %v278 = vld [vmem:[%s1 + $0xc4] sm:$0xf]
        %v279 = vld [vmem:[%s1 + $0xc8] sm:$0xf]
        %v280 = vld [vmem:[%s1 + $0xcc] sm:$0xf]
        %v281 = vld [vmem:[%s1 + $0xd0] sm:$0xf]
        %v282 = vld [vmem:[%s1 + $0xd4] sm:$0xf]
        %v283 = vld [vmem:[%s1 + $0xd8] sm:$0xf]
        %v284 = vld [vmem:[%s1 + $0xdc] sm:$0xf]
        %v285 = vld [vmem:[%s1 + $0xe0] sm:$0xf]
        %v286 = vld [vmem:[%s1 + $0xe4] sm:$0xf]
        %v287 = vld [vmem:[%s1 + $0xe8] sm:$0xf]
        %v288 = vld [vmem:[%s1 + $0xec] sm:$0xf]
        %v289 = vld [vmem:[%s1 + $0xf0] sm:$0xf]
        %v290 = vld [vmem:[%s1 + $0xf4] sm:$0xf]
        %v291 = vld [vmem:[%s1 + $0xf8] sm:$0xf]
        %v292 = vld [vmem:[%s1 + $0xfc] sm:$0xf]
        %s293 = scalar_lea.vmem %s1, 256
        %v294 = vld [vmem:[%s293] sm:$0xf]
        %v295 = vld [vmem:[%s293 + $0x4] sm:$0xf]
        %v296 = vld [vmem:[%s293 + $0x8] sm:$0xf]
        %v297 = vld [vmem:[%s293 + $0xc] sm:$0xf]
        %v298 = vld [vmem:[%s293 + $0x10] sm:$0xf]
        %v299 = vld [vmem:[%s293 + $0x14] sm:$0xf]
        %v300 = vld [vmem:[%s293 + $0x18] sm:$0xf]
        %v301 = vld [vmem:[%s293 + $0x1c] sm:$0xf]
        %v302 = vld [vmem:[%s293 + $0x20] sm:$0xf]
        %v303 = vld [vmem:[%s293 + $0x24] sm:$0xf]
        %v304 = vld [vmem:[%s293 + $0x28] sm:$0xf]
        %v305 = vld [vmem:[%s293 + $0x2c] sm:$0xf]
        %v306 = vld [vmem:[%s293 + $0x30] sm:$0xf]
        %v307 = vld [vmem:[%s293 + $0x34] sm:$0xf]
        %v308 = vld [vmem:[%s293 + $0x38] sm:$0xf]
        %v309 = vld [vmem:[%s293 + $0x3c] sm:$0xf]
        %v310 = vld [vmem:[%s293 + $0x40] sm:$0xf]
        %v311 = vld [vmem:[%s293 + $0x44] sm:$0xf]
        %v312 = vld [vmem:[%s293 + $0x48] sm:$0xf]
        %v313 = vld [vmem:[%s293 + $0x4c] sm:$0xf]
        %v314 = vld [vmem:[%s293 + $0x50] sm:$0xf]
        %v315 = vld [vmem:[%s293 + $0x54] sm:$0xf]
        %v316 = vld [vmem:[%s293 + $0x58] sm:$0xf]
        %v317 = vld [vmem:[%s293 + $0x5c] sm:$0xf]
        %v318 = vld [vmem:[%s293 + $0x60] sm:$0xf]
        %v319 = vld [vmem:[%s293 + $0x64] sm:$0xf]
        %v320 = vld [vmem:[%s293 + $0x68] sm:$0xf]
        %v321 = vld [vmem:[%s293 + $0x6c] sm:$0xf]
        %v322 = vld [vmem:[%s293 + $0x70] sm:$0xf]
        %v323 = vld [vmem:[%s293 + $0x74] sm:$0xf]
        %v324 = vld [vmem:[%s293 + $0x78] sm:$0xf]
        %v325 = vld [vmem:[%s293 + $0x7c] sm:$0xf]
        %v326 = vld [vmem:[%s293 + $0x80] sm:$0xf]
        %v327 = vld [vmem:[%s293 + $0x84] sm:$0xf]
        %v328 = vld [vmem:[%s293 + $0x88] sm:$0xf]
        %v329 = vld [vmem:[%s293 + $0x8c] sm:$0xf]
        %v330 = vld [vmem:[%s293 + $0x90] sm:$0xf]
        %v331 = vld [vmem:[%s293 + $0x94] sm:$0xf]
        %v332 = vld [vmem:[%s293 + $0x98] sm:$0xf]
        %v333 = vld [vmem:[%s293 + $0x9c] sm:$0xf]
        %v334 = vld [vmem:[%s293 + $0xa0] sm:$0xf]
        %v335 = vld [vmem:[%s293 + $0xa4] sm:$0xf]
        %v336 = vld [vmem:[%s293 + $0xa8] sm:$0xf]
        %v337 = vld [vmem:[%s293 + $0xac] sm:$0xf]
        %v338 = vld [vmem:[%s293 + $0xb0] sm:$0xf]
        %v339 = vld [vmem:[%s293 + $0xb4] sm:$0xf]
        %v340 = vld [vmem:[%s293 + $0xb8] sm:$0xf]
        %v341 = vld [vmem:[%s293 + $0xbc] sm:$0xf]
        %v342 = vld [vmem:[%s293 + $0xc0] sm:$0xf]
        %v343 = vld [vmem:[%s293 + $0xc4] sm:$0xf]
        %v344 = vld [vmem:[%s293 + $0xc8] sm:$0xf]
        %v345 = vld [vmem:[%s293 + $0xcc] sm:$0xf]
        %v346 = vld [vmem:[%s293 + $0xd0] sm:$0xf]
        %v347 = vld [vmem:[%s293 + $0xd4] sm:$0xf]
        %v348 = vld [vmem:[%s293 + $0xd8] sm:$0xf]
        %v349 = vld [vmem:[%s293 + $0xdc] sm:$0xf]
        %v350 = vld [vmem:[%s293 + $0xe0] sm:$0xf]
        %v351 = vld [vmem:[%s293 + $0xe4] sm:$0xf]
        %v352 = vld [vmem:[%s293 + $0xe8] sm:$0xf]
        %v353 = vld [vmem:[%s293 + $0xec] sm:$0xf]
        %v354 = vld [vmem:[%s293 + $0xf0] sm:$0xf]
        %v355 = vld [vmem:[%s293 + $0xf4] sm:$0xf]
        %v356 = vld [vmem:[%s293 + $0xf8] sm:$0xf]
        %v357 = vld [vmem:[%s293 + $0xfc] sm:$0xf]
        %v360 = vunpack.c.l.b16 %v227
        %v361 = vunpack.c.h.b16 %v227
        %v362 = vunpack.c.l.b16 %v228
        %v363 = vunpack.c.h.b16 %v228
        %v364 = vpack.c.b16 %v360, %v360
        %v365 = vpack.c.b16 %v361, %v361
        %v366 = vpack.c.b16 %v362, %v362
        %v367 = vpack.c.b16 %v363, %v363
        %v369 = vshrl.u32 %v364, 16
        %v371 = vshll.u32 %v364, 16
        %v373 = vrot.slane %v371, 1
        %v374 = vor.u32 %v369, %v373
        %v376 = vshrl.u32 %v365, 16
        %v378 = vshll.u32 %v365, 16
        %v380 = vrot.slane %v378, 1
        %v381 = vor.u32 %v376, %v380
        %v383 = vshrl.u32 %v366, 16
        %v385 = vshll.u32 %v366, 16
        %v387 = vrot.slane %v385, 1
        %v388 = vor.u32 %v383, %v387
        %v390 = vshrl.u32 %v367, 16
        %v392 = vshll.u32 %v367, 16
        %v394 = vrot.slane %v392, 1
        %v395 = vor.u32 %v390, %v394
        %v464 = vunpack.c.l.b16 %v294
        %v465 = vunpack.c.l.b16 %v295
        %v466 = vunpack.c.l.b16 %v296
        %v467 = vunpack.c.l.b16 %v297
        %v468 = vunpack.c.l.b16 %v298
        %v469 = vunpack.c.l.b16 %v299
        %v470 = vunpack.c.l.b16 %v300
        %v471 = vunpack.c.l.b16 %v301
        %v472 = vunpack.c.l.b16 %v302
        %v473 = vunpack.c.l.b16 %v303
        %v474 = vunpack.c.l.b16 %v304
        %v475 = vunpack.c.l.b16 %v305
        %v476 = vunpack.c.l.b16 %v306
        %v477 = vunpack.c.l.b16 %v307
        %v478 = vunpack.c.l.b16 %v308
        %v479 = vunpack.c.l.b16 %v309
        %v480 = vunpack.c.l.b16 %v310
        %v481 = vunpack.c.l.b16 %v311
        %v482 = vunpack.c.l.b16 %v312
        %v483 = vunpack.c.l.b16 %v313
        %v484 = vunpack.c.l.b16 %v314
        %v485 = vunpack.c.l.b16 %v315
        %v486 = vunpack.c.l.b16 %v316
        %v487 = vunpack.c.l.b16 %v317
        %v488 = vunpack.c.l.b16 %v318
        %v489 = vunpack.c.l.b16 %v319
        %v490 = vunpack.c.l.b16 %v320
        %v491 = vunpack.c.l.b16 %v321
        %v492 = vunpack.c.l.b16 %v322
        %v493 = vunpack.c.l.b16 %v323
        %v494 = vunpack.c.l.b16 %v324
        %v495 = vunpack.c.l.b16 %v325
        %v496 = vunpack.c.l.b16 %v326
        %v497 = vunpack.c.l.b16 %v327
        %v498 = vunpack.c.l.b16 %v328
        %v499 = vunpack.c.l.b16 %v329
        %v500 = vunpack.c.l.b16 %v330
        %v501 = vunpack.c.l.b16 %v331
        %v502 = vunpack.c.l.b16 %v332
        %v503 = vunpack.c.l.b16 %v333
        %v504 = vunpack.c.l.b16 %v334
        %v505 = vunpack.c.l.b16 %v335
        %v506 = vunpack.c.l.b16 %v336
        %v507 = vunpack.c.l.b16 %v337
        %v508 = vunpack.c.l.b16 %v338
        %v509 = vunpack.c.l.b16 %v339
        %v510 = vunpack.c.l.b16 %v340
        %v511 = vunpack.c.l.b16 %v341
        %v512 = vunpack.c.l.b16 %v342
        %v513 = vunpack.c.l.b16 %v343
        %v514 = vunpack.c.l.b16 %v344
        %v515 = vunpack.c.l.b16 %v345
        %v516 = vunpack.c.l.b16 %v346
        %v517 = vunpack.c.l.b16 %v347
        %v518 = vunpack.c.l.b16 %v348
        %v519 = vunpack.c.l.b16 %v349
        %v520 = vunpack.c.l.b16 %v350
        %v521 = vunpack.c.l.b16 %v351
        %v522 = vunpack.c.l.b16 %v352
        %v523 = vunpack.c.l.b16 %v353
        %v524 = vunpack.c.l.b16 %v354
        %v525 = vunpack.c.l.b16 %v355
        %v526 = vunpack.c.l.b16 %v356
        %v527 = vunpack.c.l.b16 %v357
        %v528 = vpack.c.b16 %v465, %v464
        %v529 = vpack.c.b16 %v467, %v466
        %v530 = vpack.c.b16 %v469, %v468
        %v531 = vpack.c.b16 %v471, %v470
        %v532 = vpack.c.b16 %v473, %v472
        %v533 = vpack.c.b16 %v475, %v474
        %v534 = vpack.c.b16 %v477, %v476
        %v535 = vpack.c.b16 %v479, %v478
        %v536 = vpack.c.b16 %v481, %v480
        %v537 = vpack.c.b16 %v483, %v482
        %v538 = vpack.c.b16 %v485, %v484
        %v539 = vpack.c.b16 %v487, %v486
        %v540 = vpack.c.b16 %v489, %v488
        %v541 = vpack.c.b16 %v491, %v490
        %v542 = vpack.c.b16 %v493, %v492
        %v543 = vpack.c.b16 %v495, %v494
        %v544 = vpack.c.b16 %v497, %v496
        %v545 = vpack.c.b16 %v499, %v498
        %v546 = vpack.c.b16 %v501, %v500
        %v547 = vpack.c.b16 %v503, %v502
        %v548 = vpack.c.b16 %v505, %v504
        %v549 = vpack.c.b16 %v507, %v506
        %v550 = vpack.c.b16 %v509, %v508
        %v551 = vpack.c.b16 %v511, %v510
        %v552 = vpack.c.b16 %v513, %v512
        %v553 = vpack.c.b16 %v515, %v514
        %v554 = vpack.c.b16 %v517, %v516
        %v555 = vpack.c.b16 %v519, %v518
        %v556 = vpack.c.b16 %v521, %v520
        %v557 = vpack.c.b16 %v523, %v522
        %v558 = vpack.c.b16 %v525, %v524
        %v559 = vpack.c.b16 %v527, %v526
        %592 = vmatprep.subr.bf16.mxu0 0
        %593 = vmatpush1.bf16.msra.mxu0 %v528
        %594 = vmatprep.subr.bf16.mxu0 0
        %595 = vmatpush1.bf16.msra.mxu0 %v529
        %596 = vmatprep.subr.bf16.mxu0 0
        %597 = vmatpush1.bf16.msra.mxu0 %v530
        %598 = vmatprep.subr.bf16.mxu0 0
        %599 = vmatpush1.bf16.msra.mxu0 %v531
        %600 = vmatprep.subr.bf16.mxu0 0
        %601 = vmatpush1.bf16.msra.mxu0 %v532
        %602 = vmatprep.subr.bf16.mxu0 0
        %603 = vmatpush1.bf16.msra.mxu0 %v533
        %604 = vmatprep.subr.bf16.mxu0 0
        %605 = vmatpush1.bf16.msra.mxu0 %v534
        %606 = vmatprep.subr.bf16.mxu0 0
        %607 = vmatpush1.bf16.msra.mxu0 %v535
        %608 = vmatprep.subr.bf16.mxu0 0
        %609 = vmatpush1.bf16.msra.mxu0 %v536
        %610 = vmatprep.subr.bf16.mxu0 0
        %611 = vmatpush1.bf16.msra.mxu0 %v537
        %612 = vmatprep.subr.bf16.mxu0 0
        %613 = vmatpush1.bf16.msra.mxu0 %v538
        %614 = vmatprep.subr.bf16.mxu0 0
        %615 = vmatpush1.bf16.msra.mxu0 %v539
        %616 = vmatprep.subr.bf16.mxu0 0
        %617 = vmatpush1.bf16.msra.mxu0 %v540
        %618 = vmatprep.subr.bf16.mxu0 0
        %619 = vmatpush1.bf16.msra.mxu0 %v541
        %620 = vmatprep.subr.bf16.mxu0 0
        %621 = vmatpush1.bf16.msra.mxu0 %v542
        %622 = vmatprep.subr.bf16.mxu0 0
        %623 = vmatpush1.bf16.msra.mxu0 %v543
        %624 = vmatprep.mubr.bf16.mxu0 %v381
        %625 = vmatmul.mubr.bf16.gmra.mrb[0].mxu0 %v374
        %v626 = vpop.f32.mrb[0].mxu0
        %v627 = vadd.f32 0.0, %v626
        %v628 = vpop.f32.mrb[0].mxu0
        %v629 = vpop.f32.mrb[0].mxu0
        %v630 = vpop.f32.mrb[0].mxu0
        %631 = vdwg.mxu0
        %632 = vmatprep.subr.bf16.mxu0 0
        %633 = vmatpush1.bf16.msra.mxu0 %v544
        %634 = vmatprep.subr.bf16.mxu0 0
        %635 = vmatpush1.bf16.msra.mxu0 %v545
        %636 = vmatprep.subr.bf16.mxu0 0
        %637 = vmatpush1.bf16.msra.mxu0 %v546
        %638 = vmatprep.subr.bf16.mxu0 0
        %639 = vmatpush1.bf16.msra.mxu0 %v547
        %640 = vmatprep.subr.bf16.mxu0 0
        %641 = vmatpush1.bf16.msra.mxu0 %v548
        %642 = vmatprep.subr.bf16.mxu0 0
        %643 = vmatpush1.bf16.msra.mxu0 %v549
        %644 = vmatprep.subr.bf16.mxu0 0
        %645 = vmatpush1.bf16.msra.mxu0 %v550
        %646 = vmatprep.subr.bf16.mxu0 0
        %647 = vmatpush1.bf16.msra.mxu0 %v551
        %648 = vmatprep.subr.bf16.mxu0 0
        %649 = vmatpush1.bf16.msra.mxu0 %v552
        %650 = vmatprep.subr.bf16.mxu0 0
        %651 = vmatpush1.bf16.msra.mxu0 %v553
        %652 = vmatprep.subr.bf16.mxu0 0
        %653 = vmatpush1.bf16.msra.mxu0 %v554
        %654 = vmatprep.subr.bf16.mxu0 0
        %655 = vmatpush1.bf16.msra.mxu0 %v555
        %656 = vmatprep.subr.bf16.mxu0 0
        %657 = vmatpush1.bf16.msra.mxu0 %v556
        %658 = vmatprep.subr.bf16.mxu0 0
        %659 = vmatpush1.bf16.msra.mxu0 %v557
        %660 = vmatprep.subr.bf16.mxu0 0
        %661 = vmatpush1.bf16.msra.mxu0 %v558
        %662 = vmatprep.subr.bf16.mxu0 0
        %663 = vmatpush1.bf16.msra.mxu0 %v559
        %664 = vmatprep.mubr.bf16.mxu0 %v395
        %665 = vmatmul.mubr.bf16.gmra.mrb[0].mxu0 %v388
        %v666 = vpop.f32.mrb[0].mxu0
        %v667 = vadd.f32 %v627, %v666
        %v668 = vpop.f32.mrb[0].mxu0
        %v669 = vpop.f32.mrb[0].mxu0
        %v670 = vpop.f32.mrb[0].mxu0
        %671 = vdwg.mxu0
        %v740 = vunpack.c.l.b16 %v229
        %v741 = vunpack.c.l.b16 %v230
        %v742 = vunpack.c.l.b16 %v231
        %v743 = vunpack.c.l.b16 %v232
        %v744 = vunpack.c.l.b16 %v233
        %v745 = vunpack.c.l.b16 %v234
        %v746 = vunpack.c.l.b16 %v235
        %v747 = vunpack.c.l.b16 %v236
        %v748 = vunpack.c.l.b16 %v237
        %v749 = vunpack.c.l.b16 %v238
        %v750 = vunpack.c.l.b16 %v239
        %v751 = vunpack.c.l.b16 %v240
        %v752 = vunpack.c.l.b16 %v241
        %v753 = vunpack.c.l.b16 %v242
        %v754 = vunpack.c.l.b16 %v243
        %v755 = vunpack.c.l.b16 %v244
        %v756 = vunpack.c.l.b16 %v245
        %v757 = vunpack.c.l.b16 %v246
        %v758 = vunpack.c.l.b16 %v247
        %v759 = vunpack.c.l.b16 %v248
        %v760 = vunpack.c.l.b16 %v249
        %v761 = vunpack.c.l.b16 %v250
        %v762 = vunpack.c.l.b16 %v251
        %v763 = vunpack.c.l.b16 %v252
        %v764 = vunpack.c.l.b16 %v253
        %v765 = vunpack.c.l.b16 %v254
        %v766 = vunpack.c.l.b16 %v255
        %v767 = vunpack.c.l.b16 %v256
        %v768 = vunpack.c.l.b16 %v257
        %v769 = vunpack.c.l.b16 %v258
        %v770 = vunpack.c.l.b16 %v259
        %v771 = vunpack.c.l.b16 %v260
        %v772 = vunpack.c.l.b16 %v261
        %v773 = vunpack.c.l.b16 %v262
        %v774 = vunpack.c.l.b16 %v263
        %v775 = vunpack.c.l.b16 %v264
        %v776 = vunpack.c.l.b16 %v265
        %v777 = vunpack.c.l.b16 %v266
        %v778 = vunpack.c.l.b16 %v267
        %v779 = vunpack.c.l.b16 %v268
        %v780 = vunpack.c.l.b16 %v269
        %v781 = vunpack.c.l.b16 %v270
        %v782 = vunpack.c.l.b16 %v271
        %v783 = vunpack.c.l.b16 %v272
        %v784 = vunpack.c.l.b16 %v273
        %v785 = vunpack.c.l.b16 %v274
        %v786 = vunpack.c.l.b16 %v275
        %v787 = vunpack.c.l.b16 %v276
        %v788 = vunpack.c.l.b16 %v277
        %v789 = vunpack.c.l.b16 %v278
        %v790 = vunpack.c.l.b16 %v279
        %v791 = vunpack.c.l.b16 %v280
        %v792 = vunpack.c.l.b16 %v281
        %v793 = vunpack.c.l.b16 %v282
        %v794 = vunpack.c.l.b16 %v283
        %v795 = vunpack.c.l.b16 %v284
        %v796 = vunpack.c.l.b16 %v285
        %v797 = vunpack.c.l.b16 %v286
        %v798 = vunpack.c.l.b16 %v287
        %v799 = vunpack.c.l.b16 %v288
        %v800 = vunpack.c.l.b16 %v289
        %v801 = vunpack.c.l.b16 %v290
        %v802 = vunpack.c.l.b16 %v291
        %v803 = vunpack.c.l.b16 %v292
        %v804 = vpack.c.b16 %v741, %v740
        %v805 = vpack.c.b16 %v743, %v742
        %v806 = vpack.c.b16 %v745, %v744
        %v807 = vpack.c.b16 %v747, %v746
        %v808 = vpack.c.b16 %v749, %v748
        %v809 = vpack.c.b16 %v751, %v750
        %v810 = vpack.c.b16 %v753, %v752
        %v811 = vpack.c.b16 %v755, %v754
        %v812 = vpack.c.b16 %v757, %v756
        %v813 = vpack.c.b16 %v759, %v758
        %v814 = vpack.c.b16 %v761, %v760
        %v815 = vpack.c.b16 %v763, %v762
        %v816 = vpack.c.b16 %v765, %v764
        %v817 = vpack.c.b16 %v767, %v766
        %v818 = vpack.c.b16 %v769, %v768
        %v819 = vpack.c.b16 %v771, %v770
        %v820 = vpack.c.b16 %v773, %v772
        %v821 = vpack.c.b16 %v775, %v774
        %v822 = vpack.c.b16 %v777, %v776
        %v823 = vpack.c.b16 %v779, %v778
        %v824 = vpack.c.b16 %v781, %v780
        %v825 = vpack.c.b16 %v783, %v782
        %v826 = vpack.c.b16 %v785, %v784
        %v827 = vpack.c.b16 %v787, %v786
        %v828 = vpack.c.b16 %v789, %v788
        %v829 = vpack.c.b16 %v791, %v790
        %v830 = vpack.c.b16 %v793, %v792
        %v831 = vpack.c.b16 %v795, %v794
        %v832 = vpack.c.b16 %v797, %v796
        %v833 = vpack.c.b16 %v799, %v798
        %v834 = vpack.c.b16 %v801, %v800
        %v835 = vpack.c.b16 %v803, %v802
        %868 = vmatprep.subr.bf16.mxu0 0
        %869 = vmatpush1.bf16.msra.mxu0 %v804
        %870 = vmatprep.subr.bf16.mxu0 0
        %871 = vmatpush1.bf16.msra.mxu0 %v805
        %872 = vmatprep.subr.bf16.mxu0 0
        %873 = vmatpush1.bf16.msra.mxu0 %v806
        %874 = vmatprep.subr.bf16.mxu0 0
        %875 = vmatpush1.bf16.msra.mxu0 %v807
        %876 = vmatprep.subr.bf16.mxu0 0
        %877 = vmatpush1.bf16.msra.mxu0 %v808
        %878 = vmatprep.subr.bf16.mxu0 0
        %879 = vmatpush1.bf16.msra.mxu0 %v809
        %880 = vmatprep.subr.bf16.mxu0 0
        %881 = vmatpush1.bf16.msra.mxu0 %v810
        %882 = vmatprep.subr.bf16.mxu0 0
        %883 = vmatpush1.bf16.msra.mxu0 %v811
        %884 = vmatprep.subr.bf16.mxu0 0
        %885 = vmatpush1.bf16.msra.mxu0 %v812
        %886 = vmatprep.subr.bf16.mxu0 0
        %887 = vmatpush1.bf16.msra.mxu0 %v813
        %888 = vmatprep.subr.bf16.mxu0 0
        %889 = vmatpush1.bf16.msra.mxu0 %v814
        %890 = vmatprep.subr.bf16.mxu0 0
        %891 = vmatpush1.bf16.msra.mxu0 %v815
        %892 = vmatprep.subr.bf16.mxu0 0
        %893 = vmatpush1.bf16.msra.mxu0 %v816
        %894 = vmatprep.subr.bf16.mxu0 0
        %895 = vmatpush1.bf16.msra.mxu0 %v817
        %896 = vmatprep.subr.bf16.mxu0 0
        %897 = vmatpush1.bf16.msra.mxu0 %v818
        %898 = vmatprep.subr.bf16.mxu0 0
        %899 = vmatpush1.bf16.msra.mxu0 %v819
        %900 = vmatprep.mubr.bf16.mxu0 %v365
        %901 = vmatmul.mubr.bf16.gmra.mrb[0].mxu0 %v364
        %v902 = vpop.f32.mrb[0].mxu0
        %v903 = vadd.f32 %v667, %v902
        %v904 = vpop.f32.mrb[0].mxu0
        %v905 = vpop.f32.mrb[0].mxu0
        %v906 = vpop.f32.mrb[0].mxu0
        %907 = vdwg.mxu0
        %908 = vmatprep.subr.bf16.mxu0 0
        %909 = vmatpush1.bf16.msra.mxu0 %v820
        %910 = vmatprep.subr.bf16.mxu0 0
        %911 = vmatpush1.bf16.msra.mxu0 %v821
        %912 = vmatprep.subr.bf16.mxu0 0
        %913 = vmatpush1.bf16.msra.mxu0 %v822
        %914 = vmatprep.subr.bf16.mxu0 0
        %915 = vmatpush1.bf16.msra.mxu0 %v823
        %916 = vmatprep.subr.bf16.mxu0 0
        %917 = vmatpush1.bf16.msra.mxu0 %v824
        %918 = vmatprep.subr.bf16.mxu0 0
        %919 = vmatpush1.bf16.msra.mxu0 %v825
        %920 = vmatprep.subr.bf16.mxu0 0
        %921 = vmatpush1.bf16.msra.mxu0 %v826
        %922 = vmatprep.subr.bf16.mxu0 0
        %923 = vmatpush1.bf16.msra.mxu0 %v827
        %924 = vmatprep.subr.bf16.mxu0 0
        %925 = vmatpush1.bf16.msra.mxu0 %v828
        %926 = vmatprep.subr.bf16.mxu0 0
        %927 = vmatpush1.bf16.msra.mxu0 %v829
        %928 = vmatprep.subr.bf16.mxu0 0
        %929 = vmatpush1.bf16.msra.mxu0 %v830
        %930 = vmatprep.subr.bf16.mxu0 0
        %931 = vmatpush1.bf16.msra.mxu0 %v831
        %932 = vmatprep.subr.bf16.mxu0 0
        %933 = vmatpush1.bf16.msra.mxu0 %v832
        %934 = vmatprep.subr.bf16.mxu0 0
        %935 = vmatpush1.bf16.msra.mxu0 %v833
        %936 = vmatprep.subr.bf16.mxu0 0
        %937 = vmatpush1.bf16.msra.mxu0 %v834
        %938 = vmatprep.subr.bf16.mxu0 0
        %939 = vmatpush1.bf16.msra.mxu0 %v835
        %940 = vmatprep.mubr.bf16.mxu0 %v367
        %941 = vmatmul.mubr.bf16.gmra.mrb[0].mxu0 %v366
        %v942 = vpop.f32.mrb[0].mxu0
        %v943 = vadd.f32 %v903, %v942
        %v944 = vpop.f32.mrb[0].mxu0
        %v945 = vpop.f32.mrb[0].mxu0
        %v946 = vpop.f32.mrb[0].mxu0
        %947 = vdwg.mxu0
        %v948 = vld [vmem:[%s226] sm:$0xee]
        %v949 = vld [vmem:[%s226 + $0x8] sm:$0xee]
        %v950 = vld [vmem:[%s226 + $0x10] sm:$0x11]
        %v951 = vld [vmem:[%s226 + $0x18] sm:$0x11]
        %s952 = scalar_lea.vmem %s1, 512
        %v953 = vld [vmem:[%s952] sm:$0xf]
        %v954 = vld [vmem:[%s952 + $0x4] sm:$0xf]
        %v955 = vld [vmem:[%s952 + $0x8] sm:$0xf]
        %v956 = vld [vmem:[%s952 + $0xc] sm:$0xf]
        %v957 = vld [vmem:[%s952 + $0x10] sm:$0xf]
        %v958 = vld [vmem:[%s952 + $0x14] sm:$0xf]
        %v959 = vld [vmem:[%s952 + $0x18] sm:$0xf]
        %v960 = vld [vmem:[%s952 + $0x1c] sm:$0xf]
        %v961 = vld [vmem:[%s952 + $0x20] sm:$0xf]
        %v962 = vld [vmem:[%s952 + $0x24] sm:$0xf]
        %v963 = vld [vmem:[%s952 + $0x28] sm:$0xf]
        %v964 = vld [vmem:[%s952 + $0x2c] sm:$0xf]
        %v965 = vld [vmem:[%s952 + $0x30] sm:$0xf]
        %v966 = vld [vmem:[%s952 + $0x34] sm:$0xf]
        %v967 = vld [vmem:[%s952 + $0x38] sm:$0xf]
        %v968 = vld [vmem:[%s952 + $0x3c] sm:$0xf]
        %v969 = vld [vmem:[%s952 + $0x40] sm:$0xf]
        %v970 = vld [vmem:[%s952 + $0x44] sm:$0xf]
        %v971 = vld [vmem:[%s952 + $0x48] sm:$0xf]
        %v972 = vld [vmem:[%s952 + $0x4c] sm:$0xf]
        %v973 = vld [vmem:[%s952 + $0x50] sm:$0xf]
        %v974 = vld [vmem:[%s952 + $0x54] sm:$0xf]
        %v975 = vld [vmem:[%s952 + $0x58] sm:$0xf]
        %v976 = vld [vmem:[%s952 + $0x5c] sm:$0xf]
        %v977 = vld [vmem:[%s952 + $0x60] sm:$0xf]
        %v978 = vld [vmem:[%s952 + $0x64] sm:$0xf]
        %v979 = vld [vmem:[%s952 + $0x68] sm:$0xf]
        %v980 = vld [vmem:[%s952 + $0x6c] sm:$0xf]
        %v981 = vld [vmem:[%s952 + $0x70] sm:$0xf]
        %v982 = vld [vmem:[%s952 + $0x74] sm:$0xf]
        %v983 = vld [vmem:[%s952 + $0x78] sm:$0xf]
        %v984 = vld [vmem:[%s952 + $0x7c] sm:$0xf]
        %v985 = vld [vmem:[%s952 + $0x80] sm:$0xf]
        %v986 = vld [vmem:[%s952 + $0x84] sm:$0xf]
        %v987 = vld [vmem:[%s952 + $0x88] sm:$0xf]
        %v988 = vld [vmem:[%s952 + $0x8c] sm:$0xf]
        %v989 = vld [vmem:[%s952 + $0x90] sm:$0xf]
        %v990 = vld [vmem:[%s952 + $0x94] sm:$0xf]
        %v991 = vld [vmem:[%s952 + $0x98] sm:$0xf]
        %v992 = vld [vmem:[%s952 + $0x9c] sm:$0xf]
        %v993 = vld [vmem:[%s952 + $0xa0] sm:$0xf]
        %v994 = vld [vmem:[%s952 + $0xa4] sm:$0xf]
        %v995 = vld [vmem:[%s952 + $0xa8] sm:$0xf]
        %v996 = vld [vmem:[%s952 + $0xac] sm:$0xf]
        %v997 = vld [vmem:[%s952 + $0xb0] sm:$0xf]
        %v998 = vld [vmem:[%s952 + $0xb4] sm:$0xf]
        %v999 = vld [vmem:[%s952 + $0xb8] sm:$0xf]
        %v1000 = vld [vmem:[%s952 + $0xbc] sm:$0xf]
        %v1001 = vld [vmem:[%s952 + $0xc0] sm:$0xf]
        %v1002 = vld [vmem:[%s952 + $0xc4] sm:$0xf]
        %v1003 = vld [vmem:[%s952 + $0xc8] sm:$0xf]
        %v1004 = vld [vmem:[%s952 + $0xcc] sm:$0xf]
        %v1005 = vld [vmem:[%s952 + $0xd0] sm:$0xf]
        %v1006 = vld [vmem:[%s952 + $0xd4] sm:$0xf]
        %v1007 = vld [vmem:[%s952 + $0xd8] sm:$0xf]
        %v1008 = vld [vmem:[%s952 + $0xdc] sm:$0xf]
        %v1009 = vld [vmem:[%s952 + $0xe0] sm:$0xf]
        %v1010 = vld [vmem:[%s952 + $0xe4] sm:$0xf]
        %v1011 = vld [vmem:[%s952 + $0xe8] sm:$0xf]
        %v1012 = vld [vmem:[%s952 + $0xec] sm:$0xf]
        %v1013 = vld [vmem:[%s952 + $0xf0] sm:$0xf]
        %v1014 = vld [vmem:[%s952 + $0xf4] sm:$0xf]
        %v1015 = vld [vmem:[%s952 + $0xf8] sm:$0xf]
        %v1016 = vld [vmem:[%s952 + $0xfc] sm:$0xf]
        %v1021 = vunpack.c.l.b16 %v948
        %v1022 = vunpack.c.h.b16 %v948
        %v1023 = vunpack.c.l.b16 %v949
        %v1024 = vunpack.c.h.b16 %v949
        %v1025 = vunpack.c.l.b16 %v950
        %v1026 = vunpack.c.h.b16 %v950
        %v1027 = vunpack.c.l.b16 %v951
        %v1028 = vunpack.c.h.b16 %v951
        %v1029 = vpack.c.b16 %v1025, %v1021
        %v1030 = vpack.c.b16 %v1026, %v1022
        %v1031 = vpack.c.b16 %v1027, %v1023
        %v1032 = vpack.c.b16 %v1028, %v1024
        %v1033 = vrot.slane %v1029, 1
        %v1034 = vrot.slane %v1030, 1
        %v1035 = vrot.slane %v1031, 1
        %v1036 = vrot.slane %v1032, 1
        %v1105 = vunpack.c.l.b16 %v953
        %v1106 = vunpack.c.l.b16 %v954
        %v1107 = vunpack.c.l.b16 %v955
        %v1108 = vunpack.c.l.b16 %v956
        %v1109 = vunpack.c.l.b16 %v957
        %v1110 = vunpack.c.l.b16 %v958
        %v1111 = vunpack.c.l.b16 %v959
        %v1112 = vunpack.c.l.b16 %v960
        %v1113 = vunpack.c.l.b16 %v961
        %v1114 = vunpack.c.l.b16 %v962
        %v1115 = vunpack.c.l.b16 %v963
        %v1116 = vunpack.c.l.b16 %v964
        %v1117 = vunpack.c.l.b16 %v965
        %v1118 = vunpack.c.l.b16 %v966
        %v1119 = vunpack.c.l.b16 %v967
        %v1120 = vunpack.c.l.b16 %v968
        %v1121 = vunpack.c.l.b16 %v969
        %v1122 = vunpack.c.l.b16 %v970
        %v1123 = vunpack.c.l.b16 %v971
        %v1124 = vunpack.c.l.b16 %v972
        %v1125 = vunpack.c.l.b16 %v973
        %v1126 = vunpack.c.l.b16 %v974
        %v1127 = vunpack.c.l.b16 %v975
        %v1128 = vunpack.c.l.b16 %v976
        %v1129 = vunpack.c.l.b16 %v977
        %v1130 = vunpack.c.l.b16 %v978
        %v1131 = vunpack.c.l.b16 %v979
        %v1132 = vunpack.c.l.b16 %v980
        %v1133 = vunpack.c.l.b16 %v981
        %v1134 = vunpack.c.l.b16 %v982
        %v1135 = vunpack.c.l.b16 %v983
        %v1136 = vunpack.c.l.b16 %v984
        %v1137 = vunpack.c.l.b16 %v985
        %v1138 = vunpack.c.l.b16 %v986
        %v1139 = vunpack.c.l.b16 %v987
        %v1140 = vunpack.c.l.b16 %v988
        %v1141 = vunpack.c.l.b16 %v989
        %v1142 = vunpack.c.l.b16 %v990
        %v1143 = vunpack.c.l.b16 %v991
        %v1144 = vunpack.c.l.b16 %v992
        %v1145 = vunpack.c.l.b16 %v993
        %v1146 = vunpack.c.l.b16 %v994
        %v1147 = vunpack.c.l.b16 %v995
        %v1148 = vunpack.c.l.b16 %v996
        %v1149 = vunpack.c.l.b16 %v997
        %v1150 = vunpack.c.l.b16 %v998
        %v1151 = vunpack.c.l.b16 %v999
        %v1152 = vunpack.c.l.b16 %v1000
        %v1153 = vunpack.c.l.b16 %v1001
        %v1154 = vunpack.c.l.b16 %v1002
        %v1155 = vunpack.c.l.b16 %v1003
        %v1156 = vunpack.c.l.b16 %v1004
        %v1157 = vunpack.c.l.b16 %v1005
        %v1158 = vunpack.c.l.b16 %v1006
        %v1159 = vunpack.c.l.b16 %v1007
        %v1160 = vunpack.c.l.b16 %v1008
        %v1161 = vunpack.c.l.b16 %v1009
        %v1162 = vunpack.c.l.b16 %v1010
        %v1163 = vunpack.c.l.b16 %v1011
        %v1164 = vunpack.c.l.b16 %v1012
        %v1165 = vunpack.c.l.b16 %v1013
        %v1166 = vunpack.c.l.b16 %v1014
        %v1167 = vunpack.c.l.b16 %v1015
        %v1168 = vunpack.c.l.b16 %v1016
        %v1169 = vpack.c.b16 %v1106, %v1105
        %v1170 = vpack.c.b16 %v1108, %v1107
        %v1171 = vpack.c.b16 %v1110, %v1109
        %v1172 = vpack.c.b16 %v1112, %v1111
        %v1173 = vpack.c.b16 %v1114, %v1113
        %v1174 = vpack.c.b16 %v1116, %v1115
        %v1175 = vpack.c.b16 %v1118, %v1117
        %v1176 = vpack.c.b16 %v1120, %v1119
        %v1177 = vpack.c.b16 %v1122, %v1121
        %v1178 = vpack.c.b16 %v1124, %v1123
        %v1179 = vpack.c.b16 %v1126, %v1125
        %v1180 = vpack.c.b16 %v1128, %v1127
        %v1181 = vpack.c.b16 %v1130, %v1129
        %v1182 = vpack.c.b16 %v1132, %v1131
        %v1183 = vpack.c.b16 %v1134, %v1133
        %v1184 = vpack.c.b16 %v1136, %v1135
        %v1185 = vpack.c.b16 %v1138, %v1137
        %v1186 = vpack.c.b16 %v1140, %v1139
        %v1187 = vpack.c.b16 %v1142, %v1141
        %v1188 = vpack.c.b16 %v1144, %v1143
        %v1189 = vpack.c.b16 %v1146, %v1145
        %v1190 = vpack.c.b16 %v1148, %v1147
        %v1191 = vpack.c.b16 %v1150, %v1149
        %v1192 = vpack.c.b16 %v1152, %v1151
        %v1193 = vpack.c.b16 %v1154, %v1153
        %v1194 = vpack.c.b16 %v1156, %v1155
        %v1195 = vpack.c.b16 %v1158, %v1157
        %v1196 = vpack.c.b16 %v1160, %v1159
        %v1197 = vpack.c.b16 %v1162, %v1161
        %v1198 = vpack.c.b16 %v1164, %v1163
        %v1199 = vpack.c.b16 %v1166, %v1165
        %v1200 = vpack.c.b16 %v1168, %v1167
        %1233 = vmatprep.subr.bf16.mxu0 0
        %1234 = vmatpush1.bf16.msra.mxu0 %v1169
        %1235 = vmatprep.subr.bf16.mxu0 0
        %1236 = vmatpush1.bf16.msra.mxu0 %v1170
        %1237 = vmatprep.subr.bf16.mxu0 0
        %1238 = vmatpush1.bf16.msra.mxu0 %v1171
        %1239 = vmatprep.subr.bf16.mxu0 0
        %1240 = vmatpush1.bf16.msra.mxu0 %v1172
        %1241 = vmatprep.subr.bf16.mxu0 0
        %1242 = vmatpush1.bf16.msra.mxu0 %v1173
        %1243 = vmatprep.subr.bf16.mxu0 0
        %1244 = vmatpush1.bf16.msra.mxu0 %v1174
        %1245 = vmatprep.subr.bf16.mxu0 0
        %1246 = vmatpush1.bf16.msra.mxu0 %v1175
        %1247 = vmatprep.subr.bf16.mxu0 0
        %1248 = vmatpush1.bf16.msra.mxu0 %v1176
        %1249 = vmatprep.subr.bf16.mxu0 0
        %1250 = vmatpush1.bf16.msra.mxu0 %v1177
        %1251 = vmatprep.subr.bf16.mxu0 0
        %1252 = vmatpush1.bf16.msra.mxu0 %v1178
        %1253 = vmatprep.subr.bf16.mxu0 0
        %1254 = vmatpush1.bf16.msra.mxu0 %v1179
        %1255 = vmatprep.subr.bf16.mxu0 0
        %1256 = vmatpush1.bf16.msra.mxu0 %v1180
        %1257 = vmatprep.subr.bf16.mxu0 0
        %1258 = vmatpush1.bf16.msra.mxu0 %v1181
        %1259 = vmatprep.subr.bf16.mxu0 0
        %1260 = vmatpush1.bf16.msra.mxu0 %v1182
        %1261 = vmatprep.subr.bf16.mxu0 0
        %1262 = vmatpush1.bf16.msra.mxu0 %v1183
        %1263 = vmatprep.subr.bf16.mxu0 0
        %1264 = vmatpush1.bf16.msra.mxu0 %v1184
        %1265 = vmatprep.mubr.bf16.mxu0 %v1034
        %1266 = vmatmul.mubr.bf16.gmra.mrb[0].mxu0 %v1033
        %v1267 = vpop.f32.mrb[0].mxu0
        %v1268 = vadd.f32 0.0, %v1267
        %v1269 = vpop.f32.mrb[0].mxu0
        %v1270 = vpop.f32.mrb[0].mxu0
        %v1271 = vpop.f32.mrb[0].mxu0
        %1272 = vdwg.mxu0
        %1273 = vmatprep.subr.bf16.mxu0 0
        %1274 = vmatpush1.bf16.msra.mxu0 %v1185
        %1275 = vmatprep.subr.bf16.mxu0 0
        %1276 = vmatpush1.bf16.msra.mxu0 %v1186
        %1277 = vmatprep.subr.bf16.mxu0 0
        %1278 = vmatpush1.bf16.msra.mxu0 %v1187
        %1279 = vmatprep.subr.bf16.mxu0 0
        %1280 = vmatpush1.bf16.msra.mxu0 %v1188
        %1281 = vmatprep.subr.bf16.mxu0 0
        %1282 = vmatpush1.bf16.msra.mxu0 %v1189
        %1283 = vmatprep.subr.bf16.mxu0 0
        %1284 = vmatpush1.bf16.msra.mxu0 %v1190
        %1285 = vmatprep.subr.bf16.mxu0 0
        %1286 = vmatpush1.bf16.msra.mxu0 %v1191
        %1287 = vmatprep.subr.bf16.mxu0 0
        %1288 = vmatpush1.bf16.msra.mxu0 %v1192
        %1289 = vmatprep.subr.bf16.mxu0 0
        %1290 = vmatpush1.bf16.msra.mxu0 %v1193
        %1291 = vmatprep.subr.bf16.mxu0 0
        %1292 = vmatpush1.bf16.msra.mxu0 %v1194
        %1293 = vmatprep.subr.bf16.mxu0 0
        %1294 = vmatpush1.bf16.msra.mxu0 %v1195
        %1295 = vmatprep.subr.bf16.mxu0 0
        %1296 = vmatpush1.bf16.msra.mxu0 %v1196
        %1297 = vmatprep.subr.bf16.mxu0 0
        %1298 = vmatpush1.bf16.msra.mxu0 %v1197
        %1299 = vmatprep.subr.bf16.mxu0 0
        %1300 = vmatpush1.bf16.msra.mxu0 %v1198
        %1301 = vmatprep.subr.bf16.mxu0 0
        %1302 = vmatpush1.bf16.msra.mxu0 %v1199
        %1303 = vmatprep.subr.bf16.mxu0 0
        %1304 = vmatpush1.bf16.msra.mxu0 %v1200
        %1305 = vmatprep.mubr.bf16.mxu0 %v1036
        %1306 = vmatmul.mubr.bf16.gmra.mrb[0].mxu0 %v1035
        %v1307 = vpop.f32.mrb[0].mxu0
        %v1308 = vadd.f32 %v1268, %v1307
        %v1309 = vpop.f32.mrb[0].mxu0
        %v1310 = vpop.f32.mrb[0].mxu0
        %v1311 = vpop.f32.mrb[0].mxu0
        %1312 = vdwg.mxu0
        %v1313 = vadd.f32 %v943, %v1308
        %s1314 = sadd.s32 %s219, 1
        %s1315 = smul.u32 %s1314, 8
        %s1316 = smul.addr %s1315, 4
        %s1317 = scalar_lea.vmem %s203, %s1316
        %v1318 = vld [vmem:[%s1317] sm:$0xff]
        %v1319 = vld [vmem:[%s1317 + $0x8] sm:$0xff]
        %s1320 = scalar_lea.vmem %s1, 768
        %v1321 = vld [vmem:[%s1320] sm:$0xf]
        %v1322 = vld [vmem:[%s1320 + $0x4] sm:$0xf]
        %v1323 = vld [vmem:[%s1320 + $0x8] sm:$0xf]
        %v1324 = vld [vmem:[%s1320 + $0xc] sm:$0xf]
        %v1325 = vld [vmem:[%s1320 + $0x10] sm:$0xf]
        %v1326 = vld [vmem:[%s1320 + $0x14] sm:$0xf]
        %v1327 = vld [vmem:[%s1320 + $0x18] sm:$0xf]
        %v1328 = vld [vmem:[%s1320 + $0x1c] sm:$0xf]
        %v1329 = vld [vmem:[%s1320 + $0x20] sm:$0xf]
        %v1330 = vld [vmem:[%s1320 + $0x24] sm:$0xf]
        %v1331 = vld [vmem:[%s1320 + $0x28] sm:$0xf]
        %v1332 = vld [vmem:[%s1320 + $0x2c] sm:$0xf]
        %v1333 = vld [vmem:[%s1320 + $0x30] sm:$0xf]
        %v1334 = vld [vmem:[%s1320 + $0x34] sm:$0xf]
        %v1335 = vld [vmem:[%s1320 + $0x38] sm:$0xf]
        %v1336 = vld [vmem:[%s1320 + $0x3c] sm:$0xf]
        %v1337 = vld [vmem:[%s1320 + $0x40] sm:$0xf]
        %v1338 = vld [vmem:[%s1320 + $0x44] sm:$0xf]
        %v1339 = vld [vmem:[%s1320 + $0x48] sm:$0xf]
        %v1340 = vld [vmem:[%s1320 + $0x4c] sm:$0xf]
        %v1341 = vld [vmem:[%s1320 + $0x50] sm:$0xf]
        %v1342 = vld [vmem:[%s1320 + $0x54] sm:$0xf]
        %v1343 = vld [vmem:[%s1320 + $0x58] sm:$0xf]
        %v1344 = vld [vmem:[%s1320 + $0x5c] sm:$0xf]
        %v1345 = vld [vmem:[%s1320 + $0x60] sm:$0xf]
        %v1346 = vld [vmem:[%s1320 + $0x64] sm:$0xf]
        %v1347 = vld [vmem:[%s1320 + $0x68] sm:$0xf]
        %v1348 = vld [vmem:[%s1320 + $0x6c] sm:$0xf]
        %v1349 = vld [vmem:[%s1320 + $0x70] sm:$0xf]
        %v1350 = vld [vmem:[%s1320 + $0x74] sm:$0xf]
        %v1351 = vld [vmem:[%s1320 + $0x78] sm:$0xf]
        %v1352 = vld [vmem:[%s1320 + $0x7c] sm:$0xf]
        %v1353 = vld [vmem:[%s1320 + $0x80] sm:$0xf]
        %v1354 = vld [vmem:[%s1320 + $0x84] sm:$0xf]
        %v1355 = vld [vmem:[%s1320 + $0x88] sm:$0xf]
        %v1356 = vld [vmem:[%s1320 + $0x8c] sm:$0xf]
        %v1357 = vld [vmem:[%s1320 + $0x90] sm:$0xf]
        %v1358 = vld [vmem:[%s1320 + $0x94] sm:$0xf]
        %v1359 = vld [vmem:[%s1320 + $0x98] sm:$0xf]
        %v1360 = vld [vmem:[%s1320 + $0x9c] sm:$0xf]
        %v1361 = vld [vmem:[%s1320 + $0xa0] sm:$0xf]
        %v1362 = vld [vmem:[%s1320 + $0xa4] sm:$0xf]
        %v1363 = vld [vmem:[%s1320 + $0xa8] sm:$0xf]
        %v1364 = vld [vmem:[%s1320 + $0xac] sm:$0xf]
        %v1365 = vld [vmem:[%s1320 + $0xb0] sm:$0xf]
        %v1366 = vld [vmem:[%s1320 + $0xb4] sm:$0xf]
        %v1367 = vld [vmem:[%s1320 + $0xb8] sm:$0xf]
        %v1368 = vld [vmem:[%s1320 + $0xbc] sm:$0xf]
        %v1369 = vld [vmem:[%s1320 + $0xc0] sm:$0xf]
        %v1370 = vld [vmem:[%s1320 + $0xc4] sm:$0xf]
        %v1371 = vld [vmem:[%s1320 + $0xc8] sm:$0xf]
        %v1372 = vld [vmem:[%s1320 + $0xcc] sm:$0xf]
        %v1373 = vld [vmem:[%s1320 + $0xd0] sm:$0xf]
        %v1374 = vld [vmem:[%s1320 + $0xd4] sm:$0xf]
        %v1375 = vld [vmem:[%s1320 + $0xd8] sm:$0xf]
        %v1376 = vld [vmem:[%s1320 + $0xdc] sm:$0xf]
        %v1377 = vld [vmem:[%s1320 + $0xe0] sm:$0xf]
        %v1378 = vld [vmem:[%s1320 + $0xe4] sm:$0xf]
        %v1379 = vld [vmem:[%s1320 + $0xe8] sm:$0xf]
        %v1380 = vld [vmem:[%s1320 + $0xec] sm:$0xf]
        %v1381 = vld [vmem:[%s1320 + $0xf0] sm:$0xf]
        %v1382 = vld [vmem:[%s1320 + $0xf4] sm:$0xf]
        %v1383 = vld [vmem:[%s1320 + $0xf8] sm:$0xf]
        %v1384 = vld [vmem:[%s1320 + $0xfc] sm:$0xf]
        %v1387 = vunpack.c.l.b16 %v1318
        %v1388 = vunpack.c.h.b16 %v1318
        %v1389 = vunpack.c.l.b16 %v1319
        %v1390 = vunpack.c.h.b16 %v1319
        %v1391 = vpack.c.b16 %v1387, %v1387
        %v1392 = vpack.c.b16 %v1388, %v1388
        %v1393 = vpack.c.b16 %v1389, %v1389
        %v1394 = vpack.c.b16 %v1390, %v1390
        %v1463 = vunpack.c.l.b16 %v1321
        %v1464 = vunpack.c.l.b16 %v1322
        %v1465 = vunpack.c.l.b16 %v1323
        %v1466 = vunpack.c.l.b16 %v1324
        %v1467 = vunpack.c.l.b16 %v1325
        %v1468 = vunpack.c.l.b16 %v1326
        %v1469 = vunpack.c.l.b16 %v1327
        %v1470 = vunpack.c.l.b16 %v1328
        %v1471 = vunpack.c.l.b16 %v1329
        %v1472 = vunpack.c.l.b16 %v1330
        %v1473 = vunpack.c.l.b16 %v1331
        %v1474 = vunpack.c.l.b16 %v1332
        %v1475 = vunpack.c.l.b16 %v1333
        %v1476 = vunpack.c.l.b16 %v1334
        %v1477 = vunpack.c.l.b16 %v1335
        %v1478 = vunpack.c.l.b16 %v1336
        %v1479 = vunpack.c.l.b16 %v1337
        %v1480 = vunpack.c.l.b16 %v1338
        %v1481 = vunpack.c.l.b16 %v1339
        %v1482 = vunpack.c.l.b16 %v1340
        %v1483 = vunpack.c.l.b16 %v1341
        %v1484 = vunpack.c.l.b16 %v1342
        %v1485 = vunpack.c.l.b16 %v1343
        %v1486 = vunpack.c.l.b16 %v1344
        %v1487 = vunpack.c.l.b16 %v1345
        %v1488 = vunpack.c.l.b16 %v1346
        %v1489 = vunpack.c.l.b16 %v1347
        %v1490 = vunpack.c.l.b16 %v1348
        %v1491 = vunpack.c.l.b16 %v1349
        %v1492 = vunpack.c.l.b16 %v1350
        %v1493 = vunpack.c.l.b16 %v1351
        %v1494 = vunpack.c.l.b16 %v1352
        %v1495 = vunpack.c.l.b16 %v1353
        %v1496 = vunpack.c.l.b16 %v1354
        %v1497 = vunpack.c.l.b16 %v1355
        %v1498 = vunpack.c.l.b16 %v1356
        %v1499 = vunpack.c.l.b16 %v1357
        %v1500 = vunpack.c.l.b16 %v1358
        %v1501 = vunpack.c.l.b16 %v1359
        %v1502 = vunpack.c.l.b16 %v1360
        %v1503 = vunpack.c.l.b16 %v1361
        %v1504 = vunpack.c.l.b16 %v1362
        %v1505 = vunpack.c.l.b16 %v1363
        %v1506 = vunpack.c.l.b16 %v1364
        %v1507 = vunpack.c.l.b16 %v1365
        %v1508 = vunpack.c.l.b16 %v1366
        %v1509 = vunpack.c.l.b16 %v1367
        %v1510 = vunpack.c.l.b16 %v1368
        %v1511 = vunpack.c.l.b16 %v1369
        %v1512 = vunpack.c.l.b16 %v1370
        %v1513 = vunpack.c.l.b16 %v1371
        %v1514 = vunpack.c.l.b16 %v1372
        %v1515 = vunpack.c.l.b16 %v1373
        %v1516 = vunpack.c.l.b16 %v1374
        %v1517 = vunpack.c.l.b16 %v1375
        %v1518 = vunpack.c.l.b16 %v1376
        %v1519 = vunpack.c.l.b16 %v1377
        %v1520 = vunpack.c.l.b16 %v1378
        %v1521 = vunpack.c.l.b16 %v1379
        %v1522 = vunpack.c.l.b16 %v1380
        %v1523 = vunpack.c.l.b16 %v1381
        %v1524 = vunpack.c.l.b16 %v1382
        %v1525 = vunpack.c.l.b16 %v1383
        %v1526 = vunpack.c.l.b16 %v1384
        %v1527 = vpack.c.b16 %v1464, %v1463
        %v1528 = vpack.c.b16 %v1466, %v1465
        %v1529 = vpack.c.b16 %v1468, %v1467
        %v1530 = vpack.c.b16 %v1470, %v1469
        %v1531 = vpack.c.b16 %v1472, %v1471
        %v1532 = vpack.c.b16 %v1474, %v1473
        %v1533 = vpack.c.b16 %v1476, %v1475
        %v1534 = vpack.c.b16 %v1478, %v1477
        %v1535 = vpack.c.b16 %v1480, %v1479
        %v1536 = vpack.c.b16 %v1482, %v1481
        %v1537 = vpack.c.b16 %v1484, %v1483
        %v1538 = vpack.c.b16 %v1486, %v1485
        %v1539 = vpack.c.b16 %v1488, %v1487
        %v1540 = vpack.c.b16 %v1490, %v1489
        %v1541 = vpack.c.b16 %v1492, %v1491
        %v1542 = vpack.c.b16 %v1494, %v1493
        %v1543 = vpack.c.b16 %v1496, %v1495
        %v1544 = vpack.c.b16 %v1498, %v1497
        %v1545 = vpack.c.b16 %v1500, %v1499
        %v1546 = vpack.c.b16 %v1502, %v1501
        %v1547 = vpack.c.b16 %v1504, %v1503
        %v1548 = vpack.c.b16 %v1506, %v1505
        %v1549 = vpack.c.b16 %v1508, %v1507
        %v1550 = vpack.c.b16 %v1510, %v1509
        %v1551 = vpack.c.b16 %v1512, %v1511
        %v1552 = vpack.c.b16 %v1514, %v1513
        %v1553 = vpack.c.b16 %v1516, %v1515
        %v1554 = vpack.c.b16 %v1518, %v1517
        %v1555 = vpack.c.b16 %v1520, %v1519
        %v1556 = vpack.c.b16 %v1522, %v1521
        %v1557 = vpack.c.b16 %v1524, %v1523
        %v1558 = vpack.c.b16 %v1526, %v1525
        %1591 = vmatprep.subr.bf16.mxu0 0
        %1592 = vmatpush1.bf16.msra.mxu0 %v1527
        %1593 = vmatprep.subr.bf16.mxu0 0
        %1594 = vmatpush1.bf16.msra.mxu0 %v1528
        %1595 = vmatprep.subr.bf16.mxu0 0
        %1596 = vmatpush1.bf16.msra.mxu0 %v1529
        %1597 = vmatprep.subr.bf16.mxu0 0
        %1598 = vmatpush1.bf16.msra.mxu0 %v1530
        %1599 = vmatprep.subr.bf16.mxu0 0
        %1600 = vmatpush1.bf16.msra.mxu0 %v1531
        %1601 = vmatprep.subr.bf16.mxu0 0
        %1602 = vmatpush1.bf16.msra.mxu0 %v1532
        %1603 = vmatprep.subr.bf16.mxu0 0
        %1604 = vmatpush1.bf16.msra.mxu0 %v1533
        %1605 = vmatprep.subr.bf16.mxu0 0
        %1606 = vmatpush1.bf16.msra.mxu0 %v1534
        %1607 = vmatprep.subr.bf16.mxu0 0
        %1608 = vmatpush1.bf16.msra.mxu0 %v1535
        %1609 = vmatprep.subr.bf16.mxu0 0
        %1610 = vmatpush1.bf16.msra.mxu0 %v1536
        %1611 = vmatprep.subr.bf16.mxu0 0
        %1612 = vmatpush1.bf16.msra.mxu0 %v1537
        %1613 = vmatprep.subr.bf16.mxu0 0
        %1614 = vmatpush1.bf16.msra.mxu0 %v1538
        %1615 = vmatprep.subr.bf16.mxu0 0
        %1616 = vmatpush1.bf16.msra.mxu0 %v1539
        %1617 = vmatprep.subr.bf16.mxu0 0
        %1618 = vmatpush1.bf16.msra.mxu0 %v1540
        %1619 = vmatprep.subr.bf16.mxu0 0
        %1620 = vmatpush1.bf16.msra.mxu0 %v1541
        %1621 = vmatprep.subr.bf16.mxu0 0
        %1622 = vmatpush1.bf16.msra.mxu0 %v1542
        %1623 = vmatprep.mubr.bf16.mxu0 %v1392
        %1624 = vmatmul.mubr.bf16.gmra.mrb[0].mxu0 %v1391
        %v1625 = vpop.f32.mrb[0].mxu0
        %v1626 = vadd.f32 0.0, %v1625
        %v1627 = vpop.f32.mrb[0].mxu0
        %v1628 = vpop.f32.mrb[0].mxu0
        %v1629 = vpop.f32.mrb[0].mxu0
        %1630 = vdwg.mxu0
        %1631 = vmatprep.subr.bf16.mxu0 0
        %1632 = vmatpush1.bf16.msra.mxu0 %v1543
        %1633 = vmatprep.subr.bf16.mxu0 0
        %1634 = vmatpush1.bf16.msra.mxu0 %v1544
        %1635 = vmatprep.subr.bf16.mxu0 0
        %1636 = vmatpush1.bf16.msra.mxu0 %v1545
        %1637 = vmatprep.subr.bf16.mxu0 0
        %1638 = vmatpush1.bf16.msra.mxu0 %v1546
        %1639 = vmatprep.subr.bf16.mxu0 0
        %1640 = vmatpush1.bf16.msra.mxu0 %v1547
        %1641 = vmatprep.subr.bf16.mxu0 0
        %1642 = vmatpush1.bf16.msra.mxu0 %v1548
        %1643 = vmatprep.subr.bf16.mxu0 0
        %1644 = vmatpush1.bf16.msra.mxu0 %v1549
        %1645 = vmatprep.subr.bf16.mxu0 0
        %1646 = vmatpush1.bf16.msra.mxu0 %v1550
        %1647 = vmatprep.subr.bf16.mxu0 0
        %1648 = vmatpush1.bf16.msra.mxu0 %v1551
        %1649 = vmatprep.subr.bf16.mxu0 0
        %1650 = vmatpush1.bf16.msra.mxu0 %v1552
        %1651 = vmatprep.subr.bf16.mxu0 0
        %1652 = vmatpush1.bf16.msra.mxu0 %v1553
        %1653 = vmatprep.subr.bf16.mxu0 0
        %1654 = vmatpush1.bf16.msra.mxu0 %v1554
        %1655 = vmatprep.subr.bf16.mxu0 0
        %1656 = vmatpush1.bf16.msra.mxu0 %v1555
        %1657 = vmatprep.subr.bf16.mxu0 0
        %1658 = vmatpush1.bf16.msra.mxu0 %v1556
        %1659 = vmatprep.subr.bf16.mxu0 0
        %1660 = vmatpush1.bf16.msra.mxu0 %v1557
        %1661 = vmatprep.subr.bf16.mxu0 0
        %1662 = vmatpush1.bf16.msra.mxu0 %v1558
        %1663 = vmatprep.mubr.bf16.mxu0 %v1394
        %1664 = vmatmul.mubr.bf16.gmra.mrb[0].mxu0 %v1393
        %v1665 = vpop.f32.mrb[0].mxu0
        %v1666 = vadd.f32 %v1626, %v1665
        %v1667 = vpop.f32.mrb[0].mxu0
        %v1668 = vpop.f32.mrb[0].mxu0
        %v1669 = vpop.f32.mrb[0].mxu0
        %1670 = vdwg.mxu0
        %v1671 = vadd.f32 %v1313, %v1666
        %s1672 = scalar_lea.vmem %s1, 1024
        %v1673 = vld [vmem:[%s1672] sm:$0xf]
        %v1674 = vld [vmem:[%s1672 + $0x4] sm:$0xf]
        %v1675 = vld [vmem:[%s1672 + $0x8] sm:$0xf]
        %v1676 = vld [vmem:[%s1672 + $0xc] sm:$0xf]
        %v1677 = vld [vmem:[%s1672 + $0x10] sm:$0xf]
        %v1678 = vld [vmem:[%s1672 + $0x14] sm:$0xf]
        %v1679 = vld [vmem:[%s1672 + $0x18] sm:$0xf]
        %v1680 = vld [vmem:[%s1672 + $0x1c] sm:$0xf]
        %v1681 = vld [vmem:[%s1672 + $0x20] sm:$0xf]
        %v1682 = vld [vmem:[%s1672 + $0x24] sm:$0xf]
        %v1683 = vld [vmem:[%s1672 + $0x28] sm:$0xf]
        %v1684 = vld [vmem:[%s1672 + $0x2c] sm:$0xf]
        %v1685 = vld [vmem:[%s1672 + $0x30] sm:$0xf]
        %v1686 = vld [vmem:[%s1672 + $0x34] sm:$0xf]
        %v1687 = vld [vmem:[%s1672 + $0x38] sm:$0xf]
        %v1688 = vld [vmem:[%s1672 + $0x3c] sm:$0xf]
        %v1689 = vld [vmem:[%s1672 + $0x40] sm:$0xf]
        %v1690 = vld [vmem:[%s1672 + $0x44] sm:$0xf]
        %v1691 = vld [vmem:[%s1672 + $0x48] sm:$0xf]
        %v1692 = vld [vmem:[%s1672 + $0x4c] sm:$0xf]
        %v1693 = vld [vmem:[%s1672 + $0x50] sm:$0xf]
        %v1694 = vld [vmem:[%s1672 + $0x54] sm:$0xf]
        %v1695 = vld [vmem:[%s1672 + $0x58] sm:$0xf]
        %v1696 = vld [vmem:[%s1672 + $0x5c] sm:$0xf]
        %v1697 = vld [vmem:[%s1672 + $0x60] sm:$0xf]
        %v1698 = vld [vmem:[%s1672 + $0x64] sm:$0xf]
        %v1699 = vld [vmem:[%s1672 + $0x68] sm:$0xf]
        %v1700 = vld [vmem:[%s1672 + $0x6c] sm:$0xf]
        %v1701 = vld [vmem:[%s1672 + $0x70] sm:$0xf]
        %v1702 = vld [vmem:[%s1672 + $0x74] sm:$0xf]
        %v1703 = vld [vmem:[%s1672 + $0x78] sm:$0xf]
        %v1704 = vld [vmem:[%s1672 + $0x7c] sm:$0xf]
        %v1705 = vld [vmem:[%s1672 + $0x80] sm:$0xf]
        %v1706 = vld [vmem:[%s1672 + $0x84] sm:$0xf]
        %v1707 = vld [vmem:[%s1672 + $0x88] sm:$0xf]
        %v1708 = vld [vmem:[%s1672 + $0x8c] sm:$0xf]
        %v1709 = vld [vmem:[%s1672 + $0x90] sm:$0xf]
        %v1710 = vld [vmem:[%s1672 + $0x94] sm:$0xf]
        %v1711 = vld [vmem:[%s1672 + $0x98] sm:$0xf]
        %v1712 = vld [vmem:[%s1672 + $0x9c] sm:$0xf]
        %v1713 = vld [vmem:[%s1672 + $0xa0] sm:$0xf]
        %v1714 = vld [vmem:[%s1672 + $0xa4] sm:$0xf]
        %v1715 = vld [vmem:[%s1672 + $0xa8] sm:$0xf]
        %v1716 = vld [vmem:[%s1672 + $0xac] sm:$0xf]
        %v1717 = vld [vmem:[%s1672 + $0xb0] sm:$0xf]
        %v1718 = vld [vmem:[%s1672 + $0xb4] sm:$0xf]
        %v1719 = vld [vmem:[%s1672 + $0xb8] sm:$0xf]
        %v1720 = vld [vmem:[%s1672 + $0xbc] sm:$0xf]
        %v1721 = vld [vmem:[%s1672 + $0xc0] sm:$0xf]
        %v1722 = vld [vmem:[%s1672 + $0xc4] sm:$0xf]
        %v1723 = vld [vmem:[%s1672 + $0xc8] sm:$0xf]
        %v1724 = vld [vmem:[%s1672 + $0xcc] sm:$0xf]
        %v1725 = vld [vmem:[%s1672 + $0xd0] sm:$0xf]
        %v1726 = vld [vmem:[%s1672 + $0xd4] sm:$0xf]
        %v1727 = vld [vmem:[%s1672 + $0xd8] sm:$0xf]
        %v1728 = vld [vmem:[%s1672 + $0xdc] sm:$0xf]
        %v1729 = vld [vmem:[%s1672 + $0xe0] sm:$0xf]
        %v1730 = vld [vmem:[%s1672 + $0xe4] sm:$0xf]
        %v1731 = vld [vmem:[%s1672 + $0xe8] sm:$0xf]
        %v1732 = vld [vmem:[%s1672 + $0xec] sm:$0xf]
        %v1733 = vld [vmem:[%s1672 + $0xf0] sm:$0xf]
        %v1734 = vld [vmem:[%s1672 + $0xf4] sm:$0xf]
        %v1735 = vld [vmem:[%s1672 + $0xf8] sm:$0xf]
        %v1736 = vld [vmem:[%s1672 + $0xfc] sm:$0xf]
        %v1738 = vshrl.u32 %v1391, 16
        %v1740 = vshll.u32 %v1391, 16
        %v1742 = vrot.slane %v1740, 1
        %v1743 = vor.u32 %v1738, %v1742
        %v1745 = vshrl.u32 %v1392, 16
        %v1747 = vshll.u32 %v1392, 16
        %v1749 = vrot.slane %v1747, 1
        %v1750 = vor.u32 %v1745, %v1749
        %v1752 = vshrl.u32 %v1393, 16
        %v1754 = vshll.u32 %v1393, 16
        %v1756 = vrot.slane %v1754, 1
        %v1757 = vor.u32 %v1752, %v1756
        %v1759 = vshrl.u32 %v1394, 16
        %v1761 = vshll.u32 %v1394, 16
        %v1763 = vrot.slane %v1761, 1
        %v1764 = vor.u32 %v1759, %v1763
        %v1833 = vunpack.c.l.b16 %v1673
        %v1834 = vunpack.c.l.b16 %v1674
        %v1835 = vunpack.c.l.b16 %v1675
        %v1836 = vunpack.c.l.b16 %v1676
        %v1837 = vunpack.c.l.b16 %v1677
        %v1838 = vunpack.c.l.b16 %v1678
        %v1839 = vunpack.c.l.b16 %v1679
        %v1840 = vunpack.c.l.b16 %v1680
        %v1841 = vunpack.c.l.b16 %v1681
        %v1842 = vunpack.c.l.b16 %v1682
        %v1843 = vunpack.c.l.b16 %v1683
        %v1844 = vunpack.c.l.b16 %v1684
        %v1845 = vunpack.c.l.b16 %v1685
        %v1846 = vunpack.c.l.b16 %v1686
        %v1847 = vunpack.c.l.b16 %v1687
        %v1848 = vunpack.c.l.b16 %v1688
        %v1849 = vunpack.c.l.b16 %v1689
        %v1850 = vunpack.c.l.b16 %v1690
        %v1851 = vunpack.c.l.b16 %v1691
        %v1852 = vunpack.c.l.b16 %v1692
        %v1853 = vunpack.c.l.b16 %v1693
        %v1854 = vunpack.c.l.b16 %v1694
        %v1855 = vunpack.c.l.b16 %v1695
        %v1856 = vunpack.c.l.b16 %v1696
        %v1857 = vunpack.c.l.b16 %v1697
        %v1858 = vunpack.c.l.b16 %v1698
        %v1859 = vunpack.c.l.b16 %v1699
        %v1860 = vunpack.c.l.b16 %v1700
        %v1861 = vunpack.c.l.b16 %v1701
        %v1862 = vunpack.c.l.b16 %v1702
        %v1863 = vunpack.c.l.b16 %v1703
        %v1864 = vunpack.c.l.b16 %v1704
        %v1865 = vunpack.c.l.b16 %v1705
        %v1866 = vunpack.c.l.b16 %v1706
        %v1867 = vunpack.c.l.b16 %v1707
        %v1868 = vunpack.c.l.b16 %v1708
        %v1869 = vunpack.c.l.b16 %v1709
        %v1870 = vunpack.c.l.b16 %v1710
        %v1871 = vunpack.c.l.b16 %v1711
        %v1872 = vunpack.c.l.b16 %v1712
        %v1873 = vunpack.c.l.b16 %v1713
        %v1874 = vunpack.c.l.b16 %v1714
        %v1875 = vunpack.c.l.b16 %v1715
        %v1876 = vunpack.c.l.b16 %v1716
        %v1877 = vunpack.c.l.b16 %v1717
        %v1878 = vunpack.c.l.b16 %v1718
        %v1879 = vunpack.c.l.b16 %v1719
        %v1880 = vunpack.c.l.b16 %v1720
        %v1881 = vunpack.c.l.b16 %v1721
        %v1882 = vunpack.c.l.b16 %v1722
        %v1883 = vunpack.c.l.b16 %v1723
        %v1884 = vunpack.c.l.b16 %v1724
        %v1885 = vunpack.c.l.b16 %v1725
        %v1886 = vunpack.c.l.b16 %v1726
        %v1887 = vunpack.c.l.b16 %v1727
        %v1888 = vunpack.c.l.b16 %v1728
        %v1889 = vunpack.c.l.b16 %v1729
        %v1890 = vunpack.c.l.b16 %v1730
        %v1891 = vunpack.c.l.b16 %v1731
        %v1892 = vunpack.c.l.b16 %v1732
        %v1893 = vunpack.c.l.b16 %v1733
        %v1894 = vunpack.c.l.b16 %v1734
        %v1895 = vunpack.c.l.b16 %v1735
        %v1896 = vunpack.c.l.b16 %v1736
        %v1897 = vpack.c.b16 %v1834, %v1833
        %v1898 = vpack.c.b16 %v1836, %v1835
        %v1899 = vpack.c.b16 %v1838, %v1837
        %v1900 = vpack.c.b16 %v1840, %v1839
        %v1901 = vpack.c.b16 %v1842, %v1841
        %v1902 = vpack.c.b16 %v1844, %v1843
        %v1903 = vpack.c.b16 %v1846, %v1845
        %v1904 = vpack.c.b16 %v1848, %v1847
        %v1905 = vpack.c.b16 %v1850, %v1849
        %v1906 = vpack.c.b16 %v1852, %v1851
        %v1907 = vpack.c.b16 %v1854, %v1853
        %v1908 = vpack.c.b16 %v1856, %v1855
        %v1909 = vpack.c.b16 %v1858, %v1857
        %v1910 = vpack.c.b16 %v1860, %v1859
        %v1911 = vpack.c.b16 %v1862, %v1861
        %v1912 = vpack.c.b16 %v1864, %v1863
        %v1913 = vpack.c.b16 %v1866, %v1865
        %v1914 = vpack.c.b16 %v1868, %v1867
        %v1915 = vpack.c.b16 %v1870, %v1869
        %v1916 = vpack.c.b16 %v1872, %v1871
        %v1917 = vpack.c.b16 %v1874, %v1873
        %v1918 = vpack.c.b16 %v1876, %v1875
        %v1919 = vpack.c.b16 %v1878, %v1877
        %v1920 = vpack.c.b16 %v1880, %v1879
        %v1921 = vpack.c.b16 %v1882, %v1881
        %v1922 = vpack.c.b16 %v1884, %v1883
        %v1923 = vpack.c.b16 %v1886, %v1885
        %v1924 = vpack.c.b16 %v1888, %v1887
        %v1925 = vpack.c.b16 %v1890, %v1889
        %v1926 = vpack.c.b16 %v1892, %v1891
        %v1927 = vpack.c.b16 %v1894, %v1893
        %v1928 = vpack.c.b16 %v1896, %v1895
        %1961 = vmatprep.subr.bf16.mxu0 0
        %1962 = vmatpush1.bf16.msra.mxu0 %v1897
        %1963 = vmatprep.subr.bf16.mxu0 0
        %1964 = vmatpush1.bf16.msra.mxu0 %v1898
        %1965 = vmatprep.subr.bf16.mxu0 0
        %1966 = vmatpush1.bf16.msra.mxu0 %v1899
        %1967 = vmatprep.subr.bf16.mxu0 0
        %1968 = vmatpush1.bf16.msra.mxu0 %v1900
        %1969 = vmatprep.subr.bf16.mxu0 0
        %1970 = vmatpush1.bf16.msra.mxu0 %v1901
        %1971 = vmatprep.subr.bf16.mxu0 0
        %1972 = vmatpush1.bf16.msra.mxu0 %v1902
        %1973 = vmatprep.subr.bf16.mxu0 0
        %1974 = vmatpush1.bf16.msra.mxu0 %v1903
        %1975 = vmatprep.subr.bf16.mxu0 0
        %1976 = vmatpush1.bf16.msra.mxu0 %v1904
        %1977 = vmatprep.subr.bf16.mxu0 0
        %1978 = vmatpush1.bf16.msra.mxu0 %v1905
        %1979 = vmatprep.subr.bf16.mxu0 0
        %1980 = vmatpush1.bf16.msra.mxu0 %v1906
        %1981 = vmatprep.subr.bf16.mxu0 0
        %1982 = vmatpush1.bf16.msra.mxu0 %v1907
        %1983 = vmatprep.subr.bf16.mxu0 0
        %1984 = vmatpush1.bf16.msra.mxu0 %v1908
        %1985 = vmatprep.subr.bf16.mxu0 0
        %1986 = vmatpush1.bf16.msra.mxu0 %v1909
        %1987 = vmatprep.subr.bf16.mxu0 0
        %1988 = vmatpush1.bf16.msra.mxu0 %v1910
        %1989 = vmatprep.subr.bf16.mxu0 0
        %1990 = vmatpush1.bf16.msra.mxu0 %v1911
        %1991 = vmatprep.subr.bf16.mxu0 0
        %1992 = vmatpush1.bf16.msra.mxu0 %v1912
        %1993 = vmatprep.mubr.bf16.mxu0 %v1750
        %1994 = vmatmul.mubr.bf16.gmra.mrb[0].mxu0 %v1743
        %v1995 = vpop.f32.mrb[0].mxu0
        %v1996 = vadd.f32 0.0, %v1995
        %v1997 = vpop.f32.mrb[0].mxu0
        %v1998 = vpop.f32.mrb[0].mxu0
        %v1999 = vpop.f32.mrb[0].mxu0
        %2000 = vdwg.mxu0
        %2001 = vmatprep.subr.bf16.mxu0 0
        %2002 = vmatpush1.bf16.msra.mxu0 %v1913
        %2003 = vmatprep.subr.bf16.mxu0 0
        %2004 = vmatpush1.bf16.msra.mxu0 %v1914
        %2005 = vmatprep.subr.bf16.mxu0 0
        %2006 = vmatpush1.bf16.msra.mxu0 %v1915
        %2007 = vmatprep.subr.bf16.mxu0 0
        %2008 = vmatpush1.bf16.msra.mxu0 %v1916
        %2009 = vmatprep.subr.bf16.mxu0 0
        %2010 = vmatpush1.bf16.msra.mxu0 %v1917
        %2011 = vmatprep.subr.bf16.mxu0 0
        %2012 = vmatpush1.bf16.msra.mxu0 %v1918
        %2013 = vmatprep.subr.bf16.mxu0 0
        %2014 = vmatpush1.bf16.msra.mxu0 %v1919
        %2015 = vmatprep.subr.bf16.mxu0 0
        %2016 = vmatpush1.bf16.msra.mxu0 %v1920
        %2017 = vmatprep.subr.bf16.mxu0 0
        %2018 = vmatpush1.bf16.msra.mxu0 %v1921
        %2019 = vmatprep.subr.bf16.mxu0 0
        %2020 = vmatpush1.bf16.msra.mxu0 %v1922
        %2021 = vmatprep.subr.bf16.mxu0 0
        %2022 = vmatpush1.bf16.msra.mxu0 %v1923
        %2023 = vmatprep.subr.bf16.mxu0 0
        %2024 = vmatpush1.bf16.msra.mxu0 %v1924
        %2025 = vmatprep.subr.bf16.mxu0 0
        %2026 = vmatpush1.bf16.msra.mxu0 %v1925
        %2027 = vmatprep.subr.bf16.mxu0 0
        %2028 = vmatpush1.bf16.msra.mxu0 %v1926
        %2029 = vmatprep.subr.bf16.mxu0 0
        %2030 = vmatpush1.bf16.msra.mxu0 %v1927
        %2031 = vmatprep.subr.bf16.mxu0 0
        %2032 = vmatpush1.bf16.msra.mxu0 %v1928
        %2033 = vmatprep.mubr.bf16.mxu0 %v1764
        %2034 = vmatmul.mubr.bf16.gmra.mrb[0].mxu0 %v1757
        %v2035 = vpop.f32.mrb[0].mxu0
        %v2036 = vadd.f32 %v1996, %v2035
        %v2037 = vpop.f32.mrb[0].mxu0
        %v2038 = vpop.f32.mrb[0].mxu0
        %v2039 = vpop.f32.mrb[0].mxu0
        %2040 = vdwg.mxu0
        %v2041 = vadd.f32 %v1671, %v2036
        %v2042 = vld [vmem:[%s1317] sm:$0xee]
        %v2043 = vld [vmem:[%s1317 + $0x8] sm:$0xee]
        %v2044 = vld [vmem:[%s1317 + $0x10] sm:$0x11]
        %v2045 = vld [vmem:[%s1317 + $0x18] sm:$0x11]
        %s2046 = scalar_lea.vmem %s1, 1280
        %v2047 = vld [vmem:[%s2046] sm:$0xf]
        %v2048 = vld [vmem:[%s2046 + $0x4] sm:$0xf]
        %v2049 = vld [vmem:[%s2046 + $0x8] sm:$0xf]
        %v2050 = vld [vmem:[%s2046 + $0xc] sm:$0xf]
        %v2051 = vld [vmem:[%s2046 + $0x10] sm:$0xf]
        %v2052 = vld [vmem:[%s2046 + $0x14] sm:$0xf]
        %v2053 = vld [vmem:[%s2046 + $0x18] sm:$0xf]
        %v2054 = vld [vmem:[%s2046 + $0x1c] sm:$0xf]
        %v2055 = vld [vmem:[%s2046 + $0x20] sm:$0xf]
        %v2056 = vld [vmem:[%s2046 + $0x24] sm:$0xf]
        %v2057 = vld [vmem:[%s2046 + $0x28] sm:$0xf]
        %v2058 = vld [vmem:[%s2046 + $0x2c] sm:$0xf]
        %v2059 = vld [vmem:[%s2046 + $0x30] sm:$0xf]
        %v2060 = vld [vmem:[%s2046 + $0x34] sm:$0xf]
        %v2061 = vld [vmem:[%s2046 + $0x38] sm:$0xf]
        %v2062 = vld [vmem:[%s2046 + $0x3c] sm:$0xf]
        %v2063 = vld [vmem:[%s2046 + $0x40] sm:$0xf]
        %v2064 = vld [vmem:[%s2046 + $0x44] sm:$0xf]
        %v2065 = vld [vmem:[%s2046 + $0x48] sm:$0xf]
        %v2066 = vld [vmem:[%s2046 + $0x4c] sm:$0xf]
        %v2067 = vld [vmem:[%s2046 + $0x50] sm:$0xf]
        %v2068 = vld [vmem:[%s2046 + $0x54] sm:$0xf]
        %v2069 = vld [vmem:[%s2046 + $0x58] sm:$0xf]
        %v2070 = vld [vmem:[%s2046 + $0x5c] sm:$0xf]
        %v2071 = vld [vmem:[%s2046 + $0x60] sm:$0xf]
        %v2072 = vld [vmem:[%s2046 + $0x64] sm:$0xf]
        %v2073 = vld [vmem:[%s2046 + $0x68] sm:$0xf]
        %v2074 = vld [vmem:[%s2046 + $0x6c] sm:$0xf]
        %v2075 = vld [vmem:[%s2046 + $0x70] sm:$0xf]
        %v2076 = vld [vmem:[%s2046 + $0x74] sm:$0xf]
        %v2077 = vld [vmem:[%s2046 + $0x78] sm:$0xf]
        %v2078 = vld [vmem:[%s2046 + $0x7c] sm:$0xf]
        %v2079 = vld [vmem:[%s2046 + $0x80] sm:$0xf]
        %v2080 = vld [vmem:[%s2046 + $0x84] sm:$0xf]
        %v2081 = vld [vmem:[%s2046 + $0x88] sm:$0xf]
        %v2082 = vld [vmem:[%s2046 + $0x8c] sm:$0xf]
        %v2083 = vld [vmem:[%s2046 + $0x90] sm:$0xf]
        %v2084 = vld [vmem:[%s2046 + $0x94] sm:$0xf]
        %v2085 = vld [vmem:[%s2046 + $0x98] sm:$0xf]
        %v2086 = vld [vmem:[%s2046 + $0x9c] sm:$0xf]
        %v2087 = vld [vmem:[%s2046 + $0xa0] sm:$0xf]
        %v2088 = vld [vmem:[%s2046 + $0xa4] sm:$0xf]
        %v2089 = vld [vmem:[%s2046 + $0xa8] sm:$0xf]
        %v2090 = vld [vmem:[%s2046 + $0xac] sm:$0xf]
        %v2091 = vld [vmem:[%s2046 + $0xb0] sm:$0xf]
        %v2092 = vld [vmem:[%s2046 + $0xb4] sm:$0xf]
        %v2093 = vld [vmem:[%s2046 + $0xb8] sm:$0xf]
        %v2094 = vld [vmem:[%s2046 + $0xbc] sm:$0xf]
        %v2095 = vld [vmem:[%s2046 + $0xc0] sm:$0xf]
        %v2096 = vld [vmem:[%s2046 + $0xc4] sm:$0xf]
        %v2097 = vld [vmem:[%s2046 + $0xc8] sm:$0xf]
        %v2098 = vld [vmem:[%s2046 + $0xcc] sm:$0xf]
        %v2099 = vld [vmem:[%s2046 + $0xd0] sm:$0xf]
        %v2100 = vld [vmem:[%s2046 + $0xd4] sm:$0xf]
        %v2101 = vld [vmem:[%s2046 + $0xd8] sm:$0xf]
        %v2102 = vld [vmem:[%s2046 + $0xdc] sm:$0xf]
        %v2103 = vld [vmem:[%s2046 + $0xe0] sm:$0xf]
        %v2104 = vld [vmem:[%s2046 + $0xe4] sm:$0xf]
        %v2105 = vld [vmem:[%s2046 + $0xe8] sm:$0xf]
        %v2106 = vld [vmem:[%s2046 + $0xec] sm:$0xf]
        %v2107 = vld [vmem:[%s2046 + $0xf0] sm:$0xf]
        %v2108 = vld [vmem:[%s2046 + $0xf4] sm:$0xf]
        %v2109 = vld [vmem:[%s2046 + $0xf8] sm:$0xf]
        %v2110 = vld [vmem:[%s2046 + $0xfc] sm:$0xf]
        %v2115 = vunpack.c.l.b16 %v2042
        %v2116 = vunpack.c.h.b16 %v2042
        %v2117 = vunpack.c.l.b16 %v2043
        %v2118 = vunpack.c.h.b16 %v2043
        %v2119 = vunpack.c.l.b16 %v2044
        %v2120 = vunpack.c.h.b16 %v2044
        %v2121 = vunpack.c.l.b16 %v2045
        %v2122 = vunpack.c.h.b16 %v2045
        %v2123 = vpack.c.b16 %v2119, %v2115
        %v2124 = vpack.c.b16 %v2120, %v2116
        %v2125 = vpack.c.b16 %v2121, %v2117
        %v2126 = vpack.c.b16 %v2122, %v2118
        %v2127 = vrot.slane %v2123, 1
        %v2128 = vrot.slane %v2124, 1
        %v2129 = vrot.slane %v2125, 1
        %v2130 = vrot.slane %v2126, 1
        %v2199 = vunpack.c.l.b16 %v2047
        %v2200 = vunpack.c.l.b16 %v2048
        %v2201 = vunpack.c.l.b16 %v2049
        %v2202 = vunpack.c.l.b16 %v2050
        %v2203 = vunpack.c.l.b16 %v2051
        %v2204 = vunpack.c.l.b16 %v2052
        %v2205 = vunpack.c.l.b16 %v2053
        %v2206 = vunpack.c.l.b16 %v2054
        %v2207 = vunpack.c.l.b16 %v2055
        %v2208 = vunpack.c.l.b16 %v2056
        %v2209 = vunpack.c.l.b16 %v2057
        %v2210 = vunpack.c.l.b16 %v2058
        %v2211 = vunpack.c.l.b16 %v2059
        %v2212 = vunpack.c.l.b16 %v2060
        %v2213 = vunpack.c.l.b16 %v2061
        %v2214 = vunpack.c.l.b16 %v2062
        %v2215 = vunpack.c.l.b16 %v2063
        %v2216 = vunpack.c.l.b16 %v2064
        %v2217 = vunpack.c.l.b16 %v2065
        %v2218 = vunpack.c.l.b16 %v2066
        %v2219 = vunpack.c.l.b16 %v2067
        %v2220 = vunpack.c.l.b16 %v2068
        %v2221 = vunpack.c.l.b16 %v2069
        %v2222 = vunpack.c.l.b16 %v2070
        %v2223 = vunpack.c.l.b16 %v2071
        %v2224 = vunpack.c.l.b16 %v2072
        %v2225 = vunpack.c.l.b16 %v2073
        %v2226 = vunpack.c.l.b16 %v2074
        %v2227 = vunpack.c.l.b16 %v2075
        %v2228 = vunpack.c.l.b16 %v2076
        %v2229 = vunpack.c.l.b16 %v2077
        %v2230 = vunpack.c.l.b16 %v2078
        %v2231 = vunpack.c.l.b16 %v2079
        %v2232 = vunpack.c.l.b16 %v2080
        %v2233 = vunpack.c.l.b16 %v2081
        %v2234 = vunpack.c.l.b16 %v2082
        %v2235 = vunpack.c.l.b16 %v2083
        %v2236 = vunpack.c.l.b16 %v2084
        %v2237 = vunpack.c.l.b16 %v2085
        %v2238 = vunpack.c.l.b16 %v2086
        %v2239 = vunpack.c.l.b16 %v2087
        %v2240 = vunpack.c.l.b16 %v2088
        %v2241 = vunpack.c.l.b16 %v2089
        %v2242 = vunpack.c.l.b16 %v2090
        %v2243 = vunpack.c.l.b16 %v2091
        %v2244 = vunpack.c.l.b16 %v2092
        %v2245 = vunpack.c.l.b16 %v2093
        %v2246 = vunpack.c.l.b16 %v2094
        %v2247 = vunpack.c.l.b16 %v2095
        %v2248 = vunpack.c.l.b16 %v2096
        %v2249 = vunpack.c.l.b16 %v2097
        %v2250 = vunpack.c.l.b16 %v2098
        %v2251 = vunpack.c.l.b16 %v2099
        %v2252 = vunpack.c.l.b16 %v2100
        %v2253 = vunpack.c.l.b16 %v2101
        %v2254 = vunpack.c.l.b16 %v2102
        %v2255 = vunpack.c.l.b16 %v2103
        %v2256 = vunpack.c.l.b16 %v2104
        %v2257 = vunpack.c.l.b16 %v2105
        %v2258 = vunpack.c.l.b16 %v2106
        %v2259 = vunpack.c.l.b16 %v2107
        %v2260 = vunpack.c.l.b16 %v2108
        %v2261 = vunpack.c.l.b16 %v2109
        %v2262 = vunpack.c.l.b16 %v2110
        %v2263 = vpack.c.b16 %v2200, %v2199
        %v2264 = vpack.c.b16 %v2202, %v2201
        %v2265 = vpack.c.b16 %v2204, %v2203
        %v2266 = vpack.c.b16 %v2206, %v2205
        %v2267 = vpack.c.b16 %v2208, %v2207
        %v2268 = vpack.c.b16 %v2210, %v2209
        %v2269 = vpack.c.b16 %v2212, %v2211
        %v2270 = vpack.c.b16 %v2214, %v2213
        %v2271 = vpack.c.b16 %v2216, %v2215
        %v2272 = vpack.c.b16 %v2218, %v2217
        %v2273 = vpack.c.b16 %v2220, %v2219
        %v2274 = vpack.c.b16 %v2222, %v2221
        %v2275 = vpack.c.b16 %v2224, %v2223
        %v2276 = vpack.c.b16 %v2226, %v2225
        %v2277 = vpack.c.b16 %v2228, %v2227
        %v2278 = vpack.c.b16 %v2230, %v2229
        %v2279 = vpack.c.b16 %v2232, %v2231
        %v2280 = vpack.c.b16 %v2234, %v2233
        %v2281 = vpack.c.b16 %v2236, %v2235
        %v2282 = vpack.c.b16 %v2238, %v2237
        %v2283 = vpack.c.b16 %v2240, %v2239
        %v2284 = vpack.c.b16 %v2242, %v2241
        %v2285 = vpack.c.b16 %v2244, %v2243
        %v2286 = vpack.c.b16 %v2246, %v2245
        %v2287 = vpack.c.b16 %v2248, %v2247
        %v2288 = vpack.c.b16 %v2250, %v2249
        %v2289 = vpack.c.b16 %v2252, %v2251
        %v2290 = vpack.c.b16 %v2254, %v2253
        %v2291 = vpack.c.b16 %v2256, %v2255
        %v2292 = vpack.c.b16 %v2258, %v2257
        %v2293 = vpack.c.b16 %v2260, %v2259
        %v2294 = vpack.c.b16 %v2262, %v2261
        %2327 = vmatprep.subr.bf16.mxu0 0
        %2328 = vmatpush1.bf16.msra.mxu0 %v2263
        %2329 = vmatprep.subr.bf16.mxu0 0
        %2330 = vmatpush1.bf16.msra.mxu0 %v2264
        %2331 = vmatprep.subr.bf16.mxu0 0
        %2332 = vmatpush1.bf16.msra.mxu0 %v2265
        %2333 = vmatprep.subr.bf16.mxu0 0
        %2334 = vmatpush1.bf16.msra.mxu0 %v2266
        %2335 = vmatprep.subr.bf16.mxu0 0
        %2336 = vmatpush1.bf16.msra.mxu0 %v2267
        %2337 = vmatprep.subr.bf16.mxu0 0
        %2338 = vmatpush1.bf16.msra.mxu0 %v2268
        %2339 = vmatprep.subr.bf16.mxu0 0
        %2340 = vmatpush1.bf16.msra.mxu0 %v2269
        %2341 = vmatprep.subr.bf16.mxu0 0
        %2342 = vmatpush1.bf16.msra.mxu0 %v2270
        %2343 = vmatprep.subr.bf16.mxu0 0
        %2344 = vmatpush1.bf16.msra.mxu0 %v2271
        %2345 = vmatprep.subr.bf16.mxu0 0
        %2346 = vmatpush1.bf16.msra.mxu0 %v2272
        %2347 = vmatprep.subr.bf16.mxu0 0
        %2348 = vmatpush1.bf16.msra.mxu0 %v2273
        %2349 = vmatprep.subr.bf16.mxu0 0
        %2350 = vmatpush1.bf16.msra.mxu0 %v2274
        %2351 = vmatprep.subr.bf16.mxu0 0
        %2352 = vmatpush1.bf16.msra.mxu0 %v2275
        %2353 = vmatprep.subr.bf16.mxu0 0
        %2354 = vmatpush1.bf16.msra.mxu0 %v2276
        %2355 = vmatprep.subr.bf16.mxu0 0
        %2356 = vmatpush1.bf16.msra.mxu0 %v2277
        %2357 = vmatprep.subr.bf16.mxu0 0
        %2358 = vmatpush1.bf16.msra.mxu0 %v2278
        %2359 = vmatprep.mubr.bf16.mxu0 %v2128
        %2360 = vmatmul.mubr.bf16.gmra.mrb[0].mxu0 %v2127
        %v2361 = vpop.f32.mrb[0].mxu0
        %v2362 = vadd.f32 0.0, %v2361
        %v2363 = vpop.f32.mrb[0].mxu0
        %v2364 = vpop.f32.mrb[0].mxu0
        %v2365 = vpop.f32.mrb[0].mxu0
        %2366 = vdwg.mxu0
        %2367 = vmatprep.subr.bf16.mxu0 0
        %2368 = vmatpush1.bf16.msra.mxu0 %v2279
        %2369 = vmatprep.subr.bf16.mxu0 0
        %2370 = vmatpush1.bf16.msra.mxu0 %v2280
        %2371 = vmatprep.subr.bf16.mxu0 0
        %2372 = vmatpush1.bf16.msra.mxu0 %v2281
        %2373 = vmatprep.subr.bf16.mxu0 0
        %2374 = vmatpush1.bf16.msra.mxu0 %v2282
        %2375 = vmatprep.subr.bf16.mxu0 0
        %2376 = vmatpush1.bf16.msra.mxu0 %v2283
        %2377 = vmatprep.subr.bf16.mxu0 0
        %2378 = vmatpush1.bf16.msra.mxu0 %v2284
        %2379 = vmatprep.subr.bf16.mxu0 0
        %2380 = vmatpush1.bf16.msra.mxu0 %v2285
        %2381 = vmatprep.subr.bf16.mxu0 0
        %2382 = vmatpush1.bf16.msra.mxu0 %v2286
        %2383 = vmatprep.subr.bf16.mxu0 0
        %2384 = vmatpush1.bf16.msra.mxu0 %v2287
        %2385 = vmatprep.subr.bf16.mxu0 0
        %2386 = vmatpush1.bf16.msra.mxu0 %v2288
        %2387 = vmatprep.subr.bf16.mxu0 0
        %2388 = vmatpush1.bf16.msra.mxu0 %v2289
        %2389 = vmatprep.subr.bf16.mxu0 0
        %2390 = vmatpush1.bf16.msra.mxu0 %v2290
        %2391 = vmatprep.subr.bf16.mxu0 0
        %2392 = vmatpush1.bf16.msra.mxu0 %v2291
        %2393 = vmatprep.subr.bf16.mxu0 0
        %2394 = vmatpush1.bf16.msra.mxu0 %v2292
        %2395 = vmatprep.subr.bf16.mxu0 0
        %2396 = vmatpush1.bf16.msra.mxu0 %v2293
        %2397 = vmatprep.subr.bf16.mxu0 0
        %2398 = vmatpush1.bf16.msra.mxu0 %v2294
        %2399 = vmatprep.mubr.bf16.mxu0 %v2130
        %2400 = vmatmul.mubr.bf16.gmra.mrb[0].mxu0 %v2129
        %v2401 = vpop.f32.mrb[0].mxu0
        %v2402 = vadd.f32 %v2362, %v2401
        %v2403 = vpop.f32.mrb[0].mxu0
        %v2404 = vpop.f32.mrb[0].mxu0
        %v2405 = vpop.f32.mrb[0].mxu0
        %2406 = vdwg.mxu0
        %v2407 = vadd.f32 %v2041, %v2402
        %s2408 = sadd.s32 %s219, 2
        %s2409 = smul.u32 %s2408, 8
        %s2410 = smul.addr %s2409, 4
        %s2411 = scalar_lea.vmem %s203, %s2410
        %v2412 = vld [vmem:[%s2411] sm:$0xff]
        %v2413 = vld [vmem:[%s2411 + $0x8] sm:$0xff]
        %s2414 = scalar_lea.vmem %s1, 1536
        %v2415 = vld [vmem:[%s2414] sm:$0xf]
        %v2416 = vld [vmem:[%s2414 + $0x4] sm:$0xf]
        %v2417 = vld [vmem:[%s2414 + $0x8] sm:$0xf]
        %v2418 = vld [vmem:[%s2414 + $0xc] sm:$0xf]
        %v2419 = vld [vmem:[%s2414 + $0x10] sm:$0xf]
        %v2420 = vld [vmem:[%s2414 + $0x14] sm:$0xf]
        %v2421 = vld [vmem:[%s2414 + $0x18] sm:$0xf]
        %v2422 = vld [vmem:[%s2414 + $0x1c] sm:$0xf]
        %v2423 = vld [vmem:[%s2414 + $0x20] sm:$0xf]
        %v2424 = vld [vmem:[%s2414 + $0x24] sm:$0xf]
        %v2425 = vld [vmem:[%s2414 + $0x28] sm:$0xf]
        %v2426 = vld [vmem:[%s2414 + $0x2c] sm:$0xf]
        %v2427 = vld [vmem:[%s2414 + $0x30] sm:$0xf]
        %v2428 = vld [vmem:[%s2414 + $0x34] sm:$0xf]
        %v2429 = vld [vmem:[%s2414 + $0x38] sm:$0xf]
        %v2430 = vld [vmem:[%s2414 + $0x3c] sm:$0xf]
        %v2431 = vld [vmem:[%s2414 + $0x40] sm:$0xf]
        %v2432 = vld [vmem:[%s2414 + $0x44] sm:$0xf]
        %v2433 = vld [vmem:[%s2414 + $0x48] sm:$0xf]
        %v2434 = vld [vmem:[%s2414 + $0x4c] sm:$0xf]
        %v2435 = vld [vmem:[%s2414 + $0x50] sm:$0xf]
        %v2436 = vld [vmem:[%s2414 + $0x54] sm:$0xf]
        %v2437 = vld [vmem:[%s2414 + $0x58] sm:$0xf]
        %v2438 = vld [vmem:[%s2414 + $0x5c] sm:$0xf]
        %v2439 = vld [vmem:[%s2414 + $0x60] sm:$0xf]
        %v2440 = vld [vmem:[%s2414 + $0x64] sm:$0xf]
        %v2441 = vld [vmem:[%s2414 + $0x68] sm:$0xf]
        %v2442 = vld [vmem:[%s2414 + $0x6c] sm:$0xf]
        %v2443 = vld [vmem:[%s2414 + $0x70] sm:$0xf]
        %v2444 = vld [vmem:[%s2414 + $0x74] sm:$0xf]
        %v2445 = vld [vmem:[%s2414 + $0x78] sm:$0xf]
        %v2446 = vld [vmem:[%s2414 + $0x7c] sm:$0xf]
        %v2447 = vld [vmem:[%s2414 + $0x80] sm:$0xf]
        %v2448 = vld [vmem:[%s2414 + $0x84] sm:$0xf]
        %v2449 = vld [vmem:[%s2414 + $0x88] sm:$0xf]
        %v2450 = vld [vmem:[%s2414 + $0x8c] sm:$0xf]
        %v2451 = vld [vmem:[%s2414 + $0x90] sm:$0xf]
        %v2452 = vld [vmem:[%s2414 + $0x94] sm:$0xf]
        %v2453 = vld [vmem:[%s2414 + $0x98] sm:$0xf]
        %v2454 = vld [vmem:[%s2414 + $0x9c] sm:$0xf]
        %v2455 = vld [vmem:[%s2414 + $0xa0] sm:$0xf]
        %v2456 = vld [vmem:[%s2414 + $0xa4] sm:$0xf]
        %v2457 = vld [vmem:[%s2414 + $0xa8] sm:$0xf]
        %v2458 = vld [vmem:[%s2414 + $0xac] sm:$0xf]
        %v2459 = vld [vmem:[%s2414 + $0xb0] sm:$0xf]
        %v2460 = vld [vmem:[%s2414 + $0xb4] sm:$0xf]
        %v2461 = vld [vmem:[%s2414 + $0xb8] sm:$0xf]
        %v2462 = vld [vmem:[%s2414 + $0xbc] sm:$0xf]
        %v2463 = vld [vmem:[%s2414 + $0xc0] sm:$0xf]
        %v2464 = vld [vmem:[%s2414 + $0xc4] sm:$0xf]
        %v2465 = vld [vmem:[%s2414 + $0xc8] sm:$0xf]
        %v2466 = vld [vmem:[%s2414 + $0xcc] sm:$0xf]
        %v2467 = vld [vmem:[%s2414 + $0xd0] sm:$0xf]
        %v2468 = vld [vmem:[%s2414 + $0xd4] sm:$0xf]
        %v2469 = vld [vmem:[%s2414 + $0xd8] sm:$0xf]
        %v2470 = vld [vmem:[%s2414 + $0xdc] sm:$0xf]
        %v2471 = vld [vmem:[%s2414 + $0xe0] sm:$0xf]
        %v2472 = vld [vmem:[%s2414 + $0xe4] sm:$0xf]
        %v2473 = vld [vmem:[%s2414 + $0xe8] sm:$0xf]
        %v2474 = vld [vmem:[%s2414 + $0xec] sm:$0xf]
        %v2475 = vld [vmem:[%s2414 + $0xf0] sm:$0xf]
        %v2476 = vld [vmem:[%s2414 + $0xf4] sm:$0xf]
        %v2477 = vld [vmem:[%s2414 + $0xf8] sm:$0xf]
        %v2478 = vld [vmem:[%s2414 + $0xfc] sm:$0xf]
        %v2481 = vunpack.c.l.b16 %v2412
        %v2482 = vunpack.c.h.b16 %v2412
        %v2483 = vunpack.c.l.b16 %v2413
        %v2484 = vunpack.c.h.b16 %v2413
        %v2485 = vpack.c.b16 %v2481, %v2481
        %v2486 = vpack.c.b16 %v2482, %v2482
        %v2487 = vpack.c.b16 %v2483, %v2483
        %v2488 = vpack.c.b16 %v2484, %v2484
        %v2557 = vunpack.c.l.b16 %v2415
        %v2558 = vunpack.c.l.b16 %v2416
        %v2559 = vunpack.c.l.b16 %v2417
        %v2560 = vunpack.c.l.b16 %v2418
        %v2561 = vunpack.c.l.b16 %v2419
        %v2562 = vunpack.c.l.b16 %v2420
        %v2563 = vunpack.c.l.b16 %v2421
        %v2564 = vunpack.c.l.b16 %v2422
        %v2565 = vunpack.c.l.b16 %v2423
        %v2566 = vunpack.c.l.b16 %v2424
        %v2567 = vunpack.c.l.b16 %v2425
        %v2568 = vunpack.c.l.b16 %v2426
        %v2569 = vunpack.c.l.b16 %v2427
        %v2570 = vunpack.c.l.b16 %v2428
        %v2571 = vunpack.c.l.b16 %v2429
        %v2572 = vunpack.c.l.b16 %v2430
        %v2573 = vunpack.c.l.b16 %v2431
        %v2574 = vunpack.c.l.b16 %v2432
        %v2575 = vunpack.c.l.b16 %v2433
        %v2576 = vunpack.c.l.b16 %v2434
        %v2577 = vunpack.c.l.b16 %v2435
        %v2578 = vunpack.c.l.b16 %v2436
        %v2579 = vunpack.c.l.b16 %v2437
        %v2580 = vunpack.c.l.b16 %v2438
        %v2581 = vunpack.c.l.b16 %v2439
        %v2582 = vunpack.c.l.b16 %v2440
        %v2583 = vunpack.c.l.b16 %v2441
        %v2584 = vunpack.c.l.b16 %v2442
        %v2585 = vunpack.c.l.b16 %v2443
        %v2586 = vunpack.c.l.b16 %v2444
        %v2587 = vunpack.c.l.b16 %v2445
        %v2588 = vunpack.c.l.b16 %v2446
        %v2589 = vunpack.c.l.b16 %v2447
        %v2590 = vunpack.c.l.b16 %v2448
        %v2591 = vunpack.c.l.b16 %v2449
        %v2592 = vunpack.c.l.b16 %v2450
        %v2593 = vunpack.c.l.b16 %v2451
        %v2594 = vunpack.c.l.b16 %v2452
        %v2595 = vunpack.c.l.b16 %v2453
        %v2596 = vunpack.c.l.b16 %v2454
        %v2597 = vunpack.c.l.b16 %v2455
        %v2598 = vunpack.c.l.b16 %v2456
        %v2599 = vunpack.c.l.b16 %v2457
        %v2600 = vunpack.c.l.b16 %v2458
        %v2601 = vunpack.c.l.b16 %v2459
        %v2602 = vunpack.c.l.b16 %v2460
        %v2603 = vunpack.c.l.b16 %v2461
        %v2604 = vunpack.c.l.b16 %v2462
        %v2605 = vunpack.c.l.b16 %v2463
        %v2606 = vunpack.c.l.b16 %v2464
        %v2607 = vunpack.c.l.b16 %v2465
        %v2608 = vunpack.c.l.b16 %v2466
        %v2609 = vunpack.c.l.b16 %v2467
        %v2610 = vunpack.c.l.b16 %v2468
        %v2611 = vunpack.c.l.b16 %v2469
        %v2612 = vunpack.c.l.b16 %v2470
        %v2613 = vunpack.c.l.b16 %v2471
        %v2614 = vunpack.c.l.b16 %v2472
        %v2615 = vunpack.c.l.b16 %v2473
        %v2616 = vunpack.c.l.b16 %v2474
        %v2617 = vunpack.c.l.b16 %v2475
        %v2618 = vunpack.c.l.b16 %v2476
        %v2619 = vunpack.c.l.b16 %v2477
        %v2620 = vunpack.c.l.b16 %v2478
        %v2621 = vpack.c.b16 %v2558, %v2557
        %v2622 = vpack.c.b16 %v2560, %v2559
        %v2623 = vpack.c.b16 %v2562, %v2561
        %v2624 = vpack.c.b16 %v2564, %v2563
        %v2625 = vpack.c.b16 %v2566, %v2565
        %v2626 = vpack.c.b16 %v2568, %v2567
        %v2627 = vpack.c.b16 %v2570, %v2569
        %v2628 = vpack.c.b16 %v2572, %v2571
        %v2629 = vpack.c.b16 %v2574, %v2573
        %v2630 = vpack.c.b16 %v2576, %v2575
        %v2631 = vpack.c.b16 %v2578, %v2577
        %v2632 = vpack.c.b16 %v2580, %v2579
        %v2633 = vpack.c.b16 %v2582, %v2581
        %v2634 = vpack.c.b16 %v2584, %v2583
        %v2635 = vpack.c.b16 %v2586, %v2585
        %v2636 = vpack.c.b16 %v2588, %v2587
        %v2637 = vpack.c.b16 %v2590, %v2589
        %v2638 = vpack.c.b16 %v2592, %v2591
        %v2639 = vpack.c.b16 %v2594, %v2593
        %v2640 = vpack.c.b16 %v2596, %v2595
        %v2641 = vpack.c.b16 %v2598, %v2597
        %v2642 = vpack.c.b16 %v2600, %v2599
        %v2643 = vpack.c.b16 %v2602, %v2601
        %v2644 = vpack.c.b16 %v2604, %v2603
        %v2645 = vpack.c.b16 %v2606, %v2605
        %v2646 = vpack.c.b16 %v2608, %v2607
        %v2647 = vpack.c.b16 %v2610, %v2609
        %v2648 = vpack.c.b16 %v2612, %v2611
        %v2649 = vpack.c.b16 %v2614, %v2613
        %v2650 = vpack.c.b16 %v2616, %v2615
        %v2651 = vpack.c.b16 %v2618, %v2617
        %v2652 = vpack.c.b16 %v2620, %v2619
        %2685 = vmatprep.subr.bf16.mxu0 0
        %2686 = vmatpush1.bf16.msra.mxu0 %v2621
        %2687 = vmatprep.subr.bf16.mxu0 0
        %2688 = vmatpush1.bf16.msra.mxu0 %v2622
        %2689 = vmatprep.subr.bf16.mxu0 0
        %2690 = vmatpush1.bf16.msra.mxu0 %v2623
        %2691 = vmatprep.subr.bf16.mxu0 0
        %2692 = vmatpush1.bf16.msra.mxu0 %v2624
        %2693 = vmatprep.subr.bf16.mxu0 0
        %2694 = vmatpush1.bf16.msra.mxu0 %v2625
        %2695 = vmatprep.subr.bf16.mxu0 0
        %2696 = vmatpush1.bf16.msra.mxu0 %v2626
        %2697 = vmatprep.subr.bf16.mxu0 0
        %2698 = vmatpush1.bf16.msra.mxu0 %v2627
        %2699 = vmatprep.subr.bf16.mxu0 0
        %2700 = vmatpush1.bf16.msra.mxu0 %v2628
        %2701 = vmatprep.subr.bf16.mxu0 0
        %2702 = vmatpush1.bf16.msra.mxu0 %v2629
        %2703 = vmatprep.subr.bf16.mxu0 0
        %2704 = vmatpush1.bf16.msra.mxu0 %v2630
        %2705 = vmatprep.subr.bf16.mxu0 0
        %2706 = vmatpush1.bf16.msra.mxu0 %v2631
        %2707 = vmatprep.subr.bf16.mxu0 0
        %2708 = vmatpush1.bf16.msra.mxu0 %v2632
        %2709 = vmatprep.subr.bf16.mxu0 0
        %2710 = vmatpush1.bf16.msra.mxu0 %v2633
        %2711 = vmatprep.subr.bf16.mxu0 0
        %2712 = vmatpush1.bf16.msra.mxu0 %v2634
        %2713 = vmatprep.subr.bf16.mxu0 0
        %2714 = vmatpush1.bf16.msra.mxu0 %v2635
        %2715 = vmatprep.subr.bf16.mxu0 0
        %2716 = vmatpush1.bf16.msra.mxu0 %v2636
        %2717 = vmatprep.mubr.bf16.mxu0 %v2486
        %2718 = vmatmul.mubr.bf16.gmra.mrb[0].mxu0 %v2485
        %v2719 = vpop.f32.mrb[0].mxu0
        %v2720 = vadd.f32 0.0, %v2719
        %v2721 = vpop.f32.mrb[0].mxu0
        %v2722 = vpop.f32.mrb[0].mxu0
        %v2723 = vpop.f32.mrb[0].mxu0
        %2724 = vdwg.mxu0
        %2725 = vmatprep.subr.bf16.mxu0 0
        %2726 = vmatpush1.bf16.msra.mxu0 %v2637
        %2727 = vmatprep.subr.bf16.mxu0 0
        %2728 = vmatpush1.bf16.msra.mxu0 %v2638
        %2729 = vmatprep.subr.bf16.mxu0 0
        %2730 = vmatpush1.bf16.msra.mxu0 %v2639
        %2731 = vmatprep.subr.bf16.mxu0 0
        %2732 = vmatpush1.bf16.msra.mxu0 %v2640
        %2733 = vmatprep.subr.bf16.mxu0 0
        %2734 = vmatpush1.bf16.msra.mxu0 %v2641
        %2735 = vmatprep.subr.bf16.mxu0 0
        %2736 = vmatpush1.bf16.msra.mxu0 %v2642
        %2737 = vmatprep.subr.bf16.mxu0 0
        %2738 = vmatpush1.bf16.msra.mxu0 %v2643
        %2739 = vmatprep.subr.bf16.mxu0 0
        %2740 = vmatpush1.bf16.msra.mxu0 %v2644
        %2741 = vmatprep.subr.bf16.mxu0 0
        %2742 = vmatpush1.bf16.msra.mxu0 %v2645
        %2743 = vmatprep.subr.bf16.mxu0 0
        %2744 = vmatpush1.bf16.msra.mxu0 %v2646
        %2745 = vmatprep.subr.bf16.mxu0 0
        %2746 = vmatpush1.bf16.msra.mxu0 %v2647
        %2747 = vmatprep.subr.bf16.mxu0 0
        %2748 = vmatpush1.bf16.msra.mxu0 %v2648
        %2749 = vmatprep.subr.bf16.mxu0 0
        %2750 = vmatpush1.bf16.msra.mxu0 %v2649
        %2751 = vmatprep.subr.bf16.mxu0 0
        %2752 = vmatpush1.bf16.msra.mxu0 %v2650
        %2753 = vmatprep.subr.bf16.mxu0 0
        %2754 = vmatpush1.bf16.msra.mxu0 %v2651
        %2755 = vmatprep.subr.bf16.mxu0 0
        %2756 = vmatpush1.bf16.msra.mxu0 %v2652
        %2757 = vmatprep.mubr.bf16.mxu0 %v2488
        %2758 = vmatmul.mubr.bf16.gmra.mrb[0].mxu0 %v2487
        %v2759 = vpop.f32.mrb[0].mxu0
        %v2760 = vadd.f32 %v2720, %v2759
        %v2761 = vpop.f32.mrb[0].mxu0
        %v2762 = vpop.f32.mrb[0].mxu0
        %v2763 = vpop.f32.mrb[0].mxu0
        %2764 = vdwg.mxu0
        %v2765 = vadd.f32 %v2407, %v2760
        %s2766 = scalar_lea.vmem %s1, 1792
        %v2767 = vld [vmem:[%s2766] sm:$0xf]
        %v2768 = vld [vmem:[%s2766 + $0x4] sm:$0xf]
        %v2769 = vld [vmem:[%s2766 + $0x8] sm:$0xf]
        %v2770 = vld [vmem:[%s2766 + $0xc] sm:$0xf]
        %v2771 = vld [vmem:[%s2766 + $0x10] sm:$0xf]
        %v2772 = vld [vmem:[%s2766 + $0x14] sm:$0xf]
        %v2773 = vld [vmem:[%s2766 + $0x18] sm:$0xf]
        %v2774 = vld [vmem:[%s2766 + $0x1c] sm:$0xf]
        %v2775 = vld [vmem:[%s2766 + $0x20] sm:$0xf]
        %v2776 = vld [vmem:[%s2766 + $0x24] sm:$0xf]
        %v2777 = vld [vmem:[%s2766 + $0x28] sm:$0xf]
        %v2778 = vld [vmem:[%s2766 + $0x2c] sm:$0xf]
        %v2779 = vld [vmem:[%s2766 + $0x30] sm:$0xf]
        %v2780 = vld [vmem:[%s2766 + $0x34] sm:$0xf]
        %v2781 = vld [vmem:[%s2766 + $0x38] sm:$0xf]
        %v2782 = vld [vmem:[%s2766 + $0x3c] sm:$0xf]
        %v2783 = vld [vmem:[%s2766 + $0x40] sm:$0xf]
        %v2784 = vld [vmem:[%s2766 + $0x44] sm:$0xf]
        %v2785 = vld [vmem:[%s2766 + $0x48] sm:$0xf]
        %v2786 = vld [vmem:[%s2766 + $0x4c] sm:$0xf]
        %v2787 = vld [vmem:[%s2766 + $0x50] sm:$0xf]
        %v2788 = vld [vmem:[%s2766 + $0x54] sm:$0xf]
        %v2789 = vld [vmem:[%s2766 + $0x58] sm:$0xf]
        %v2790 = vld [vmem:[%s2766 + $0x5c] sm:$0xf]
        %v2791 = vld [vmem:[%s2766 + $0x60] sm:$0xf]
        %v2792 = vld [vmem:[%s2766 + $0x64] sm:$0xf]
        %v2793 = vld [vmem:[%s2766 + $0x68] sm:$0xf]
        %v2794 = vld [vmem:[%s2766 + $0x6c] sm:$0xf]
        %v2795 = vld [vmem:[%s2766 + $0x70] sm:$0xf]
        %v2796 = vld [vmem:[%s2766 + $0x74] sm:$0xf]
        %v2797 = vld [vmem:[%s2766 + $0x78] sm:$0xf]
        %v2798 = vld [vmem:[%s2766 + $0x7c] sm:$0xf]
        %v2799 = vld [vmem:[%s2766 + $0x80] sm:$0xf]
        %v2800 = vld [vmem:[%s2766 + $0x84] sm:$0xf]
        %v2801 = vld [vmem:[%s2766 + $0x88] sm:$0xf]
        %v2802 = vld [vmem:[%s2766 + $0x8c] sm:$0xf]
        %v2803 = vld [vmem:[%s2766 + $0x90] sm:$0xf]
        %v2804 = vld [vmem:[%s2766 + $0x94] sm:$0xf]
        %v2805 = vld [vmem:[%s2766 + $0x98] sm:$0xf]
        %v2806 = vld [vmem:[%s2766 + $0x9c] sm:$0xf]
        %v2807 = vld [vmem:[%s2766 + $0xa0] sm:$0xf]
        %v2808 = vld [vmem:[%s2766 + $0xa4] sm:$0xf]
        %v2809 = vld [vmem:[%s2766 + $0xa8] sm:$0xf]
        %v2810 = vld [vmem:[%s2766 + $0xac] sm:$0xf]
        %v2811 = vld [vmem:[%s2766 + $0xb0] sm:$0xf]
        %v2812 = vld [vmem:[%s2766 + $0xb4] sm:$0xf]
        %v2813 = vld [vmem:[%s2766 + $0xb8] sm:$0xf]
        %v2814 = vld [vmem:[%s2766 + $0xbc] sm:$0xf]
        %v2815 = vld [vmem:[%s2766 + $0xc0] sm:$0xf]
        %v2816 = vld [vmem:[%s2766 + $0xc4] sm:$0xf]
        %v2817 = vld [vmem:[%s2766 + $0xc8] sm:$0xf]
        %v2818 = vld [vmem:[%s2766 + $0xcc] sm:$0xf]
        %v2819 = vld [vmem:[%s2766 + $0xd0] sm:$0xf]
        %v2820 = vld [vmem:[%s2766 + $0xd4] sm:$0xf]
        %v2821 = vld [vmem:[%s2766 + $0xd8] sm:$0xf]
        %v2822 = vld [vmem:[%s2766 + $0xdc] sm:$0xf]
        %v2823 = vld [vmem:[%s2766 + $0xe0] sm:$0xf]
        %v2824 = vld [vmem:[%s2766 + $0xe4] sm:$0xf]
        %v2825 = vld [vmem:[%s2766 + $0xe8] sm:$0xf]
        %v2826 = vld [vmem:[%s2766 + $0xec] sm:$0xf]
        %v2827 = vld [vmem:[%s2766 + $0xf0] sm:$0xf]
        %v2828 = vld [vmem:[%s2766 + $0xf4] sm:$0xf]
        %v2829 = vld [vmem:[%s2766 + $0xf8] sm:$0xf]
        %v2830 = vld [vmem:[%s2766 + $0xfc] sm:$0xf]
        %v2832 = vshrl.u32 %v2485, 16
        %v2834 = vshll.u32 %v2485, 16
        %v2836 = vrot.slane %v2834, 1
        %v2837 = vor.u32 %v2832, %v2836
        %v2839 = vshrl.u32 %v2486, 16
        %v2841 = vshll.u32 %v2486, 16
        %v2843 = vrot.slane %v2841, 1
        %v2844 = vor.u32 %v2839, %v2843
        %v2846 = vshrl.u32 %v2487, 16
        %v2848 = vshll.u32 %v2487, 16
        %v2850 = vrot.slane %v2848, 1
        %v2851 = vor.u32 %v2846, %v2850
        %v2853 = vshrl.u32 %v2488, 16
        %v2855 = vshll.u32 %v2488, 16
        %v2857 = vrot.slane %v2855, 1
        %v2858 = vor.u32 %v2853, %v2857
        %v2927 = vunpack.c.l.b16 %v2767
        %v2928 = vunpack.c.l.b16 %v2768
        %v2929 = vunpack.c.l.b16 %v2769
        %v2930 = vunpack.c.l.b16 %v2770
        %v2931 = vunpack.c.l.b16 %v2771
        %v2932 = vunpack.c.l.b16 %v2772
        %v2933 = vunpack.c.l.b16 %v2773
        %v2934 = vunpack.c.l.b16 %v2774
        %v2935 = vunpack.c.l.b16 %v2775
        %v2936 = vunpack.c.l.b16 %v2776
        %v2937 = vunpack.c.l.b16 %v2777
        %v2938 = vunpack.c.l.b16 %v2778
        %v2939 = vunpack.c.l.b16 %v2779
        %v2940 = vunpack.c.l.b16 %v2780
        %v2941 = vunpack.c.l.b16 %v2781
        %v2942 = vunpack.c.l.b16 %v2782
        %v2943 = vunpack.c.l.b16 %v2783
        %v2944 = vunpack.c.l.b16 %v2784
        %v2945 = vunpack.c.l.b16 %v2785
        %v2946 = vunpack.c.l.b16 %v2786
        %v2947 = vunpack.c.l.b16 %v2787
        %v2948 = vunpack.c.l.b16 %v2788
        %v2949 = vunpack.c.l.b16 %v2789
        %v2950 = vunpack.c.l.b16 %v2790
        %v2951 = vunpack.c.l.b16 %v2791
        %v2952 = vunpack.c.l.b16 %v2792
        %v2953 = vunpack.c.l.b16 %v2793
        %v2954 = vunpack.c.l.b16 %v2794
        %v2955 = vunpack.c.l.b16 %v2795
        %v2956 = vunpack.c.l.b16 %v2796
        %v2957 = vunpack.c.l.b16 %v2797
        %v2958 = vunpack.c.l.b16 %v2798
        %v2959 = vunpack.c.l.b16 %v2799
        %v2960 = vunpack.c.l.b16 %v2800
        %v2961 = vunpack.c.l.b16 %v2801
        %v2962 = vunpack.c.l.b16 %v2802
        %v2963 = vunpack.c.l.b16 %v2803
        %v2964 = vunpack.c.l.b16 %v2804
        %v2965 = vunpack.c.l.b16 %v2805
        %v2966 = vunpack.c.l.b16 %v2806
        %v2967 = vunpack.c.l.b16 %v2807
        %v2968 = vunpack.c.l.b16 %v2808
        %v2969 = vunpack.c.l.b16 %v2809
        %v2970 = vunpack.c.l.b16 %v2810
        %v2971 = vunpack.c.l.b16 %v2811
        %v2972 = vunpack.c.l.b16 %v2812
        %v2973 = vunpack.c.l.b16 %v2813
        %v2974 = vunpack.c.l.b16 %v2814
        %v2975 = vunpack.c.l.b16 %v2815
        %v2976 = vunpack.c.l.b16 %v2816
        %v2977 = vunpack.c.l.b16 %v2817
        %v2978 = vunpack.c.l.b16 %v2818
        %v2979 = vunpack.c.l.b16 %v2819
        %v2980 = vunpack.c.l.b16 %v2820
        %v2981 = vunpack.c.l.b16 %v2821
        %v2982 = vunpack.c.l.b16 %v2822
        %v2983 = vunpack.c.l.b16 %v2823
        %v2984 = vunpack.c.l.b16 %v2824
        %v2985 = vunpack.c.l.b16 %v2825
        %v2986 = vunpack.c.l.b16 %v2826
        %v2987 = vunpack.c.l.b16 %v2827
        %v2988 = vunpack.c.l.b16 %v2828
        %v2989 = vunpack.c.l.b16 %v2829
        %v2990 = vunpack.c.l.b16 %v2830
        %v2991 = vpack.c.b16 %v2928, %v2927
        %v2992 = vpack.c.b16 %v2930, %v2929
        %v2993 = vpack.c.b16 %v2932, %v2931
        %v2994 = vpack.c.b16 %v2934, %v2933
        %v2995 = vpack.c.b16 %v2936, %v2935
        %v2996 = vpack.c.b16 %v2938, %v2937
        %v2997 = vpack.c.b16 %v2940, %v2939
        %v2998 = vpack.c.b16 %v2942, %v2941
        %v2999 = vpack.c.b16 %v2944, %v2943
        %v3000 = vpack.c.b16 %v2946, %v2945
        %v3001 = vpack.c.b16 %v2948, %v2947
        %v3002 = vpack.c.b16 %v2950, %v2949
        %v3003 = vpack.c.b16 %v2952, %v2951
        %v3004 = vpack.c.b16 %v2954, %v2953
        %v3005 = vpack.c.b16 %v2956, %v2955
        %v3006 = vpack.c.b16 %v2958, %v2957
        %v3007 = vpack.c.b16 %v2960, %v2959
        %v3008 = vpack.c.b16 %v2962, %v2961
        %v3009 = vpack.c.b16 %v2964, %v2963
        %v3010 = vpack.c.b16 %v2966, %v2965
        %v3011 = vpack.c.b16 %v2968, %v2967
        %v3012 = vpack.c.b16 %v2970, %v2969
        %v3013 = vpack.c.b16 %v2972, %v2971
        %v3014 = vpack.c.b16 %v2974, %v2973
        %v3015 = vpack.c.b16 %v2976, %v2975
        %v3016 = vpack.c.b16 %v2978, %v2977
        %v3017 = vpack.c.b16 %v2980, %v2979
        %v3018 = vpack.c.b16 %v2982, %v2981
        %v3019 = vpack.c.b16 %v2984, %v2983
        %v3020 = vpack.c.b16 %v2986, %v2985
        %v3021 = vpack.c.b16 %v2988, %v2987
        %v3022 = vpack.c.b16 %v2990, %v2989
        %3055 = vmatprep.subr.bf16.mxu0 0
        %3056 = vmatpush1.bf16.msra.mxu0 %v2991
        %3057 = vmatprep.subr.bf16.mxu0 0
        %3058 = vmatpush1.bf16.msra.mxu0 %v2992
        %3059 = vmatprep.subr.bf16.mxu0 0
        %3060 = vmatpush1.bf16.msra.mxu0 %v2993
        %3061 = vmatprep.subr.bf16.mxu0 0
        %3062 = vmatpush1.bf16.msra.mxu0 %v2994
        %3063 = vmatprep.subr.bf16.mxu0 0
        %3064 = vmatpush1.bf16.msra.mxu0 %v2995
        %3065 = vmatprep.subr.bf16.mxu0 0
        %3066 = vmatpush1.bf16.msra.mxu0 %v2996
        %3067 = vmatprep.subr.bf16.mxu0 0
        %3068 = vmatpush1.bf16.msra.mxu0 %v2997
        %3069 = vmatprep.subr.bf16.mxu0 0
        %3070 = vmatpush1.bf16.msra.mxu0 %v2998
        %3071 = vmatprep.subr.bf16.mxu0 0
        %3072 = vmatpush1.bf16.msra.mxu0 %v2999
        %3073 = vmatprep.subr.bf16.mxu0 0
        %3074 = vmatpush1.bf16.msra.mxu0 %v3000
        %3075 = vmatprep.subr.bf16.mxu0 0
        %3076 = vmatpush1.bf16.msra.mxu0 %v3001
        %3077 = vmatprep.subr.bf16.mxu0 0
        %3078 = vmatpush1.bf16.msra.mxu0 %v3002
        %3079 = vmatprep.subr.bf16.mxu0 0
        %3080 = vmatpush1.bf16.msra.mxu0 %v3003
        %3081 = vmatprep.subr.bf16.mxu0 0
        %3082 = vmatpush1.bf16.msra.mxu0 %v3004
        %3083 = vmatprep.subr.bf16.mxu0 0
        %3084 = vmatpush1.bf16.msra.mxu0 %v3005
        %3085 = vmatprep.subr.bf16.mxu0 0
        %3086 = vmatpush1.bf16.msra.mxu0 %v3006
        %3087 = vmatprep.mubr.bf16.mxu0 %v2844
        %3088 = vmatmul.mubr.bf16.gmra.mrb[0].mxu0 %v2837
        %v3089 = vpop.f32.mrb[0].mxu0
        %v3090 = vadd.f32 0.0, %v3089
        %v3091 = vpop.f32.mrb[0].mxu0
        %v3092 = vpop.f32.mrb[0].mxu0
        %v3093 = vpop.f32.mrb[0].mxu0
        %3094 = vdwg.mxu0
        %3095 = vmatprep.subr.bf16.mxu0 0
        %3096 = vmatpush1.bf16.msra.mxu0 %v3007
        %3097 = vmatprep.subr.bf16.mxu0 0
        %3098 = vmatpush1.bf16.msra.mxu0 %v3008
        %3099 = vmatprep.subr.bf16.mxu0 0
        %3100 = vmatpush1.bf16.msra.mxu0 %v3009
        %3101 = vmatprep.subr.bf16.mxu0 0
        %3102 = vmatpush1.bf16.msra.mxu0 %v3010
        %3103 = vmatprep.subr.bf16.mxu0 0
        %3104 = vmatpush1.bf16.msra.mxu0 %v3011
        %3105 = vmatprep.subr.bf16.mxu0 0
        %3106 = vmatpush1.bf16.msra.mxu0 %v3012
        %3107 = vmatprep.subr.bf16.mxu0 0
        %3108 = vmatpush1.bf16.msra.mxu0 %v3013
        %3109 = vmatprep.subr.bf16.mxu0 0
        %3110 = vmatpush1.bf16.msra.mxu0 %v3014
        %3111 = vmatprep.subr.bf16.mxu0 0
        %3112 = vmatpush1.bf16.msra.mxu0 %v3015
        %3113 = vmatprep.subr.bf16.mxu0 0
        %3114 = vmatpush1.bf16.msra.mxu0 %v3016
        %3115 = vmatprep.subr.bf16.mxu0 0
        %3116 = vmatpush1.bf16.msra.mxu0 %v3017
        %3117 = vmatprep.subr.bf16.mxu0 0
        %3118 = vmatpush1.bf16.msra.mxu0 %v3018
        %3119 = vmatprep.subr.bf16.mxu0 0
        %3120 = vmatpush1.bf16.msra.mxu0 %v3019
        %3121 = vmatprep.subr.bf16.mxu0 0
        %3122 = vmatpush1.bf16.msra.mxu0 %v3020
        %3123 = vmatprep.subr.bf16.mxu0 0
        %3124 = vmatpush1.bf16.msra.mxu0 %v3021
        %3125 = vmatprep.subr.bf16.mxu0 0
        %3126 = vmatpush1.bf16.msra.mxu0 %v3022
        %3127 = vmatprep.mubr.bf16.mxu0 %v2858
        %3128 = vmatmul.mubr.bf16.gmra.mrb[0].mxu0 %v2851
        %v3129 = vpop.f32.mrb[0].mxu0
        %v3130 = vadd.f32 %v3090, %v3129
        %v3131 = vpop.f32.mrb[0].mxu0
        %v3132 = vpop.f32.mrb[0].mxu0
        %v3133 = vpop.f32.mrb[0].mxu0
        %3134 = vdwg.mxu0
        %v3135 = vadd.f32 %v2765, %v3130
        %v3136 = vld [vmem:[%s2411] sm:$0xee]
        %v3137 = vld [vmem:[%s2411 + $0x8] sm:$0xee]
        %v3138 = vld [vmem:[%s2411 + $0x10] sm:$0x11]
        %v3139 = vld [vmem:[%s2411 + $0x18] sm:$0x11]
        %s3140 = scalar_lea.vmem %s1, 2048
        %v3141 = vld [vmem:[%s3140] sm:$0xf]
        %v3142 = vld [vmem:[%s3140 + $0x4] sm:$0xf]
        %v3143 = vld [vmem:[%s3140 + $0x8] sm:$0xf]
        %v3144 = vld [vmem:[%s3140 + $0xc] sm:$0xf]
        %v3145 = vld [vmem:[%s3140 + $0x10] sm:$0xf]
        %v3146 = vld [vmem:[%s3140 + $0x14] sm:$0xf]
        %v3147 = vld [vmem:[%s3140 + $0x18] sm:$0xf]
        %v3148 = vld [vmem:[%s3140 + $0x1c] sm:$0xf]
        %v3149 = vld [vmem:[%s3140 + $0x20] sm:$0xf]
        %v3150 = vld [vmem:[%s3140 + $0x24] sm:$0xf]
        %v3151 = vld [vmem:[%s3140 + $0x28] sm:$0xf]
        %v3152 = vld [vmem:[%s3140 + $0x2c] sm:$0xf]
        %v3153 = vld [vmem:[%s3140 + $0x30] sm:$0xf]
        %v3154 = vld [vmem:[%s3140 + $0x34] sm:$0xf]
        %v3155 = vld [vmem:[%s3140 + $0x38] sm:$0xf]
        %v3156 = vld [vmem:[%s3140 + $0x3c] sm:$0xf]
        %v3157 = vld [vmem:[%s3140 + $0x40] sm:$0xf]
        %v3158 = vld [vmem:[%s3140 + $0x44] sm:$0xf]
        %v3159 = vld [vmem:[%s3140 + $0x48] sm:$0xf]
        %v3160 = vld [vmem:[%s3140 + $0x4c] sm:$0xf]
        %v3161 = vld [vmem:[%s3140 + $0x50] sm:$0xf]
        %v3162 = vld [vmem:[%s3140 + $0x54] sm:$0xf]
        %v3163 = vld [vmem:[%s3140 + $0x58] sm:$0xf]
        %v3164 = vld [vmem:[%s3140 + $0x5c] sm:$0xf]
        %v3165 = vld [vmem:[%s3140 + $0x60] sm:$0xf]
        %v3166 = vld [vmem:[%s3140 + $0x64] sm:$0xf]
        %v3167 = vld [vmem:[%s3140 + $0x68] sm:$0xf]
        %v3168 = vld [vmem:[%s3140 + $0x6c] sm:$0xf]
        %v3169 = vld [vmem:[%s3140 + $0x70] sm:$0xf]
        %v3170 = vld [vmem:[%s3140 + $0x74] sm:$0xf]
        %v3171 = vld [vmem:[%s3140 + $0x78] sm:$0xf]
        %v3172 = vld [vmem:[%s3140 + $0x7c] sm:$0xf]
        %v3173 = vld [vmem:[%s3140 + $0x80] sm:$0xf]
        %v3174 = vld [vmem:[%s3140 + $0x84] sm:$0xf]
        %v3175 = vld [vmem:[%s3140 + $0x88] sm:$0xf]
        %v3176 = vld [vmem:[%s3140 + $0x8c] sm:$0xf]
        %v3177 = vld [vmem:[%s3140 + $0x90] sm:$0xf]
        %v3178 = vld [vmem:[%s3140 + $0x94] sm:$0xf]
        %v3179 = vld [vmem:[%s3140 + $0x98] sm:$0xf]
        %v3180 = vld [vmem:[%s3140 + $0x9c] sm:$0xf]
        %v3181 = vld [vmem:[%s3140 + $0xa0] sm:$0xf]
        %v3182 = vld [vmem:[%s3140 + $0xa4] sm:$0xf]
        %v3183 = vld [vmem:[%s3140 + $0xa8] sm:$0xf]
        %v3184 = vld [vmem:[%s3140 + $0xac] sm:$0xf]
        %v3185 = vld [vmem:[%s3140 + $0xb0] sm:$0xf]
        %v3186 = vld [vmem:[%s3140 + $0xb4] sm:$0xf]
        %v3187 = vld [vmem:[%s3140 + $0xb8] sm:$0xf]
        %v3188 = vld [vmem:[%s3140 + $0xbc] sm:$0xf]
        %v3189 = vld [vmem:[%s3140 + $0xc0] sm:$0xf]
        %v3190 = vld [vmem:[%s3140 + $0xc4] sm:$0xf]
        %v3191 = vld [vmem:[%s3140 + $0xc8] sm:$0xf]
        %v3192 = vld [vmem:[%s3140 + $0xcc] sm:$0xf]
        %v3193 = vld [vmem:[%s3140 + $0xd0] sm:$0xf]
        %v3194 = vld [vmem:[%s3140 + $0xd4] sm:$0xf]
        %v3195 = vld [vmem:[%s3140 + $0xd8] sm:$0xf]
        %v3196 = vld [vmem:[%s3140 + $0xdc] sm:$0xf]
        %v3197 = vld [vmem:[%s3140 + $0xe0] sm:$0xf]
        %v3198 = vld [vmem:[%s3140 + $0xe4] sm:$0xf]
        %v3199 = vld [vmem:[%s3140 + $0xe8] sm:$0xf]
        %v3200 = vld [vmem:[%s3140 + $0xec] sm:$0xf]
        %v3201 = vld [vmem:[%s3140 + $0xf0] sm:$0xf]
        %v3202 = vld [vmem:[%s3140 + $0xf4] sm:$0xf]
        %v3203 = vld [vmem:[%s3140 + $0xf8] sm:$0xf]
        %v3204 = vld [vmem:[%s3140 + $0xfc] sm:$0xf]
        %v3209 = vunpack.c.l.b16 %v3136
        %v3210 = vunpack.c.h.b16 %v3136
        %v3211 = vunpack.c.l.b16 %v3137
        %v3212 = vunpack.c.h.b16 %v3137
        %v3213 = vunpack.c.l.b16 %v3138
        %v3214 = vunpack.c.h.b16 %v3138
        %v3215 = vunpack.c.l.b16 %v3139
        %v3216 = vunpack.c.h.b16 %v3139
        %v3217 = vpack.c.b16 %v3213, %v3209
        %v3218 = vpack.c.b16 %v3214, %v3210
        %v3219 = vpack.c.b16 %v3215, %v3211
        %v3220 = vpack.c.b16 %v3216, %v3212
        %v3221 = vrot.slane %v3217, 1
        %v3222 = vrot.slane %v3218, 1
        %v3223 = vrot.slane %v3219, 1
        %v3224 = vrot.slane %v3220, 1
        %v3293 = vunpack.c.l.b16 %v3141
        %v3294 = vunpack.c.l.b16 %v3142
        %v3295 = vunpack.c.l.b16 %v3143
        %v3296 = vunpack.c.l.b16 %v3144
        %v3297 = vunpack.c.l.b16 %v3145
        %v3298 = vunpack.c.l.b16 %v3146
        %v3299 = vunpack.c.l.b16 %v3147
        %v3300 = vunpack.c.l.b16 %v3148
        %v3301 = vunpack.c.l.b16 %v3149
        %v3302 = vunpack.c.l.b16 %v3150
        %v3303 = vunpack.c.l.b16 %v3151
        %v3304 = vunpack.c.l.b16 %v3152
        %v3305 = vunpack.c.l.b16 %v3153
        %v3306 = vunpack.c.l.b16 %v3154
        %v3307 = vunpack.c.l.b16 %v3155
        %v3308 = vunpack.c.l.b16 %v3156
        %v3309 = vunpack.c.l.b16 %v3157
        %v3310 = vunpack.c.l.b16 %v3158
        %v3311 = vunpack.c.l.b16 %v3159
        %v3312 = vunpack.c.l.b16 %v3160
        %v3313 = vunpack.c.l.b16 %v3161
        %v3314 = vunpack.c.l.b16 %v3162
        %v3315 = vunpack.c.l.b16 %v3163
        %v3316 = vunpack.c.l.b16 %v3164
        %v3317 = vunpack.c.l.b16 %v3165
        %v3318 = vunpack.c.l.b16 %v3166
        %v3319 = vunpack.c.l.b16 %v3167
        %v3320 = vunpack.c.l.b16 %v3168
        %v3321 = vunpack.c.l.b16 %v3169
        %v3322 = vunpack.c.l.b16 %v3170
        %v3323 = vunpack.c.l.b16 %v3171
        %v3324 = vunpack.c.l.b16 %v3172
        %v3325 = vunpack.c.l.b16 %v3173
        %v3326 = vunpack.c.l.b16 %v3174
        %v3327 = vunpack.c.l.b16 %v3175
        %v3328 = vunpack.c.l.b16 %v3176
        %v3329 = vunpack.c.l.b16 %v3177
        %v3330 = vunpack.c.l.b16 %v3178
        %v3331 = vunpack.c.l.b16 %v3179
        %v3332 = vunpack.c.l.b16 %v3180
        %v3333 = vunpack.c.l.b16 %v3181
        %v3334 = vunpack.c.l.b16 %v3182
        %v3335 = vunpack.c.l.b16 %v3183
        %v3336 = vunpack.c.l.b16 %v3184
        %v3337 = vunpack.c.l.b16 %v3185
        %v3338 = vunpack.c.l.b16 %v3186
        %v3339 = vunpack.c.l.b16 %v3187
        %v3340 = vunpack.c.l.b16 %v3188
        %v3341 = vunpack.c.l.b16 %v3189
        %v3342 = vunpack.c.l.b16 %v3190
        %v3343 = vunpack.c.l.b16 %v3191
        %v3344 = vunpack.c.l.b16 %v3192
        %v3345 = vunpack.c.l.b16 %v3193
        %v3346 = vunpack.c.l.b16 %v3194
        %v3347 = vunpack.c.l.b16 %v3195
        %v3348 = vunpack.c.l.b16 %v3196
        %v3349 = vunpack.c.l.b16 %v3197
        %v3350 = vunpack.c.l.b16 %v3198
        %v3351 = vunpack.c.l.b16 %v3199
        %v3352 = vunpack.c.l.b16 %v3200
        %v3353 = vunpack.c.l.b16 %v3201
        %v3354 = vunpack.c.l.b16 %v3202
        %v3355 = vunpack.c.l.b16 %v3203
        %v3356 = vunpack.c.l.b16 %v3204
        %v3357 = vpack.c.b16 %v3294, %v3293
        %v3358 = vpack.c.b16 %v3296, %v3295
        %v3359 = vpack.c.b16 %v3298, %v3297
        %v3360 = vpack.c.b16 %v3300, %v3299
        %v3361 = vpack.c.b16 %v3302, %v3301
        %v3362 = vpack.c.b16 %v3304, %v3303
        %v3363 = vpack.c.b16 %v3306, %v3305
        %v3364 = vpack.c.b16 %v3308, %v3307
        %v3365 = vpack.c.b16 %v3310, %v3309
        %v3366 = vpack.c.b16 %v3312, %v3311
        %v3367 = vpack.c.b16 %v3314, %v3313
        %v3368 = vpack.c.b16 %v3316, %v3315
        %v3369 = vpack.c.b16 %v3318, %v3317
        %v3370 = vpack.c.b16 %v3320, %v3319
        %v3371 = vpack.c.b16 %v3322, %v3321
        %v3372 = vpack.c.b16 %v3324, %v3323
        %v3373 = vpack.c.b16 %v3326, %v3325
        %v3374 = vpack.c.b16 %v3328, %v3327
        %v3375 = vpack.c.b16 %v3330, %v3329
        %v3376 = vpack.c.b16 %v3332, %v3331
        %v3377 = vpack.c.b16 %v3334, %v3333
        %v3378 = vpack.c.b16 %v3336, %v3335
        %v3379 = vpack.c.b16 %v3338, %v3337
        %v3380 = vpack.c.b16 %v3340, %v3339
        %v3381 = vpack.c.b16 %v3342, %v3341
        %v3382 = vpack.c.b16 %v3344, %v3343
        %v3383 = vpack.c.b16 %v3346, %v3345
        %v3384 = vpack.c.b16 %v3348, %v3347
        %v3385 = vpack.c.b16 %v3350, %v3349
        %v3386 = vpack.c.b16 %v3352, %v3351
        %v3387 = vpack.c.b16 %v3354, %v3353
        %v3388 = vpack.c.b16 %v3356, %v3355
        %3421 = vmatprep.subr.bf16.mxu0 0
        %3422 = vmatpush1.bf16.msra.mxu0 %v3357
        %3423 = vmatprep.subr.bf16.mxu0 0
        %3424 = vmatpush1.bf16.msra.mxu0 %v3358
        %3425 = vmatprep.subr.bf16.mxu0 0
        %3426 = vmatpush1.bf16.msra.mxu0 %v3359
        %3427 = vmatprep.subr.bf16.mxu0 0
        %3428 = vmatpush1.bf16.msra.mxu0 %v3360
        %3429 = vmatprep.subr.bf16.mxu0 0
        %3430 = vmatpush1.bf16.msra.mxu0 %v3361
        %3431 = vmatprep.subr.bf16.mxu0 0
        %3432 = vmatpush1.bf16.msra.mxu0 %v3362
        %3433 = vmatprep.subr.bf16.mxu0 0
        %3434 = vmatpush1.bf16.msra.mxu0 %v3363
        %3435 = vmatprep.subr.bf16.mxu0 0
        %3436 = vmatpush1.bf16.msra.mxu0 %v3364
        %3437 = vmatprep.subr.bf16.mxu0 0
        %3438 = vmatpush1.bf16.msra.mxu0 %v3365
        %3439 = vmatprep.subr.bf16.mxu0 0
        %3440 = vmatpush1.bf16.msra.mxu0 %v3366
        %3441 = vmatprep.subr.bf16.mxu0 0
        %3442 = vmatpush1.bf16.msra.mxu0 %v3367
        %3443 = vmatprep.subr.bf16.mxu0 0
        %3444 = vmatpush1.bf16.msra.mxu0 %v3368
        %3445 = vmatprep.subr.bf16.mxu0 0
        %3446 = vmatpush1.bf16.msra.mxu0 %v3369
        %3447 = vmatprep.subr.bf16.mxu0 0
        %3448 = vmatpush1.bf16.msra.mxu0 %v3370
        %3449 = vmatprep.subr.bf16.mxu0 0
        %3450 = vmatpush1.bf16.msra.mxu0 %v3371
        %3451 = vmatprep.subr.bf16.mxu0 0
        %3452 = vmatpush1.bf16.msra.mxu0 %v3372
        %3453 = vmatprep.mubr.bf16.mxu0 %v3222
        %3454 = vmatmul.mubr.bf16.gmra.mrb[0].mxu0 %v3221
        %v3455 = vpop.f32.mrb[0].mxu0
        %v3456 = vadd.f32 0.0, %v3455
        %v3457 = vpop.f32.mrb[0].mxu0
        %v3458 = vpop.f32.mrb[0].mxu0
        %v3459 = vpop.f32.mrb[0].mxu0
        %3460 = vdwg.mxu0
        %3461 = vmatprep.subr.bf16.mxu0 0
        %3462 = vmatpush1.bf16.msra.mxu0 %v3373
        %3463 = vmatprep.subr.bf16.mxu0 0
        %3464 = vmatpush1.bf16.msra.mxu0 %v3374
        %3465 = vmatprep.subr.bf16.mxu0 0
        %3466 = vmatpush1.bf16.msra.mxu0 %v3375
        %3467 = vmatprep.subr.bf16.mxu0 0
        %3468 = vmatpush1.bf16.msra.mxu0 %v3376
        %3469 = vmatprep.subr.bf16.mxu0 0
        %3470 = vmatpush1.bf16.msra.mxu0 %v3377
        %3471 = vmatprep.subr.bf16.mxu0 0
        %3472 = vmatpush1.bf16.msra.mxu0 %v3378
        %3473 = vmatprep.subr.bf16.mxu0 0
        %3474 = vmatpush1.bf16.msra.mxu0 %v3379
        %3475 = vmatprep.subr.bf16.mxu0 0
        %3476 = vmatpush1.bf16.msra.mxu0 %v3380
        %3477 = vmatprep.subr.bf16.mxu0 0
        %3478 = vmatpush1.bf16.msra.mxu0 %v3381
        %3479 = vmatprep.subr.bf16.mxu0 0
        %3480 = vmatpush1.bf16.msra.mxu0 %v3382
        %3481 = vmatprep.subr.bf16.mxu0 0
        %3482 = vmatpush1.bf16.msra.mxu0 %v3383
        %3483 = vmatprep.subr.bf16.mxu0 0
        %3484 = vmatpush1.bf16.msra.mxu0 %v3384
        %3485 = vmatprep.subr.bf16.mxu0 0
        %3486 = vmatpush1.bf16.msra.mxu0 %v3385
        %3487 = vmatprep.subr.bf16.mxu0 0
        %3488 = vmatpush1.bf16.msra.mxu0 %v3386
        %3489 = vmatprep.subr.bf16.mxu0 0
        %3490 = vmatpush1.bf16.msra.mxu0 %v3387
        %3491 = vmatprep.subr.bf16.mxu0 0
        %3492 = vmatpush1.bf16.msra.mxu0 %v3388
        %3493 = vmatprep.mubr.bf16.mxu0 %v3224
        %3494 = vmatmul.mubr.bf16.gmra.mrb[0].mxu0 %v3223
        %v3495 = vpop.f32.mrb[0].mxu0
        %v3496 = vadd.f32 %v3456, %v3495
        %v3497 = vpop.f32.mrb[0].mxu0
        %v3498 = vpop.f32.mrb[0].mxu0
        %v3499 = vpop.f32.mrb[0].mxu0
        %3500 = vdwg.mxu0
        %v3501 = vadd.f32 %v3135, %v3496
        %v3502 = vld [vmem:[%s211] sm:$0x1]
        %vm3503 = vcmask 1046528
        %v3504 = vsel %vm3503, %v3501, 0.0
        %v3505 = vrot.slane %v3504, 4
        %v3506 = vadd.f32 %v3504, %v3505
        %v3507 = vrot.slane %v3506, 2
        %v3508 = vadd.f32 %v3506, %v3507
        %v3509 = vrot.slane %v3508, 1
        %v3510 = vadd.f32 %v3508, %v3509
        %v3511 = vadd.f32 %v3502, %v3510
        %3512 = vst [vmem:[%s211] sm:$0x1] %v3511
        %v3513 = vld [vmem:[%s214] sm:$0x1]
        %v3514 = vmul.f32 %v3501, %v3501
        %v3515 = vsel %vm3503, %v3514, 0.0
        %v3516 = vrot.slane %v3515, 4
        %v3517 = vadd.f32 %v3515, %v3516
        %v3518 = vrot.slane %v3517, 2
        %v3519 = vadd.f32 %v3517, %v3518
        %v3520 = vrot.slane %v3519, 1
        %v3521 = vadd.f32 %v3519, %v3520
        %v3522 = vadd.f32 %v3513, %v3521
        %3523 = vst [vmem:[%s214] sm:$0x1] %v3522
        %v3524 = vpack.c.bf16 %v3501, %v3501
        %s3525 = smul.addr %s219, 4
        %s3526 = scalar_lea.vmem %s208, %s3525
        %vm3527 = vcmask 1043456
        %vm3528 = vsmask.f32 3328
        %vm3529 = vmand %vm3527, %vm3528
        %v3530 = vld [vmem:[%s3526] sm:$0xf]
        %v3531 = vsel %vm3529, %v3524, %v3530
        %3532 = vst [vmem:[%s3526] sm:$0xf] %v3531
      $region33: #{decoder_forward.5} parent=27 // loop_footer
        %s223 = sadd.s32 1, %s219
      $region34: #{decoder_forward.5} parent=27 // loop_footer_branch
        %218 = sbr.rel target = $region30
      $region35: #{decoder_forward.5} parent=27 // loop_exit
        _
      %p3533 = scmp.lt.s32.totalorder %s16, 1
      %s3534 = scalar_select %p3533, %s16, 1
      %s3535 = smul.addr %s3534, 7
      %s3536 = smul.addr %s3535, 4
      %s3537 = scalar_lea.vmem %s2, %s3536
      %p3538 = scmp.lt.s32.totalorder %s16, 1
      %s3539 = scalar_select %p3538, %s16, 1
      %s3540 = scalar_lea.vmem %s3, %s3539
      %p3541 = scmp.lt.s32.totalorder %s16, 1
      %s3542 = scalar_select %p3541, %s16, 1
      %s3543 = scalar_lea.vmem %s4, %s3542
      // Predicated region
      $region36: #{decoder_forward.5} parent=27 // pred_check
        %p3544 = pneg %p81
      $region37: #{decoder_forward.5} parent=27 // pred_check_branch
        %3546 = sbr.rel (%p3544) target = $region39
      $region38: #{decoder_forward.5} parent=27 // pred_region
        _
      $region39: #{decoder_forward.5} parent=27 // pred_fallthru
        _
      // Predicated region
      $region40: #{decoder_forward.5} parent=27 // pred_check
        %p3547 = pneg %p107
      $region41: #{decoder_forward.5} parent=27 // pred_check_branch
        %3549 = sbr.rel (%p3547) target = $region43
      $region42: #{decoder_forward.5} parent=27 // pred_region
        _
      $region43: #{decoder_forward.5} parent=27 // pred_fallthru
        _
      // Predicated region
      $region44: #{decoder_forward.5} parent=27 // pred_check
        %p3550 = pneg %p133
      $region45: #{decoder_forward.5} parent=27 // pred_check_branch
        %3552 = sbr.rel (%p3550) target = $region47
      $region46: #{decoder_forward.5} parent=27 // pred_region
        _
      $region47: #{decoder_forward.5} parent=27 // pred_fallthru
        _
    $region28: #{decoder_forward.5} parent=5 // pred_fallthru
      _
    %p3553 = scmp.le.s32.totalorder 2, %s11
    // Predicated region
    $region48: #{decoder_forward.5} parent=5 // pred_check
      %p3554 = pneg %p3553
    $region49: #{decoder_forward.5} parent=5 // pred_check_branch
      %3556 = sbr.rel (%p3554) target = $region51
    $region50: #{decoder_forward.5} parent=5 // pred_region
      %s3557 = ssub.s32 %s11, 2
      // Predicated region
      $region52: #{decoder_forward.5} parent=50 // pred_check
        %p3558 = pneg %p87
      $region53: #{decoder_forward.5} parent=50 // pred_check_branch
        %3560 = sbr.rel (%p3558) target = $region55
      $region54: #{decoder_forward.5} parent=50 // pred_region
        %p3561 = scmp.lt.s32.totalorder %s17, 1
        %s3562 = scalar_select %p3561, %s17, 1
        %s3563 = smul.addr %s3562, 7
        %s3564 = smul.addr %s3563, 4
        %s3565 = scalar_lea.vmem %s2, %s3564
      $region55: #{decoder_forward.5} parent=50 // pred_fallthru
        _
      // Predicated region
      $region56: #{decoder_forward.5} parent=50 // pred_check
        %p3566 = pneg %p113
      $region57: #{decoder_forward.5} parent=50 // pred_check_branch
        %3568 = sbr.rel (%p3566) target = $region59
      $region58: #{decoder_forward.5} parent=50 // pred_region
        %p3569 = scmp.lt.s32.totalorder %s17, 1
        %s3570 = scalar_select %p3569, %s17, 1
        %s3571 = scalar_lea.vmem %s3, %s3570
      $region59: #{decoder_forward.5} parent=50 // pred_fallthru
        _
      // Predicated region
      $region60: #{decoder_forward.5} parent=50 // pred_check
        %p3572 = pneg %p139
      $region61: #{decoder_forward.5} parent=50 // pred_check_branch
        %3574 = sbr.rel (%p3572) target = $region63
      $region62: #{decoder_forward.5} parent=50 // pred_region
        %p3575 = scmp.lt.s32.totalorder %s17, 1
        %s3576 = scalar_select %p3575, %s17, 1
        %s3577 = scalar_lea.vmem %s4, %s3576
      $region63: #{decoder_forward.5} parent=50 // pred_fallthru
        _
    $region51: #{decoder_forward.5} parent=5 // pred_fallthru
      _
  $region6: #{decoder_forward.5} parent=0 // loop_footer
    %s15 = sadd.s32 1, %s11
  $region7: #{decoder_forward.5} parent=0 // loop_footer_branch
    %10 = sbr.rel target = $region3
  $region8: #{decoder_forward.5} parent=0 // loop_exit
    _

// kernel: decoder_forward.6
$region0: #{decoder_forward.6}
  #allocation0 [shape = 'u32[]', space=smem, size = 0x4, offset = 0x4, fixed_abs, tag = 'smem constant byte address 0x4 - core index']
  #allocation1 [shape = 'u32[144,128]{1,0:T(1,128)}', space=vmem, size = 0x12000, scoped, tag = 'internal scratch']
  %s0 = inlined_call_operand.vmem [shape: bf16[2,16,16,32], index: 0, kind: input, shape index: {}]
  %s1 = inlined_call_operand.vmem [shape: bf16[9,32,64], index: 1, kind: input, shape index: {}]
  %s2 = inlined_call_operand.vmem [shape: bf16[2,14,14,64], index: 2, kind: output, shape index: {0}]
  %s3 = inlined_call_operand.vmem [shape: f32[2,1,64], index: 3, kind: output, shape index: {1}]
  %s4 = inlined_call_operand.vmem [shape: f32[2,1,64], index: 4, kind: output, shape index: {2}]
  %5 = xla_tuple %s2, %s3, %s4
  %s6 = sld [smem:[#allocation0]]
  $region64: #{decoder_forward.6} parent=0
    _
  %s8 = ssub.s32 1, %s6
  %s9 = scalar_select 0, %s8, %s6
  loop: start=0, step=1, limit=4
  $region2: #{decoder_forward.6} parent=0 // loop_pre_header
    _
  $region3: #{decoder_forward.6} parent=0 // loop_header
    %s11 = sphi 0, %s15
    %p12 = scmp.ge.s32.totalorder %s11, 4
    %s21 = sphi 0, %s23
    %s24 = sphi 0, %s21
    %s25 = sphi 0, %s24
    %s41 = sphi 0, %s25
    %s45 = sphi 0, %s45
    %s47 = sphi 0, %s45
    %s48 = sphi 0, %s47
    %s62 = sphi 0, %s48
    %s68 = sphi 0, %s70
    %s71 = sphi 0, %s68
    %s72 = sphi 0, %s71
    %s88 = sphi 0, %s72
    %s94 = sphi 0, %s96
    %s97 = sphi 0, %s94
    %s98 = sphi 0, %s97
    %s114 = sphi 0, %s98
    %s120 = sphi 0, %s122
    %s123 = sphi 0, %s120
    %s124 = sphi 0, %s123
    %s140 = sphi 0, %s124
  $region4: #{decoder_forward.6} parent=0 // loop_header_branch
    %14 = sbr.rel (%p12) target = $region8
  $region5: #{decoder_forward.6} parent=0 // loop_body
    %s16 = ssub.s32 %s11, 1
    %s17 = ssub.s32 %s11, 2
    %s18 = sadd.s32 %s11, 1
    %s19 = ssub.s32 %s11, %s18
    %p20 = scmp.eq.s32.totalorder %s19, 0
    %s22 = sadd.s32 %s21, 1
    %s23 = scalar_select %p20, %s21, %s22
    %p26 = pneg %p20
    %p27 = scmp.eq.s32.totalorder %s11, 1
    %p28 = por %p26, %p27
    %p29 = scmp.ne.s32.totalorder %s21, %s24
    %p30 = scmp.eq.s32.totalorder %s11, 0
    %p31 = por %p29, %p30
    %p32 = scmp.ne.s32.totalorder %s21, %s24
    %p33 = scmp.eq.s32.totalorder %s16, 1
    %p34 = por %p32, %p33
    %p35 = scmp.ne.s32.totalorder %s24, %s25
    %p36 = scmp.eq.s32.totalorder %s16, 0
    %p37 = por %p35, %p36
    %p38 = scmp.ne.s32.totalorder %s24, %s25
    %p39 = scmp.eq.s32.totalorder %s17, 1
    %p40 = por %p38, %p39
    %p42 = scmp.ne.s32.totalorder %s25, %s41
    %p43 = scmp.eq.s32.totalorder %s17, 0
    %p44 = por %p42, %p43
    %s46 = sadd.s32 %s45, 1
    %p49 = scmp.eq.s32.totalorder %s11, 1
    %p50 = scmp.ne.s32.totalorder %s45, %s47
    %p51 = scmp.eq.s32.totalorder %s11, 0
    %p52 = por %p50, %p51
    %p53 = scmp.ne.s32.totalorder %s45, %s47
    %p54 = scmp.eq.s32.totalorder %s16, 1
    %p55 = por %p53, %p54
    %p56 = scmp.ne.s32.totalorder %s47, %s48
    %p57 = scmp.eq.s32.totalorder %s16, 0
    %p58 = por %p56, %p57
    %p59 = scmp.ne.s32.totalorder %s47, %s48
    %p60 = scmp.eq.s32.totalorder %s17, 1
    %p61 = por %p59, %p60
    %p63 = scmp.ne.s32.totalorder %s48, %s62
    %p64 = scmp.eq.s32.totalorder %s17, 0
    %p65 = por %p63, %p64
    %s66 = ssub.s32 %s11, %s18
    %p67 = scmp.eq.s32.totalorder %s66, 0
    %s69 = sadd.s32 %s68, 1
    %s70 = scalar_select %p67, %s68, %s69
    %p73 = pneg %p67
    %p74 = scmp.eq.s32.totalorder %s11, 1
    %p75 = por %p73, %p74
    %p76 = scmp.ne.s32.totalorder %s68, %s71
    %p77 = scmp.eq.s32.totalorder %s11, 0
    %p78 = por %p76, %p77
    %p79 = scmp.ne.s32.totalorder %s68, %s71
    %p80 = scmp.eq.s32.totalorder %s16, 1
    %p81 = por %p79, %p80
    %p82 = scmp.ne.s32.totalorder %s71, %s72
    %p83 = scmp.eq.s32.totalorder %s16, 0
    %p84 = por %p82, %p83
    %p85 = scmp.ne.s32.totalorder %s71, %s72
    %p86 = scmp.eq.s32.totalorder %s17, 1
    %p87 = por %p85, %p86
    %p89 = scmp.ne.s32.totalorder %s72, %s88
    %p90 = scmp.eq.s32.totalorder %s17, 0
    %p91 = por %p89, %p90
    %s92 = ssub.s32 %s11, %s18
    %p93 = scmp.eq.s32.totalorder %s92, 0
    %s95 = sadd.s32 %s94, 1
    %s96 = scalar_select %p93, %s94, %s95
    %p99 = pneg %p93
    %p100 = scmp.eq.s32.totalorder %s11, 1
    %p101 = por %p99, %p100
    %p102 = scmp.ne.s32.totalorder %s94, %s97
    %p103 = scmp.eq.s32.totalorder %s11, 0
    %p104 = por %p102, %p103
    %p105 = scmp.ne.s32.totalorder %s94, %s97
    %p106 = scmp.eq.s32.totalorder %s16, 1
    %p107 = por %p105, %p106
    %p108 = scmp.ne.s32.totalorder %s97, %s98
    %p109 = scmp.eq.s32.totalorder %s16, 0
    %p110 = por %p108, %p109
    %p111 = scmp.ne.s32.totalorder %s97, %s98
    %p112 = scmp.eq.s32.totalorder %s17, 1
    %p113 = por %p111, %p112
    %p115 = scmp.ne.s32.totalorder %s98, %s114
    %p116 = scmp.eq.s32.totalorder %s17, 0
    %p117 = por %p115, %p116
    %s118 = ssub.s32 %s11, %s18
    %p119 = scmp.eq.s32.totalorder %s118, 0
    %s121 = sadd.s32 %s120, 1
    %s122 = scalar_select %p119, %s120, %s121
    %p125 = pneg %p119
    %p126 = scmp.eq.s32.totalorder %s11, 1
    %p127 = por %p125, %p126
    %p128 = scmp.ne.s32.totalorder %s120, %s123
    %p129 = scmp.eq.s32.totalorder %s11, 0
    %p130 = por %p128, %p129
    %p131 = scmp.ne.s32.totalorder %s120, %s123
    %p132 = scmp.eq.s32.totalorder %s16, 1
    %p133 = por %p131, %p132
    %p134 = scmp.ne.s32.totalorder %s123, %s124
    %p135 = scmp.eq.s32.totalorder %s16, 0
    %p136 = por %p134, %p135
    %p137 = scmp.ne.s32.totalorder %s123, %s124
    %p138 = scmp.eq.s32.totalorder %s17, 1
    %p139 = por %p137, %p138
    %p141 = scmp.ne.s32.totalorder %s124, %s140
    %p142 = scmp.eq.s32.totalorder %s17, 0
    %p143 = por %p141, %p142
    %p144 = scmp.le.s32.totalorder 1, %s11
    %p145 = scmp.lt.s32.totalorder %s11, 3
    %p146 = pnand %p144, %p145
    %p147 = pneg %p146
    // Predicated region
    $region9: #{decoder_forward.6} parent=5 // pred_check
      _
    $region10: #{decoder_forward.6} parent=5 // pred_check_branch
      %149 = sbr.rel (%p146) target = $region12
    $region11: #{decoder_forward.6} parent=5 // pred_region
      %s150 = ssub.s32 %s11, 1
      // Predicated region
      $region13: #{decoder_forward.6} parent=11 // pred_check
        %p151 = pneg %p58
      $region14: #{decoder_forward.6} parent=11 // pred_check_branch
        %153 = sbr.rel (%p151) target = $region16
      $region15: #{decoder_forward.6} parent=11 // pred_region
        _
      $region16: #{decoder_forward.6} parent=11 // pred_fallthru
        _
    $region12: #{decoder_forward.6} parent=5 // pred_fallthru
      _
    %p154 = scmp.lt.s32.totalorder %s11, 2
    // Predicated region
    $region17: #{decoder_forward.6} parent=5 // pred_check
      %p155 = pneg %p154
    $region18: #{decoder_forward.6} parent=5 // pred_check_branch
      %157 = sbr.rel (%p155) target = $region20
    $region19: #{decoder_forward.6} parent=5 // pred_region
      // Predicated region
      $region21: #{decoder_forward.6} parent=19 // pred_check
        %p158 = pneg %p31
      $region22: #{decoder_forward.6} parent=19 // pred_check_branch
        %160 = sbr.rel (%p158) target = $region24
      $region23: #{decoder_forward.6} parent=19 // pred_region
        %p161 = scmp.lt.s32.totalorder %s11, 1
        %s162 = scalar_select %p161, %s11, 1
        %s163 = smul.addr %s162, 32
        %s164 = smul.addr %s163, 4
        %s165 = scalar_lea.vmem %s0, %s164
      $region24: #{decoder_forward.6} parent=19 // pred_fallthru
        _
    $region20: #{decoder_forward.6} parent=5 // pred_fallthru
      _
    %p166 = scmp.le.s32.totalorder 1, %s11
    %p167 = scmp.lt.s32.totalorder %s11, 3
    %p168 = pnand %p166, %p167
    %p169 = pneg %p168
    // Predicated region
    $region25: #{decoder_forward.6} parent=5 // pred_check
      _
    $region26: #{decoder_forward.6} parent=5 // pred_check_branch
      %171 = sbr.rel (%p168) target = $region28
    $region27: #{decoder_forward.6} parent=5 // pred_region
      %s172 = ssub.s32 %s11, 1
      %p173 = scmp.lt.s32.totalorder %s16, 1
      %s174 = scalar_select %p173, %s16, 1
      %s175 = smul.addr %s174, 32
      %s176 = smul.addr %s175, 4
      %s177 = scalar_lea.vmem %s0, %s176
      %p178 = pneg %p37
      %p179 = pneg %p34
      %p180 = pneg %p58
      %p181 = pneg %p55
      %p182 = pneg %p84
      %p183 = pneg %p81
      %p184 = scmp.lt.s32.totalorder %s16, 1
      %s185 = scalar_select %p184, %s16, 1
      %s186 = smul.addr %s185, 28
      %s187 = smul.addr %s186, 4
      %s188 = scalar_lea.vmem %s2, %s187
      %p189 = pneg %p110
      %p190 = pneg %p107
      %p191 = scmp.lt.s32.totalorder %s16, 1
      %s192 = scalar_select %p191, %s16, 1
      %s193 = scalar_lea.vmem %s3, %s192
      %p194 = pneg %p136
      %p195 = pneg %p133
      %p196 = scmp.lt.s32.totalorder %s16, 1
      %s197 = scalar_select %p196, %s16, 1
      %s198 = scalar_lea.vmem %s4, %s197
      %p199 = scmp.lt.s32.totalorder %s16, 1
      %s200 = scalar_select %p199, %s16, 1
      %s201 = smul.addr %s200, 32
      %s202 = smul.addr %s201, 4
      %s203 = scalar_lea.vmem %s0, %s202
      %p204 = scmp.lt.s32.totalorder %s16, 1
      %s205 = scalar_select %p204, %s16, 1
      %s206 = smul.addr %s205, 28
      %s207 = smul.addr %s206, 4
      %s208 = scalar_lea.vmem %s2, %s207
      %p209 = scmp.lt.s32.totalorder %s16, 1
      %s210 = scalar_select %p209, %s16, 1
      %s211 = scalar_lea.vmem %s3, %s210
      %p212 = scmp.lt.s32.totalorder %s16, 1
      %s213 = scalar_select %p212, %s16, 1
      %s214 = scalar_lea.vmem %s4, %s213
      %vm216 = vcmask 516096
      %217 = vst.msk [vmem:[%s211] sm:$0x1] %vm216, 0.0
      %218 = vst.msk [vmem:[%s214] sm:$0x1] %vm216, 0.0
      loop: start=0, step=1, limit=14
      $region29: #{decoder_forward.6} parent=27 // loop_pre_header
        _
      $region30: #{decoder_forward.6} parent=27 // loop_header
        %s220 = sphi 0, %s224
        %p221 = scmp.ge.s32.totalorder %s220, 14
      $region31: #{decoder_forward.6} parent=27 // loop_header_branch
        %223 = sbr.rel (%p221) target = $region35
      $region32: #{decoder_forward.6} parent=27 // loop_body
        %s225 = smul.u32 %s220, 2
        %s226 = smul.addr %s225, 4
        %s227 = scalar_lea.vmem %s203, %s226
        %v228 = vld [vmem:[%s227] sm:$0xf]
        %v229 = vld [vmem:[%s227 + $0x4] sm:$0x7]
        %v230 = vld [vmem:[%s1] sm:$0xf]
        %v231 = vld [vmem:[%s1 + $0x4] sm:$0xf]
        %v232 = vld [vmem:[%s1 + $0x8] sm:$0xf]
        %v233 = vld [vmem:[%s1 + $0xc] sm:$0xf]
        %v234 = vld [vmem:[%s227 + $0x4] sm:$0xf]
        %s235 = scalar_lea.vmem %s1, 16
        %v236 = vld [vmem:[%s235] sm:$0xf]
        %v237 = vld [vmem:[%s235 + $0x4] sm:$0xf]
        %v238 = vld [vmem:[%s235 + $0x8] sm:$0xf]
        %v239 = vld [vmem:[%s235 + $0xc] sm:$0xf]
        %v242 = vunpack.c.l.b16 %v228
        %v243 = vunpack.c.l.b16 %v234
        %v244 = vpack.c.b16 %v243, %v242
        %v246 = vshrl.u32 %v244, 16
        %v248 = vshll.u32 %v244, 16
        %v250 = vrot.slane %v248, 1
        %v251 = vor.u32 %v246, %v250
        %v256 = vunpack.c.l.b16 %v236
        %v257 = vunpack.c.l.b16 %v237
        %v258 = vunpack.c.l.b16 %v238
        %v259 = vunpack.c.l.b16 %v239
        %v260 = vpack.c.b16 %v257, %v256
        %v261 = vpack.c.b16 %v259, %v258
        %vm264 = vcmask 261120
        %v266 = vsel %vm264, %v251, 0
        %268 = vmatprep.subr.bf16.mxu0 0
        %269 = vmatpush1.bf16.msra.mxu0 %v260
        %270 = vmatprep.subr.bf16.mxu0 0
        %271 = vmatpush1.bf16.msra.mxu0 %v261
        %272 = vmatprep.subr.bf16.mxu0 0
        %273 = vmatpush1.bf16.msra.mxu0 0
        %274 = vmatprep.subr.bf16.mxu0 0
        %275 = vmatpush1.bf16.msra.mxu0 0
        %276 = vmatprep.subr.bf16.mxu0 0
        %277 = vmatpush1.bf16.msra.mxu0 0
        %278 = vmatprep.subr.bf16.mxu0 0
        %279 = vmatpush1.bf16.msra.mxu0 0
        %280 = vmatprep.subr.bf16.mxu0 0
        %281 = vmatpush1.bf16.msra.mxu0 0
        %282 = vmatprep.subr.bf16.mxu0 0
        %283 = vmatpush1.bf16.msra.mxu0 0
        %284 = vmatprep.subr.bf16.mxu0 0
        %285 = vmatpush1.bf16.msra.mxu0 0
        %286 = vmatprep.subr.bf16.mxu0 0
        %287 = vmatpush1.bf16.msra.mxu0 0
        %288 = vmatprep.subr.bf16.mxu0 0
        %289 = vmatpush1.bf16.msra.mxu0 0
        %290 = vmatprep.subr.bf16.mxu0 0
        %291 = vmatpush1.bf16.msra.mxu0 0
        %292 = vmatprep.subr.bf16.mxu0 0
        %293 = vmatpush1.bf16.msra.mxu0 0
        %294 = vmatprep.subr.bf16.mxu0 0
        %295 = vmatpush1.bf16.msra.mxu0 0
        %296 = vmatprep.subr.bf16.mxu0 0
        %297 = vmatpush1.bf16.msra.mxu0 0
        %298 = vmatprep.subr.bf16.mxu0 0
        %299 = vmatpush1.bf16.msra.mxu0 0
        %300 = vmatprep.mubr.bf16.mxu0 0
        %301 = vmatmul.mubr.bf16.gmra.mrb[0].mxu0 %v266
        %v302 = vpop.f32.mrb[0].mxu0
        %v303 = vadd.f32 0.0, %v302
        %v304 = vpop.f32.mrb[0].mxu0
        %v305 = vpop.f32.mrb[0].mxu0
        %v306 = vadd.f32 0.0, %v305
        %v307 = vpop.f32.mrb[0].mxu0
        %308 = vdwg.mxu0
        %v310 = vunpack.c.l.b16 %v229
        %v311 = vpack.c.b16 %v310, %v242
        %v316 = vunpack.c.l.b16 %v230
        %v317 = vunpack.c.l.b16 %v231
        %v318 = vunpack.c.l.b16 %v232
        %v319 = vunpack.c.l.b16 %v233
        %v320 = vpack.c.b16 %v317, %v316
        %v321 = vpack.c.b16 %v319, %v318
        %v325 = vsel %vm264, %v311, 0
        %327 = vmatprep.subr.bf16.mxu0 0
        %328 = vmatpush1.bf16.msra.mxu0 %v320
        %329 = vmatprep.subr.bf16.mxu0 0
        %330 = vmatpush1.bf16.msra.mxu0 %v321
        %331 = vmatprep.subr.bf16.mxu0 0
        %332 = vmatpush1.bf16.msra.mxu0 0
        %333 = vmatprep.subr.bf16.mxu0 0
        %334 = vmatpush1.bf16.msra.mxu0 0
        %335 = vmatprep.subr.bf16.mxu0 0
        %336 = vmatpush1.bf16.msra.mxu0 0
        %337 = vmatprep.subr.bf16.mxu0 0
        %338 = vmatpush1.bf16.msra.mxu0 0
        %339 = vmatprep.subr.bf16.mxu0 0
        %340 = vmatpush1.bf16.msra.mxu0 0
        %341 = vmatprep.subr.bf16.mxu0 0
        %342 = vmatpush1.bf16.msra.mxu0 0
        %343 = vmatprep.subr.bf16.mxu0 0
        %344 = vmatpush1.bf16.msra.mxu0 0
        %345 = vmatprep.subr.bf16.mxu0 0
        %346 = vmatpush1.bf16.msra.mxu0 0
        %347 = vmatprep.subr.bf16.mxu0 0
        %348 = vmatpush1.bf16.msra.mxu0 0
        %349 = vmatprep.subr.bf16.mxu0 0
        %350 = vmatpush1.bf16.msra.mxu0 0
        %351 = vmatprep.subr.bf16.mxu0 0
        %352 = vmatpush1.bf16.msra.mxu0 0
        %353 = vmatprep.subr.bf16.mxu0 0
        %354 = vmatpush1.bf16.msra.mxu0 0
        %355 = vmatprep.subr.bf16.mxu0 0
        %356 = vmatpush1.bf16.msra.mxu0 0
        %357 = vmatprep.subr.bf16.mxu0 0
        %358 = vmatpush1.bf16.msra.mxu0 0
        %359 = vmatprep.mubr.bf16.mxu0 0
        %360 = vmatmul.mubr.bf16.gmra.mrb[0].mxu0 %v325
        %v361 = vpop.f32.mrb[0].mxu0
        %v362 = vadd.f32 %v303, %v361
        %v363 = vpop.f32.mrb[0].mxu0
        %v364 = vpop.f32.mrb[0].mxu0
        %v365 = vadd.f32 %v306, %v364
        %v366 = vpop.f32.mrb[0].mxu0
        %367 = vdwg.mxu0
        %v368 = vld [vmem:[%s227] sm:$0xe]
        %s369 = scalar_lea.vmem %s1, 32
        %v370 = vld [vmem:[%s369] sm:$0xf]
        %v371 = vld [vmem:[%s369 + $0x4] sm:$0xf]
        %v372 = vld [vmem:[%s369 + $0x8] sm:$0xf]
        %v373 = vld [vmem:[%s369 + $0xc] sm:$0xf]
        %v375 = vunpack.c.l.b16 %v368
        %v376 = vpack.c.b16 %v243, %v375
        %v377 = vrot.slane %v376, 1
        %v382 = vunpack.c.l.b16 %v370
        %v383 = vunpack.c.l.b16 %v371
        %v384 = vunpack.c.l.b16 %v372
        %v385 = vunpack.c.l.b16 %v373
        %v386 = vpack.c.b16 %v383, %v382
        %v387 = vpack.c.b16 %v385, %v384
        %v391 = vsel %vm264, %v377, 0
        %393 = vmatprep.subr.bf16.mxu0 0
        %394 = vmatpush1.bf16.msra.mxu0 %v386
        %395 = vmatprep.subr.bf16.mxu0 0
        %396 = vmatpush1.bf16.msra.mxu0 %v387
        %397 = vmatprep.subr.bf16.mxu0 0
        %398 = vmatpush1.bf16.msra.mxu0 0
        %399 = vmatprep.subr.bf16.mxu0 0
        %400 = vmatpush1.bf16.msra.mxu0 0
        %401 = vmatprep.subr.bf16.mxu0 0
        %402 = vmatpush1.bf16.msra.mxu0 0
        %403 = vmatprep.subr.bf16.mxu0 0
        %404 = vmatpush1.bf16.msra.mxu0 0
        %405 = vmatprep.subr.bf16.mxu0 0
        %406 = vmatpush1.bf16.msra.mxu0 0
        %407 = vmatprep.subr.bf16.mxu0 0
        %408 = vmatpush1.bf16.msra.mxu0 0
        %409 = vmatprep.subr.bf16.mxu0 0
        %410 = vmatpush1.bf16.msra.mxu0 0
        %411 = vmatprep.subr.bf16.mxu0 0
        %412 = vmatpush1.bf16.msra.mxu0 0
        %413 = vmatprep.subr.bf16.mxu0 0
        %414 = vmatpush1.bf16.msra.mxu0 0
        %415 = vmatprep.subr.bf16.mxu0 0
        %416 = vmatpush1.bf16.msra.mxu0 0
        %417 = vmatprep.subr.bf16.mxu0 0
        %418 = vmatpush1.bf16.msra.mxu0 0
        %419 = vmatprep.subr.bf16.mxu0 0
        %420 = vmatpush1.bf16.msra.mxu0 0
        %421 = vmatprep.subr.bf16.mxu0 0
        %422 = vmatpush1.bf16.msra.mxu0 0
        %423 = vmatprep.subr.bf16.mxu0 0
        %424 = vmatpush1.bf16.msra.mxu0 0
        %425 = vmatprep.mubr.bf16.mxu0 0
        %426 = vmatmul.mubr.bf16.gmra.mrb[0].mxu0 %v391
        %v427 = vpop.f32.mrb[0].mxu0
        %v428 = vadd.f32 0.0, %v427
        %v429 = vpop.f32.mrb[0].mxu0
        %v430 = vpop.f32.mrb[0].mxu0
        %v431 = vadd.f32 0.0, %v430
        %v432 = vpop.f32.mrb[0].mxu0
        %433 = vdwg.mxu0
        %v434 = vadd.f32 %v362, %v428
        %v435 = vadd.f32 %v365, %v431
        %s436 = sadd.s32 %s220, 1
        %s437 = smul.u32 %s436, 2
        %s438 = smul.addr %s437, 4
        %s439 = scalar_lea.vmem %s203, %s438
        %v440 = vld [vmem:[%s439] sm:$0xf]
        %v441 = vld [vmem:[%s439 + $0x4] sm:$0x7]
        %s442 = scalar_lea.vmem %s1, 48
        %v443 = vld [vmem:[%s442] sm:$0xf]
        %v444 = vld [vmem:[%s442 + $0x4] sm:$0xf]
        %v445 = vld [vmem:[%s442 + $0x8] sm:$0xf]
        %v446 = vld [vmem:[%s442 + $0xc] sm:$0xf]
        %v449 = vunpack.c.l.b16 %v440
        %v450 = vunpack.c.l.b16 %v441
        %v451 = vpack.c.b16 %v450, %v449
        %v456 = vunpack.c.l.b16 %v443
        %v457 = vunpack.c.l.b16 %v444
        %v458 = vunpack.c.l.b16 %v445
        %v459 = vunpack.c.l.b16 %v446
        %v460 = vpack.c.b16 %v457, %v456
        %v461 = vpack.c.b16 %v459, %v458
        %v465 = vsel %vm264, %v451, 0
        %467 = vmatprep.subr.bf16.mxu0 0
        %468 = vmatpush1.bf16.msra.mxu0 %v460
        %469 = vmatprep.subr.bf16.mxu0 0
        %470 = vmatpush1.bf16.msra.mxu0 %v461
        %471 = vmatprep.subr.bf16.mxu0 0
        %472 = vmatpush1.bf16.msra.mxu0 0
        %473 = vmatprep.subr.bf16.mxu0 0
        %474 = vmatpush1.bf16.msra.mxu0 0
        %475 = vmatprep.subr.bf16.mxu0 0
        %476 = vmatpush1.bf16.msra.mxu0 0
        %477 = vmatprep.subr.bf16.mxu0 0
        %478 = vmatpush1.bf16.msra.mxu0 0
        %479 = vmatprep.subr.bf16.mxu0 0
        %480 = vmatpush1.bf16.msra.mxu0 0
        %481 = vmatprep.subr.bf16.mxu0 0
        %482 = vmatpush1.bf16.msra.mxu0 0
        %483 = vmatprep.subr.bf16.mxu0 0
        %484 = vmatpush1.bf16.msra.mxu0 0
        %485 = vmatprep.subr.bf16.mxu0 0
        %486 = vmatpush1.bf16.msra.mxu0 0
        %487 = vmatprep.subr.bf16.mxu0 0
        %488 = vmatpush1.bf16.msra.mxu0 0
        %489 = vmatprep.subr.bf16.mxu0 0
        %490 = vmatpush1.bf16.msra.mxu0 0
        %491 = vmatprep.subr.bf16.mxu0 0
        %492 = vmatpush1.bf16.msra.mxu0 0
        %493 = vmatprep.subr.bf16.mxu0 0
        %494 = vmatpush1.bf16.msra.mxu0 0
        %495 = vmatprep.subr.bf16.mxu0 0
        %496 = vmatpush1.bf16.msra.mxu0 0
        %497 = vmatprep.subr.bf16.mxu0 0
        %498 = vmatpush1.bf16.msra.mxu0 0
        %499 = vmatprep.mubr.bf16.mxu0 0
        %500 = vmatmul.mubr.bf16.gmra.mrb[0].mxu0 %v465
        %v501 = vpop.f32.mrb[0].mxu0
        %v502 = vadd.f32 0.0, %v501
        %v503 = vpop.f32.mrb[0].mxu0
        %v504 = vpop.f32.mrb[0].mxu0
        %v505 = vadd.f32 0.0, %v504
        %v506 = vpop.f32.mrb[0].mxu0
        %507 = vdwg.mxu0
        %v508 = vadd.f32 %v434, %v502
        %v509 = vadd.f32 %v435, %v505
        %v510 = vld [vmem:[%s439 + $0x4] sm:$0xf]
        %s511 = scalar_lea.vmem %s1, 64
        %v512 = vld [vmem:[%s511] sm:$0xf]
        %v513 = vld [vmem:[%s511 + $0x4] sm:$0xf]
        %v514 = vld [vmem:[%s511 + $0x8] sm:$0xf]
        %v515 = vld [vmem:[%s511 + $0xc] sm:$0xf]
        %v517 = vunpack.c.l.b16 %v510
        %v518 = vpack.c.b16 %v517, %v449
        %v520 = vshrl.u32 %v518, 16
        %v522 = vshll.u32 %v518, 16
        %v524 = vrot.slane %v522, 1
        %v525 = vor.u32 %v520, %v524
        %v530 = vunpack.c.l.b16 %v512
        %v531 = vunpack.c.l.b16 %v513
        %v532 = vunpack.c.l.b16 %v514
        %v533 = vunpack.c.l.b16 %v515
        %v534 = vpack.c.b16 %v531, %v530
        %v535 = vpack.c.b16 %v533, %v532
        %v539 = vsel %vm264, %v525, 0
        %541 = vmatprep.subr.bf16.mxu0 0
        %542 = vmatpush1.bf16.msra.mxu0 %v534
        %543 = vmatprep.subr.bf16.mxu0 0
        %544 = vmatpush1.bf16.msra.mxu0 %v535
        %545 = vmatprep.subr.bf16.mxu0 0
        %546 = vmatpush1.bf16.msra.mxu0 0
        %547 = vmatprep.subr.bf16.mxu0 0
        %548 = vmatpush1.bf16.msra.mxu0 0
        %549 = vmatprep.subr.bf16.mxu0 0
        %550 = vmatpush1.bf16.msra.mxu0 0
        %551 = vmatprep.subr.bf16.mxu0 0
        %552 = vmatpush1.bf16.msra.mxu0 0
        %553 = vmatprep.subr.bf16.mxu0 0
        %554 = vmatpush1.bf16.msra.mxu0 0
        %555 = vmatprep.subr.bf16.mxu0 0
        %556 = vmatpush1.bf16.msra.mxu0 0
        %557 = vmatprep.subr.bf16.mxu0 0
        %558 = vmatpush1.bf16.msra.mxu0 0
        %559 = vmatprep.subr.bf16.mxu0 0
        %560 = vmatpush1.bf16.msra.mxu0 0
        %561 = vmatprep.subr.bf16.mxu0 0
        %562 = vmatpush1.bf16.msra.mxu0 0
        %563 = vmatprep.subr.bf16.mxu0 0
        %564 = vmatpush1.bf16.msra.mxu0 0
        %565 = vmatprep.subr.bf16.mxu0 0
        %566 = vmatpush1.bf16.msra.mxu0 0
        %567 = vmatprep.subr.bf16.mxu0 0
        %568 = vmatpush1.bf16.msra.mxu0 0
        %569 = vmatprep.subr.bf16.mxu0 0
        %570 = vmatpush1.bf16.msra.mxu0 0
        %571 = vmatprep.subr.bf16.mxu0 0
        %572 = vmatpush1.bf16.msra.mxu0 0
        %573 = vmatprep.mubr.bf16.mxu0 0
        %574 = vmatmul.mubr.bf16.gmra.mrb[0].mxu0 %v539
        %v575 = vpop.f32.mrb[0].mxu0
        %v576 = vadd.f32 0.0, %v575
        %v577 = vpop.f32.mrb[0].mxu0
        %v578 = vpop.f32.mrb[0].mxu0
        %v579 = vadd.f32 0.0, %v578
        %v580 = vpop.f32.mrb[0].mxu0
        %581 = vdwg.mxu0
        %v582 = vadd.f32 %v508, %v576
        %v583 = vadd.f32 %v509, %v579
        %v584 = vld [vmem:[%s439] sm:$0xe]
        %s585 = scalar_lea.vmem %s1, 80
        %v586 = vld [vmem:[%s585] sm:$0xf]
        %v587 = vld [vmem:[%s585 + $0x4] sm:$0xf]
        %v588 = vld [vmem:[%s585 + $0x8] sm:$0xf]
        %v589 = vld [vmem:[%s585 + $0xc] sm:$0xf]
        %v591 = vunpack.c.l.b16 %v584
        %v592 = vpack.c.b16 %v517, %v591
        %v593 = vrot.slane %v592, 1
        %v598 = vunpack.c.l.b16 %v586
        %v599 = vunpack.c.l.b16 %v587
        %v600 = vunpack.c.l.b16 %v588
        %v601 = vunpack.c.l.b16 %v589
        %v602 = vpack.c.b16 %v599, %v598
        %v603 = vpack.c.b16 %v601, %v600
        %v607 = vsel %vm264, %v593, 0
        %609 = vmatprep.subr.bf16.mxu0 0
        %610 = vmatpush1.bf16.msra.mxu0 %v602
        %611 = vmatprep.subr.bf16.mxu0 0
        %612 = vmatpush1.bf16.msra.mxu0 %v603
        %613 = vmatprep.subr.bf16.mxu0 0
        %614 = vmatpush1.bf16.msra.mxu0 0
        %615 = vmatprep.subr.bf16.mxu0 0
        %616 = vmatpush1.bf16.msra.mxu0 0
        %617 = vmatprep.subr.bf16.mxu0 0
        %618 = vmatpush1.bf16.msra.mxu0 0
        %619 = vmatprep.subr.bf16.mxu0 0
        %620 = vmatpush1.bf16.msra.mxu0 0
        %621 = vmatprep.subr.bf16.mxu0 0
        %622 = vmatpush1.bf16.msra.mxu0 0
        %623 = vmatprep.subr.bf16.mxu0 0
        %624 = vmatpush1.bf16.msra.mxu0 0
        %625 = vmatprep.subr.bf16.mxu0 0
        %626 = vmatpush1.bf16.msra.mxu0 0
        %627 = vmatprep.subr.bf16.mxu0 0
        %628 = vmatpush1.bf16.msra.mxu0 0
        %629 = vmatprep.subr.bf16.mxu0 0
        %630 = vmatpush1.bf16.msra.mxu0 0
        %631 = vmatprep.subr.bf16.mxu0 0
        %632 = vmatpush1.bf16.msra.mxu0 0
        %633 = vmatprep.subr.bf16.mxu0 0
        %634 = vmatpush1.bf16.msra.mxu0 0
        %635 = vmatprep.subr.bf16.mxu0 0
        %636 = vmatpush1.bf16.msra.mxu0 0
        %637 = vmatprep.subr.bf16.mxu0 0
        %638 = vmatpush1.bf16.msra.mxu0 0
        %639 = vmatprep.subr.bf16.mxu0 0
        %640 = vmatpush1.bf16.msra.mxu0 0
        %641 = vmatprep.mubr.bf16.mxu0 0
        %642 = vmatmul.mubr.bf16.gmra.mrb[0].mxu0 %v607
        %v643 = vpop.f32.mrb[0].mxu0
        %v644 = vadd.f32 0.0, %v643
        %v645 = vpop.f32.mrb[0].mxu0
        %v646 = vpop.f32.mrb[0].mxu0
        %v647 = vadd.f32 0.0, %v646
        %v648 = vpop.f32.mrb[0].mxu0
        %649 = vdwg.mxu0
        %v650 = vadd.f32 %v582, %v644
        %v651 = vadd.f32 %v583, %v647
        %s652 = sadd.s32 %s220, 2
        %s653 = smul.u32 %s652, 2
        %s654 = smul.addr %s653, 4
        %s655 = scalar_lea.vmem %s203, %s654
        %v656 = vld [vmem:[%s655] sm:$0xf]
        %v657 = vld [vmem:[%s655 + $0x4] sm:$0x7]
        %s658 = scalar_lea.vmem %s1, 96
        %v659 = vld [vmem:[%s658] sm:$0xf]
        %v660 = vld [vmem:[%s658 + $0x4] sm:$0xf]
        %v661 = vld [vmem:[%s658 + $0x8] sm:$0xf]
        %v662 = vld [vmem:[%s658 + $0xc] sm:$0xf]
        %v665 = vunpack.c.l.b16 %v656
        %v666 = vunpack.c.l.b16 %v657
        %v667 = vpack.c.b16 %v666, %v665
        %v672 = vunpack.c.l.b16 %v659
        %v673 = vunpack.c.l.b16 %v660
        %v674 = vunpack.c.l.b16 %v661
        %v675 = vunpack.c.l.b16 %v662
        %v676 = vpack.c.b16 %v673, %v672
        %v677 = vpack.c.b16 %v675, %v674
        %v681 = vsel %vm264, %v667, 0
        %683 = vmatprep.subr.bf16.mxu0 0
        %684 = vmatpush1.bf16.msra.mxu0 %v676
        %685 = vmatprep.subr.bf16.mxu0 0
        %686 = vmatpush1.bf16.msra.mxu0 %v677
        %687 = vmatprep.subr.bf16.mxu0 0
        %688 = vmatpush1.bf16.msra.mxu0 0
        %689 = vmatprep.subr.bf16.mxu0 0
        %690 = vmatpush1.bf16.msra.mxu0 0
        %691 = vmatprep.subr.bf16.mxu0 0
        %692 = vmatpush1.bf16.msra.mxu0 0
        %693 = vmatprep.subr.bf16.mxu0 0
        %694 = vmatpush1.bf16.msra.mxu0 0
        %695 = vmatprep.subr.bf16.mxu0 0
        %696 = vmatpush1.bf16.msra.mxu0 0
        %697 = vmatprep.subr.bf16.mxu0 0
        %698 = vmatpush1.bf16.msra.mxu0 0
        %699 = vmatprep.subr.bf16.mxu0 0
        %700 = vmatpush1.bf16.msra.mxu0 0
        %701 = vmatprep.subr.bf16.mxu0 0
        %702 = vmatpush1.bf16.msra.mxu0 0
        %703 = vmatprep.subr.bf16.mxu0 0
        %704 = vmatpush1.bf16.msra.mxu0 0
        %705 = vmatprep.subr.bf16.mxu0 0
        %706 = vmatpush1.bf16.msra.mxu0 0
        %707 = vmatprep.subr.bf16.mxu0 0
        %708 = vmatpush1.bf16.msra.mxu0 0
        %709 = vmatprep.subr.bf16.mxu0 0
        %710 = vmatpush1.bf16.msra.mxu0 0
        %711 = vmatprep.subr.bf16.mxu0 0
        %712 = vmatpush1.bf16.msra.mxu0 0
        %713 = vmatprep.subr.bf16.mxu0 0
        %714 = vmatpush1.bf16.msra.mxu0 0
        %715 = vmatprep.mubr.bf16.mxu0 0
        %716 = vmatmul.mubr.bf16.gmra.mrb[0].mxu0 %v681
        %v717 = vpop.f32.mrb[0].mxu0
        %v718 = vadd.f32 0.0, %v717
        %v719 = vpop.f32.mrb[0].mxu0
        %v720 = vpop.f32.mrb[0].mxu0
        %v721 = vadd.f32 0.0, %v720
        %v722 = vpop.f32.mrb[0].mxu0
        %723 = vdwg.mxu0
        %v724 = vadd.f32 %v650, %v718
        %v725 = vadd.f32 %v651, %v721
        %v726 = vld [vmem:[%s655 + $0x4] sm:$0xf]
        %s727 = scalar_lea.vmem %s1, 112
        %v728 = vld [vmem:[%s727] sm:$0xf]
        %v729 = vld [vmem:[%s727 + $0x4] sm:$0xf]
        %v730 = vld [vmem:[%s727 + $0x8] sm:$0xf]
        %v731 = vld [vmem:[%s727 + $0xc] sm:$0xf]
        %v733 = vunpack.c.l.b16 %v726
        %v734 = vpack.c.b16 %v733, %v665
        %v736 = vshrl.u32 %v734, 16
        %v738 = vshll.u32 %v734, 16
        %v740 = vrot.slane %v738, 1
        %v741 = vor.u32 %v736, %v740
        %v746 = vunpack.c.l.b16 %v728
        %v747 = vunpack.c.l.b16 %v729
        %v748 = vunpack.c.l.b16 %v730
        %v749 = vunpack.c.l.b16 %v731
        %v750 = vpack.c.b16 %v747, %v746
        %v751 = vpack.c.b16 %v749, %v748
        %v755 = vsel %vm264, %v741, 0
        %757 = vmatprep.subr.bf16.mxu0 0
        %758 = vmatpush1.bf16.msra.mxu0 %v750
        %759 = vmatprep.subr.bf16.mxu0 0
        %760 = vmatpush1.bf16.msra.mxu0 %v751
        %761 = vmatprep.subr.bf16.mxu0 0
        %762 = vmatpush1.bf16.msra.mxu0 0
        %763 = vmatprep.subr.bf16.mxu0 0
        %764 = vmatpush1.bf16.msra.mxu0 0
        %765 = vmatprep.subr.bf16.mxu0 0
        %766 = vmatpush1.bf16.msra.mxu0 0
        %767 = vmatprep.subr.bf16.mxu0 0
        %768 = vmatpush1.bf16.msra.mxu0 0
        %769 = vmatprep.subr.bf16.mxu0 0
        %770 = vmatpush1.bf16.msra.mxu0 0
        %771 = vmatprep.subr.bf16.mxu0 0
        %772 = vmatpush1.bf16.msra.mxu0 0
        %773 = vmatprep.subr.bf16.mxu0 0
        %774 = vmatpush1.bf16.msra.mxu0 0
        %775 = vmatprep.subr.bf16.mxu0 0
        %776 = vmatpush1.bf16.msra.mxu0 0
        %777 = vmatprep.subr.bf16.mxu0 0
        %778 = vmatpush1.bf16.msra.mxu0 0
        %779 = vmatprep.subr.bf16.mxu0 0
        %780 = vmatpush1.bf16.msra.mxu0 0
        %781 = vmatprep.subr.bf16.mxu0 0
        %782 = vmatpush1.bf16.msra.mxu0 0
        %783 = vmatprep.subr.bf16.mxu0 0
        %784 = vmatpush1.bf16.msra.mxu0 0
        %785 = vmatprep.subr.bf16.mxu0 0
        %786 = vmatpush1.bf16.msra.mxu0 0
        %787 = vmatprep.subr.bf16.mxu0 0
        %788 = vmatpush1.bf16.msra.mxu0 0
        %789 = vmatprep.mubr.bf16.mxu0 0
        %790 = vmatmul.mubr.bf16.gmra.mrb[0].mxu0 %v755
        %v791 = vpop.f32.mrb[0].mxu0
        %v792 = vadd.f32 0.0, %v791
        %v793 = vpop.f32.mrb[0].mxu0
        %v794 = vpop.f32.mrb[0].mxu0
        %v795 = vadd.f32 0.0, %v794
        %v796 = vpop.f32.mrb[0].mxu0
        %797 = vdwg.mxu0
        %v798 = vadd.f32 %v724, %v792
        %v799 = vadd.f32 %v725, %v795
        %v800 = vld [vmem:[%s655] sm:$0xe]
        %s801 = scalar_lea.vmem %s1, 128
        %v802 = vld [vmem:[%s801] sm:$0xf]
        %v803 = vld [vmem:[%s801 + $0x4] sm:$0xf]
        %v804 = vld [vmem:[%s801 + $0x8] sm:$0xf]
        %v805 = vld [vmem:[%s801 + $0xc] sm:$0xf]
        %v807 = vunpack.c.l.b16 %v800
        %v808 = vpack.c.b16 %v733, %v807
        %v809 = vrot.slane %v808, 1
        %v814 = vunpack.c.l.b16 %v802
        %v815 = vunpack.c.l.b16 %v803
        %v816 = vunpack.c.l.b16 %v804
        %v817 = vunpack.c.l.b16 %v805
        %v818 = vpack.c.b16 %v815, %v814
        %v819 = vpack.c.b16 %v817, %v816
        %v823 = vsel %vm264, %v809, 0
        %825 = vmatprep.subr.bf16.mxu0 0
        %826 = vmatpush1.bf16.msra.mxu0 %v818
        %827 = vmatprep.subr.bf16.mxu0 0
        %828 = vmatpush1.bf16.msra.mxu0 %v819
        %829 = vmatprep.subr.bf16.mxu0 0
        %830 = vmatpush1.bf16.msra.mxu0 0
        %831 = vmatprep.subr.bf16.mxu0 0
        %832 = vmatpush1.bf16.msra.mxu0 0
        %833 = vmatprep.subr.bf16.mxu0 0
        %834 = vmatpush1.bf16.msra.mxu0 0
        %835 = vmatprep.subr.bf16.mxu0 0
        %836 = vmatpush1.bf16.msra.mxu0 0
        %837 = vmatprep.subr.bf16.mxu0 0
        %838 = vmatpush1.bf16.msra.mxu0 0
        %839 = vmatprep.subr.bf16.mxu0 0
        %840 = vmatpush1.bf16.msra.mxu0 0
        %841 = vmatprep.subr.bf16.mxu0 0
        %842 = vmatpush1.bf16.msra.mxu0 0
        %843 = vmatprep.subr.bf16.mxu0 0
        %844 = vmatpush1.bf16.msra.mxu0 0
        %845 = vmatprep.subr.bf16.mxu0 0
        %846 = vmatpush1.bf16.msra.mxu0 0
        %847 = vmatprep.subr.bf16.mxu0 0
        %848 = vmatpush1.bf16.msra.mxu0 0
        %849 = vmatprep.subr.bf16.mxu0 0
        %850 = vmatpush1.bf16.msra.mxu0 0
        %851 = vmatprep.subr.bf16.mxu0 0
        %852 = vmatpush1.bf16.msra.mxu0 0
        %853 = vmatprep.subr.bf16.mxu0 0
        %854 = vmatpush1.bf16.msra.mxu0 0
        %855 = vmatprep.subr.bf16.mxu0 0
        %856 = vmatpush1.bf16.msra.mxu0 0
        %857 = vmatprep.mubr.bf16.mxu0 0
        %858 = vmatmul.mubr.bf16.gmra.mrb[0].mxu0 %v823
        %v859 = vpop.f32.mrb[0].mxu0
        %v860 = vadd.f32 0.0, %v859
        %v861 = vpop.f32.mrb[0].mxu0
        %v862 = vpop.f32.mrb[0].mxu0
        %v863 = vadd.f32 0.0, %v862
        %v864 = vpop.f32.mrb[0].mxu0
        %865 = vdwg.mxu0
        %v866 = vadd.f32 %v798, %v860
        %v867 = vadd.f32 %v799, %v863
        %v868 = vld [vmem:[%s211] sm:$0x1]
        %vm869 = vcmask 523264
        %v870 = vsel %vm869, %v866, 0.0
        %vm871 = vcmask 521216
        %v872 = vsel %vm871, %v867, 0.0
        %v873 = vadd.f32 %v870, %v872
        %v874 = vrot.slane %v873, 4
        %v875 = vadd.f32 %v873, %v874
        %v876 = vrot.slane %v875, 2
        %v877 = vadd.f32 %v875, %v876
        %v878 = vrot.slane %v877, 1
        %v879 = vadd.f32 %v877, %v878
        %v880 = vadd.f32 %v868, %v879
        %881 = vst.msk [vmem:[%s211] sm:$0x1] %vm216, %v880
        %v882 = vld [vmem:[%s214] sm:$0x1]
        %v883 = vmul.f32 %v866, %v866
        %v884 = vmul.f32 %v867, %v867
        %v885 = vsel %vm869, %v883, 0.0
        %v886 = vsel %vm871, %v884, 0.0
        %v887 = vadd.f32 %v885, %v886
        %v888 = vrot.slane %v887, 4
        %v889 = vadd.f32 %v887, %v888
        %v890 = vrot.slane %v889, 2
        %v891 = vadd.f32 %v889, %v890
        %v892 = vrot.slane %v891, 1
        %v893 = vadd.f32 %v891, %v892
        %v894 = vadd.f32 %v882, %v893
        %895 = vst.msk [vmem:[%s214] sm:$0x1] %vm216, %v894
        %v896 = vpack.c.bf16 %v867, %v866
        %v898 = vunpack.c.l.b16 %v896
        %v899 = vunpack.c.h.b16 %v896
        %v900 = vpack.c.b16 %v898, %v898
        %v901 = vpack.c.b16 %v899, %v899
        %s904 = smul.addr %s225, 4
        %s905 = scalar_lea.vmem %s208, %s904
        %vm906 = vcmask 519168
        %907 = vst.msk [vmem:[%s905] sm:$0xf] %vm906, %v900
        %vm908 = vcmask 518144
        %909 = vst.msk [vmem:[%s905 + $0x4] sm:$0x7] %vm908, %v901
      $region33: #{decoder_forward.6} parent=27 // loop_footer
        %s224 = sadd.s32 1, %s220
      $region34: #{decoder_forward.6} parent=27 // loop_footer_branch
        %219 = sbr.rel target = $region30
      $region35: #{decoder_forward.6} parent=27 // loop_exit
        _
      %p910 = scmp.lt.s32.totalorder %s16, 1
      %s911 = scalar_select %p910, %s16, 1
      %s912 = smul.addr %s911, 28
      %s913 = smul.addr %s912, 4
      %s914 = scalar_lea.vmem %s2, %s913
      %p915 = scmp.lt.s32.totalorder %s16, 1
      %s916 = scalar_select %p915, %s16, 1
      %s917 = scalar_lea.vmem %s3, %s916
      %p918 = scmp.lt.s32.totalorder %s16, 1
      %s919 = scalar_select %p918, %s16, 1
      %s920 = scalar_lea.vmem %s4, %s919
      // Predicated region
      $region36: #{decoder_forward.6} parent=27 // pred_check
        %p921 = pneg %p81
      $region37: #{decoder_forward.6} parent=27 // pred_check_branch
        %923 = sbr.rel (%p921) target = $region39
      $region38: #{decoder_forward.6} parent=27 // pred_region
        _
      $region39: #{decoder_forward.6} parent=27 // pred_fallthru
        _
      // Predicated region
      $region40: #{decoder_forward.6} parent=27 // pred_check
        %p924 = pneg %p107
      $region41: #{decoder_forward.6} parent=27 // pred_check_branch
        %926 = sbr.rel (%p924) target = $region43
      $region42: #{decoder_forward.6} parent=27 // pred_region
        _
      $region43: #{decoder_forward.6} parent=27 // pred_fallthru
        _
      // Predicated region
      $region44: #{decoder_forward.6} parent=27 // pred_check
        %p927 = pneg %p133
      $region45: #{decoder_forward.6} parent=27 // pred_check_branch
        %929 = sbr.rel (%p927) target = $region47
      $region46: #{decoder_forward.6} parent=27 // pred_region
        _
      $region47: #{decoder_forward.6} parent=27 // pred_fallthru
        _
    $region28: #{decoder_forward.6} parent=5 // pred_fallthru
      _
    %p930 = scmp.le.s32.totalorder 2, %s11
    // Predicated region
    $region48: #{decoder_forward.6} parent=5 // pred_check
      %p931 = pneg %p930
    $region49: #{decoder_forward.6} parent=5 // pred_check_branch
      %933 = sbr.rel (%p931) target = $region51
    $region50: #{decoder_forward.6} parent=5 // pred_region
      %s934 = ssub.s32 %s11, 2
      // Predicated region
      $region52: #{decoder_forward.6} parent=50 // pred_check
        %p935 = pneg %p87
      $region53: #{decoder_forward.6} parent=50 // pred_check_branch
        %937 = sbr.rel (%p935) target = $region55
      $region54: #{decoder_forward.6} parent=50 // pred_region
        %p938 = scmp.lt.s32.totalorder %s17, 1
        %s939 = scalar_select %p938, %s17, 1
        %s940 = smul.addr %s939, 28
        %s941 = smul.addr %s940, 4
        %s942 = scalar_lea.vmem %s2, %s941
      $region55: #{decoder_forward.6} parent=50 // pred_fallthru
        _
      // Predicated region
      $region56: #{decoder_forward.6} parent=50 // pred_check
        %p943 = pneg %p113
      $region57: #{decoder_forward.6} parent=50 // pred_check_branch
        %945 = sbr.rel (%p943) target = $region59
      $region58: #{decoder_forward.6} parent=50 // pred_region
        %p946 = scmp.lt.s32.totalorder %s17, 1
        %s947 = scalar_select %p946, %s17, 1
        %s948 = scalar_lea.vmem %s3, %s947
      $region59: #{decoder_forward.6} parent=50 // pred_fallthru
        _
      // Predicated region
      $region60: #{decoder_forward.6} parent=50 // pred_check
        %p949 = pneg %p139
      $region61: #{decoder_forward.6} parent=50 // pred_check_branch
        %951 = sbr.rel (%p949) target = $region63
      $region62: #{decoder_forward.6} parent=50 // pred_region
        %p952 = scmp.lt.s32.totalorder %s17, 1
        %s953 = scalar_select %p952, %s17, 1
        %s954 = scalar_lea.vmem %s4, %s953
      $region63: #{decoder_forward.6} parent=50 // pred_fallthru
        _
    $region51: #{decoder_forward.6} parent=5 // pred_fallthru
      _
  $region6: #{decoder_forward.6} parent=0 // loop_footer
    %s15 = sadd.s32 1, %s11
  $region7: #{decoder_forward.6} parent=0 // loop_footer_branch
    %10 = sbr.rel target = $region3
  $region8: #{decoder_forward.6} parent=0 // loop_exit
    _

// kernel: decoder_forward.7
$region0: #{decoder_forward.7}
  #allocation0 [shape = 'u32[]', space=smem, size = 0x4, offset = 0x4, fixed_abs, tag = 'smem constant byte address 0x4 - core index']
  #allocation1 [shape = 'u32[144,128]{1,0:T(1,128)}', space=vmem, size = 0x12000, scoped, tag = 'internal scratch']
  %s0 = inlined_call_operand.vmem [shape: bf16[2,30,30,16], index: 0, kind: input, shape index: {}]
  %s1 = inlined_call_operand.vmem [shape: bf16[9,16,32], index: 1, kind: input, shape index: {}]
  %s2 = inlined_call_operand.vmem [shape: bf16[2,28,28,32], index: 2, kind: output, shape index: {0}]
  %s3 = inlined_call_operand.vmem [shape: f32[2,1,32], index: 3, kind: output, shape index: {1}]
  %s4 = inlined_call_operand.vmem [shape: f32[2,1,32], index: 4, kind: output, shape index: {2}]
  %5 = xla_tuple %s2, %s3, %s4
  %s6 = sld [smem:[#allocation0]]
  $region64: #{decoder_forward.7} parent=0
    _
  %s8 = ssub.s32 1, %s6
  %s9 = scalar_select 0, %s8, %s6
  loop: start=0, step=1, limit=4
  $region2: #{decoder_forward.7} parent=0 // loop_pre_header
    _
  $region3: #{decoder_forward.7} parent=0 // loop_header
    %s11 = sphi 0, %s15
    %p12 = scmp.ge.s32.totalorder %s11, 4
    %s21 = sphi 0, %s23
    %s24 = sphi 0, %s21
    %s25 = sphi 0, %s24
    %s41 = sphi 0, %s25
    %s45 = sphi 0, %s45
    %s47 = sphi 0, %s45
    %s48 = sphi 0, %s47
    %s62 = sphi 0, %s48
    %s68 = sphi 0, %s70
    %s71 = sphi 0, %s68
    %s72 = sphi 0, %s71
    %s88 = sphi 0, %s72
    %s94 = sphi 0, %s96
    %s97 = sphi 0, %s94
    %s98 = sphi 0, %s97
    %s114 = sphi 0, %s98
    %s120 = sphi 0, %s122
    %s123 = sphi 0, %s120
    %s124 = sphi 0, %s123
    %s140 = sphi 0, %s124
  $region4: #{decoder_forward.7} parent=0 // loop_header_branch
    %14 = sbr.rel (%p12) target = $region8
  $region5: #{decoder_forward.7} parent=0 // loop_body
    %s16 = ssub.s32 %s11, 1
    %s17 = ssub.s32 %s11, 2
    %s18 = sadd.s32 %s11, 1
    %s19 = ssub.s32 %s11, %s18
    %p20 = scmp.eq.s32.totalorder %s19, 0
    %s22 = sadd.s32 %s21, 1
    %s23 = scalar_select %p20, %s21, %s22
    %p26 = pneg %p20
    %p27 = scmp.eq.s32.totalorder %s11, 1
    %p28 = por %p26, %p27
    %p29 = scmp.ne.s32.totalorder %s21, %s24
    %p30 = scmp.eq.s32.totalorder %s11, 0
    %p31 = por %p29, %p30
    %p32 = scmp.ne.s32.totalorder %s21, %s24
    %p33 = scmp.eq.s32.totalorder %s16, 1
    %p34 = por %p32, %p33
    %p35 = scmp.ne.s32.totalorder %s24, %s25
    %p36 = scmp.eq.s32.totalorder %s16, 0
    %p37 = por %p35, %p36
    %p38 = scmp.ne.s32.totalorder %s24, %s25
    %p39 = scmp.eq.s32.totalorder %s17, 1
    %p40 = por %p38, %p39
    %p42 = scmp.ne.s32.totalorder %s25, %s41
    %p43 = scmp.eq.s32.totalorder %s17, 0
    %p44 = por %p42, %p43
    %s46 = sadd.s32 %s45, 1
    %p49 = scmp.eq.s32.totalorder %s11, 1
    %p50 = scmp.ne.s32.totalorder %s45, %s47
    %p51 = scmp.eq.s32.totalorder %s11, 0
    %p52 = por %p50, %p51
    %p53 = scmp.ne.s32.totalorder %s45, %s47
    %p54 = scmp.eq.s32.totalorder %s16, 1
    %p55 = por %p53, %p54
    %p56 = scmp.ne.s32.totalorder %s47, %s48
    %p57 = scmp.eq.s32.totalorder %s16, 0
    %p58 = por %p56, %p57
    %p59 = scmp.ne.s32.totalorder %s47, %s48
    %p60 = scmp.eq.s32.totalorder %s17, 1
    %p61 = por %p59, %p60
    %p63 = scmp.ne.s32.totalorder %s48, %s62
    %p64 = scmp.eq.s32.totalorder %s17, 0
    %p65 = por %p63, %p64
    %s66 = ssub.s32 %s11, %s18
    %p67 = scmp.eq.s32.totalorder %s66, 0
    %s69 = sadd.s32 %s68, 1
    %s70 = scalar_select %p67, %s68, %s69
    %p73 = pneg %p67
    %p74 = scmp.eq.s32.totalorder %s11, 1
    %p75 = por %p73, %p74
    %p76 = scmp.ne.s32.totalorder %s68, %s71
    %p77 = scmp.eq.s32.totalorder %s11, 0
    %p78 = por %p76, %p77
    %p79 = scmp.ne.s32.totalorder %s68, %s71
    %p80 = scmp.eq.s32.totalorder %s16, 1
    %p81 = por %p79, %p80
    %p82 = scmp.ne.s32.totalorder %s71, %s72
    %p83 = scmp.eq.s32.totalorder %s16, 0
    %p84 = por %p82, %p83
    %p85 = scmp.ne.s32.totalorder %s71, %s72
    %p86 = scmp.eq.s32.totalorder %s17, 1
    %p87 = por %p85, %p86
    %p89 = scmp.ne.s32.totalorder %s72, %s88
    %p90 = scmp.eq.s32.totalorder %s17, 0
    %p91 = por %p89, %p90
    %s92 = ssub.s32 %s11, %s18
    %p93 = scmp.eq.s32.totalorder %s92, 0
    %s95 = sadd.s32 %s94, 1
    %s96 = scalar_select %p93, %s94, %s95
    %p99 = pneg %p93
    %p100 = scmp.eq.s32.totalorder %s11, 1
    %p101 = por %p99, %p100
    %p102 = scmp.ne.s32.totalorder %s94, %s97
    %p103 = scmp.eq.s32.totalorder %s11, 0
    %p104 = por %p102, %p103
    %p105 = scmp.ne.s32.totalorder %s94, %s97
    %p106 = scmp.eq.s32.totalorder %s16, 1
    %p107 = por %p105, %p106
    %p108 = scmp.ne.s32.totalorder %s97, %s98
    %p109 = scmp.eq.s32.totalorder %s16, 0
    %p110 = por %p108, %p109
    %p111 = scmp.ne.s32.totalorder %s97, %s98
    %p112 = scmp.eq.s32.totalorder %s17, 1
    %p113 = por %p111, %p112
    %p115 = scmp.ne.s32.totalorder %s98, %s114
    %p116 = scmp.eq.s32.totalorder %s17, 0
    %p117 = por %p115, %p116
    %s118 = ssub.s32 %s11, %s18
    %p119 = scmp.eq.s32.totalorder %s118, 0
    %s121 = sadd.s32 %s120, 1
    %s122 = scalar_select %p119, %s120, %s121
    %p125 = pneg %p119
    %p126 = scmp.eq.s32.totalorder %s11, 1
    %p127 = por %p125, %p126
    %p128 = scmp.ne.s32.totalorder %s120, %s123
    %p129 = scmp.eq.s32.totalorder %s11, 0
    %p130 = por %p128, %p129
    %p131 = scmp.ne.s32.totalorder %s120, %s123
    %p132 = scmp.eq.s32.totalorder %s16, 1
    %p133 = por %p131, %p132
    %p134 = scmp.ne.s32.totalorder %s123, %s124
    %p135 = scmp.eq.s32.totalorder %s16, 0
    %p136 = por %p134, %p135
    %p137 = scmp.ne.s32.totalorder %s123, %s124
    %p138 = scmp.eq.s32.totalorder %s17, 1
    %p139 = por %p137, %p138
    %p141 = scmp.ne.s32.totalorder %s124, %s140
    %p142 = scmp.eq.s32.totalorder %s17, 0
    %p143 = por %p141, %p142
    %p144 = scmp.le.s32.totalorder 1, %s11
    %p145 = scmp.lt.s32.totalorder %s11, 3
    %p146 = pnand %p144, %p145
    %p147 = pneg %p146
    // Predicated region
    $region9: #{decoder_forward.7} parent=5 // pred_check
      _
    $region10: #{decoder_forward.7} parent=5 // pred_check_branch
      %149 = sbr.rel (%p146) target = $region12
    $region11: #{decoder_forward.7} parent=5 // pred_region
      %s150 = ssub.s32 %s11, 1
      // Predicated region
      $region13: #{decoder_forward.7} parent=11 // pred_check
        %p151 = pneg %p58
      $region14: #{decoder_forward.7} parent=11 // pred_check_branch
        %153 = sbr.rel (%p151) target = $region16
      $region15: #{decoder_forward.7} parent=11 // pred_region
        _
      $region16: #{decoder_forward.7} parent=11 // pred_fallthru
        _
    $region12: #{decoder_forward.7} parent=5 // pred_fallthru
      _
    %p154 = scmp.lt.s32.totalorder %s11, 2
    // Predicated region
    $region17: #{decoder_forward.7} parent=5 // pred_check
      %p155 = pneg %p154
    $region18: #{decoder_forward.7} parent=5 // pred_check_branch
      %157 = sbr.rel (%p155) target = $region20
    $region19: #{decoder_forward.7} parent=5 // pred_region
      // Predicated region
      $region21: #{decoder_forward.7} parent=19 // pred_check
        %p158 = pneg %p31
      $region22: #{decoder_forward.7} parent=19 // pred_check_branch
        %160 = sbr.rel (%p158) target = $region24
      $region23: #{decoder_forward.7} parent=19 // pred_region
        %p161 = scmp.lt.s32.totalorder %s11, 1
        %s162 = scalar_select %p161, %s11, 1
        %s163 = smul.addr %s162, 120
        %s164 = smul.addr %s163, 4
        %s165 = scalar_lea.vmem %s0, %s164
      $region24: #{decoder_forward.7} parent=19 // pred_fallthru
        _
    $region20: #{decoder_forward.7} parent=5 // pred_fallthru
      _
    %p166 = scmp.le.s32.totalorder 1, %s11
    %p167 = scmp.lt.s32.totalorder %s11, 3
    %p168 = pnand %p166, %p167
    %p169 = pneg %p168
    // Predicated region
    $region25: #{decoder_forward.7} parent=5 // pred_check
      _
    $region26: #{decoder_forward.7} parent=5 // pred_check_branch
      %171 = sbr.rel (%p168) target = $region28
    $region27: #{decoder_forward.7} parent=5 // pred_region
      %s172 = ssub.s32 %s11, 1
      %p173 = scmp.lt.s32.totalorder %s16, 1
      %s174 = scalar_select %p173, %s16, 1
      %s175 = smul.addr %s174, 120
      %s176 = smul.addr %s175, 4
      %s177 = scalar_lea.vmem %s0, %s176
      %p178 = pneg %p37
      %p179 = pneg %p34
      %p180 = pneg %p58
      %p181 = pneg %p55
      %p182 = pneg %p84
      %p183 = pneg %p81
      %p184 = scmp.lt.s32.totalorder %s16, 1
      %s185 = scalar_select %p184, %s16, 1
      %s186 = smul.addr %s185, 112
      %s187 = smul.addr %s186, 4
      %s188 = scalar_lea.vmem %s2, %s187
      %p189 = pneg %p110
      %p190 = pneg %p107
      %p191 = scmp.lt.s32.totalorder %s16, 1
      %s192 = scalar_select %p191, %s16, 1
      %s193 = scalar_lea.vmem %s3, %s192
      %p194 = pneg %p136
      %p195 = pneg %p133
      %p196 = scmp.lt.s32.totalorder %s16, 1
      %s197 = scalar_select %p196, %s16, 1
      %s198 = scalar_lea.vmem %s4, %s197
      %p199 = scmp.lt.s32.totalorder %s16, 1
      %s200 = scalar_select %p199, %s16, 1
      %s201 = smul.addr %s200, 120
      %s202 = smul.addr %s201, 4
      %s203 = scalar_lea.vmem %s0, %s202
      %p204 = scmp.lt.s32.totalorder %s16, 1
      %s205 = scalar_select %p204, %s16, 1
      %s206 = smul.addr %s205, 112
      %s207 = smul.addr %s206, 4
      %s208 = scalar_lea.vmem %s2, %s207
      %p209 = scmp.lt.s32.totalorder %s16, 1
      %s210 = scalar_select %p209, %s16, 1
      %s211 = scalar_lea.vmem %s3, %s210
      %p212 = scmp.lt.s32.totalorder %s16, 1
      %s213 = scalar_select %p212, %s16, 1
      %s214 = scalar_lea.vmem %s4, %s213
      %vm216 = vcmask 253952
      %217 = vst.msk [vmem:[%s211] sm:$0x1] %vm216, 0.0
      %218 = vst.msk [vmem:[%s214] sm:$0x1] %vm216, 0.0
      loop: start=0, step=1, limit=28
      $region29: #{decoder_forward.7} parent=27 // loop_pre_header
        _
      $region30: #{decoder_forward.7} parent=27 // loop_header
        %s220 = sphi 0, %s224
        %p221 = scmp.ge.s32.totalorder %s220, 28
      $region31: #{decoder_forward.7} parent=27 // loop_header_branch
        %223 = sbr.rel (%p221) target = $region35
      $region32: #{decoder_forward.7} parent=27 // loop_body
        %s225 = smul.u32 %s220, 4
        %s226 = smul.addr %s225, 4
        %s227 = scalar_lea.vmem %s203, %s226
        %v228 = vld [vmem:[%s227] sm:$0xf]
        %v229 = vld [vmem:[%s227 + $0x4] sm:$0xf]
        %v230 = vld [vmem:[%s227 + $0x8] sm:$0xf]
        %v231 = vld [vmem:[%s227 + $0xc] sm:$0x3]
        %v232 = vld [vmem:[%s1] sm:$0xf]
        %v233 = vld [vmem:[%s1 + $0x4] sm:$0xf]
        %v234 = vld [vmem:[%s227 + $0xc] sm:$0x7]
        %s235 = scalar_lea.vmem %s1, 8
        %v236 = vld [vmem:[%s235] sm:$0xf]
        %v237 = vld [vmem:[%s235 + $0x4] sm:$0xf]
        %v242 = vunpack.c.l.b16 %v228
        %v243 = vunpack.c.l.b16 %v229
        %v244 = vunpack.c.l.b16 %v230
        %v245 = vunpack.c.l.b16 %v234
        %v246 = vpack.c.b16 %v243, %v242
        %v247 = vpack.c.b16 %v245, %v244
        %vm248 = vsmask.f32 7424
        %v250 = vshrl.u32 %v246, 16
        %v252 = vshll.u32 %v246, 16
        %v254 = vrot.slane %v252, 1
        %v255 = vor.u32 %v250, %v254
        %v257 = vshll.u32 %v247, 16
        %v259 = vrot.slane %v257, 1
        %v260 = vsel %vm248, %v255, %v259
        %v261 = vshrl.u32 %v247, 16
        %v263 = vor.u32 %v261, %v259
        %v266 = vunpack.c.l.b16 %v236
        %v267 = vunpack.c.l.b16 %v237
        %v268 = vpack.c.b16 %v267, %v266
        %vm270 = vcmask 130048
        %v272 = vsel %vm270, %v260, 0
        %v275 = vsel %vm270, %v263, 0
        %277 = vmatprep.subr.bf16.mxu0 0
        %278 = vmatpush1.bf16.msra.mxu0 %v268
        %279 = vmatprep.subr.bf16.mxu0 0
        %280 = vmatpush1.bf16.msra.mxu0 0
        %281 = vmatprep.subr.bf16.mxu0 0
        %282 = vmatpush1.bf16.msra.mxu0 0
        %283 = vmatprep.subr.bf16.mxu0 0
        %284 = vmatpush1.bf16.msra.mxu0 0
        %285 = vmatprep.subr.bf16.mxu0 0
        %286 = vmatpush1.bf16.msra.mxu0 0
        %287 = vmatprep.subr.bf16.mxu0 0
        %288 = vmatpush1.bf16.msra.mxu0 0
        %289 = vmatprep.subr.bf16.mxu0 0
        %290 = vmatpush1.bf16.msra.mxu0 0
        %291 = vmatprep.subr.bf16.mxu0 0
        %292 = vmatpush1.bf16.msra.mxu0 0
        %293 = vmatprep.subr.bf16.mxu0 0
        %294 = vmatpush1.bf16.msra.mxu0 0
        %295 = vmatprep.subr.bf16.mxu0 0
        %296 = vmatpush1.bf16.msra.mxu0 0
        %297 = vmatprep.subr.bf16.mxu0 0
        %298 = vmatpush1.bf16.msra.mxu0 0
        %299 = vmatprep.subr.bf16.mxu0 0
        %300 = vmatpush1.bf16.msra.mxu0 0
        %301 = vmatprep.subr.bf16.mxu0 0
        %302 = vmatpush1.bf16.msra.mxu0 0
        %303 = vmatprep.subr.bf16.mxu0 0
        %304 = vmatpush1.bf16.msra.mxu0 0
        %305 = vmatprep.subr.bf16.mxu0 0
        %306 = vmatpush1.bf16.msra.mxu0 0
        %307 = vmatprep.subr.bf16.mxu0 0
        %308 = vmatpush1.bf16.msra.mxu0 0
        %309 = vmatprep.mubr.bf16.mxu0 0
        %310 = vmatmul.mubr.bf16.gmra.mrb[0].mxu0 %v272
        %v311 = vpop.f32.mrb[0].mxu0
        %v312 = vadd.f32 0.0, %v311
        %v313 = vpop.f32.mrb[0].mxu0
        %v314 = vpop.f32.mrb[0].mxu0
        %v315 = vadd.f32 0.0, %v314
        %v316 = vpop.f32.mrb[0].mxu0
        %317 = vmatprep.mubr.bf16.mxu0 0
        %318 = vmatmul.mubr.bf16.gmra.mrb[0].mxu0 %v275
        %v319 = vpop.f32.mrb[0].mxu0
        %v320 = vadd.f32 0.0, %v319
        %v321 = vpop.f32.mrb[0].mxu0
        %v322 = vpop.f32.mrb[0].mxu0
        %v323 = vadd.f32 0.0, %v322
        %v324 = vpop.f32.mrb[0].mxu0
        %325 = vdwg.mxu0
        %v327 = vunpack.c.l.b16 %v231
        %v328 = vpack.c.b16 %v327, %v244
        %v331 = vunpack.c.l.b16 %v232
        %v332 = vunpack.c.l.b16 %v233
        %v333 = vpack.c.b16 %v332, %v331
        %v335 = vsel %vm270, %v246, 0
        %v338 = vsel %vm270, %v328, 0
        %340 = vmatprep.subr.bf16.mxu0 0
        %341 = vmatpush1.bf16.msra.mxu0 %v333
        %342 = vmatprep.subr.bf16.mxu0 0
        %343 = vmatpush1.bf16.msra.mxu0 0
        %344 = vmatprep.subr.bf16.mxu0 0
        %345 = vmatpush1.bf16.msra.mxu0 0
        %346 = vmatprep.subr.bf16.mxu0 0
        %347 = vmatpush1.bf16.msra.mxu0 0
        %348 = vmatprep.subr.bf16.mxu0 0
        %349 = vmatpush1.bf16.msra.mxu0 0
        %350 = vmatprep.subr.bf16.mxu0 0
        %351 = vmatpush1.bf16.msra.mxu0 0
        %352 = vmatprep.subr.bf16.mxu0 0
        %353 = vmatpush1.bf16.msra.mxu0 0
        %354 = vmatprep.subr.bf16.mxu0 0
        %355 = vmatpush1.bf16.msra.mxu0 0
        %356 = vmatprep.subr.bf16.mxu0 0
        %357 = vmatpush1.bf16.msra.mxu0 0
        %358 = vmatprep.subr.bf16.mxu0 0
        %359 = vmatpush1.bf16.msra.mxu0 0
        %360 = vmatprep.subr.bf16.mxu0 0
        %361 = vmatpush1.bf16.msra.mxu0 0
        %362 = vmatprep.subr.bf16.mxu0 0
        %363 = vmatpush1.bf16.msra.mxu0 0
        %364 = vmatprep.subr.bf16.mxu0 0
        %365 = vmatpush1.bf16.msra.mxu0 0
        %366 = vmatprep.subr.bf16.mxu0 0
        %367 = vmatpush1.bf16.msra.mxu0 0
        %368 = vmatprep.subr.bf16.mxu0 0
        %369 = vmatpush1.bf16.msra.mxu0 0
        %370 = vmatprep.subr.bf16.mxu0 0
        %371 = vmatpush1.bf16.msra.mxu0 0
        %372 = vmatprep.mubr.bf16.mxu0 0
        %373 = vmatmul.mubr.bf16.gmra.mrb[0].mxu0 %v335
        %v374 = vpop.f32.mrb[0].mxu0
        %v375 = vadd.f32 %v312, %v374
        %v376 = vpop.f32.mrb[0].mxu0
        %v377 = vpop.f32.mrb[0].mxu0
        %v378 = vadd.f32 %v315, %v377
        %v379 = vpop.f32.mrb[0].mxu0
        %380 = vmatprep.mubr.bf16.mxu0 0
        %381 = vmatmul.mubr.bf16.gmra.mrb[0].mxu0 %v338
        %v382 = vpop.f32.mrb[0].mxu0
        %v383 = vadd.f32 %v320, %v382
        %v384 = vpop.f32.mrb[0].mxu0
        %v385 = vpop.f32.mrb[0].mxu0
        %v386 = vadd.f32 %v323, %v385
        %v387 = vpop.f32.mrb[0].mxu0
        %388 = vdwg.mxu0
        %v389 = vld [vmem:[%s227] sm:$0xe]
        %s390 = scalar_lea.vmem %s1, 16
        %v391 = vld [vmem:[%s390] sm:$0xf]
        %v392 = vld [vmem:[%s390 + $0x4] sm:$0xf]
        %v394 = vunpack.c.l.b16 %v389
        %v395 = vpack.c.b16 %v243, %v394
        %vm396 = vcmask 1046528
        %v397 = vrot.slane %v395, 1
        %v398 = vrot.slane %v247, 1
        %v399 = vsel %vm396, %v397, %v398
        %v402 = vunpack.c.l.b16 %v391
        %v403 = vunpack.c.l.b16 %v392
        %v404 = vpack.c.b16 %v403, %v402
        %v407 = vsel %vm270, %v399, 0
        %v410 = vsel %vm270, %v398, 0
        %412 = vmatprep.subr.bf16.mxu0 0
        %413 = vmatpush1.bf16.msra.mxu0 %v404
        %414 = vmatprep.subr.bf16.mxu0 0
        %415 = vmatpush1.bf16.msra.mxu0 0
        %416 = vmatprep.subr.bf16.mxu0 0
        %417 = vmatpush1.bf16.msra.mxu0 0
        %418 = vmatprep.subr.bf16.mxu0 0
        %419 = vmatpush1.bf16.msra.mxu0 0
        %420 = vmatprep.subr.bf16.mxu0 0
        %421 = vmatpush1.bf16.msra.mxu0 0
        %422 = vmatprep.subr.bf16.mxu0 0
        %423 = vmatpush1.bf16.msra.mxu0 0
        %424 = vmatprep.subr.bf16.mxu0 0
        %425 = vmatpush1.bf16.msra.mxu0 0
        %426 = vmatprep.subr.bf16.mxu0 0
        %427 = vmatpush1.bf16.msra.mxu0 0
        %428 = vmatprep.subr.bf16.mxu0 0
        %429 = vmatpush1.bf16.msra.mxu0 0
        %430 = vmatprep.subr.bf16.mxu0 0
        %431 = vmatpush1.bf16.msra.mxu0 0
        %432 = vmatprep.subr.bf16.mxu0 0
        %433 = vmatpush1.bf16.msra.mxu0 0
        %434 = vmatprep.subr.bf16.mxu0 0
        %435 = vmatpush1.bf16.msra.mxu0 0
        %436 = vmatprep.subr.bf16.mxu0 0
        %437 = vmatpush1.bf16.msra.mxu0 0
        %438 = vmatprep.subr.bf16.mxu0 0
        %439 = vmatpush1.bf16.msra.mxu0 0
        %440 = vmatprep.subr.bf16.mxu0 0
        %441 = vmatpush1.bf16.msra.mxu0 0
        %442 = vmatprep.subr.bf16.mxu0 0
        %443 = vmatpush1.bf16.msra.mxu0 0
        %444 = vmatprep.mubr.bf16.mxu0 0
        %445 = vmatmul.mubr.bf16.gmra.mrb[0].mxu0 %v407
        %v446 = vpop.f32.mrb[0].mxu0
        %v447 = vadd.f32 0.0, %v446
        %v448 = vpop.f32.mrb[0].mxu0
        %v449 = vpop.f32.mrb[0].mxu0
        %v450 = vadd.f32 0.0, %v449
        %v451 = vpop.f32.mrb[0].mxu0
        %452 = vmatprep.mubr.bf16.mxu0 0
        %453 = vmatmul.mubr.bf16.gmra.mrb[0].mxu0 %v410
        %v454 = vpop.f32.mrb[0].mxu0
        %v455 = vadd.f32 0.0, %v454
        %v456 = vpop.f32.mrb[0].mxu0
        %v457 = vpop.f32.mrb[0].mxu0
        %v458 = vadd.f32 0.0, %v457
        %v459 = vpop.f32.mrb[0].mxu0
        %460 = vdwg.mxu0
        %v461 = vadd.f32 %v375, %v447
        %v462 = vadd.f32 %v378, %v450
        %v463 = vadd.f32 %v383, %v455
        %v464 = vadd.f32 %v386, %v458
        %s465 = sadd.s32 %s220, 1
        %s466 = smul.u32 %s465, 4
        %s467 = smul.addr %s466, 4
        %s468 = scalar_lea.vmem %s203, %s467
        %v469 = vld [vmem:[%s468] sm:$0xf]
        %v470 = vld [vmem:[%s468 + $0x4] sm:$0xf]
        %v471 = vld [vmem:[%s468 + $0x8] sm:$0xf]
        %v472 = vld [vmem:[%s468 + $0xc] sm:$0x3]
        %s473 = scalar_lea.vmem %s1, 24
        %v474 = vld [vmem:[%s473] sm:$0xf]
        %v475 = vld [vmem:[%s473 + $0x4] sm:$0xf]
        %v480 = vunpack.c.l.b16 %v469
        %v481 = vunpack.c.l.b16 %v470
        %v482 = vunpack.c.l.b16 %v471
        %v483 = vunpack.c.l.b16 %v472
        %v484 = vpack.c.b16 %v481, %v480
        %v485 = vpack.c.b16 %v483, %v482
        %v488 = vunpack.c.l.b16 %v474
        %v489 = vunpack.c.l.b16 %v475
        %v490 = vpack.c.b16 %v489, %v488
        %v493 = vsel %vm270, %v484, 0
        %v496 = vsel %vm270, %v485, 0
        %498 = vmatprep.subr.bf16.mxu0 0
        %499 = vmatpush1.bf16.msra.mxu0 %v490
        %500 = vmatprep.subr.bf16.mxu0 0
        %501 = vmatpush1.bf16.msra.mxu0 0
        %502 = vmatprep.subr.bf16.mxu0 0
        %503 = vmatpush1.bf16.msra.mxu0 0
        %504 = vmatprep.subr.bf16.mxu0 0
        %505 = vmatpush1.bf16.msra.mxu0 0
        %506 = vmatprep.subr.bf16.mxu0 0
        %507 = vmatpush1.bf16.msra.mxu0 0
        %508 = vmatprep.subr.bf16.mxu0 0
        %509 = vmatpush1.bf16.msra.mxu0 0
        %510 = vmatprep.subr.bf16.mxu0 0
        %511 = vmatpush1.bf16.msra.mxu0 0
        %512 = vmatprep.subr.bf16.mxu0 0
        %513 = vmatpush1.bf16.msra.mxu0 0
        %514 = vmatprep.subr.bf16.mxu0 0
        %515 = vmatpush1.bf16.msra.mxu0 0
        %516 = vmatprep.subr.bf16.mxu0 0
        %517 = vmatpush1.bf16.msra.mxu0 0
        %518 = vmatprep.subr.bf16.mxu0 0
        %519 = vmatpush1.bf16.msra.mxu0 0
        %520 = vmatprep.subr.bf16.mxu0 0
        %521 = vmatpush1.bf16.msra.mxu0 0
        %522 = vmatprep.subr.bf16.mxu0 0
        %523 = vmatpush1.bf16.msra.mxu0 0
        %524 = vmatprep.subr.bf16.mxu0 0
        %525 = vmatpush1.bf16.msra.mxu0 0
        %526 = vmatprep.subr.bf16.mxu0 0
        %527 = vmatpush1.bf16.msra.mxu0 0
        %528 = vmatprep.subr.bf16.mxu0 0
        %529 = vmatpush1.bf16.msra.mxu0 0
        %530 = vmatprep.mubr.bf16.mxu0 0
        %531 = vmatmul.mubr.bf16.gmra.mrb[0].mxu0 %v493
        %v532 = vpop.f32.mrb[0].mxu0
        %v533 = vadd.f32 0.0, %v532
        %v534 = vpop.f32.mrb[0].mxu0
        %v535 = vpop.f32.mrb[0].mxu0
        %v536 = vadd.f32 0.0, %v535
        %v537 = vpop.f32.mrb[0].mxu0
        %538 = vmatprep.mubr.bf16.mxu0 0
        %539 = vmatmul.mubr.bf16.gmra.mrb[0].mxu0 %v496
        %v540 = vpop.f32.mrb[0].mxu0
        %v541 = vadd.f32 0.0, %v540
        %v542 = vpop.f32.mrb[0].mxu0
        %v543 = vpop.f32.mrb[0].mxu0
        %v544 = vadd.f32 0.0, %v543
        %v545 = vpop.f32.mrb[0].mxu0
        %546 = vdwg.mxu0
        %v547 = vadd.f32 %v461, %v533
        %v548 = vadd.f32 %v462, %v536
        %v549 = vadd.f32 %v463, %v541
        %v550 = vadd.f32 %v464, %v544
        %v551 = vld [vmem:[%s468 + $0xc] sm:$0x7]
        %s552 = scalar_lea.vmem %s1, 32
        %v553 = vld [vmem:[%s552] sm:$0xf]
        %v554 = vld [vmem:[%s552 + $0x4] sm:$0xf]
        %v556 = vunpack.c.l.b16 %v551
        %v557 = vpack.c.b16 %v556, %v482
        %v558 = vshrl.u32 %v484, 16
        %v560 = vshll.u32 %v484, 16
        %v562 = vrot.slane %v560, 1
        %v563 = vor.u32 %v558, %v562
        %v565 = vshll.u32 %v557, 16
        %v567 = vrot.slane %v565, 1
        %v568 = vsel %vm248, %v563, %v567
        %v569 = vshrl.u32 %v557, 16
        %v571 = vor.u32 %v569, %v567
        %v574 = vunpack.c.l.b16 %v553
        %v575 = vunpack.c.l.b16 %v554
        %v576 = vpack.c.b16 %v575, %v574
        %v579 = vsel %vm270, %v568, 0
        %v582 = vsel %vm270, %v571, 0
        %584 = vmatprep.subr.bf16.mxu0 0
        %585 = vmatpush1.bf16.msra.mxu0 %v576
        %586 = vmatprep.subr.bf16.mxu0 0
        %587 = vmatpush1.bf16.msra.mxu0 0
        %588 = vmatprep.subr.bf16.mxu0 0
        %589 = vmatpush1.bf16.msra.mxu0 0
        %590 = vmatprep.subr.bf16.mxu0 0
        %591 = vmatpush1.bf16.msra.mxu0 0
        %592 = vmatprep.subr.bf16.mxu0 0
        %593 = vmatpush1.bf16.msra.mxu0 0
        %594 = vmatprep.subr.bf16.mxu0 0
        %595 = vmatpush1.bf16.msra.mxu0 0
        %596 = vmatprep.subr.bf16.mxu0 0
        %597 = vmatpush1.bf16.msra.mxu0 0
        %598 = vmatprep.subr.bf16.mxu0 0
        %599 = vmatpush1.bf16.msra.mxu0 0
        %600 = vmatprep.subr.bf16.mxu0 0
        %601 = vmatpush1.bf16.msra.mxu0 0
        %602 = vmatprep.subr.bf16.mxu0 0
        %603 = vmatpush1.bf16.msra.mxu0 0
        %604 = vmatprep.subr.bf16.mxu0 0
        %605 = vmatpush1.bf16.msra.mxu0 0
        %606 = vmatprep.subr.bf16.mxu0 0
        %607 = vmatpush1.bf16.msra.mxu0 0
        %608 = vmatprep.subr.bf16.mxu0 0
        %609 = vmatpush1.bf16.msra.mxu0 0
        %610 = vmatprep.subr.bf16.mxu0 0
        %611 = vmatpush1.bf16.msra.mxu0 0
        %612 = vmatprep.subr.bf16.mxu0 0
        %613 = vmatpush1.bf16.msra.mxu0 0
        %614 = vmatprep.subr.bf16.mxu0 0
        %615 = vmatpush1.bf16.msra.mxu0 0
        %616 = vmatprep.mubr.bf16.mxu0 0
        %617 = vmatmul.mubr.bf16.gmra.mrb[0].mxu0 %v579
        %v618 = vpop.f32.mrb[0].mxu0
        %v619 = vadd.f32 0.0, %v618
        %v620 = vpop.f32.mrb[0].mxu0
        %v621 = vpop.f32.mrb[0].mxu0
        %v622 = vadd.f32 0.0, %v621
        %v623 = vpop.f32.mrb[0].mxu0
        %624 = vmatprep.mubr.bf16.mxu0 0
        %625 = vmatmul.mubr.bf16.gmra.mrb[0].mxu0 %v582
        %v626 = vpop.f32.mrb[0].mxu0
        %v627 = vadd.f32 0.0, %v626
        %v628 = vpop.f32.mrb[0].mxu0
        %v629 = vpop.f32.mrb[0].mxu0
        %v630 = vadd.f32 0.0, %v629
        %v631 = vpop.f32.mrb[0].mxu0
        %632 = vdwg.mxu0
        %v633 = vadd.f32 %v547, %v619
        %v634 = vadd.f32 %v548, %v622
        %v635 = vadd.f32 %v549, %v627
        %v636 = vadd.f32 %v550, %v630
        %v637 = vld [vmem:[%s468] sm:$0xe]
        %s638 = scalar_lea.vmem %s1, 40
        %v639 = vld [vmem:[%s638] sm:$0xf]
        %v640 = vld [vmem:[%s638 + $0x4] sm:$0xf]
        %v642 = vunpack.c.l.b16 %v637
        %v643 = vpack.c.b16 %v481, %v642
        %v644 = vrot.slane %v643, 1
        %v645 = vrot.slane %v557, 1
        %v646 = vsel %vm396, %v644, %v645
        %v649 = vunpack.c.l.b16 %v639
        %v650 = vunpack.c.l.b16 %v640
        %v651 = vpack.c.b16 %v650, %v649
        %v654 = vsel %vm270, %v646, 0
        %v657 = vsel %vm270, %v645, 0
        %659 = vmatprep.subr.bf16.mxu0 0
        %660 = vmatpush1.bf16.msra.mxu0 %v651
        %661 = vmatprep.subr.bf16.mxu0 0
        %662 = vmatpush1.bf16.msra.mxu0 0
        %663 = vmatprep.subr.bf16.mxu0 0
        %664 = vmatpush1.bf16.msra.mxu0 0
        %665 = vmatprep.subr.bf16.mxu0 0
        %666 = vmatpush1.bf16.msra.mxu0 0
        %667 = vmatprep.subr.bf16.mxu0 0
        %668 = vmatpush1.bf16.msra.mxu0 0
        %669 = vmatprep.subr.bf16.mxu0 0
        %670 = vmatpush1.bf16.msra.mxu0 0
        %671 = vmatprep.subr.bf16.mxu0 0
        %672 = vmatpush1.bf16.msra.mxu0 0
        %673 = vmatprep.subr.bf16.mxu0 0
        %674 = vmatpush1.bf16.msra.mxu0 0
        %675 = vmatprep.subr.bf16.mxu0 0
        %676 = vmatpush1.bf16.msra.mxu0 0
        %677 = vmatprep.subr.bf16.mxu0 0
        %678 = vmatpush1.bf16.msra.mxu0 0
        %679 = vmatprep.subr.bf16.mxu0 0
        %680 = vmatpush1.bf16.msra.mxu0 0
        %681 = vmatprep.subr.bf16.mxu0 0
        %682 = vmatpush1.bf16.msra.mxu0 0
        %683 = vmatprep.subr.bf16.mxu0 0
        %684 = vmatpush1.bf16.msra.mxu0 0
        %685 = vmatprep.subr.bf16.mxu0 0
        %686 = vmatpush1.bf16.msra.mxu0 0
        %687 = vmatprep.subr.bf16.mxu0 0
        %688 = vmatpush1.bf16.msra.mxu0 0
        %689 = vmatprep.subr.bf16.mxu0 0
        %690 = vmatpush1.bf16.msra.mxu0 0
        %691 = vmatprep.mubr.bf16.mxu0 0
        %692 = vmatmul.mubr.bf16.gmra.mrb[0].mxu0 %v654
        %v693 = vpop.f32.mrb[0].mxu0
        %v694 = vadd.f32 0.0, %v693
        %v695 = vpop.f32.mrb[0].mxu0
        %v696 = vpop.f32.mrb[0].mxu0
        %v697 = vadd.f32 0.0, %v696
        %v698 = vpop.f32.mrb[0].mxu0
        %699 = vmatprep.mubr.bf16.mxu0 0
        %700 = vmatmul.mubr.bf16.gmra.mrb[0].mxu0 %v657
        %v701 = vpop.f32.mrb[0].mxu0
        %v702 = vadd.f32 0.0, %v701
        %v703 = vpop.f32.mrb[0].mxu0
        %v704 = vpop.f32.mrb[0].mxu0
        %v705 = vadd.f32 0.0, %v704
        %v706 = vpop.f32.mrb[0].mxu0
        %707 = vdwg.mxu0
        %v708 = vadd.f32 %v633, %v694
        %v709 = vadd.f32 %v634, %v697
        %v710 = vadd.f32 %v635, %v702
        %v711 = vadd.f32 %v636, %v705
        %s712 = sadd.s32 %s220, 2
        %s713 = smul.u32 %s712, 4
        %s714 = smul.addr %s713, 4
        %s715 = scalar_lea.vmem %s203, %s714
        %v716 = vld [vmem:[%s715] sm:$0xf]
        %v717 = vld [vmem:[%s715 + $0x4] sm:$0xf]
        %v718 = vld [vmem:[%s715 + $0x8] sm:$0xf]
        %v719 = vld [vmem:[%s715 + $0xc] sm:$0x3]
        %s720 = scalar_lea.vmem %s1, 48
        %v721 = vld [vmem:[%s720] sm:$0xf]
        %v722 = vld [vmem:[%s720 + $0x4] sm:$0xf]
        %v727 = vunpack.c.l.b16 %v716
        %v728 = vunpack.c.l.b16 %v717
        %v729 = vunpack.c.l.b16 %v718
        %v730 = vunpack.c.l.b16 %v719
        %v731 = vpack.c.b16 %v728, %v727
        %v732 = vpack.c.b16 %v730, %v729
        %v735 = vunpack.c.l.b16 %v721
        %v736 = vunpack.c.l.b16 %v722
        %v737 = vpack.c.b16 %v736, %v735
        %v740 = vsel %vm270, %v731, 0
        %v743 = vsel %vm270, %v732, 0
        %745 = vmatprep.subr.bf16.mxu0 0
        %746 = vmatpush1.bf16.msra.mxu0 %v737
        %747 = vmatprep.subr.bf16.mxu0 0
        %748 = vmatpush1.bf16.msra.mxu0 0
        %749 = vmatprep.subr.bf16.mxu0 0
        %750 = vmatpush1.bf16.msra.mxu0 0
        %751 = vmatprep.subr.bf16.mxu0 0
        %752 = vmatpush1.bf16.msra.mxu0 0
        %753 = vmatprep.subr.bf16.mxu0 0
        %754 = vmatpush1.bf16.msra.mxu0 0
        %755 = vmatprep.subr.bf16.mxu0 0
        %756 = vmatpush1.bf16.msra.mxu0 0
        %757 = vmatprep.subr.bf16.mxu0 0
        %758 = vmatpush1.bf16.msra.mxu0 0
        %759 = vmatprep.subr.bf16.mxu0 0
        %760 = vmatpush1.bf16.msra.mxu0 0
        %761 = vmatprep.subr.bf16.mxu0 0
        %762 = vmatpush1.bf16.msra.mxu0 0
        %763 = vmatprep.subr.bf16.mxu0 0
        %764 = vmatpush1.bf16.msra.mxu0 0
        %765 = vmatprep.subr.bf16.mxu0 0
        %766 = vmatpush1.bf16.msra.mxu0 0
        %767 = vmatprep.subr.bf16.mxu0 0
        %768 = vmatpush1.bf16.msra.mxu0 0
        %769 = vmatprep.subr.bf16.mxu0 0
        %770 = vmatpush1.bf16.msra.mxu0 0
        %771 = vmatprep.subr.bf16.mxu0 0
        %772 = vmatpush1.bf16.msra.mxu0 0
        %773 = vmatprep.subr.bf16.mxu0 0
        %774 = vmatpush1.bf16.msra.mxu0 0
        %775 = vmatprep.subr.bf16.mxu0 0
        %776 = vmatpush1.bf16.msra.mxu0 0
        %777 = vmatprep.mubr.bf16.mxu0 0
        %778 = vmatmul.mubr.bf16.gmra.mrb[0].mxu0 %v740
        %v779 = vpop.f32.mrb[0].mxu0
        %v780 = vadd.f32 0.0, %v779
        %v781 = vpop.f32.mrb[0].mxu0
        %v782 = vpop.f32.mrb[0].mxu0
        %v783 = vadd.f32 0.0, %v782
        %v784 = vpop.f32.mrb[0].mxu0
        %785 = vmatprep.mubr.bf16.mxu0 0
        %786 = vmatmul.mubr.bf16.gmra.mrb[0].mxu0 %v743
        %v787 = vpop.f32.mrb[0].mxu0
        %v788 = vadd.f32 0.0, %v787
        %v789 = vpop.f32.mrb[0].mxu0
        %v790 = vpop.f32.mrb[0].mxu0
        %v791 = vadd.f32 0.0, %v790
        %v792 = vpop.f32.mrb[0].mxu0
        %793 = vdwg.mxu0
        %v794 = vadd.f32 %v708, %v780
        %v795 = vadd.f32 %v709, %v783
        %v796 = vadd.f32 %v710, %v788
        %v797 = vadd.f32 %v711, %v791
        %v798 = vld [vmem:[%s715 + $0xc] sm:$0x7]
        %s799 = scalar_lea.vmem %s1, 56
        %v800 = vld [vmem:[%s799] sm:$0xf]
        %v801 = vld [vmem:[%s799 + $0x4] sm:$0xf]
        %v803 = vunpack.c.l.b16 %v798
        %v804 = vpack.c.b16 %v803, %v729
        %v805 = vshrl.u32 %v731, 16
        %v807 = vshll.u32 %v731, 16
        %v809 = vrot.slane %v807, 1
        %v810 = vor.u32 %v805, %v809
        %v812 = vshll.u32 %v804, 16
        %v814 = vrot.slane %v812, 1
        %v815 = vsel %vm248, %v810, %v814
        %v816 = vshrl.u32 %v804, 16
        %v818 = vor.u32 %v816, %v814
        %v821 = vunpack.c.l.b16 %v800
        %v822 = vunpack.c.l.b16 %v801
        %v823 = vpack.c.b16 %v822, %v821
        %v826 = vsel %vm270, %v815, 0
        %v829 = vsel %vm270, %v818, 0
        %831 = vmatprep.subr.bf16.mxu0 0
        %832 = vmatpush1.bf16.msra.mxu0 %v823
        %833 = vmatprep.subr.bf16.mxu0 0
        %834 = vmatpush1.bf16.msra.mxu0 0
        %835 = vmatprep.subr.bf16.mxu0 0
        %836 = vmatpush1.bf16.msra.mxu0 0
        %837 = vmatprep.subr.bf16.mxu0 0
        %838 = vmatpush1.bf16.msra.mxu0 0
        %839 = vmatprep.subr.bf16.mxu0 0
        %840 = vmatpush1.bf16.msra.mxu0 0
        %841 = vmatprep.subr.bf16.mxu0 0
        %842 = vmatpush1.bf16.msra.mxu0 0
        %843 = vmatprep.subr.bf16.mxu0 0
        %844 = vmatpush1.bf16.msra.mxu0 0
        %845 = vmatprep.subr.bf16.mxu0 0
        %846 = vmatpush1.bf16.msra.mxu0 0
        %847 = vmatprep.subr.bf16.mxu0 0
        %848 = vmatpush1.bf16.msra.mxu0 0
        %849 = vmatprep.subr.bf16.mxu0 0
        %850 = vmatpush1.bf16.msra.mxu0 0
        %851 = vmatprep.subr.bf16.mxu0 0
        %852 = vmatpush1.bf16.msra.mxu0 0
        %853 = vmatprep.subr.bf16.mxu0 0
        %854 = vmatpush1.bf16.msra.mxu0 0
        %855 = vmatprep.subr.bf16.mxu0 0
        %856 = vmatpush1.bf16.msra.mxu0 0
        %857 = vmatprep.subr.bf16.mxu0 0
        %858 = vmatpush1.bf16.msra.mxu0 0
        %859 = vmatprep.subr.bf16.mxu0 0
        %860 = vmatpush1.bf16.msra.mxu0 0
        %861 = vmatprep.subr.bf16.mxu0 0
        %862 = vmatpush1.bf16.msra.mxu0 0
        %863 = vmatprep.mubr.bf16.mxu0 0
        %864 = vmatmul.mubr.bf16.gmra.mrb[0].mxu0 %v826
        %v865 = vpop.f32.mrb[0].mxu0
        %v866 = vadd.f32 0.0, %v865
        %v867 = vpop.f32.mrb[0].mxu0
        %v868 = vpop.f32.mrb[0].mxu0
        %v869 = vadd.f32 0.0, %v868
        %v870 = vpop.f32.mrb[0].mxu0
        %871 = vmatprep.mubr.bf16.mxu0 0
        %872 = vmatmul.mubr.bf16.gmra.mrb[0].mxu0 %v829
        %v873 = vpop.f32.mrb[0].mxu0
        %v874 = vadd.f32 0.0, %v873
        %v875 = vpop.f32.mrb[0].mxu0
        %v876 = vpop.f32.mrb[0].mxu0
        %v877 = vadd.f32 0.0, %v876
        %v878 = vpop.f32.mrb[0].mxu0
        %879 = vdwg.mxu0
        %v880 = vadd.f32 %v794, %v866
        %v881 = vadd.f32 %v795, %v869
        %v882 = vadd.f32 %v796, %v874
        %v883 = vadd.f32 %v797, %v877
        %v884 = vld [vmem:[%s715] sm:$0xe]
        %s885 = scalar_lea.vmem %s1, 64
        %v886 = vld [vmem:[%s885] sm:$0xf]
        %v887 = vld [vmem:[%s885 + $0x4] sm:$0xf]
        %v889 = vunpack.c.l.b16 %v884
        %v890 = vpack.c.b16 %v728, %v889
        %v891 = vrot.slane %v890, 1
        %v892 = vrot.slane %v804, 1
        %v893 = vsel %vm396, %v891, %v892
        %v896 = vunpack.c.l.b16 %v886
        %v897 = vunpack.c.l.b16 %v887
        %v898 = vpack.c.b16 %v897, %v896
        %v901 = vsel %vm270, %v893, 0
        %v904 = vsel %vm270, %v892, 0
        %906 = vmatprep.subr.bf16.mxu0 0
        %907 = vmatpush1.bf16.msra.mxu0 %v898
        %908 = vmatprep.subr.bf16.mxu0 0
        %909 = vmatpush1.bf16.msra.mxu0 0
        %910 = vmatprep.subr.bf16.mxu0 0
        %911 = vmatpush1.bf16.msra.mxu0 0
        %912 = vmatprep.subr.bf16.mxu0 0
        %913 = vmatpush1.bf16.msra.mxu0 0
        %914 = vmatprep.subr.bf16.mxu0 0
        %915 = vmatpush1.bf16.msra.mxu0 0
        %916 = vmatprep.subr.bf16.mxu0 0
        %917 = vmatpush1.bf16.msra.mxu0 0
        %918 = vmatprep.subr.bf16.mxu0 0
        %919 = vmatpush1.bf16.msra.mxu0 0
        %920 = vmatprep.subr.bf16.mxu0 0
        %921 = vmatpush1.bf16.msra.mxu0 0
        %922 = vmatprep.subr.bf16.mxu0 0
        %923 = vmatpush1.bf16.msra.mxu0 0
        %924 = vmatprep.subr.bf16.mxu0 0
        %925 = vmatpush1.bf16.msra.mxu0 0
        %926 = vmatprep.subr.bf16.mxu0 0
        %927 = vmatpush1.bf16.msra.mxu0 0
        %928 = vmatprep.subr.bf16.mxu0 0
        %929 = vmatpush1.bf16.msra.mxu0 0
        %930 = vmatprep.subr.bf16.mxu0 0
        %931 = vmatpush1.bf16.msra.mxu0 0
        %932 = vmatprep.subr.bf16.mxu0 0
        %933 = vmatpush1.bf16.msra.mxu0 0
        %934 = vmatprep.subr.bf16.mxu0 0
        %935 = vmatpush1.bf16.msra.mxu0 0
        %936 = vmatprep.subr.bf16.mxu0 0
        %937 = vmatpush1.bf16.msra.mxu0 0
        %938 = vmatprep.mubr.bf16.mxu0 0
        %939 = vmatmul.mubr.bf16.gmra.mrb[0].mxu0 %v901
        %v940 = vpop.f32.mrb[0].mxu0
        %v941 = vadd.f32 0.0, %v940
        %v942 = vpop.f32.mrb[0].mxu0
        %v943 = vpop.f32.mrb[0].mxu0
        %v944 = vadd.f32 0.0, %v943
        %v945 = vpop.f32.mrb[0].mxu0
        %946 = vmatprep.mubr.bf16.mxu0 0
        %947 = vmatmul.mubr.bf16.gmra.mrb[0].mxu0 %v904
        %v948 = vpop.f32.mrb[0].mxu0
        %v949 = vadd.f32 0.0, %v948
        %v950 = vpop.f32.mrb[0].mxu0
        %v951 = vpop.f32.mrb[0].mxu0
        %v952 = vadd.f32 0.0, %v951
        %v953 = vpop.f32.mrb[0].mxu0
        %954 = vdwg.mxu0
        %v955 = vadd.f32 %v880, %v941
        %v956 = vadd.f32 %v881, %v944
        %v957 = vadd.f32 %v882, %v949
        %v958 = vadd.f32 %v883, %v952
        %v959 = vld [vmem:[%s211] sm:$0x1]
        %vm960 = vcmask 261120
        %v961 = vsel %vm960, %v955, 0.0
        %v962 = vsel %vm960, %v956, 0.0
        %v963 = vadd.f32 %v961, %v962
        %v964 = vsel %vm960, %v957, 0.0
        %v965 = vadd.f32 %v963, %v964
        %vm966 = vcmask 257024
        %v967 = vsel %vm966, %v958, 0.0
        %v968 = vadd.f32 %v965, %v967
        %v969 = vrot.slane %v968, 4
        %v970 = vadd.f32 %v968, %v969
        %v971 = vrot.slane %v970, 2
        %v972 = vadd.f32 %v970, %v971
        %v973 = vrot.slane %v972, 1
        %v974 = vadd.f32 %v972, %v973
        %v975 = vadd.f32 %v959, %v974
        %976 = vst.msk [vmem:[%s211] sm:$0x1] %vm216, %v975
        %v977 = vld [vmem:[%s214] sm:$0x1]
        %v978 = vmul.f32 %v955, %v955
        %v979 = vmul.f32 %v956, %v956
        %v980 = vmul.f32 %v957, %v957
        %v981 = vmul.f32 %v958, %v958
        %v982 = vsel %vm960, %v978, 0.0
        %v983 = vsel %vm960, %v979, 0.0
        %v984 = vadd.f32 %v982, %v983
        %v985 = vsel %vm960, %v980, 0.0
        %v986 = vadd.f32 %v984, %v985
        %v987 = vsel %vm966, %v981, 0.0
        %v988 = vadd.f32 %v986, %v987
        %v989 = vrot.slane %v988, 4
        %v990 = vadd.f32 %v988, %v989
        %v991 = vrot.slane %v990, 2
        %v992 = vadd.f32 %v990, %v991
        %v993 = vrot.slane %v992, 1
        %v994 = vadd.f32 %v992, %v993
        %v995 = vadd.f32 %v977, %v994
        %996 = vst.msk [vmem:[%s214] sm:$0x1] %vm216, %v995
        %v997 = vpack.c.bf16 %v956, %v955
        %v998 = vpack.c.bf16 %v958, %v957
        %v1001 = vunpack.c.l.b16 %v997
        %v1002 = vunpack.c.h.b16 %v997
        %v1003 = vunpack.c.l.b16 %v998
        %v1004 = vunpack.c.h.b16 %v998
        %v1005 = vpack.c.b16 %v1001, %v1001
        %v1006 = vpack.c.b16 %v1002, %v1002
        %v1007 = vpack.c.b16 %v1003, %v1003
        %v1008 = vpack.c.b16 %v1004, %v1004
        %s1013 = smul.addr %s225, 4
        %s1014 = scalar_lea.vmem %s208, %s1013
        %1015 = vst.msk [vmem:[%s1014] sm:$0xf] %vm966, %v1005
        %1016 = vst.msk [vmem:[%s1014 + $0x4] sm:$0xf] %vm966, %v1006
        %1017 = vst.msk [vmem:[%s1014 + $0x8] sm:$0xf] %vm966, %v1007
        %vm1018 = vcmask 254976
        %1019 = vst.msk [vmem:[%s1014 + $0xc] sm:$0x3] %vm1018, %v1008
      $region33: #{decoder_forward.7} parent=27 // loop_footer
        %s224 = sadd.s32 1, %s220
      $region34: #{decoder_forward.7} parent=27 // loop_footer_branch
        %219 = sbr.rel target = $region30
      $region35: #{decoder_forward.7} parent=27 // loop_exit
        _
      %p1020 = scmp.lt.s32.totalorder %s16, 1
      %s1021 = scalar_select %p1020, %s16, 1
      %s1022 = smul.addr %s1021, 112
      %s1023 = smul.addr %s1022, 4
      %s1024 = scalar_lea.vmem %s2, %s1023
      %p1025 = scmp.lt.s32.totalorder %s16, 1
      %s1026 = scalar_select %p1025, %s16, 1
      %s1027 = scalar_lea.vmem %s3, %s1026
      %p1028 = scmp.lt.s32.totalorder %s16, 1
      %s1029 = scalar_select %p1028, %s16, 1
      %s1030 = scalar_lea.vmem %s4, %s1029
      // Predicated region
      $region36: #{decoder_forward.7} parent=27 // pred_check
        %p1031 = pneg %p81
      $region37: #{decoder_forward.7} parent=27 // pred_check_branch
        %1033 = sbr.rel (%p1031) target = $region39
      $region38: #{decoder_forward.7} parent=27 // pred_region
        _
      $region39: #{decoder_forward.7} parent=27 // pred_fallthru
        _
      // Predicated region
      $region40: #{decoder_forward.7} parent=27 // pred_check
        %p1034 = pneg %p107
      $region41: #{decoder_forward.7} parent=27 // pred_check_branch
        %1036 = sbr.rel (%p1034) target = $region43
      $region42: #{decoder_forward.7} parent=27 // pred_region
        _
      $region43: #{decoder_forward.7} parent=27 // pred_fallthru
        _
      // Predicated region
      $region44: #{decoder_forward.7} parent=27 // pred_check
        %p1037 = pneg %p133
      $region45: #{decoder_forward.7} parent=27 // pred_check_branch
        %1039 = sbr.rel (%p1037) target = $region47
      $region46: #{decoder_forward.7} parent=27 // pred_region
        _
      $region47: #{decoder_forward.7} parent=27 // pred_fallthru
        _
    $region28: #{decoder_forward.7} parent=5 // pred_fallthru
      _
    %p1040 = scmp.le.s32.totalorder 2, %s11
    // Predicated region
    $region48: #{decoder_forward.7} parent=5 // pred_check
      %p1041 = pneg %p1040
    $region49: #{decoder_forward.7} parent=5 // pred_check_branch
      %1043 = sbr.rel (%p1041) target = $region51
    $region50: #{decoder_forward.7} parent=5 // pred_region
      %s1044 = ssub.s32 %s11, 2
      // Predicated region
      $region52: #{decoder_forward.7} parent=50 // pred_check
        %p1045 = pneg %p87
      $region53: #{decoder_forward.7} parent=50 // pred_check_branch
        %1047 = sbr.rel (%p1045) target = $region55
      $region54: #{decoder_forward.7} parent=50 // pred_region
        %p1048 = scmp.lt.s32.totalorder %s17, 1
        %s1049 = scalar_select %p1048, %s17, 1
        %s1050 = smul.addr %s1049, 112
        %s1051 = smul.addr %s1050, 4
        %s1052 = scalar_lea.vmem %s2, %s1051
      $region55: #{decoder_forward.7} parent=50 // pred_fallthru
        _
      // Predicated region
      $region56: #{decoder_forward.7} parent=50 // pred_check
        %p1053 = pneg %p113
      $region57: #{decoder_forward.7} parent=50 // pred_check_branch
        %1055 = sbr.rel (%p1053) target = $region59
      $region58: #{decoder_forward.7} parent=50 // pred_region
        %p1056 = scmp.lt.s32.totalorder %s17, 1
        %s1057 = scalar_select %p1056, %s17, 1
        %s1058 = scalar_lea.vmem %s3, %s1057
      $region59: #{decoder_forward.7} parent=50 // pred_fallthru
        _
      // Predicated region
      $region60: #{decoder_forward.7} parent=50 // pred_check
        %p1059 = pneg %p139
      $region61: #{decoder_forward.7} parent=50 // pred_check_branch
        %1061 = sbr.rel (%p1059) target = $region63
      $region62: #{decoder_forward.7} parent=50 // pred_region
        %p1062 = scmp.lt.s32.totalorder %s17, 1
        %s1063 = scalar_select %p1062, %s17, 1
        %s1064 = scalar_lea.vmem %s4, %s1063
      $region63: #{decoder_forward.7} parent=50 // pred_fallthru
        _
    $region51: #{decoder_forward.7} parent=5 // pred_fallthru
      _
  $region6: #{decoder_forward.7} parent=0 // loop_footer
    %s15 = sadd.s32 1, %s11
  $region7: #{decoder_forward.7} parent=0 // loop_footer_branch
    %10 = sbr.rel target = $region3
  $region8: #{decoder_forward.7} parent=0 // loop_exit
    _

// kernel: decoder_forward.8
$region0: #{decoder_forward.8}
  #allocation0 [shape = 'u32[]', space=smem, size = 0x4, offset = 0x4, fixed_abs, tag = 'smem constant byte address 0x4 - core index']
  #allocation1 [shape = 'u32[144,128]{1,0:T(1,128)}', space=vmem, size = 0x12000, scoped, tag = 'internal scratch']
  %s0 = inlined_call_operand.vmem [shape: bf16[2,58,58,8], index: 0, kind: input, shape index: {}]
  %s1 = inlined_call_operand.vmem [shape: bf16[9,8,16], index: 1, kind: input, shape index: {}]
  %s2 = inlined_call_operand.vmem [shape: bf16[2,56,56,16], index: 2, kind: output, shape index: {0}]
  %s3 = inlined_call_operand.vmem [shape: f32[2,1,16], index: 3, kind: output, shape index: {1}]
  %s4 = inlined_call_operand.vmem [shape: f32[2,1,16], index: 4, kind: output, shape index: {2}]
  %5 = xla_tuple %s2, %s3, %s4
  %s6 = sld [smem:[#allocation0]]
  $region64: #{decoder_forward.8} parent=0
    _
  %s8 = ssub.s32 1, %s6
  %s9 = scalar_select 0, %s8, %s6
  loop: start=0, step=1, limit=4
  $region2: #{decoder_forward.8} parent=0 // loop_pre_header
    _
  $region3: #{decoder_forward.8} parent=0 // loop_header
    %s11 = sphi 0, %s15
    %p12 = scmp.ge.s32.totalorder %s11, 4
    %s21 = sphi 0, %s23
    %s24 = sphi 0, %s21
    %s25 = sphi 0, %s24
    %s41 = sphi 0, %s25
    %s45 = sphi 0, %s45
    %s47 = sphi 0, %s45
    %s48 = sphi 0, %s47
    %s62 = sphi 0, %s48
    %s68 = sphi 0, %s70
    %s71 = sphi 0, %s68
    %s72 = sphi 0, %s71
    %s88 = sphi 0, %s72
    %s94 = sphi 0, %s96
    %s97 = sphi 0, %s94
    %s98 = sphi 0, %s97
    %s114 = sphi 0, %s98
    %s120 = sphi 0, %s122
    %s123 = sphi 0, %s120
    %s124 = sphi 0, %s123
    %s140 = sphi 0, %s124
  $region4: #{decoder_forward.8} parent=0 // loop_header_branch
    %14 = sbr.rel (%p12) target = $region8
  $region5: #{decoder_forward.8} parent=0 // loop_body
    %s16 = ssub.s32 %s11, 1
    %s17 = ssub.s32 %s11, 2
    %s18 = sadd.s32 %s11, 1
    %s19 = ssub.s32 %s11, %s18
    %p20 = scmp.eq.s32.totalorder %s19, 0
    %s22 = sadd.s32 %s21, 1
    %s23 = scalar_select %p20, %s21, %s22
    %p26 = pneg %p20
    %p27 = scmp.eq.s32.totalorder %s11, 1
    %p28 = por %p26, %p27
    %p29 = scmp.ne.s32.totalorder %s21, %s24
    %p30 = scmp.eq.s32.totalorder %s11, 0
    %p31 = por %p29, %p30
    %p32 = scmp.ne.s32.totalorder %s21, %s24
    %p33 = scmp.eq.s32.totalorder %s16, 1
    %p34 = por %p32, %p33
    %p35 = scmp.ne.s32.totalorder %s24, %s25
    %p36 = scmp.eq.s32.totalorder %s16, 0
    %p37 = por %p35, %p36
    %p38 = scmp.ne.s32.totalorder %s24, %s25
    %p39 = scmp.eq.s32.totalorder %s17, 1
    %p40 = por %p38, %p39
    %p42 = scmp.ne.s32.totalorder %s25, %s41
    %p43 = scmp.eq.s32.totalorder %s17, 0
    %p44 = por %p42, %p43
    %s46 = sadd.s32 %s45, 1
    %p49 = scmp.eq.s32.totalorder %s11, 1
    %p50 = scmp.ne.s32.totalorder %s45, %s47
    %p51 = scmp.eq.s32.totalorder %s11, 0
    %p52 = por %p50, %p51
    %p53 = scmp.ne.s32.totalorder %s45, %s47
    %p54 = scmp.eq.s32.totalorder %s16, 1
    %p55 = por %p53, %p54
    %p56 = scmp.ne.s32.totalorder %s47, %s48
    %p57 = scmp.eq.s32.totalorder %s16, 0
    %p58 = por %p56, %p57
    %p59 = scmp.ne.s32.totalorder %s47, %s48
    %p60 = scmp.eq.s32.totalorder %s17, 1
    %p61 = por %p59, %p60
    %p63 = scmp.ne.s32.totalorder %s48, %s62
    %p64 = scmp.eq.s32.totalorder %s17, 0
    %p65 = por %p63, %p64
    %s66 = ssub.s32 %s11, %s18
    %p67 = scmp.eq.s32.totalorder %s66, 0
    %s69 = sadd.s32 %s68, 1
    %s70 = scalar_select %p67, %s68, %s69
    %p73 = pneg %p67
    %p74 = scmp.eq.s32.totalorder %s11, 1
    %p75 = por %p73, %p74
    %p76 = scmp.ne.s32.totalorder %s68, %s71
    %p77 = scmp.eq.s32.totalorder %s11, 0
    %p78 = por %p76, %p77
    %p79 = scmp.ne.s32.totalorder %s68, %s71
    %p80 = scmp.eq.s32.totalorder %s16, 1
    %p81 = por %p79, %p80
    %p82 = scmp.ne.s32.totalorder %s71, %s72
    %p83 = scmp.eq.s32.totalorder %s16, 0
    %p84 = por %p82, %p83
    %p85 = scmp.ne.s32.totalorder %s71, %s72
    %p86 = scmp.eq.s32.totalorder %s17, 1
    %p87 = por %p85, %p86
    %p89 = scmp.ne.s32.totalorder %s72, %s88
    %p90 = scmp.eq.s32.totalorder %s17, 0
    %p91 = por %p89, %p90
    %s92 = ssub.s32 %s11, %s18
    %p93 = scmp.eq.s32.totalorder %s92, 0
    %s95 = sadd.s32 %s94, 1
    %s96 = scalar_select %p93, %s94, %s95
    %p99 = pneg %p93
    %p100 = scmp.eq.s32.totalorder %s11, 1
    %p101 = por %p99, %p100
    %p102 = scmp.ne.s32.totalorder %s94, %s97
    %p103 = scmp.eq.s32.totalorder %s11, 0
    %p104 = por %p102, %p103
    %p105 = scmp.ne.s32.totalorder %s94, %s97
    %p106 = scmp.eq.s32.totalorder %s16, 1
    %p107 = por %p105, %p106
    %p108 = scmp.ne.s32.totalorder %s97, %s98
    %p109 = scmp.eq.s32.totalorder %s16, 0
    %p110 = por %p108, %p109
    %p111 = scmp.ne.s32.totalorder %s97, %s98
    %p112 = scmp.eq.s32.totalorder %s17, 1
    %p113 = por %p111, %p112
    %p115 = scmp.ne.s32.totalorder %s98, %s114
    %p116 = scmp.eq.s32.totalorder %s17, 0
    %p117 = por %p115, %p116
    %s118 = ssub.s32 %s11, %s18
    %p119 = scmp.eq.s32.totalorder %s118, 0
    %s121 = sadd.s32 %s120, 1
    %s122 = scalar_select %p119, %s120, %s121
    %p125 = pneg %p119
    %p126 = scmp.eq.s32.totalorder %s11, 1
    %p127 = por %p125, %p126
    %p128 = scmp.ne.s32.totalorder %s120, %s123
    %p129 = scmp.eq.s32.totalorder %s11, 0
    %p130 = por %p128, %p129
    %p131 = scmp.ne.s32.totalorder %s120, %s123
    %p132 = scmp.eq.s32.totalorder %s16, 1
    %p133 = por %p131, %p132
    %p134 = scmp.ne.s32.totalorder %s123, %s124
    %p135 = scmp.eq.s32.totalorder %s16, 0
    %p136 = por %p134, %p135
    %p137 = scmp.ne.s32.totalorder %s123, %s124
    %p138 = scmp.eq.s32.totalorder %s17, 1
    %p139 = por %p137, %p138
    %p141 = scmp.ne.s32.totalorder %s124, %s140
    %p142 = scmp.eq.s32.totalorder %s17, 0
    %p143 = por %p141, %p142
    %p144 = scmp.le.s32.totalorder 1, %s11
    %p145 = scmp.lt.s32.totalorder %s11, 3
    %p146 = pnand %p144, %p145
    %p147 = pneg %p146
    // Predicated region
    $region9: #{decoder_forward.8} parent=5 // pred_check
      _
    $region10: #{decoder_forward.8} parent=5 // pred_check_branch
      %149 = sbr.rel (%p146) target = $region12
    $region11: #{decoder_forward.8} parent=5 // pred_region
      %s150 = ssub.s32 %s11, 1
      // Predicated region
      $region13: #{decoder_forward.8} parent=11 // pred_check
        %p151 = pneg %p58
      $region14: #{decoder_forward.8} parent=11 // pred_check_branch
        %153 = sbr.rel (%p151) target = $region16
      $region15: #{decoder_forward.8} parent=11 // pred_region
        _
      $region16: #{decoder_forward.8} parent=11 // pred_fallthru
        _
    $region12: #{decoder_forward.8} parent=5 // pred_fallthru
      _
    %p154 = scmp.lt.s32.totalorder %s11, 2
    // Predicated region
    $region17: #{decoder_forward.8} parent=5 // pred_check
      %p155 = pneg %p154
    $region18: #{decoder_forward.8} parent=5 // pred_check_branch
      %157 = sbr.rel (%p155) target = $region20
    $region19: #{decoder_forward.8} parent=5 // pred_region
      // Predicated region
      $region21: #{decoder_forward.8} parent=19 // pred_check
        %p158 = pneg %p31
      $region22: #{decoder_forward.8} parent=19 // pred_check_branch
        %160 = sbr.rel (%p158) target = $region24
      $region23: #{decoder_forward.8} parent=19 // pred_region
        %p161 = scmp.lt.s32.totalorder %s11, 1
        %s162 = scalar_select %p161, %s11, 1
        %s163 = smul.addr %s162, 464
        %s164 = smul.addr %s163, 4
        %s165 = scalar_lea.vmem %s0, %s164
      $region24: #{decoder_forward.8} parent=19 // pred_fallthru
        _
    $region20: #{decoder_forward.8} parent=5 // pred_fallthru
      _
    %p166 = scmp.le.s32.totalorder 1, %s11
    %p167 = scmp.lt.s32.totalorder %s11, 3
    %p168 = pnand %p166, %p167
    %p169 = pneg %p168
    // Predicated region
    $region25: #{decoder_forward.8} parent=5 // pred_check
      _
    $region26: #{decoder_forward.8} parent=5 // pred_check_branch
      %171 = sbr.rel (%p168) target = $region28
    $region27: #{decoder_forward.8} parent=5 // pred_region
      %s172 = ssub.s32 %s11, 1
      %p173 = scmp.lt.s32.totalorder %s16, 1
      %s174 = scalar_select %p173, %s16, 1
      %s175 = smul.addr %s174, 464
      %s176 = smul.addr %s175, 4
      %s177 = scalar_lea.vmem %s0, %s176
      %p178 = pneg %p37
      %p179 = pneg %p34
      %p180 = pneg %p58
      %p181 = pneg %p55
      %p182 = pneg %p84
      %p183 = pneg %p81
      %p184 = scmp.lt.s32.totalorder %s16, 1
      %s185 = scalar_select %p184, %s16, 1
      %s186 = smul.addr %s185, 392
      %s187 = smul.addr %s186, 4
      %s188 = scalar_lea.vmem %s2, %s187
      %p189 = pneg %p110
      %p190 = pneg %p107
      %p191 = scmp.lt.s32.totalorder %s16, 1
      %s192 = scalar_select %p191, %s16, 1
      %s193 = scalar_lea.vmem %s3, %s192
      %p194 = pneg %p136
      %p195 = pneg %p133
      %p196 = scmp.lt.s32.totalorder %s16, 1
      %s197 = scalar_select %p196, %s16, 1
      %s198 = scalar_lea.vmem %s4, %s197
      %p199 = scmp.lt.s32.totalorder %s16, 1
      %s200 = scalar_select %p199, %s16, 1
      %s201 = smul.addr %s200, 464
      %s202 = smul.addr %s201, 4
      %s203 = scalar_lea.vmem %s0, %s202
      %p204 = scmp.lt.s32.totalorder %s16, 1
      %s205 = scalar_select %p204, %s16, 1
      %s206 = smul.addr %s205, 392
      %s207 = smul.addr %s206, 4
      %s208 = scalar_lea.vmem %s2, %s207
      %p209 = scmp.lt.s32.totalorder %s16, 1
      %s210 = scalar_select %p209, %s16, 1
      %s211 = scalar_lea.vmem %s3, %s210
      %p212 = scmp.lt.s32.totalorder %s16, 1
      %s213 = scalar_select %p212, %s16, 1
      %s214 = scalar_lea.vmem %s4, %s213
      %vm216 = vcmask 122880
      %217 = vst.msk [vmem:[%s211] sm:$0x1] %vm216, 0.0
      %218 = vst.msk [vmem:[%s214] sm:$0x1] %vm216, 0.0
      loop: start=0, step=1, limit=56
      $region29: #{decoder_forward.8} parent=27 // loop_pre_header
        _
      $region30: #{decoder_forward.8} parent=27 // loop_header
        %s220 = sphi 0, %s224
        %p221 = scmp.ge.s32.totalorder %s220, 56
      $region31: #{decoder_forward.8} parent=27 // loop_header_branch
        %223 = sbr.rel (%p221) target = $region35
      $region32: #{decoder_forward.8} parent=27 // loop_body
        %s225 = smul.u32 %s220, 8
        %s226 = smul.addr %s225, 4
        %s227 = scalar_lea.vmem %s203, %s226
        %v228 = vld [vmem:[%s227] sm:$0xf]
        %v229 = vld [vmem:[%s227 + $0x4] sm:$0xf]
        %v230 = vld [vmem:[%s227 + $0x8] sm:$0xf]
        %v231 = vld [vmem:[%s227 + $0xc] sm:$0xf]
        %v232 = vld [vmem:[%s227 + $0x10] sm:$0xf]
        %v233 = vld [vmem:[%s227 + $0x14] sm:$0xf]
        %v234 = vld [vmem:[%s227 + $0x18] sm:$0xf]
        %v235 = vld [vmem:[%s1] sm:$0xf]
        %v236 = vld [vmem:[%s227 + $0x1c] sm:$0x1]
        %s237 = scalar_lea.vmem %s1, 4
        %v238 = vld [vmem:[%s237] sm:$0xf]
        %v247 = vunpack.c.l.b16 %v228
        %v248 = vunpack.c.l.b16 %v229
        %v249 = vunpack.c.l.b16 %v230
        %v250 = vunpack.c.l.b16 %v231
        %v251 = vunpack.c.l.b16 %v232
        %v252 = vunpack.c.l.b16 %v233
        %v253 = vunpack.c.l.b16 %v234
        %v254 = vunpack.c.l.b16 %v236
        %v255 = vpack.c.b16 %v248, %v247
        %v256 = vpack.c.b16 %v250, %v249
        %v257 = vpack.c.b16 %v252, %v251
        %v258 = vpack.c.b16 %v254, %v253
        %vm259 = vsmask.f32 7424
        %v261 = vshrl.u32 %v255, 16
        %v263 = vshll.u32 %v255, 16
        %v265 = vrot.slane %v263, 1
        %v266 = vor.u32 %v261, %v265
        %v268 = vshll.u32 %v256, 16
        %v270 = vrot.slane %v268, 1
        %v271 = vsel %vm259, %v266, %v270
        %v272 = vshrl.u32 %v256, 16
        %v274 = vor.u32 %v272, %v270
        %v276 = vshll.u32 %v257, 16
        %v278 = vrot.slane %v276, 1
        %v279 = vsel %vm259, %v274, %v278
        %v280 = vshrl.u32 %v257, 16
        %v282 = vor.u32 %v280, %v278
        %v284 = vshll.u32 %v258, 16
        %v286 = vrot.slane %v284, 1
        %v287 = vsel %vm259, %v282, %v286
        %v288 = vshrl.u32 %v258, 16
        %v290 = vor.u32 %v288, %v286
        %vm291 = vcmask 64512
        %v293 = vsel %vm291, %v271, 0
        %v296 = vsel %vm291, %v279, 0
        %v299 = vsel %vm291, %v287, 0
        %v302 = vsel %vm291, %v290, 0
        %vm304 = vcmask 1043456
        %v306 = vsel %vm304, %v238, 0
        %308 = vmatprep.subr.bf16.mxu0 0
        %309 = vmatpush1.bf16.msra.mxu0 %v306
        %310 = vmatprep.subr.bf16.mxu0 0
        %311 = vmatpush1.bf16.msra.mxu0 0
        %312 = vmatprep.subr.bf16.mxu0 0
        %313 = vmatpush1.bf16.msra.mxu0 0
        %314 = vmatprep.subr.bf16.mxu0 0
        %315 = vmatpush1.bf16.msra.mxu0 0
        %316 = vmatprep.subr.bf16.mxu0 0
        %317 = vmatpush1.bf16.msra.mxu0 0
        %318 = vmatprep.subr.bf16.mxu0 0
        %319 = vmatpush1.bf16.msra.mxu0 0
        %320 = vmatprep.subr.bf16.mxu0 0
        %321 = vmatpush1.bf16.msra.mxu0 0
        %322 = vmatprep.subr.bf16.mxu0 0
        %323 = vmatpush1.bf16.msra.mxu0 0
        %324 = vmatprep.subr.bf16.mxu0 0
        %325 = vmatpush1.bf16.msra.mxu0 0
        %326 = vmatprep.subr.bf16.mxu0 0
        %327 = vmatpush1.bf16.msra.mxu0 0
        %328 = vmatprep.subr.bf16.mxu0 0
        %329 = vmatpush1.bf16.msra.mxu0 0
        %330 = vmatprep.subr.bf16.mxu0 0
        %331 = vmatpush1.bf16.msra.mxu0 0
        %332 = vmatprep.subr.bf16.mxu0 0
        %333 = vmatpush1.bf16.msra.mxu0 0
        %334 = vmatprep.subr.bf16.mxu0 0
        %335 = vmatpush1.bf16.msra.mxu0 0
        %336 = vmatprep.subr.bf16.mxu0 0
        %337 = vmatpush1.bf16.msra.mxu0 0
        %338 = vmatprep.subr.bf16.mxu0 0
        %339 = vmatpush1.bf16.msra.mxu0 0
        %340 = vmatprep.mubr.bf16.mxu0 0
        %341 = vmatmul.mubr.bf16.gmra.mrb[0].mxu0 %v293
        %v342 = vpop.f32.mrb[0].mxu0
        %v343 = vadd.f32 0.0, %v342
        %v344 = vpop.f32.mrb[0].mxu0
        %v345 = vpop.f32.mrb[0].mxu0
        %v346 = vadd.f32 0.0, %v345
        %v347 = vpop.f32.mrb[0].mxu0
        %348 = vmatprep.mubr.bf16.mxu0 0
        %349 = vmatmul.mubr.bf16.gmra.mrb[0].mxu0 %v296
        %v350 = vpop.f32.mrb[0].mxu0
        %v351 = vadd.f32 0.0, %v350
        %v352 = vpop.f32.mrb[0].mxu0
        %v353 = vpop.f32.mrb[0].mxu0
        %v354 = vadd.f32 0.0, %v353
        %v355 = vpop.f32.mrb[0].mxu0
        %356 = vmatprep.mubr.bf16.mxu0 0
        %357 = vmatmul.mubr.bf16.gmra.mrb[0].mxu0 %v299
        %v358 = vpop.f32.mrb[0].mxu0
        %v359 = vadd.f32 0.0, %v358
        %v360 = vpop.f32.mrb[0].mxu0
        %v361 = vpop.f32.mrb[0].mxu0
        %v362 = vadd.f32 0.0, %v361
        %v363 = vpop.f32.mrb[0].mxu0
        %364 = vmatprep.mubr.bf16.mxu0 0
        %365 = vmatmul.mubr.bf16.gmra.mrb[0].mxu0 %v302
        %v366 = vpop.f32.mrb[0].mxu0
        %v367 = vadd.f32 0.0, %v366
        %v368 = vpop.f32.mrb[0].mxu0
        %v369 = vpop.f32.mrb[0].mxu0
        %v370 = vpop.f32.mrb[0].mxu0
        %371 = vdwg.mxu0
        %v372 = vpack.c.b16 %v253, %v253
        %v373 = vsel %vm291, %v255, 0
        %v375 = vsel %vm291, %v256, 0
        %v377 = vsel %vm291, %v257, 0
        %v380 = vsel %vm291, %v372, 0
        %v383 = vsel %vm304, %v235, 0
        %385 = vmatprep.subr.bf16.mxu0 0
        %386 = vmatpush1.bf16.msra.mxu0 %v383
        %387 = vmatprep.subr.bf16.mxu0 0
        %388 = vmatpush1.bf16.msra.mxu0 0
        %389 = vmatprep.subr.bf16.mxu0 0
        %390 = vmatpush1.bf16.msra.mxu0 0
        %391 = vmatprep.subr.bf16.mxu0 0
        %392 = vmatpush1.bf16.msra.mxu0 0
        %393 = vmatprep.subr.bf16.mxu0 0
        %394 = vmatpush1.bf16.msra.mxu0 0
        %395 = vmatprep.subr.bf16.mxu0 0
        %396 = vmatpush1.bf16.msra.mxu0 0
        %397 = vmatprep.subr.bf16.mxu0 0
        %398 = vmatpush1.bf16.msra.mxu0 0
        %399 = vmatprep.subr.bf16.mxu0 0
        %400 = vmatpush1.bf16.msra.mxu0 0
        %401 = vmatprep.subr.bf16.mxu0 0
        %402 = vmatpush1.bf16.msra.mxu0 0
        %403 = vmatprep.subr.bf16.mxu0 0
        %404 = vmatpush1.bf16.msra.mxu0 0
        %405 = vmatprep.subr.bf16.mxu0 0
        %406 = vmatpush1.bf16.msra.mxu0 0
        %407 = vmatprep.subr.bf16.mxu0 0
        %408 = vmatpush1.bf16.msra.mxu0 0
        %409 = vmatprep.subr.bf16.mxu0 0
        %410 = vmatpush1.bf16.msra.mxu0 0
        %411 = vmatprep.subr.bf16.mxu0 0
        %412 = vmatpush1.bf16.msra.mxu0 0
        %413 = vmatprep.subr.bf16.mxu0 0
        %414 = vmatpush1.bf16.msra.mxu0 0
        %415 = vmatprep.subr.bf16.mxu0 0
        %416 = vmatpush1.bf16.msra.mxu0 0
        %417 = vmatprep.mubr.bf16.mxu0 0
        %418 = vmatmul.mubr.bf16.gmra.mrb[0].mxu0 %v373
        %v419 = vpop.f32.mrb[0].mxu0
        %v420 = vadd.f32 %v343, %v419
        %v421 = vpop.f32.mrb[0].mxu0
        %v422 = vpop.f32.mrb[0].mxu0
        %v423 = vadd.f32 %v346, %v422
        %v424 = vpop.f32.mrb[0].mxu0
        %425 = vmatprep.mubr.bf16.mxu0 0
        %426 = vmatmul.mubr.bf16.gmra.mrb[0].mxu0 %v375
        %v427 = vpop.f32.mrb[0].mxu0
        %v428 = vadd.f32 %v351, %v427
        %v429 = vpop.f32.mrb[0].mxu0
        %v430 = vpop.f32.mrb[0].mxu0
        %v431 = vadd.f32 %v354, %v430
        %v432 = vpop.f32.mrb[0].mxu0
        %433 = vmatprep.mubr.bf16.mxu0 0
        %434 = vmatmul.mubr.bf16.gmra.mrb[0].mxu0 %v377
        %v435 = vpop.f32.mrb[0].mxu0
        %v436 = vadd.f32 %v359, %v435
        %v437 = vpop.f32.mrb[0].mxu0
        %v438 = vpop.f32.mrb[0].mxu0
        %v439 = vadd.f32 %v362, %v438
        %v440 = vpop.f32.mrb[0].mxu0
        %441 = vmatprep.mubr.bf16.mxu0 0
        %442 = vmatmul.mubr.bf16.gmra.mrb[0].mxu0 %v380
        %v443 = vpop.f32.mrb[0].mxu0
        %v444 = vadd.f32 %v367, %v443
        %v445 = vpop.f32.mrb[0].mxu0
        %v446 = vpop.f32.mrb[0].mxu0
        %v447 = vpop.f32.mrb[0].mxu0
        %448 = vdwg.mxu0
        %v449 = vld [vmem:[%s227] sm:$0xe]
        %s450 = scalar_lea.vmem %s1, 8
        %v451 = vld [vmem:[%s450] sm:$0xf]
        %v453 = vunpack.c.l.b16 %v449
        %v454 = vpack.c.b16 %v248, %v453
        %vm455 = vcmask 1046528
        %v456 = vrot.slane %v454, 1
        %v457 = vrot.slane %v256, 1
        %v458 = vsel %vm455, %v456, %v457
        %v459 = vrot.slane %v257, 1
        %v460 = vsel %vm455, %v457, %v459
        %v461 = vrot.slane %v258, 1
        %v462 = vsel %vm455, %v459, %v461
        %v464 = vsel %vm291, %v458, 0
        %v467 = vsel %vm291, %v460, 0
        %v470 = vsel %vm291, %v462, 0
        %v473 = vsel %vm291, %v461, 0
        %v476 = vsel %vm304, %v451, 0
        %478 = vmatprep.subr.bf16.mxu0 0
        %479 = vmatpush1.bf16.msra.mxu0 %v476
        %480 = vmatprep.subr.bf16.mxu0 0
        %481 = vmatpush1.bf16.msra.mxu0 0
        %482 = vmatprep.subr.bf16.mxu0 0
        %483 = vmatpush1.bf16.msra.mxu0 0
        %484 = vmatprep.subr.bf16.mxu0 0
        %485 = vmatpush1.bf16.msra.mxu0 0
        %486 = vmatprep.subr.bf16.mxu0 0
        %487 = vmatpush1.bf16.msra.mxu0 0
        %488 = vmatprep.subr.bf16.mxu0 0
        %489 = vmatpush1.bf16.msra.mxu0 0
        %490 = vmatprep.subr.bf16.mxu0 0
        %491 = vmatpush1.bf16.msra.mxu0 0
        %492 = vmatprep.subr.bf16.mxu0 0
        %493 = vmatpush1.bf16.msra.mxu0 0
        %494 = vmatprep.subr.bf16.mxu0 0
        %495 = vmatpush1.bf16.msra.mxu0 0
        %496 = vmatprep.subr.bf16.mxu0 0
        %497 = vmatpush1.bf16.msra.mxu0 0
        %498 = vmatprep.subr.bf16.mxu0 0
        %499 = vmatpush1.bf16.msra.mxu0 0
        %500 = vmatprep.subr.bf16.mxu0 0
        %501 = vmatpush1.bf16.msra.mxu0 0
        %502 = vmatprep.subr.bf16.mxu0 0
        %503 = vmatpush1.bf16.msra.mxu0 0
        %504 = vmatprep.subr.bf16.mxu0 0
        %505 = vmatpush1.bf16.msra.mxu0 0
        %506 = vmatprep.subr.bf16.mxu0 0
        %507 = vmatpush1.bf16.msra.mxu0 0
        %508 = vmatprep.subr.bf16.mxu0 0
        %509 = vmatpush1.bf16.msra.mxu0 0
        %510 = vmatprep.mubr.bf16.mxu0 0
        %511 = vmatmul.mubr.bf16.gmra.mrb[0].mxu0 %v464
        %v512 = vpop.f32.mrb[0].mxu0
        %v513 = vadd.f32 0.0, %v512
        %v514 = vpop.f32.mrb[0].mxu0
        %v515 = vpop.f32.mrb[0].mxu0
        %v516 = vadd.f32 0.0, %v515
        %v517 = vpop.f32.mrb[0].mxu0
        %518 = vmatprep.mubr.bf16.mxu0 0
        %519 = vmatmul.mubr.bf16.gmra.mrb[0].mxu0 %v467
        %v520 = vpop.f32.mrb[0].mxu0
        %v521 = vadd.f32 0.0, %v520
        %v522 = vpop.f32.mrb[0].mxu0
        %v523 = vpop.f32.mrb[0].mxu0
        %v524 = vadd.f32 0.0, %v523
        %v525 = vpop.f32.mrb[0].mxu0
        %526 = vmatprep.mubr.bf16.mxu0 0
        %527 = vmatmul.mubr.bf16.gmra.mrb[0].mxu0 %v470
        %v528 = vpop.f32.mrb[0].mxu0
        %v529 = vadd.f32 0.0, %v528
        %v530 = vpop.f32.mrb[0].mxu0
        %v531 = vpop.f32.mrb[0].mxu0
        %v532 = vadd.f32 0.0, %v531
        %v533 = vpop.f32.mrb[0].mxu0
        %534 = vmatprep.mubr.bf16.mxu0 0
        %535 = vmatmul.mubr.bf16.gmra.mrb[0].mxu0 %v473
        %v536 = vpop.f32.mrb[0].mxu0
        %v537 = vadd.f32 0.0, %v536
        %v538 = vpop.f32.mrb[0].mxu0
        %v539 = vpop.f32.mrb[0].mxu0
        %v540 = vpop.f32.mrb[0].mxu0
        %541 = vdwg.mxu0
        %v542 = vadd.f32 %v420, %v513
        %v543 = vadd.f32 %v423, %v516
        %v544 = vadd.f32 %v428, %v521
        %v545 = vadd.f32 %v431, %v524
        %v546 = vadd.f32 %v436, %v529
        %v547 = vadd.f32 %v439, %v532
        %v548 = vadd.f32 %v444, %v537
        %s549 = sadd.s32 %s220, 1
        %s550 = smul.u32 %s549, 8
        %s551 = smul.addr %s550, 4
        %s552 = scalar_lea.vmem %s203, %s551
        %v553 = vld [vmem:[%s552] sm:$0xf]
        %v554 = vld [vmem:[%s552 + $0x4] sm:$0xf]
        %v555 = vld [vmem:[%s552 + $0x8] sm:$0xf]
        %v556 = vld [vmem:[%s552 + $0xc] sm:$0xf]
        %v557 = vld [vmem:[%s552 + $0x10] sm:$0xf]
        %v558 = vld [vmem:[%s552 + $0x14] sm:$0xf]
        %v559 = vld [vmem:[%s552 + $0x18] sm:$0xf]
        %s560 = scalar_lea.vmem %s1, 12
        %v561 = vld [vmem:[%s560] sm:$0xf]
        %v569 = vunpack.c.l.b16 %v553
        %v570 = vunpack.c.l.b16 %v554
        %v571 = vunpack.c.l.b16 %v555
        %v572 = vunpack.c.l.b16 %v556
        %v573 = vunpack.c.l.b16 %v557
        %v574 = vunpack.c.l.b16 %v558
        %v575 = vunpack.c.l.b16 %v559
        %v576 = vpack.c.b16 %v570, %v569
        %v577 = vpack.c.b16 %v572, %v571
        %v578 = vpack.c.b16 %v574, %v573
        %v579 = vpack.c.b16 %v575, %v575
        %v581 = vsel %vm291, %v576, 0
        %v584 = vsel %vm291, %v577, 0
        %v587 = vsel %vm291, %v578, 0
        %v590 = vsel %vm291, %v579, 0
        %v593 = vsel %vm304, %v561, 0
        %595 = vmatprep.subr.bf16.mxu0 0
        %596 = vmatpush1.bf16.msra.mxu0 %v593
        %597 = vmatprep.subr.bf16.mxu0 0
        %598 = vmatpush1.bf16.msra.mxu0 0
        %599 = vmatprep.subr.bf16.mxu0 0
        %600 = vmatpush1.bf16.msra.mxu0 0
        %601 = vmatprep.subr.bf16.mxu0 0
        %602 = vmatpush1.bf16.msra.mxu0 0
        %603 = vmatprep.subr.bf16.mxu0 0
        %604 = vmatpush1.bf16.msra.mxu0 0
        %605 = vmatprep.subr.bf16.mxu0 0
        %606 = vmatpush1.bf16.msra.mxu0 0
        %607 = vmatprep.subr.bf16.mxu0 0
        %608 = vmatpush1.bf16.msra.mxu0 0
        %609 = vmatprep.subr.bf16.mxu0 0
        %610 = vmatpush1.bf16.msra.mxu0 0
        %611 = vmatprep.subr.bf16.mxu0 0
        %612 = vmatpush1.bf16.msra.mxu0 0
        %613 = vmatprep.subr.bf16.mxu0 0
        %614 = vmatpush1.bf16.msra.mxu0 0
        %615 = vmatprep.subr.bf16.mxu0 0
        %616 = vmatpush1.bf16.msra.mxu0 0
        %617 = vmatprep.subr.bf16.mxu0 0
        %618 = vmatpush1.bf16.msra.mxu0 0
        %619 = vmatprep.subr.bf16.mxu0 0
        %620 = vmatpush1.bf16.msra.mxu0 0
        %621 = vmatprep.subr.bf16.mxu0 0
        %622 = vmatpush1.bf16.msra.mxu0 0
        %623 = vmatprep.subr.bf16.mxu0 0
        %624 = vmatpush1.bf16.msra.mxu0 0
        %625 = vmatprep.subr.bf16.mxu0 0
        %626 = vmatpush1.bf16.msra.mxu0 0
        %627 = vmatprep.mubr.bf16.mxu0 0
        %628 = vmatmul.mubr.bf16.gmra.mrb[0].mxu0 %v581
        %v629 = vpop.f32.mrb[0].mxu0
        %v630 = vadd.f32 0.0, %v629
        %v631 = vpop.f32.mrb[0].mxu0
        %v632 = vpop.f32.mrb[0].mxu0
        %v633 = vadd.f32 0.0, %v632
        %v634 = vpop.f32.mrb[0].mxu0
        %635 = vmatprep.mubr.bf16.mxu0 0
        %636 = vmatmul.mubr.bf16.gmra.mrb[0].mxu0 %v584
        %v637 = vpop.f32.mrb[0].mxu0
        %v638 = vadd.f32 0.0, %v637
        %v639 = vpop.f32.mrb[0].mxu0
        %v640 = vpop.f32.mrb[0].mxu0
        %v641 = vadd.f32 0.0, %v640
        %v642 = vpop.f32.mrb[0].mxu0
        %643 = vmatprep.mubr.bf16.mxu0 0
        %644 = vmatmul.mubr.bf16.gmra.mrb[0].mxu0 %v587
        %v645 = vpop.f32.mrb[0].mxu0
        %v646 = vadd.f32 0.0, %v645
        %v647 = vpop.f32.mrb[0].mxu0
        %v648 = vpop.f32.mrb[0].mxu0
        %v649 = vadd.f32 0.0, %v648
        %v650 = vpop.f32.mrb[0].mxu0
        %651 = vmatprep.mubr.bf16.mxu0 0
        %652 = vmatmul.mubr.bf16.gmra.mrb[0].mxu0 %v590
        %v653 = vpop.f32.mrb[0].mxu0
        %v654 = vadd.f32 0.0, %v653
        %v655 = vpop.f32.mrb[0].mxu0
        %v656 = vpop.f32.mrb[0].mxu0
        %v657 = vpop.f32.mrb[0].mxu0
        %658 = vdwg.mxu0
        %v659 = vadd.f32 %v542, %v630
        %v660 = vadd.f32 %v543, %v633
        %v661 = vadd.f32 %v544, %v638
        %v662 = vadd.f32 %v545, %v641
        %v663 = vadd.f32 %v546, %v646
        %v664 = vadd.f32 %v547, %v649
        %v665 = vadd.f32 %v548, %v654
        %v666 = vld [vmem:[%s552] sm:$0xf]
        %v667 = vld [vmem:[%s552 + $0x4] sm:$0xf]
        %v668 = vld [vmem:[%s552 + $0x8] sm:$0xf]
        %v669 = vld [vmem:[%s552 + $0xc] sm:$0xf]
        %v670 = vld [vmem:[%s552 + $0x10] sm:$0xf]
        %v671 = vld [vmem:[%s552 + $0x14] sm:$0xf]
        %v672 = vld [vmem:[%s552 + $0x18] sm:$0xf]
        %v673 = vld [vmem:[%s552 + $0x1c] sm:$0x1]
        %s674 = scalar_lea.vmem %s1, 16
        %v675 = vld [vmem:[%s674] sm:$0xf]
        %v684 = vunpack.c.l.b16 %v666
        %v685 = vunpack.c.l.b16 %v667
        %v686 = vunpack.c.l.b16 %v668
        %v687 = vunpack.c.l.b16 %v669
        %v688 = vunpack.c.l.b16 %v670
        %v689 = vunpack.c.l.b16 %v671
        %v690 = vunpack.c.l.b16 %v672
        %v691 = vunpack.c.l.b16 %v673
        %v692 = vpack.c.b16 %v685, %v684
        %v693 = vpack.c.b16 %v687, %v686
        %v694 = vpack.c.b16 %v689, %v688
        %v695 = vpack.c.b16 %v691, %v690
        %v697 = vshrl.u32 %v692, 16
        %v699 = vshll.u32 %v692, 16
        %v701 = vrot.slane %v699, 1
        %v702 = vor.u32 %v697, %v701
        %v704 = vshll.u32 %v693, 16
        %v706 = vrot.slane %v704, 1
        %v707 = vsel %vm259, %v702, %v706
        %v708 = vshrl.u32 %v693, 16
        %v710 = vor.u32 %v708, %v706
        %v712 = vshll.u32 %v694, 16
        %v714 = vrot.slane %v712, 1
        %v715 = vsel %vm259, %v710, %v714
        %v716 = vshrl.u32 %v694, 16
        %v718 = vor.u32 %v716, %v714
        %v720 = vshll.u32 %v695, 16
        %v722 = vrot.slane %v720, 1
        %v723 = vsel %vm259, %v718, %v722
        %v724 = vshrl.u32 %v695, 16
        %v726 = vor.u32 %v724, %v722
        %v728 = vsel %vm291, %v707, 0
        %v731 = vsel %vm291, %v715, 0
        %v734 = vsel %vm291, %v723, 0
        %v737 = vsel %vm291, %v726, 0
        %v740 = vsel %vm304, %v675, 0
        %742 = vmatprep.subr.bf16.mxu0 0
        %743 = vmatpush1.bf16.msra.mxu0 %v740
        %744 = vmatprep.subr.bf16.mxu0 0
        %745 = vmatpush1.bf16.msra.mxu0 0
        %746 = vmatprep.subr.bf16.mxu0 0
        %747 = vmatpush1.bf16.msra.mxu0 0
        %748 = vmatprep.subr.bf16.mxu0 0
        %749 = vmatpush1.bf16.msra.mxu0 0
        %750 = vmatprep.subr.bf16.mxu0 0
        %751 = vmatpush1.bf16.msra.mxu0 0
        %752 = vmatprep.subr.bf16.mxu0 0
        %753 = vmatpush1.bf16.msra.mxu0 0
        %754 = vmatprep.subr.bf16.mxu0 0
        %755 = vmatpush1.bf16.msra.mxu0 0
        %756 = vmatprep.subr.bf16.mxu0 0
        %757 = vmatpush1.bf16.msra.mxu0 0
        %758 = vmatprep.subr.bf16.mxu0 0
        %759 = vmatpush1.bf16.msra.mxu0 0
        %760 = vmatprep.subr.bf16.mxu0 0
        %761 = vmatpush1.bf16.msra.mxu0 0
        %762 = vmatprep.subr.bf16.mxu0 0
        %763 = vmatpush1.bf16.msra.mxu0 0
        %764 = vmatprep.subr.bf16.mxu0 0
        %765 = vmatpush1.bf16.msra.mxu0 0
        %766 = vmatprep.subr.bf16.mxu0 0
        %767 = vmatpush1.bf16.msra.mxu0 0
        %768 = vmatprep.subr.bf16.mxu0 0
        %769 = vmatpush1.bf16.msra.mxu0 0
        %770 = vmatprep.subr.bf16.mxu0 0
        %771 = vmatpush1.bf16.msra.mxu0 0
        %772 = vmatprep.subr.bf16.mxu0 0
        %773 = vmatpush1.bf16.msra.mxu0 0
        %774 = vmatprep.mubr.bf16.mxu0 0
        %775 = vmatmul.mubr.bf16.gmra.mrb[0].mxu0 %v728
        %v776 = vpop.f32.mrb[0].mxu0
        %v777 = vadd.f32 0.0, %v776
        %v778 = vpop.f32.mrb[0].mxu0
        %v779 = vpop.f32.mrb[0].mxu0
        %v780 = vadd.f32 0.0, %v779
        %v781 = vpop.f32.mrb[0].mxu0
        %782 = vmatprep.mubr.bf16.mxu0 0
        %783 = vmatmul.mubr.bf16.gmra.mrb[0].mxu0 %v731
        %v784 = vpop.f32.mrb[0].mxu0
        %v785 = vadd.f32 0.0, %v784
        %v786 = vpop.f32.mrb[0].mxu0
        %v787 = vpop.f32.mrb[0].mxu0
        %v788 = vadd.f32 0.0, %v787
        %v789 = vpop.f32.mrb[0].mxu0
        %790 = vmatprep.mubr.bf16.mxu0 0
        %791 = vmatmul.mubr.bf16.gmra.mrb[0].mxu0 %v734
        %v792 = vpop.f32.mrb[0].mxu0
        %v793 = vadd.f32 0.0, %v792
        %v794 = vpop.f32.mrb[0].mxu0
        %v795 = vpop.f32.mrb[0].mxu0
        %v796 = vadd.f32 0.0, %v795
        %v797 = vpop.f32.mrb[0].mxu0
        %798 = vmatprep.mubr.bf16.mxu0 0
        %799 = vmatmul.mubr.bf16.gmra.mrb[0].mxu0 %v737
        %v800 = vpop.f32.mrb[0].mxu0
        %v801 = vadd.f32 0.0, %v800
        %v802 = vpop.f32.mrb[0].mxu0
        %v803 = vpop.f32.mrb[0].mxu0
        %v804 = vpop.f32.mrb[0].mxu0
        %805 = vdwg.mxu0
        %v806 = vadd.f32 %v659, %v777
        %v807 = vadd.f32 %v660, %v780
        %v808 = vadd.f32 %v661, %v785
        %v809 = vadd.f32 %v662, %v788
        %v810 = vadd.f32 %v663, %v793
        %v811 = vadd.f32 %v664, %v796
        %v812 = vadd.f32 %v665, %v801
        %v813 = vld [vmem:[%s552] sm:$0xe]
        %s814 = scalar_lea.vmem %s1, 20
        %v815 = vld [vmem:[%s814] sm:$0xf]
        %v817 = vunpack.c.l.b16 %v813
        %v818 = vpack.c.b16 %v685, %v817
        %v819 = vrot.slane %v818, 1
        %v820 = vrot.slane %v693, 1
        %v821 = vsel %vm455, %v819, %v820
        %v822 = vrot.slane %v694, 1
        %v823 = vsel %vm455, %v820, %v822
        %v824 = vrot.slane %v695, 1
        %v825 = vsel %vm455, %v822, %v824
        %v827 = vsel %vm291, %v821, 0
        %v830 = vsel %vm291, %v823, 0
        %v833 = vsel %vm291, %v825, 0
        %v836 = vsel %vm291, %v824, 0
        %v839 = vsel %vm304, %v815, 0
        %841 = vmatprep.subr.bf16.mxu0 0
        %842 = vmatpush1.bf16.msra.mxu0 %v839
        %843 = vmatprep.subr.bf16.mxu0 0
        %844 = vmatpush1.bf16.msra.mxu0 0
        %845 = vmatprep.subr.bf16.mxu0 0
        %846 = vmatpush1.bf16.msra.mxu0 0
        %847 = vmatprep.subr.bf16.mxu0 0
        %848 = vmatpush1.bf16.msra.mxu0 0
        %849 = vmatprep.subr.bf16.mxu0 0
        %850 = vmatpush1.bf16.msra.mxu0 0
        %851 = vmatprep.subr.bf16.mxu0 0
        %852 = vmatpush1.bf16.msra.mxu0 0
        %853 = vmatprep.subr.bf16.mxu0 0
        %854 = vmatpush1.bf16.msra.mxu0 0
        %855 = vmatprep.subr.bf16.mxu0 0
        %856 = vmatpush1.bf16.msra.mxu0 0
        %857 = vmatprep.subr.bf16.mxu0 0
        %858 = vmatpush1.bf16.msra.mxu0 0
        %859 = vmatprep.subr.bf16.mxu0 0
        %860 = vmatpush1.bf16.msra.mxu0 0
        %861 = vmatprep.subr.bf16.mxu0 0
        %862 = vmatpush1.bf16.msra.mxu0 0
        %863 = vmatprep.subr.bf16.mxu0 0
        %864 = vmatpush1.bf16.msra.mxu0 0
        %865 = vmatprep.subr.bf16.mxu0 0
        %866 = vmatpush1.bf16.msra.mxu0 0
        %867 = vmatprep.subr.bf16.mxu0 0
        %868 = vmatpush1.bf16.msra.mxu0 0
        %869 = vmatprep.subr.bf16.mxu0 0
        %870 = vmatpush1.bf16.msra.mxu0 0
        %871 = vmatprep.subr.bf16.mxu0 0
        %872 = vmatpush1.bf16.msra.mxu0 0
        %873 = vmatprep.mubr.bf16.mxu0 0
        %874 = vmatmul.mubr.bf16.gmra.mrb[0].mxu0 %v827
        %v875 = vpop.f32.mrb[0].mxu0
        %v876 = vadd.f32 0.0, %v875
        %v877 = vpop.f32.mrb[0].mxu0
        %v878 = vpop.f32.mrb[0].mxu0
        %v879 = vadd.f32 0.0, %v878
        %v880 = vpop.f32.mrb[0].mxu0
        %881 = vmatprep.mubr.bf16.mxu0 0
        %882 = vmatmul.mubr.bf16.gmra.mrb[0].mxu0 %v830
        %v883 = vpop.f32.mrb[0].mxu0
        %v884 = vadd.f32 0.0, %v883
        %v885 = vpop.f32.mrb[0].mxu0
        %v886 = vpop.f32.mrb[0].mxu0
        %v887 = vadd.f32 0.0, %v886
        %v888 = vpop.f32.mrb[0].mxu0
        %889 = vmatprep.mubr.bf16.mxu0 0
        %890 = vmatmul.mubr.bf16.gmra.mrb[0].mxu0 %v833
        %v891 = vpop.f32.mrb[0].mxu0
        %v892 = vadd.f32 0.0, %v891
        %v893 = vpop.f32.mrb[0].mxu0
        %v894 = vpop.f32.mrb[0].mxu0
        %v895 = vadd.f32 0.0, %v894
        %v896 = vpop.f32.mrb[0].mxu0
        %897 = vmatprep.mubr.bf16.mxu0 0
        %898 = vmatmul.mubr.bf16.gmra.mrb[0].mxu0 %v836
        %v899 = vpop.f32.mrb[0].mxu0
        %v900 = vadd.f32 0.0, %v899
        %v901 = vpop.f32.mrb[0].mxu0
        %v902 = vpop.f32.mrb[0].mxu0
        %v903 = vpop.f32.mrb[0].mxu0
        %904 = vdwg.mxu0
        %v905 = vadd.f32 %v806, %v876
        %v906 = vadd.f32 %v807, %v879
        %v907 = vadd.f32 %v808, %v884
        %v908 = vadd.f32 %v809, %v887
        %v909 = vadd.f32 %v810, %v892
        %v910 = vadd.f32 %v811, %v895
        %v911 = vadd.f32 %v812, %v900
        %s912 = sadd.s32 %s220, 2
        %s913 = smul.u32 %s912, 8
        %s914 = smul.addr %s913, 4
        %s915 = scalar_lea.vmem %s203, %s914
        %v916 = vld [vmem:[%s915] sm:$0xf]
        %v917 = vld [vmem:[%s915 + $0x4] sm:$0xf]
        %v918 = vld [vmem:[%s915 + $0x8] sm:$0xf]
        %v919 = vld [vmem:[%s915 + $0xc] sm:$0xf]
        %v920 = vld [vmem:[%s915 + $0x10] sm:$0xf]
        %v921 = vld [vmem:[%s915 + $0x14] sm:$0xf]
        %v922 = vld [vmem:[%s915 + $0x18] sm:$0xf]
        %s923 = scalar_lea.vmem %s1, 24
        %v924 = vld [vmem:[%s923] sm:$0xf]
        %v932 = vunpack.c.l.b16 %v916
        %v933 = vunpack.c.l.b16 %v917
        %v934 = vunpack.c.l.b16 %v918
        %v935 = vunpack.c.l.b16 %v919
        %v936 = vunpack.c.l.b16 %v920
        %v937 = vunpack.c.l.b16 %v921
        %v938 = vunpack.c.l.b16 %v922
        %v939 = vpack.c.b16 %v933, %v932
        %v940 = vpack.c.b16 %v935, %v934
        %v941 = vpack.c.b16 %v937, %v936
        %v942 = vpack.c.b16 %v938, %v938
        %v944 = vsel %vm291, %v939, 0
        %v947 = vsel %vm291, %v940, 0
        %v950 = vsel %vm291, %v941, 0
        %v953 = vsel %vm291, %v942, 0
        %v956 = vsel %vm304, %v924, 0
        %958 = vmatprep.subr.bf16.mxu0 0
        %959 = vmatpush1.bf16.msra.mxu0 %v956
        %960 = vmatprep.subr.bf16.mxu0 0
        %961 = vmatpush1.bf16.msra.mxu0 0
        %962 = vmatprep.subr.bf16.mxu0 0
        %963 = vmatpush1.bf16.msra.mxu0 0
        %964 = vmatprep.subr.bf16.mxu0 0
        %965 = vmatpush1.bf16.msra.mxu0 0
        %966 = vmatprep.subr.bf16.mxu0 0
        %967 = vmatpush1.bf16.msra.mxu0 0
        %968 = vmatprep.subr.bf16.mxu0 0
        %969 = vmatpush1.bf16.msra.mxu0 0
        %970 = vmatprep.subr.bf16.mxu0 0
        %971 = vmatpush1.bf16.msra.mxu0 0
        %972 = vmatprep.subr.bf16.mxu0 0
        %973 = vmatpush1.bf16.msra.mxu0 0
        %974 = vmatprep.subr.bf16.mxu0 0
        %975 = vmatpush1.bf16.msra.mxu0 0
        %976 = vmatprep.subr.bf16.mxu0 0
        %977 = vmatpush1.bf16.msra.mxu0 0
        %978 = vmatprep.subr.bf16.mxu0 0
        %979 = vmatpush1.bf16.msra.mxu0 0
        %980 = vmatprep.subr.bf16.mxu0 0
        %981 = vmatpush1.bf16.msra.mxu0 0
        %982 = vmatprep.subr.bf16.mxu0 0
        %983 = vmatpush1.bf16.msra.mxu0 0
        %984 = vmatprep.subr.bf16.mxu0 0
        %985 = vmatpush1.bf16.msra.mxu0 0
        %986 = vmatprep.subr.bf16.mxu0 0
        %987 = vmatpush1.bf16.msra.mxu0 0
        %988 = vmatprep.subr.bf16.mxu0 0
        %989 = vmatpush1.bf16.msra.mxu0 0
        %990 = vmatprep.mubr.bf16.mxu0 0
        %991 = vmatmul.mubr.bf16.gmra.mrb[0].mxu0 %v944
        %v992 = vpop.f32.mrb[0].mxu0
        %v993 = vadd.f32 0.0, %v992
        %v994 = vpop.f32.mrb[0].mxu0
        %v995 = vpop.f32.mrb[0].mxu0
        %v996 = vadd.f32 0.0, %v995
        %v997 = vpop.f32.mrb[0].mxu0
        %998 = vmatprep.mubr.bf16.mxu0 0
        %999 = vmatmul.mubr.bf16.gmra.mrb[0].mxu0 %v947
        %v1000 = vpop.f32.mrb[0].mxu0
        %v1001 = vadd.f32 0.0, %v1000
        %v1002 = vpop.f32.mrb[0].mxu0
        %v1003 = vpop.f32.mrb[0].mxu0
        %v1004 = vadd.f32 0.0, %v1003
        %v1005 = vpop.f32.mrb[0].mxu0
        %1006 = vmatprep.mubr.bf16.mxu0 0
        %1007 = vmatmul.mubr.bf16.gmra.mrb[0].mxu0 %v950
        %v1008 = vpop.f32.mrb[0].mxu0
        %v1009 = vadd.f32 0.0, %v1008
        %v1010 = vpop.f32.mrb[0].mxu0
        %v1011 = vpop.f32.mrb[0].mxu0
        %v1012 = vadd.f32 0.0, %v1011
        %v1013 = vpop.f32.mrb[0].mxu0
        %1014 = vmatprep.mubr.bf16.mxu0 0
        %1015 = vmatmul.mubr.bf16.gmra.mrb[0].mxu0 %v953
        %v1016 = vpop.f32.mrb[0].mxu0
        %v1017 = vadd.f32 0.0, %v1016
        %v1018 = vpop.f32.mrb[0].mxu0
        %v1019 = vpop.f32.mrb[0].mxu0
        %v1020 = vpop.f32.mrb[0].mxu0
        %1021 = vdwg.mxu0
        %v1022 = vadd.f32 %v905, %v993
        %v1023 = vadd.f32 %v906, %v996
        %v1024 = vadd.f32 %v907, %v1001
        %v1025 = vadd.f32 %v908, %v1004
        %v1026 = vadd.f32 %v909, %v1009
        %v1027 = vadd.f32 %v910, %v1012
        %v1028 = vadd.f32 %v911, %v1017
        %v1029 = vld [vmem:[%s915] sm:$0xf]
        %v1030 = vld [vmem:[%s915 + $0x4] sm:$0xf]
        %v1031 = vld [vmem:[%s915 + $0x8] sm:$0xf]
        %v1032 = vld [vmem:[%s915 + $0xc] sm:$0xf]
        %v1033 = vld [vmem:[%s915 + $0x10] sm:$0xf]
        %v1034 = vld [vmem:[%s915 + $0x14] sm:$0xf]
        %v1035 = vld [vmem:[%s915 + $0x18] sm:$0xf]
        %v1036 = vld [vmem:[%s915 + $0x1c] sm:$0x1]
        %s1037 = scalar_lea.vmem %s1, 28
        %v1038 = vld [vmem:[%s1037] sm:$0xf]
        %v1047 = vunpack.c.l.b16 %v1029
        %v1048 = vunpack.c.l.b16 %v1030
        %v1049 = vunpack.c.l.b16 %v1031
        %v1050 = vunpack.c.l.b16 %v1032
        %v1051 = vunpack.c.l.b16 %v1033
        %v1052 = vunpack.c.l.b16 %v1034
        %v1053 = vunpack.c.l.b16 %v1035
        %v1054 = vunpack.c.l.b16 %v1036
        %v1055 = vpack.c.b16 %v1048, %v1047
        %v1056 = vpack.c.b16 %v1050, %v1049
        %v1057 = vpack.c.b16 %v1052, %v1051
        %v1058 = vpack.c.b16 %v1054, %v1053
        %v1060 = vshrl.u32 %v1055, 16
        %v1062 = vshll.u32 %v1055, 16
        %v1064 = vrot.slane %v1062, 1
        %v1065 = vor.u32 %v1060, %v1064
        %v1067 = vshll.u32 %v1056, 16
        %v1069 = vrot.slane %v1067, 1
        %v1070 = vsel %vm259, %v1065, %v1069
        %v1071 = vshrl.u32 %v1056, 16
        %v1073 = vor.u32 %v1071, %v1069
        %v1075 = vshll.u32 %v1057, 16
        %v1077 = vrot.slane %v1075, 1
        %v1078 = vsel %vm259, %v1073, %v1077
        %v1079 = vshrl.u32 %v1057, 16
        %v1081 = vor.u32 %v1079, %v1077
        %v1083 = vshll.u32 %v1058, 16
        %v1085 = vrot.slane %v1083, 1
        %v1086 = vsel %vm259, %v1081, %v1085
        %v1087 = vshrl.u32 %v1058, 16
        %v1089 = vor.u32 %v1087, %v1085
        %v1091 = vsel %vm291, %v1070, 0
        %v1094 = vsel %vm291, %v1078, 0
        %v1097 = vsel %vm291, %v1086, 0
        %v1100 = vsel %vm291, %v1089, 0
        %v1103 = vsel %vm304, %v1038, 0
        %1105 = vmatprep.subr.bf16.mxu0 0
        %1106 = vmatpush1.bf16.msra.mxu0 %v1103
        %1107 = vmatprep.subr.bf16.mxu0 0
        %1108 = vmatpush1.bf16.msra.mxu0 0
        %1109 = vmatprep.subr.bf16.mxu0 0
        %1110 = vmatpush1.bf16.msra.mxu0 0
        %1111 = vmatprep.subr.bf16.mxu0 0
        %1112 = vmatpush1.bf16.msra.mxu0 0
        %1113 = vmatprep.subr.bf16.mxu0 0
        %1114 = vmatpush1.bf16.msra.mxu0 0
        %1115 = vmatprep.subr.bf16.mxu0 0
        %1116 = vmatpush1.bf16.msra.mxu0 0
        %1117 = vmatprep.subr.bf16.mxu0 0
        %1118 = vmatpush1.bf16.msra.mxu0 0
        %1119 = vmatprep.subr.bf16.mxu0 0
        %1120 = vmatpush1.bf16.msra.mxu0 0
        %1121 = vmatprep.subr.bf16.mxu0 0
        %1122 = vmatpush1.bf16.msra.mxu0 0
        %1123 = vmatprep.subr.bf16.mxu0 0
        %1124 = vmatpush1.bf16.msra.mxu0 0
        %1125 = vmatprep.subr.bf16.mxu0 0
        %1126 = vmatpush1.bf16.msra.mxu0 0
        %1127 = vmatprep.subr.bf16.mxu0 0
        %1128 = vmatpush1.bf16.msra.mxu0 0
        %1129 = vmatprep.subr.bf16.mxu0 0
        %1130 = vmatpush1.bf16.msra.mxu0 0
        %1131 = vmatprep.subr.bf16.mxu0 0
        %1132 = vmatpush1.bf16.msra.mxu0 0
        %1133 = vmatprep.subr.bf16.mxu0 0
        %1134 = vmatpush1.bf16.msra.mxu0 0
        %1135 = vmatprep.subr.bf16.mxu0 0
        %1136 = vmatpush1.bf16.msra.mxu0 0
        %1137 = vmatprep.mubr.bf16.mxu0 0
        %1138 = vmatmul.mubr.bf16.gmra.mrb[0].mxu0 %v1091
        %v1139 = vpop.f32.mrb[0].mxu0
        %v1140 = vadd.f32 0.0, %v1139
        %v1141 = vpop.f32.mrb[0].mxu0
        %v1142 = vpop.f32.mrb[0].mxu0
        %v1143 = vadd.f32 0.0, %v1142
        %v1144 = vpop.f32.mrb[0].mxu0
        %1145 = vmatprep.mubr.bf16.mxu0 0
        %1146 = vmatmul.mubr.bf16.gmra.mrb[0].mxu0 %v1094
        %v1147 = vpop.f32.mrb[0].mxu0
        %v1148 = vadd.f32 0.0, %v1147
        %v1149 = vpop.f32.mrb[0].mxu0
        %v1150 = vpop.f32.mrb[0].mxu0
        %v1151 = vadd.f32 0.0, %v1150
        %v1152 = vpop.f32.mrb[0].mxu0
        %1153 = vmatprep.mubr.bf16.mxu0 0
        %1154 = vmatmul.mubr.bf16.gmra.mrb[0].mxu0 %v1097
        %v1155 = vpop.f32.mrb[0].mxu0
        %v1156 = vadd.f32 0.0, %v1155
        %v1157 = vpop.f32.mrb[0].mxu0
        %v1158 = vpop.f32.mrb[0].mxu0
        %v1159 = vadd.f32 0.0, %v1158
        %v1160 = vpop.f32.mrb[0].mxu0
        %1161 = vmatprep.mubr.bf16.mxu0 0
        %1162 = vmatmul.mubr.bf16.gmra.mrb[0].mxu0 %v1100
        %v1163 = vpop.f32.mrb[0].mxu0
        %v1164 = vadd.f32 0.0, %v1163
        %v1165 = vpop.f32.mrb[0].mxu0
        %v1166 = vpop.f32.mrb[0].mxu0
        %v1167 = vpop.f32.mrb[0].mxu0
        %1168 = vdwg.mxu0
        %v1169 = vadd.f32 %v1022, %v1140
        %v1170 = vadd.f32 %v1023, %v1143
        %v1171 = vadd.f32 %v1024, %v1148
        %v1172 = vadd.f32 %v1025, %v1151
        %v1173 = vadd.f32 %v1026, %v1156
        %v1174 = vadd.f32 %v1027, %v1159
        %v1175 = vadd.f32 %v1028, %v1164
        %v1176 = vld [vmem:[%s915] sm:$0xe]
        %s1177 = scalar_lea.vmem %s1, 32
        %v1178 = vld [vmem:[%s1177] sm:$0xf]
        %v1180 = vunpack.c.l.b16 %v1176
        %v1181 = vpack.c.b16 %v1048, %v1180
        %v1182 = vrot.slane %v1181, 1
        %v1183 = vrot.slane %v1056, 1
        %v1184 = vsel %vm455, %v1182, %v1183
        %v1185 = vrot.slane %v1057, 1
        %v1186 = vsel %vm455, %v1183, %v1185
        %v1187 = vrot.slane %v1058, 1
        %v1188 = vsel %vm455, %v1185, %v1187
        %v1190 = vsel %vm291, %v1184, 0
        %v1193 = vsel %vm291, %v1186, 0
        %v1196 = vsel %vm291, %v1188, 0
        %v1199 = vsel %vm291, %v1187, 0
        %v1202 = vsel %vm304, %v1178, 0
        %1204 = vmatprep.subr.bf16.mxu0 0
        %1205 = vmatpush1.bf16.msra.mxu0 %v1202
        %1206 = vmatprep.subr.bf16.mxu0 0
        %1207 = vmatpush1.bf16.msra.mxu0 0
        %1208 = vmatprep.subr.bf16.mxu0 0
        %1209 = vmatpush1.bf16.msra.mxu0 0
        %1210 = vmatprep.subr.bf16.mxu0 0
        %1211 = vmatpush1.bf16.msra.mxu0 0
        %1212 = vmatprep.subr.bf16.mxu0 0
        %1213 = vmatpush1.bf16.msra.mxu0 0
        %1214 = vmatprep.subr.bf16.mxu0 0
        %1215 = vmatpush1.bf16.msra.mxu0 0
        %1216 = vmatprep.subr.bf16.mxu0 0
        %1217 = vmatpush1.bf16.msra.mxu0 0
        %1218 = vmatprep.subr.bf16.mxu0 0
        %1219 = vmatpush1.bf16.msra.mxu0 0
        %1220 = vmatprep.subr.bf16.mxu0 0
        %1221 = vmatpush1.bf16.msra.mxu0 0
        %1222 = vmatprep.subr.bf16.mxu0 0
        %1223 = vmatpush1.bf16.msra.mxu0 0
        %1224 = vmatprep.subr.bf16.mxu0 0
        %1225 = vmatpush1.bf16.msra.mxu0 0
        %1226 = vmatprep.subr.bf16.mxu0 0
        %1227 = vmatpush1.bf16.msra.mxu0 0
        %1228 = vmatprep.subr.bf16.mxu0 0
        %1229 = vmatpush1.bf16.msra.mxu0 0
        %1230 = vmatprep.subr.bf16.mxu0 0
        %1231 = vmatpush1.bf16.msra.mxu0 0
        %1232 = vmatprep.subr.bf16.mxu0 0
        %1233 = vmatpush1.bf16.msra.mxu0 0
        %1234 = vmatprep.subr.bf16.mxu0 0
        %1235 = vmatpush1.bf16.msra.mxu0 0
        %1236 = vmatprep.mubr.bf16.mxu0 0
        %1237 = vmatmul.mubr.bf16.gmra.mrb[0].mxu0 %v1190
        %v1238 = vpop.f32.mrb[0].mxu0
        %v1239 = vadd.f32 0.0, %v1238
        %v1240 = vpop.f32.mrb[0].mxu0
        %v1241 = vpop.f32.mrb[0].mxu0
        %v1242 = vadd.f32 0.0, %v1241
        %v1243 = vpop.f32.mrb[0].mxu0
        %1244 = vmatprep.mubr.bf16.mxu0 0
        %1245 = vmatmul.mubr.bf16.gmra.mrb[0].mxu0 %v1193
        %v1246 = vpop.f32.mrb[0].mxu0
        %v1247 = vadd.f32 0.0, %v1246
        %v1248 = vpop.f32.mrb[0].mxu0
        %v1249 = vpop.f32.mrb[0].mxu0
        %v1250 = vadd.f32 0.0, %v1249
        %v1251 = vpop.f32.mrb[0].mxu0
        %1252 = vmatprep.mubr.bf16.mxu0 0
        %1253 = vmatmul.mubr.bf16.gmra.mrb[0].mxu0 %v1196
        %v1254 = vpop.f32.mrb[0].mxu0
        %v1255 = vadd.f32 0.0, %v1254
        %v1256 = vpop.f32.mrb[0].mxu0
        %v1257 = vpop.f32.mrb[0].mxu0
        %v1258 = vadd.f32 0.0, %v1257
        %v1259 = vpop.f32.mrb[0].mxu0
        %1260 = vmatprep.mubr.bf16.mxu0 0
        %1261 = vmatmul.mubr.bf16.gmra.mrb[0].mxu0 %v1199
        %v1262 = vpop.f32.mrb[0].mxu0
        %v1263 = vadd.f32 0.0, %v1262
        %v1264 = vpop.f32.mrb[0].mxu0
        %v1265 = vpop.f32.mrb[0].mxu0
        %v1266 = vpop.f32.mrb[0].mxu0
        %1267 = vdwg.mxu0
        %v1268 = vadd.f32 %v1169, %v1239
        %v1269 = vadd.f32 %v1170, %v1242
        %v1270 = vadd.f32 %v1171, %v1247
        %v1271 = vadd.f32 %v1172, %v1250
        %v1272 = vadd.f32 %v1173, %v1255
        %v1273 = vadd.f32 %v1174, %v1258
        %v1274 = vadd.f32 %v1175, %v1263
        %v1275 = vld [vmem:[%s211] sm:$0x1]
        %vm1276 = vcmask 130048
        %v1277 = vsel %vm1276, %v1268, 0.0
        %v1278 = vsel %vm1276, %v1269, 0.0
        %v1279 = vadd.f32 %v1277, %v1278
        %v1280 = vsel %vm1276, %v1270, 0.0
        %v1281 = vadd.f32 %v1279, %v1280
        %v1282 = vsel %vm1276, %v1271, 0.0
        %v1283 = vadd.f32 %v1281, %v1282
        %v1284 = vsel %vm1276, %v1272, 0.0
        %v1285 = vadd.f32 %v1283, %v1284
        %v1286 = vsel %vm1276, %v1273, 0.0
        %v1287 = vadd.f32 %v1285, %v1286
        %v1288 = vsel %vm1276, %v1274, 0.0
        %v1289 = vadd.f32 %v1287, %v1288
        %v1290 = vrot.slane %v1289, 4
        %v1291 = vadd.f32 %v1289, %v1290
        %v1292 = vrot.slane %v1291, 2
        %v1293 = vadd.f32 %v1291, %v1292
        %v1294 = vrot.slane %v1293, 1
        %v1295 = vadd.f32 %v1293, %v1294
        %v1296 = vadd.f32 %v1275, %v1295
        %1297 = vst.msk [vmem:[%s211] sm:$0x1] %vm216, %v1296
        %v1298 = vld [vmem:[%s214] sm:$0x1]
        %v1299 = vmul.f32 %v1268, %v1268
        %v1300 = vmul.f32 %v1269, %v1269
        %v1301 = vmul.f32 %v1270, %v1270
        %v1302 = vmul.f32 %v1271, %v1271
        %v1303 = vmul.f32 %v1272, %v1272
        %v1304 = vmul.f32 %v1273, %v1273
        %v1305 = vmul.f32 %v1274, %v1274
        %v1306 = vsel %vm1276, %v1299, 0.0
        %v1307 = vsel %vm1276, %v1300, 0.0
        %v1308 = vadd.f32 %v1306, %v1307
        %v1309 = vsel %vm1276, %v1301, 0.0
        %v1310 = vadd.f32 %v1308, %v1309
        %v1311 = vsel %vm1276, %v1302, 0.0
        %v1312 = vadd.f32 %v1310, %v1311
        %v1313 = vsel %vm1276, %v1303, 0.0
        %v1314 = vadd.f32 %v1312, %v1313
        %v1315 = vsel %vm1276, %v1304, 0.0
        %v1316 = vadd.f32 %v1314, %v1315
        %v1317 = vsel %vm1276, %v1305, 0.0
        %v1318 = vadd.f32 %v1316, %v1317
        %v1319 = vrot.slane %v1318, 4
        %v1320 = vadd.f32 %v1318, %v1319
        %v1321 = vrot.slane %v1320, 2
        %v1322 = vadd.f32 %v1320, %v1321
        %v1323 = vrot.slane %v1322, 1
        %v1324 = vadd.f32 %v1322, %v1323
        %v1325 = vadd.f32 %v1298, %v1324
        %1326 = vst.msk [vmem:[%s214] sm:$0x1] %vm216, %v1325
        %v1327 = vpack.c.bf16 %v1269, %v1268
        %v1328 = vpack.c.bf16 %v1271, %v1270
        %v1329 = vpack.c.bf16 %v1273, %v1272
        %v1330 = vpack.c.bf16 %v1274, %v1274
        %v1335 = vunpack.c.l.b16 %v1327
        %v1336 = vunpack.c.h.b16 %v1327
        %v1337 = vunpack.c.l.b16 %v1328
        %v1338 = vunpack.c.h.b16 %v1328
        %v1339 = vunpack.c.l.b16 %v1329
        %v1340 = vunpack.c.h.b16 %v1329
        %v1341 = vunpack.c.l.b16 %v1330
        %v1342 = vpack.c.b16 %v1335, %v1335
        %v1343 = vpack.c.b16 %v1336, %v1336
        %v1344 = vpack.c.b16 %v1337, %v1337
        %v1345 = vpack.c.b16 %v1338, %v1338
        %v1346 = vpack.c.b16 %v1339, %v1339
        %v1347 = vpack.c.b16 %v1340, %v1340
        %v1348 = vpack.c.b16 %v1341, %v1341
        %s1356 = smul.u32 %s220, 7
        %s1357 = smul.addr %s1356, 4
        %s1358 = scalar_lea.vmem %s208, %s1357
        %vm1359 = vcmask 125952
        %1360 = vst.msk [vmem:[%s1358] sm:$0xf] %vm1359, %v1342
        %1361 = vst.msk [vmem:[%s1358 + $0x4] sm:$0xf] %vm1359, %v1343
        %1362 = vst.msk [vmem:[%s1358 + $0x8] sm:$0xf] %vm1359, %v1344
        %1363 = vst.msk [vmem:[%s1358 + $0xc] sm:$0xf] %vm1359, %v1345
        %1364 = vst.msk [vmem:[%s1358 + $0x10] sm:$0xf] %vm1359, %v1346
        %1365 = vst.msk [vmem:[%s1358 + $0x14] sm:$0xf] %vm1359, %v1347
        %1366 = vst.msk [vmem:[%s1358 + $0x18] sm:$0xf] %vm1359, %v1348
      $region33: #{decoder_forward.8} parent=27 // loop_footer
        %s224 = sadd.s32 1, %s220
      $region34: #{decoder_forward.8} parent=27 // loop_footer_branch
        %219 = sbr.rel target = $region30
      $region35: #{decoder_forward.8} parent=27 // loop_exit
        _
      %p1367 = scmp.lt.s32.totalorder %s16, 1
      %s1368 = scalar_select %p1367, %s16, 1
      %s1369 = smul.addr %s1368, 392
      %s1370 = smul.addr %s1369, 4
      %s1371 = scalar_lea.vmem %s2, %s1370
      %p1372 = scmp.lt.s32.totalorder %s16, 1
      %s1373 = scalar_select %p1372, %s16, 1
      %s1374 = scalar_lea.vmem %s3, %s1373
      %p1375 = scmp.lt.s32.totalorder %s16, 1
      %s1376 = scalar_select %p1375, %s16, 1
      %s1377 = scalar_lea.vmem %s4, %s1376
      // Predicated region
      $region36: #{decoder_forward.8} parent=27 // pred_check
        %p1378 = pneg %p81
      $region37: #{decoder_forward.8} parent=27 // pred_check_branch
        %1380 = sbr.rel (%p1378) target = $region39
      $region38: #{decoder_forward.8} parent=27 // pred_region
        _
      $region39: #{decoder_forward.8} parent=27 // pred_fallthru
        _
      // Predicated region
      $region40: #{decoder_forward.8} parent=27 // pred_check
        %p1381 = pneg %p107
      $region41: #{decoder_forward.8} parent=27 // pred_check_branch
        %1383 = sbr.rel (%p1381) target = $region43
      $region42: #{decoder_forward.8} parent=27 // pred_region
        _
      $region43: #{decoder_forward.8} parent=27 // pred_fallthru
        _
      // Predicated region
      $region44: #{decoder_forward.8} parent=27 // pred_check
        %p1384 = pneg %p133
      $region45: #{decoder_forward.8} parent=27 // pred_check_branch
        %1386 = sbr.rel (%p1384) target = $region47
      $region46: #{decoder_forward.8} parent=27 // pred_region
        _
      $region47: #{decoder_forward.8} parent=27 // pred_fallthru
        _
    $region28: #{decoder_forward.8} parent=5 // pred_fallthru
      _
    %p1387 = scmp.le.s32.totalorder 2, %s11
    // Predicated region
    $region48: #{decoder_forward.8} parent=5 // pred_check
      %p1388 = pneg %p1387
    $region49: #{decoder_forward.8} parent=5 // pred_check_branch
      %1390 = sbr.rel (%p1388) target = $region51
    $region50: #{decoder_forward.8} parent=5 // pred_region
      %s1391 = ssub.s32 %s11, 2
      // Predicated region
      $region52: #{decoder_forward.8} parent=50 // pred_check
        %p1392 = pneg %p87
      $region53: #{decoder_forward.8} parent=50 // pred_check_branch
        %1394 = sbr.rel (%p1392) target = $region55
      $region54: #{decoder_forward.8} parent=50 // pred_region
        %p1395 = scmp.lt.s32.totalorder %s17, 1
        %s1396 = scalar_select %p1395, %s17, 1
        %s1397 = smul.addr %s1396, 392
        %s1398 = smul.addr %s1397, 4
        %s1399 = scalar_lea.vmem %s2, %s1398
      $region55: #{decoder_forward.8} parent=50 // pred_fallthru
        _
      // Predicated region
      $region56: #{decoder_forward.8} parent=50 // pred_check
        %p1400 = pneg %p113
      $region57: #{decoder_forward.8} parent=50 // pred_check_branch
        %1402 = sbr.rel (%p1400) target = $region59
      $region58: #{decoder_forward.8} parent=50 // pred_region
        %p1403 = scmp.lt.s32.totalorder %s17, 1
        %s1404 = scalar_select %p1403, %s17, 1
        %s1405 = scalar_lea.vmem %s3, %s1404
      $region59: #{decoder_forward.8} parent=50 // pred_fallthru
        _
      // Predicated region
      $region60: #{decoder_forward.8} parent=50 // pred_check
        %p1406 = pneg %p139
      $region61: #{decoder_forward.8} parent=50 // pred_check_branch
        %1408 = sbr.rel (%p1406) target = $region63
      $region62: #{decoder_forward.8} parent=50 // pred_region
        %p1409 = scmp.lt.s32.totalorder %s17, 1
        %s1410 = scalar_select %p1409, %s17, 1
        %s1411 = scalar_lea.vmem %s4, %s1410
      $region63: #{decoder_forward.8} parent=50 // pred_fallthru
        _
    $region51: #{decoder_forward.8} parent=5 // pred_fallthru
      _
  $region6: #{decoder_forward.8} parent=0 // loop_footer
    %s15 = sadd.s32 1, %s11
  $region7: #{decoder_forward.8} parent=0 // loop_footer_branch
    %10 = sbr.rel target = $region3
  $region8: #{decoder_forward.8} parent=0 // loop_exit
    _

// kernel: decoder_forward.9
$region0: #{decoder_forward.9}
  #allocation0 [shape = 'u32[]', space=smem, size = 0x4, offset = 0x4, fixed_abs, tag = 'smem constant byte address 0x4 - core index']
  #allocation1 [shape = 'u32[144,128]{1,0:T(1,128)}', space=vmem, size = 0x12000, scoped, tag = 'internal scratch']
  %s0 = inlined_call_operand.vmem [shape: bf16[2,114,114,4], index: 0, kind: input, shape index: {}]
  %s1 = inlined_call_operand.vmem [shape: bf16[9,4,12], index: 1, kind: input, shape index: {}]
  %s2 = inlined_call_operand.vmem [shape: f32[2,112,112,12], index: 2, kind: output, shape index: {}]
  %s3 = sld [smem:[#allocation0]]
  $region48: #{decoder_forward.9} parent=0
    _
  %s5 = ssub.s32 1, %s3
  %s6 = scalar_select 0, %s5, %s3
  loop: start=0, step=1, limit=4
  $region2: #{decoder_forward.9} parent=0 // loop_pre_header
    _
  $region3: #{decoder_forward.9} parent=0 // loop_header
    %s8 = sphi 0, %s12
    %p9 = scmp.ge.s32.totalorder %s8, 4
    %s18 = sphi 0, %s20
    %s21 = sphi 0, %s18
    %s22 = sphi 0, %s21
    %s38 = sphi 0, %s22
    %s42 = sphi 0, %s42
    %s44 = sphi 0, %s42
    %s45 = sphi 0, %s44
    %s59 = sphi 0, %s45
    %s65 = sphi 0, %s67
    %s68 = sphi 0, %s65
    %s69 = sphi 0, %s68
    %s85 = sphi 0, %s69
  $region4: #{decoder_forward.9} parent=0 // loop_header_branch
    %11 = sbr.rel (%p9) target = $region8
  $region5: #{decoder_forward.9} parent=0 // loop_body
    %s13 = ssub.s32 %s8, 1
    %s14 = ssub.s32 %s8, 2
    %s15 = sadd.s32 %s8, 1
    %s16 = ssub.s32 %s8, %s15
    %p17 = scmp.eq.s32.totalorder %s16, 0
    %s19 = sadd.s32 %s18, 1
    %s20 = scalar_select %p17, %s18, %s19
    %p23 = pneg %p17
    %p24 = scmp.eq.s32.totalorder %s8, 1
    %p25 = por %p23, %p24
    %p26 = scmp.ne.s32.totalorder %s18, %s21
    %p27 = scmp.eq.s32.totalorder %s8, 0
    %p28 = por %p26, %p27
    %p29 = scmp.ne.s32.totalorder %s18, %s21
    %p30 = scmp.eq.s32.totalorder %s13, 1
    %p31 = por %p29, %p30
    %p32 = scmp.ne.s32.totalorder %s21, %s22
    %p33 = scmp.eq.s32.totalorder %s13, 0
    %p34 = por %p32, %p33
    %p35 = scmp.ne.s32.totalorder %s21, %s22
    %p36 = scmp.eq.s32.totalorder %s14, 1
    %p37 = por %p35, %p36
    %p39 = scmp.ne.s32.totalorder %s22, %s38
    %p40 = scmp.eq.s32.totalorder %s14, 0
    %p41 = por %p39, %p40
    %s43 = sadd.s32 %s42, 1
    %p46 = scmp.eq.s32.totalorder %s8, 1
    %p47 = scmp.ne.s32.totalorder %s42, %s44
    %p48 = scmp.eq.s32.totalorder %s8, 0
    %p49 = por %p47, %p48
    %p50 = scmp.ne.s32.totalorder %s42, %s44
    %p51 = scmp.eq.s32.totalorder %s13, 1
    %p52 = por %p50, %p51
    %p53 = scmp.ne.s32.totalorder %s44, %s45
    %p54 = scmp.eq.s32.totalorder %s13, 0
    %p55 = por %p53, %p54
    %p56 = scmp.ne.s32.totalorder %s44, %s45
    %p57 = scmp.eq.s32.totalorder %s14, 1
    %p58 = por %p56, %p57
    %p60 = scmp.ne.s32.totalorder %s45, %s59
    %p61 = scmp.eq.s32.totalorder %s14, 0
    %p62 = por %p60, %p61
    %s63 = ssub.s32 %s8, %s15
    %p64 = scmp.eq.s32.totalorder %s63, 0
    %s66 = sadd.s32 %s65, 1
    %s67 = scalar_select %p64, %s65, %s66
    %p70 = pneg %p64
    %p71 = scmp.eq.s32.totalorder %s8, 1
    %p72 = por %p70, %p71
    %p73 = scmp.ne.s32.totalorder %s65, %s68
    %p74 = scmp.eq.s32.totalorder %s8, 0
    %p75 = por %p73, %p74
    %p76 = scmp.ne.s32.totalorder %s65, %s68
    %p77 = scmp.eq.s32.totalorder %s13, 1
    %p78 = por %p76, %p77
    %p79 = scmp.ne.s32.totalorder %s68, %s69
    %p80 = scmp.eq.s32.totalorder %s13, 0
    %p81 = por %p79, %p80
    %p82 = scmp.ne.s32.totalorder %s68, %s69
    %p83 = scmp.eq.s32.totalorder %s14, 1
    %p84 = por %p82, %p83
    %p86 = scmp.ne.s32.totalorder %s69, %s85
    %p87 = scmp.eq.s32.totalorder %s14, 0
    %p88 = por %p86, %p87
    %p89 = scmp.le.s32.totalorder 1, %s8
    %p90 = scmp.lt.s32.totalorder %s8, 3
    %p91 = pnand %p89, %p90
    %p92 = pneg %p91
    // Predicated region
    $region9: #{decoder_forward.9} parent=5 // pred_check
      _
    $region10: #{decoder_forward.9} parent=5 // pred_check_branch
      %94 = sbr.rel (%p91) target = $region12
    $region11: #{decoder_forward.9} parent=5 // pred_region
      %s95 = ssub.s32 %s8, 1
      // Predicated region
      $region13: #{decoder_forward.9} parent=11 // pred_check
        %p96 = pneg %p55
      $region14: #{decoder_forward.9} parent=11 // pred_check_branch
        %98 = sbr.rel (%p96) target = $region16
      $region15: #{decoder_forward.9} parent=11 // pred_region
        _
      $region16: #{decoder_forward.9} parent=11 // pred_fallthru
        _
    $region12: #{decoder_forward.9} parent=5 // pred_fallthru
      _
    %p99 = scmp.lt.s32.totalorder %s8, 2
    // Predicated region
    $region17: #{decoder_forward.9} parent=5 // pred_check
      %p100 = pneg %p99
    $region18: #{decoder_forward.9} parent=5 // pred_check_branch
      %102 = sbr.rel (%p100) target = $region20
    $region19: #{decoder_forward.9} parent=5 // pred_region
      // Predicated region
      $region21: #{decoder_forward.9} parent=19 // pred_check
        %p103 = pneg %p28
      $region22: #{decoder_forward.9} parent=19 // pred_check_branch
        %105 = sbr.rel (%p103) target = $region24
      $region23: #{decoder_forward.9} parent=19 // pred_region
        %p106 = scmp.lt.s32.totalorder %s8, 1
        %s107 = scalar_select %p106, %s8, 1
        %s108 = smul.addr %s107, 1710
        %s109 = smul.addr %s108, 4
        %s110 = scalar_lea.vmem %s0, %s109
      $region24: #{decoder_forward.9} parent=19 // pred_fallthru
        _
    $region20: #{decoder_forward.9} parent=5 // pred_fallthru
      _
    %p111 = scmp.le.s32.totalorder 1, %s8
    %p112 = scmp.lt.s32.totalorder %s8, 3
    %p113 = pnand %p111, %p112
    %p114 = pneg %p113
    // Predicated region
    $region25: #{decoder_forward.9} parent=5 // pred_check
      _
    $region26: #{decoder_forward.9} parent=5 // pred_check_branch
      %116 = sbr.rel (%p113) target = $region28
    $region27: #{decoder_forward.9} parent=5 // pred_region
      %s117 = ssub.s32 %s8, 1
      %p118 = scmp.lt.s32.totalorder %s13, 1
      %s119 = scalar_select %p118, %s13, 1
      %s120 = smul.addr %s119, 1710
      %s121 = smul.addr %s120, 4
      %s122 = scalar_lea.vmem %s0, %s121
      %p123 = pneg %p34
      %p124 = pneg %p31
      %p125 = pneg %p55
      %p126 = pneg %p52
      %p127 = pneg %p81
      %p128 = pneg %p78
      %p129 = scmp.lt.s32.totalorder %s13, 1
      %s130 = scalar_select %p129, %s13, 1
      %s131 = smul.addr %s130, 1568
      %s132 = smul.addr %s131, 8
      %s133 = scalar_lea.vmem %s2, %s132
      %p134 = scmp.lt.s32.totalorder %s13, 1
      %s135 = scalar_select %p134, %s13, 1
      %s136 = smul.addr %s135, 1710
      %s137 = smul.addr %s136, 4
      %s138 = scalar_lea.vmem %s0, %s137
      %p139 = scmp.lt.s32.totalorder %s13, 1
      %s140 = scalar_select %p139, %s13, 1
      %s141 = smul.addr %s140, 1568
      %s142 = smul.addr %s141, 8
      %s143 = scalar_lea.vmem %s2, %s142
      loop: start=0, step=1, limit=112
      $region29: #{decoder_forward.9} parent=27 // loop_pre_header
        _
      $region30: #{decoder_forward.9} parent=27 // loop_header
        %s146 = sphi 0, %s150
        %p147 = scmp.ge.s32.totalorder %s146, 112
      $region31: #{decoder_forward.9} parent=27 // loop_header_branch
        %149 = sbr.rel (%p147) target = $region35
      $region32: #{decoder_forward.9} parent=27 // loop_body
        %s151 = smul.u32 %s146, 15
        %s152 = smul.addr %s151, 4
        %s153 = scalar_lea.vmem %s138, %s152
        %v154 = vld [vmem:[%s153] sm:$0xf]
        %v155 = vld [vmem:[%s153 + $0x4] sm:$0xf]
        %v156 = vld [vmem:[%s153 + $0x8] sm:$0xf]
        %v157 = vld [vmem:[%s153 + $0xc] sm:$0xf]
        %v158 = vld [vmem:[%s153 + $0x10] sm:$0xf]
        %v159 = vld [vmem:[%s153 + $0x14] sm:$0xf]
        %v160 = vld [vmem:[%s153 + $0x18] sm:$0xf]
        %v161 = vld [vmem:[%s153 + $0x1c] sm:$0xf]
        %v162 = vld [vmem:[%s153 + $0x20] sm:$0xf]
        %v163 = vld [vmem:[%s153 + $0x24] sm:$0xf]
        %v164 = vld [vmem:[%s153 + $0x28] sm:$0xf]
        %v165 = vld [vmem:[%s153 + $0x2c] sm:$0xf]
        %v166 = vld [vmem:[%s153 + $0x30] sm:$0xf]
        %v167 = vld [vmem:[%s153 + $0x34] sm:$0xf]
        %v168 = vld [vmem:[%s1] sm:$0x3]
        %v169 = vld [vmem:[%s153 + $0x38] sm:$0x1]
        %s170 = scalar_lea.vmem %s1, 2
        %v171 = vld [vmem:[%s170] sm:$0x3]
        %v187 = vunpack.c.l.b16 %v154
        %v188 = vunpack.c.l.b16 %v155
        %v189 = vunpack.c.l.b16 %v156
        %v190 = vunpack.c.l.b16 %v157
        %v191 = vunpack.c.l.b16 %v158
        %v192 = vunpack.c.l.b16 %v159
        %v193 = vunpack.c.l.b16 %v160
        %v194 = vunpack.c.l.b16 %v161
        %v195 = vunpack.c.l.b16 %v162
        %v196 = vunpack.c.l.b16 %v163
        %v197 = vunpack.c.l.b16 %v164
        %v198 = vunpack.c.l.b16 %v165
        %v199 = vunpack.c.l.b16 %v166
        %v200 = vunpack.c.l.b16 %v167
        %v201 = vunpack.c.l.b16 %v169
        %v202 = vpack.c.b16 %v188, %v187
        %v203 = vpack.c.b16 %v190, %v189
        %v204 = vpack.c.b16 %v192, %v191
        %v205 = vpack.c.b16 %v194, %v193
        %v206 = vpack.c.b16 %v196, %v195
        %v207 = vpack.c.b16 %v198, %v197
        %v208 = vpack.c.b16 %v200, %v199
        %v209 = vpack.c.b16 %v201, %v201
        %vm210 = vsmask.f32 7424
        %v212 = vshrl.u32 %v202, 16
        %v214 = vshll.u32 %v202, 16
        %v216 = vrot.slane %v214, 1
        %v217 = vor.u32 %v212, %v216
        %v219 = vshll.u32 %v203, 16
        %v221 = vrot.slane %v219, 1
        %v222 = vsel %vm210, %v217, %v221
        %v223 = vshrl.u32 %v203, 16
        %v225 = vor.u32 %v223, %v221
        %v227 = vshll.u32 %v204, 16
        %v229 = vrot.slane %v227, 1
        %v230 = vsel %vm210, %v225, %v229
        %v231 = vshrl.u32 %v204, 16
        %v233 = vor.u32 %v231, %v229
        %v235 = vshll.u32 %v205, 16
        %v237 = vrot.slane %v235, 1
        %v238 = vsel %vm210, %v233, %v237
        %v239 = vshrl.u32 %v205, 16
        %v241 = vor.u32 %v239, %v237
        %v243 = vshll.u32 %v206, 16
        %v245 = vrot.slane %v243, 1
        %v246 = vsel %vm210, %v241, %v245
        %v247 = vshrl.u32 %v206, 16
        %v249 = vor.u32 %v247, %v245
        %v251 = vshll.u32 %v207, 16
        %v253 = vrot.slane %v251, 1
        %v254 = vsel %vm210, %v249, %v253
        %v255 = vshrl.u32 %v207, 16
        %v257 = vor.u32 %v255, %v253
        %v259 = vshll.u32 %v208, 16
        %v261 = vrot.slane %v259, 1
        %v262 = vsel %vm210, %v257, %v261
        %v263 = vshrl.u32 %v208, 16
        %v265 = vor.u32 %v263, %v261
        %v267 = vshll.u32 %v209, 16
        %v269 = vrot.slane %v267, 1
        %v270 = vsel %vm210, %v265, %v269
        %vm271 = vcmask 31744
        %v273 = vsel %vm271, %v222, 0
        %v276 = vsel %vm271, %v230, 0
        %v279 = vsel %vm271, %v238, 0
        %v282 = vsel %vm271, %v246, 0
        %v285 = vsel %vm271, %v254, 0
        %v288 = vsel %vm271, %v262, 0
        %v291 = vsel %vm271, %v270, 0
        %vm293 = vcmask 1041408
        %v295 = vsel %vm293, %v171, 0
        %297 = vmatprep.subr.bf16.mxu0 0
        %298 = vmatpush1.bf16.msra.mxu0 %v295
        %299 = vmatprep.subr.bf16.mxu0 0
        %300 = vmatpush1.bf16.msra.mxu0 0
        %301 = vmatprep.subr.bf16.mxu0 0
        %302 = vmatpush1.bf16.msra.mxu0 0
        %303 = vmatprep.subr.bf16.mxu0 0
        %304 = vmatpush1.bf16.msra.mxu0 0
        %305 = vmatprep.subr.bf16.mxu0 0
        %306 = vmatpush1.bf16.msra.mxu0 0
        %307 = vmatprep.subr.bf16.mxu0 0
        %308 = vmatpush1.bf16.msra.mxu0 0
        %309 = vmatprep.subr.bf16.mxu0 0
        %310 = vmatpush1.bf16.msra.mxu0 0
        %311 = vmatprep.subr.bf16.mxu0 0
        %312 = vmatpush1.bf16.msra.mxu0 0
        %313 = vmatprep.subr.bf16.mxu0 0
        %314 = vmatpush1.bf16.msra.mxu0 0
        %315 = vmatprep.subr.bf16.mxu0 0
        %316 = vmatpush1.bf16.msra.mxu0 0
        %317 = vmatprep.subr.bf16.mxu0 0
        %318 = vmatpush1.bf16.msra.mxu0 0
        %319 = vmatprep.subr.bf16.mxu0 0
        %320 = vmatpush1.bf16.msra.mxu0 0
        %321 = vmatprep.subr.bf16.mxu0 0
        %322 = vmatpush1.bf16.msra.mxu0 0
        %323 = vmatprep.subr.bf16.mxu0 0
        %324 = vmatpush1.bf16.msra.mxu0 0
        %325 = vmatprep.subr.bf16.mxu0 0
        %326 = vmatpush1.bf16.msra.mxu0 0
        %327 = vmatprep.subr.bf16.mxu0 0
        %328 = vmatpush1.bf16.msra.mxu0 0
        %329 = vmatprep.mubr.bf16.mxu0 0
        %330 = vmatmul.mubr.bf16.gmra.mrb[0].mxu0 %v273
        %v331 = vpop.f32.mrb[0].mxu0
        %v332 = vadd.f32 0.0, %v331
        %v333 = vpop.f32.mrb[0].mxu0
        %v334 = vpop.f32.mrb[0].mxu0
        %v335 = vadd.f32 0.0, %v334
        %v336 = vpop.f32.mrb[0].mxu0
        %337 = vmatprep.mubr.bf16.mxu0 0
        %338 = vmatmul.mubr.bf16.gmra.mrb[0].mxu0 %v276
        %v339 = vpop.f32.mrb[0].mxu0
        %v340 = vadd.f32 0.0, %v339
        %v341 = vpop.f32.mrb[0].mxu0
        %v342 = vpop.f32.mrb[0].mxu0
        %v343 = vadd.f32 0.0, %v342
        %v344 = vpop.f32.mrb[0].mxu0
        %345 = vmatprep.mubr.bf16.mxu0 0
        %346 = vmatmul.mubr.bf16.gmra.mrb[0].mxu0 %v279
        %v347 = vpop.f32.mrb[0].mxu0
        %v348 = vadd.f32 0.0, %v347
        %v349 = vpop.f32.mrb[0].mxu0
        %v350 = vpop.f32.mrb[0].mxu0
        %v351 = vadd.f32 0.0, %v350
        %v352 = vpop.f32.mrb[0].mxu0
        %353 = vmatprep.mubr.bf16.mxu0 0
        %354 = vmatmul.mubr.bf16.gmra.mrb[0].mxu0 %v282
        %v355 = vpop.f32.mrb[0].mxu0
        %v356 = vadd.f32 0.0, %v355
        %v357 = vpop.f32.mrb[0].mxu0
        %v358 = vpop.f32.mrb[0].mxu0
        %v359 = vadd.f32 0.0, %v358
        %v360 = vpop.f32.mrb[0].mxu0
        %361 = vmatprep.mubr.bf16.mxu0 0
        %362 = vmatmul.mubr.bf16.gmra.mrb[0].mxu0 %v285
        %v363 = vpop.f32.mrb[0].mxu0
        %v364 = vadd.f32 0.0, %v363
        %v365 = vpop.f32.mrb[0].mxu0
        %v366 = vpop.f32.mrb[0].mxu0
        %v367 = vadd.f32 0.0, %v366
        %v368 = vpop.f32.mrb[0].mxu0
        %369 = vmatprep.mubr.bf16.mxu0 0
        %370 = vmatmul.mubr.bf16.gmra.mrb[0].mxu0 %v288
        %v371 = vpop.f32.mrb[0].mxu0
        %v372 = vadd.f32 0.0, %v371
        %v373 = vpop.f32.mrb[0].mxu0
        %v374 = vpop.f32.mrb[0].mxu0
        %v375 = vadd.f32 0.0, %v374
        %v376 = vpop.f32.mrb[0].mxu0
        %377 = vmatprep.mubr.bf16.mxu0 0
        %378 = vmatmul.mubr.bf16.gmra.mrb[0].mxu0 %v291
        %v379 = vpop.f32.mrb[0].mxu0
        %v380 = vadd.f32 0.0, %v379
        %v381 = vpop.f32.mrb[0].mxu0
        %v382 = vpop.f32.mrb[0].mxu0
        %v383 = vadd.f32 0.0, %v382
        %v384 = vpop.f32.mrb[0].mxu0
        %385 = vdwg.mxu0
        %v386 = vsel %vm271, %v202, 0
        %v388 = vsel %vm271, %v203, 0
        %v390 = vsel %vm271, %v204, 0
        %v392 = vsel %vm271, %v205, 0
        %v394 = vsel %vm271, %v206, 0
        %v396 = vsel %vm271, %v207, 0
        %v398 = vsel %vm271, %v208, 0
        %v401 = vsel %vm293, %v168, 0
        %403 = vmatprep.subr.bf16.mxu0 0
        %404 = vmatpush1.bf16.msra.mxu0 %v401
        %405 = vmatprep.subr.bf16.mxu0 0
        %406 = vmatpush1.bf16.msra.mxu0 0
        %407 = vmatprep.subr.bf16.mxu0 0
        %408 = vmatpush1.bf16.msra.mxu0 0
        %409 = vmatprep.subr.bf16.mxu0 0
        %410 = vmatpush1.bf16.msra.mxu0 0
        %411 = vmatprep.subr.bf16.mxu0 0
        %412 = vmatpush1.bf16.msra.mxu0 0
        %413 = vmatprep.subr.bf16.mxu0 0
        %414 = vmatpush1.bf16.msra.mxu0 0
        %415 = vmatprep.subr.bf16.mxu0 0
        %416 = vmatpush1.bf16.msra.mxu0 0
        %417 = vmatprep.subr.bf16.mxu0 0
        %418 = vmatpush1.bf16.msra.mxu0 0
        %419 = vmatprep.subr.bf16.mxu0 0
        %420 = vmatpush1.bf16.msra.mxu0 0
        %421 = vmatprep.subr.bf16.mxu0 0
        %422 = vmatpush1.bf16.msra.mxu0 0
        %423 = vmatprep.subr.bf16.mxu0 0
        %424 = vmatpush1.bf16.msra.mxu0 0
        %425 = vmatprep.subr.bf16.mxu0 0
        %426 = vmatpush1.bf16.msra.mxu0 0
        %427 = vmatprep.subr.bf16.mxu0 0
        %428 = vmatpush1.bf16.msra.mxu0 0
        %429 = vmatprep.subr.bf16.mxu0 0
        %430 = vmatpush1.bf16.msra.mxu0 0
        %431 = vmatprep.subr.bf16.mxu0 0
        %432 = vmatpush1.bf16.msra.mxu0 0
        %433 = vmatprep.subr.bf16.mxu0 0
        %434 = vmatpush1.bf16.msra.mxu0 0
        %435 = vmatprep.mubr.bf16.mxu0 0
        %436 = vmatmul.mubr.bf16.gmra.mrb[0].mxu0 %v386
        %v437 = vpop.f32.mrb[0].mxu0
        %v438 = vadd.f32 %v332, %v437
        %v439 = vpop.f32.mrb[0].mxu0
        %v440 = vpop.f32.mrb[0].mxu0
        %v441 = vadd.f32 %v335, %v440
        %v442 = vpop.f32.mrb[0].mxu0
        %443 = vmatprep.mubr.bf16.mxu0 0
        %444 = vmatmul.mubr.bf16.gmra.mrb[0].mxu0 %v388
        %v445 = vpop.f32.mrb[0].mxu0
        %v446 = vadd.f32 %v340, %v445
        %v447 = vpop.f32.mrb[0].mxu0
        %v448 = vpop.f32.mrb[0].mxu0
        %v449 = vadd.f32 %v343, %v448
        %v450 = vpop.f32.mrb[0].mxu0
        %451 = vmatprep.mubr.bf16.mxu0 0
        %452 = vmatmul.mubr.bf16.gmra.mrb[0].mxu0 %v390
        %v453 = vpop.f32.mrb[0].mxu0
        %v454 = vadd.f32 %v348, %v453
        %v455 = vpop.f32.mrb[0].mxu0
        %v456 = vpop.f32.mrb[0].mxu0
        %v457 = vadd.f32 %v351, %v456
        %v458 = vpop.f32.mrb[0].mxu0
        %459 = vmatprep.mubr.bf16.mxu0 0
        %460 = vmatmul.mubr.bf16.gmra.mrb[0].mxu0 %v392
        %v461 = vpop.f32.mrb[0].mxu0
        %v462 = vadd.f32 %v356, %v461
        %v463 = vpop.f32.mrb[0].mxu0
        %v464 = vpop.f32.mrb[0].mxu0
        %v465 = vadd.f32 %v359, %v464
        %v466 = vpop.f32.mrb[0].mxu0
        %467 = vmatprep.mubr.bf16.mxu0 0
        %468 = vmatmul.mubr.bf16.gmra.mrb[0].mxu0 %v394
        %v469 = vpop.f32.mrb[0].mxu0
        %v470 = vadd.f32 %v364, %v469
        %v471 = vpop.f32.mrb[0].mxu0
        %v472 = vpop.f32.mrb[0].mxu0
        %v473 = vadd.f32 %v367, %v472
        %v474 = vpop.f32.mrb[0].mxu0
        %475 = vmatprep.mubr.bf16.mxu0 0
        %476 = vmatmul.mubr.bf16.gmra.mrb[0].mxu0 %v396
        %v477 = vpop.f32.mrb[0].mxu0
        %v478 = vadd.f32 %v372, %v477
        %v479 = vpop.f32.mrb[0].mxu0
        %v480 = vpop.f32.mrb[0].mxu0
        %v481 = vadd.f32 %v375, %v480
        %v482 = vpop.f32.mrb[0].mxu0
        %483 = vmatprep.mubr.bf16.mxu0 0
        %484 = vmatmul.mubr.bf16.gmra.mrb[0].mxu0 %v398
        %v485 = vpop.f32.mrb[0].mxu0
        %v486 = vadd.f32 %v380, %v485
        %v487 = vpop.f32.mrb[0].mxu0
        %v488 = vpop.f32.mrb[0].mxu0
        %v489 = vadd.f32 %v383, %v488
        %v490 = vpop.f32.mrb[0].mxu0
        %491 = vdwg.mxu0
        %v492 = vld [vmem:[%s153] sm:$0xe]
        %s493 = scalar_lea.vmem %s1, 4
        %v494 = vld [vmem:[%s493] sm:$0x3]
        %v496 = vunpack.c.l.b16 %v492
        %v497 = vpack.c.b16 %v188, %v496
        %vm498 = vcmask 1046528
        %v499 = vrot.slane %v497, 1
        %v500 = vrot.slane %v203, 1
        %v501 = vsel %vm498, %v499, %v500
        %v502 = vrot.slane %v204, 1
        %v503 = vsel %vm498, %v500, %v502
        %v504 = vrot.slane %v205, 1
        %v505 = vsel %vm498, %v502, %v504
        %v506 = vrot.slane %v206, 1
        %v507 = vsel %vm498, %v504, %v506
        %v508 = vrot.slane %v207, 1
        %v509 = vsel %vm498, %v506, %v508
        %v510 = vrot.slane %v208, 1
        %v511 = vsel %vm498, %v508, %v510
        %v512 = vrot.slane %v209, 1
        %v513 = vsel %vm498, %v510, %v512
        %v515 = vsel %vm271, %v501, 0
        %v518 = vsel %vm271, %v503, 0
        %v521 = vsel %vm271, %v505, 0
        %v524 = vsel %vm271, %v507, 0
        %v527 = vsel %vm271, %v509, 0
        %v530 = vsel %vm271, %v511, 0
        %v533 = vsel %vm271, %v513, 0
        %v536 = vsel %vm293, %v494, 0
        %538 = vmatprep.subr.bf16.mxu0 0
        %539 = vmatpush1.bf16.msra.mxu0 %v536
        %540 = vmatprep.subr.bf16.mxu0 0
        %541 = vmatpush1.bf16.msra.mxu0 0
        %542 = vmatprep.subr.bf16.mxu0 0
        %543 = vmatpush1.bf16.msra.mxu0 0
        %544 = vmatprep.subr.bf16.mxu0 0
        %545 = vmatpush1.bf16.msra.mxu0 0
        %546 = vmatprep.subr.bf16.mxu0 0
        %547 = vmatpush1.bf16.msra.mxu0 0
        %548 = vmatprep.subr.bf16.mxu0 0
        %549 = vmatpush1.bf16.msra.mxu0 0
        %550 = vmatprep.subr.bf16.mxu0 0
        %551 = vmatpush1.bf16.msra.mxu0 0
        %552 = vmatprep.subr.bf16.mxu0 0
        %553 = vmatpush1.bf16.msra.mxu0 0
        %554 = vmatprep.subr.bf16.mxu0 0
        %555 = vmatpush1.bf16.msra.mxu0 0
        %556 = vmatprep.subr.bf16.mxu0 0
        %557 = vmatpush1.bf16.msra.mxu0 0
        %558 = vmatprep.subr.bf16.mxu0 0
        %559 = vmatpush1.bf16.msra.mxu0 0
        %560 = vmatprep.subr.bf16.mxu0 0
        %561 = vmatpush1.bf16.msra.mxu0 0
        %562 = vmatprep.subr.bf16.mxu0 0
        %563 = vmatpush1.bf16.msra.mxu0 0
        %564 = vmatprep.subr.bf16.mxu0 0
        %565 = vmatpush1.bf16.msra.mxu0 0
        %566 = vmatprep.subr.bf16.mxu0 0
        %567 = vmatpush1.bf16.msra.mxu0 0
        %568 = vmatprep.subr.bf16.mxu0 0
        %569 = vmatpush1.bf16.msra.mxu0 0
        %570 = vmatprep.mubr.bf16.mxu0 0
        %571 = vmatmul.mubr.bf16.gmra.mrb[0].mxu0 %v515
        %v572 = vpop.f32.mrb[0].mxu0
        %v573 = vadd.f32 0.0, %v572
        %v574 = vpop.f32.mrb[0].mxu0
        %v575 = vpop.f32.mrb[0].mxu0
        %v576 = vadd.f32 0.0, %v575
        %v577 = vpop.f32.mrb[0].mxu0
        %578 = vmatprep.mubr.bf16.mxu0 0
        %579 = vmatmul.mubr.bf16.gmra.mrb[0].mxu0 %v518
        %v580 = vpop.f32.mrb[0].mxu0
        %v581 = vadd.f32 0.0, %v580
        %v582 = vpop.f32.mrb[0].mxu0
        %v583 = vpop.f32.mrb[0].mxu0
        %v584 = vadd.f32 0.0, %v583
        %v585 = vpop.f32.mrb[0].mxu0
        %586 = vmatprep.mubr.bf16.mxu0 0
        %587 = vmatmul.mubr.bf16.gmra.mrb[0].mxu0 %v521
        %v588 = vpop.f32.mrb[0].mxu0
        %v589 = vadd.f32 0.0, %v588
        %v590 = vpop.f32.mrb[0].mxu0
        %v591 = vpop.f32.mrb[0].mxu0
        %v592 = vadd.f32 0.0, %v591
        %v593 = vpop.f32.mrb[0].mxu0
        %594 = vmatprep.mubr.bf16.mxu0 0
        %595 = vmatmul.mubr.bf16.gmra.mrb[0].mxu0 %v524
        %v596 = vpop.f32.mrb[0].mxu0
        %v597 = vadd.f32 0.0, %v596
        %v598 = vpop.f32.mrb[0].mxu0
        %v599 = vpop.f32.mrb[0].mxu0
        %v600 = vadd.f32 0.0, %v599
        %v601 = vpop.f32.mrb[0].mxu0
        %602 = vmatprep.mubr.bf16.mxu0 0
        %603 = vmatmul.mubr.bf16.gmra.mrb[0].mxu0 %v527
        %v604 = vpop.f32.mrb[0].mxu0
        %v605 = vadd.f32 0.0, %v604
        %v606 = vpop.f32.mrb[0].mxu0
        %v607 = vpop.f32.mrb[0].mxu0
        %v608 = vadd.f32 0.0, %v607
        %v609 = vpop.f32.mrb[0].mxu0
        %610 = vmatprep.mubr.bf16.mxu0 0
        %611 = vmatmul.mubr.bf16.gmra.mrb[0].mxu0 %v530
        %v612 = vpop.f32.mrb[0].mxu0
        %v613 = vadd.f32 0.0, %v612
        %v614 = vpop.f32.mrb[0].mxu0
        %v615 = vpop.f32.mrb[0].mxu0
        %v616 = vadd.f32 0.0, %v615
        %v617 = vpop.f32.mrb[0].mxu0
        %618 = vmatprep.mubr.bf16.mxu0 0
        %619 = vmatmul.mubr.bf16.gmra.mrb[0].mxu0 %v533
        %v620 = vpop.f32.mrb[0].mxu0
        %v621 = vadd.f32 0.0, %v620
        %v622 = vpop.f32.mrb[0].mxu0
        %v623 = vpop.f32.mrb[0].mxu0
        %v624 = vadd.f32 0.0, %v623
        %v625 = vpop.f32.mrb[0].mxu0
        %626 = vdwg.mxu0
        %v627 = vadd.f32 %v438, %v573
        %v628 = vadd.f32 %v441, %v576
        %v629 = vadd.f32 %v446, %v581
        %v630 = vadd.f32 %v449, %v584
        %v631 = vadd.f32 %v454, %v589
        %v632 = vadd.f32 %v457, %v592
        %v633 = vadd.f32 %v462, %v597
        %v634 = vadd.f32 %v465, %v600
        %v635 = vadd.f32 %v470, %v605
        %v636 = vadd.f32 %v473, %v608
        %v637 = vadd.f32 %v478, %v613
        %v638 = vadd.f32 %v481, %v616
        %v639 = vadd.f32 %v486, %v621
        %v640 = vadd.f32 %v489, %v624
        %s641 = sadd.s32 %s146, 1
        %s642 = smul.u32 %s641, 15
        %s643 = smul.addr %s642, 4
        %s644 = scalar_lea.vmem %s138, %s643
        %v645 = vld [vmem:[%s644] sm:$0xf]
        %v646 = vld [vmem:[%s644 + $0x4] sm:$0xf]
        %v647 = vld [vmem:[%s644 + $0x8] sm:$0xf]
        %v648 = vld [vmem:[%s644 + $0xc] sm:$0xf]
        %v649 = vld [vmem:[%s644 + $0x10] sm:$0xf]
        %v650 = vld [vmem:[%s644 + $0x14] sm:$0xf]
        %v651 = vld [vmem:[%s644 + $0x18] sm:$0xf]
        %v652 = vld [vmem:[%s644 + $0x1c] sm:$0xf]
        %v653 = vld [vmem:[%s644 + $0x20] sm:$0xf]
        %v654 = vld [vmem:[%s644 + $0x24] sm:$0xf]
        %v655 = vld [vmem:[%s644 + $0x28] sm:$0xf]
        %v656 = vld [vmem:[%s644 + $0x2c] sm:$0xf]
        %v657 = vld [vmem:[%s644 + $0x30] sm:$0xf]
        %v658 = vld [vmem:[%s644 + $0x34] sm:$0xf]
        %s659 = scalar_lea.vmem %s1, 6
        %v660 = vld [vmem:[%s659] sm:$0x3]
        %v675 = vunpack.c.l.b16 %v645
        %v676 = vunpack.c.l.b16 %v646
        %v677 = vunpack.c.l.b16 %v647
        %v678 = vunpack.c.l.b16 %v648
        %v679 = vunpack.c.l.b16 %v649
        %v680 = vunpack.c.l.b16 %v650
        %v681 = vunpack.c.l.b16 %v651
        %v682 = vunpack.c.l.b16 %v652
        %v683 = vunpack.c.l.b16 %v653
        %v684 = vunpack.c.l.b16 %v654
        %v685 = vunpack.c.l.b16 %v655
        %v686 = vunpack.c.l.b16 %v656
        %v687 = vunpack.c.l.b16 %v657
        %v688 = vunpack.c.l.b16 %v658
        %v689 = vpack.c.b16 %v676, %v675
        %v690 = vpack.c.b16 %v678, %v677
        %v691 = vpack.c.b16 %v680, %v679
        %v692 = vpack.c.b16 %v682, %v681
        %v693 = vpack.c.b16 %v684, %v683
        %v694 = vpack.c.b16 %v686, %v685
        %v695 = vpack.c.b16 %v688, %v687
        %v697 = vsel %vm271, %v689, 0
        %v700 = vsel %vm271, %v690, 0
        %v703 = vsel %vm271, %v691, 0
        %v706 = vsel %vm271, %v692, 0
        %v709 = vsel %vm271, %v693, 0
        %v712 = vsel %vm271, %v694, 0
        %v715 = vsel %vm271, %v695, 0
        %v718 = vsel %vm293, %v660, 0
        %720 = vmatprep.subr.bf16.mxu0 0
        %721 = vmatpush1.bf16.msra.mxu0 %v718
        %722 = vmatprep.subr.bf16.mxu0 0
        %723 = vmatpush1.bf16.msra.mxu0 0
        %724 = vmatprep.subr.bf16.mxu0 0
        %725 = vmatpush1.bf16.msra.mxu0 0
        %726 = vmatprep.subr.bf16.mxu0 0
        %727 = vmatpush1.bf16.msra.mxu0 0
        %728 = vmatprep.subr.bf16.mxu0 0
        %729 = vmatpush1.bf16.msra.mxu0 0
        %730 = vmatprep.subr.bf16.mxu0 0
        %731 = vmatpush1.bf16.msra.mxu0 0
        %732 = vmatprep.subr.bf16.mxu0 0
        %733 = vmatpush1.bf16.msra.mxu0 0
        %734 = vmatprep.subr.bf16.mxu0 0
        %735 = vmatpush1.bf16.msra.mxu0 0
        %736 = vmatprep.subr.bf16.mxu0 0
        %737 = vmatpush1.bf16.msra.mxu0 0
        %738 = vmatprep.subr.bf16.mxu0 0
        %739 = vmatpush1.bf16.msra.mxu0 0
        %740 = vmatprep.subr.bf16.mxu0 0
        %741 = vmatpush1.bf16.msra.mxu0 0
        %742 = vmatprep.subr.bf16.mxu0 0
        %743 = vmatpush1.bf16.msra.mxu0 0
        %744 = vmatprep.subr.bf16.mxu0 0
        %745 = vmatpush1.bf16.msra.mxu0 0
        %746 = vmatprep.subr.bf16.mxu0 0
        %747 = vmatpush1.bf16.msra.mxu0 0
        %748 = vmatprep.subr.bf16.mxu0 0
        %749 = vmatpush1.bf16.msra.mxu0 0
        %750 = vmatprep.subr.bf16.mxu0 0
        %751 = vmatpush1.bf16.msra.mxu0 0
        %752 = vmatprep.mubr.bf16.mxu0 0
        %753 = vmatmul.mubr.bf16.gmra.mrb[0].mxu0 %v697
        %v754 = vpop.f32.mrb[0].mxu0
        %v755 = vadd.f32 0.0, %v754
        %v756 = vpop.f32.mrb[0].mxu0
        %v757 = vpop.f32.mrb[0].mxu0
        %v758 = vadd.f32 0.0, %v757
        %v759 = vpop.f32.mrb[0].mxu0
        %760 = vmatprep.mubr.bf16.mxu0 0
        %761 = vmatmul.mubr.bf16.gmra.mrb[0].mxu0 %v700
        %v762 = vpop.f32.mrb[0].mxu0
        %v763 = vadd.f32 0.0, %v762
        %v764 = vpop.f32.mrb[0].mxu0
        %v765 = vpop.f32.mrb[0].mxu0
        %v766 = vadd.f32 0.0, %v765
        %v767 = vpop.f32.mrb[0].mxu0
        %768 = vmatprep.mubr.bf16.mxu0 0
        %769 = vmatmul.mubr.bf16.gmra.mrb[0].mxu0 %v703
        %v770 = vpop.f32.mrb[0].mxu0
        %v771 = vadd.f32 0.0, %v770
        %v772 = vpop.f32.mrb[0].mxu0
        %v773 = vpop.f32.mrb[0].mxu0
        %v774 = vadd.f32 0.0, %v773
        %v775 = vpop.f32.mrb[0].mxu0
        %776 = vmatprep.mubr.bf16.mxu0 0
        %777 = vmatmul.mubr.bf16.gmra.mrb[0].mxu0 %v706
        %v778 = vpop.f32.mrb[0].mxu0
        %v779 = vadd.f32 0.0, %v778
        %v780 = vpop.f32.mrb[0].mxu0
        %v781 = vpop.f32.mrb[0].mxu0
        %v782 = vadd.f32 0.0, %v781
        %v783 = vpop.f32.mrb[0].mxu0
        %784 = vmatprep.mubr.bf16.mxu0 0
        %785 = vmatmul.mubr.bf16.gmra.mrb[0].mxu0 %v709
        %v786 = vpop.f32.mrb[0].mxu0
        %v787 = vadd.f32 0.0, %v786
        %v788 = vpop.f32.mrb[0].mxu0
        %v789 = vpop.f32.mrb[0].mxu0
        %v790 = vadd.f32 0.0, %v789
        %v791 = vpop.f32.mrb[0].mxu0
        %792 = vmatprep.mubr.bf16.mxu0 0
        %793 = vmatmul.mubr.bf16.gmra.mrb[0].mxu0 %v712
        %v794 = vpop.f32.mrb[0].mxu0
        %v795 = vadd.f32 0.0, %v794
        %v796 = vpop.f32.mrb[0].mxu0
        %v797 = vpop.f32.mrb[0].mxu0
        %v798 = vadd.f32 0.0, %v797
        %v799 = vpop.f32.mrb[0].mxu0
        %800 = vmatprep.mubr.bf16.mxu0 0
        %801 = vmatmul.mubr.bf16.gmra.mrb[0].mxu0 %v715
        %v802 = vpop.f32.mrb[0].mxu0
        %v803 = vadd.f32 0.0, %v802
        %v804 = vpop.f32.mrb[0].mxu0
        %v805 = vpop.f32.mrb[0].mxu0
        %v806 = vadd.f32 0.0, %v805
        %v807 = vpop.f32.mrb[0].mxu0
        %808 = vdwg.mxu0
        %v809 = vadd.f32 %v627, %v755
        %v810 = vadd.f32 %v628, %v758
        %v811 = vadd.f32 %v629, %v763
        %v812 = vadd.f32 %v630, %v766
        %v813 = vadd.f32 %v631, %v771
        %v814 = vadd.f32 %v632, %v774
        %v815 = vadd.f32 %v633, %v779
        %v816 = vadd.f32 %v634, %v782
        %v817 = vadd.f32 %v635, %v787
        %v818 = vadd.f32 %v636, %v790
        %v819 = vadd.f32 %v637, %v795
        %v820 = vadd.f32 %v638, %v798
        %v821 = vadd.f32 %v639, %v803
        %v822 = vadd.f32 %v640, %v806
        %v823 = vld [vmem:[%s644] sm:$0xf]
        %v824 = vld [vmem:[%s644 + $0x4] sm:$0xf]
        %v825 = vld [vmem:[%s644 + $0x8] sm:$0xf]
        %v826 = vld [vmem:[%s644 + $0xc] sm:$0xf]
        %v827 = vld [vmem:[%s644 + $0x10] sm:$0xf]
        %v828 = vld [vmem:[%s644 + $0x14] sm:$0xf]
        %v829 = vld [vmem:[%s644 + $0x18] sm:$0xf]
        %v830 = vld [vmem:[%s644 + $0x1c] sm:$0xf]
        %v831 = vld [vmem:[%s644 + $0x20] sm:$0xf]
        %v832 = vld [vmem:[%s644 + $0x24] sm:$0xf]
        %v833 = vld [vmem:[%s644 + $0x28] sm:$0xf]
        %v834 = vld [vmem:[%s644 + $0x2c] sm:$0xf]
        %v835 = vld [vmem:[%s644 + $0x30] sm:$0xf]
        %v836 = vld [vmem:[%s644 + $0x34] sm:$0xf]
        %v837 = vld [vmem:[%s644 + $0x38] sm:$0x1]
        %s838 = scalar_lea.vmem %s1, 8
        %v839 = vld [vmem:[%s838] sm:$0x3]
        %v855 = vunpack.c.l.b16 %v823
        %v856 = vunpack.c.l.b16 %v824
        %v857 = vunpack.c.l.b16 %v825
        %v858 = vunpack.c.l.b16 %v826
        %v859 = vunpack.c.l.b16 %v827
        %v860 = vunpack.c.l.b16 %v828
        %v861 = vunpack.c.l.b16 %v829
        %v862 = vunpack.c.l.b16 %v830
        %v863 = vunpack.c.l.b16 %v831
        %v864 = vunpack.c.l.b16 %v832
        %v865 = vunpack.c.l.b16 %v833
        %v866 = vunpack.c.l.b16 %v834
        %v867 = vunpack.c.l.b16 %v835
        %v868 = vunpack.c.l.b16 %v836
        %v869 = vunpack.c.l.b16 %v837
        %v870 = vpack.c.b16 %v856, %v855
        %v871 = vpack.c.b16 %v858, %v857
        %v872 = vpack.c.b16 %v860, %v859
        %v873 = vpack.c.b16 %v862, %v861
        %v874 = vpack.c.b16 %v864, %v863
        %v875 = vpack.c.b16 %v866, %v865
        %v876 = vpack.c.b16 %v868, %v867
        %v877 = vpack.c.b16 %v869, %v869
        %v879 = vshrl.u32 %v870, 16
        %v881 = vshll.u32 %v870, 16
        %v883 = vrot.slane %v881, 1
        %v884 = vor.u32 %v879, %v883
        %v886 = vshll.u32 %v871, 16
        %v888 = vrot.slane %v886, 1
        %v889 = vsel %vm210, %v884, %v888
        %v890 = vshrl.u32 %v871, 16
        %v892 = vor.u32 %v890, %v888
        %v894 = vshll.u32 %v872, 16
        %v896 = vrot.slane %v894, 1
        %v897 = vsel %vm210, %v892, %v896
        %v898 = vshrl.u32 %v872, 16
        %v900 = vor.u32 %v898, %v896
        %v902 = vshll.u32 %v873, 16
        %v904 = vrot.slane %v902, 1
        %v905 = vsel %vm210, %v900, %v904
        %v906 = vshrl.u32 %v873, 16
        %v908 = vor.u32 %v906, %v904
        %v910 = vshll.u32 %v874, 16
        %v912 = vrot.slane %v910, 1
        %v913 = vsel %vm210, %v908, %v912
        %v914 = vshrl.u32 %v874, 16
        %v916 = vor.u32 %v914, %v912
        %v918 = vshll.u32 %v875, 16
        %v920 = vrot.slane %v918, 1
        %v921 = vsel %vm210, %v916, %v920
        %v922 = vshrl.u32 %v875, 16
        %v924 = vor.u32 %v922, %v920
        %v926 = vshll.u32 %v876, 16
        %v928 = vrot.slane %v926, 1
        %v929 = vsel %vm210, %v924, %v928
        %v930 = vshrl.u32 %v876, 16
        %v932 = vor.u32 %v930, %v928
        %v934 = vshll.u32 %v877, 16
        %v936 = vrot.slane %v934, 1
        %v937 = vsel %vm210, %v932, %v936
        %v939 = vsel %vm271, %v889, 0
        %v942 = vsel %vm271, %v897, 0
        %v945 = vsel %vm271, %v905, 0
        %v948 = vsel %vm271, %v913, 0
        %v951 = vsel %vm271, %v921, 0
        %v954 = vsel %vm271, %v929, 0
        %v957 = vsel %vm271, %v937, 0
        %v960 = vsel %vm293, %v839, 0
        %962 = vmatprep.subr.bf16.mxu0 0
        %963 = vmatpush1.bf16.msra.mxu0 %v960
        %964 = vmatprep.subr.bf16.mxu0 0
        %965 = vmatpush1.bf16.msra.mxu0 0
        %966 = vmatprep.subr.bf16.mxu0 0
        %967 = vmatpush1.bf16.msra.mxu0 0
        %968 = vmatprep.subr.bf16.mxu0 0
        %969 = vmatpush1.bf16.msra.mxu0 0
        %970 = vmatprep.subr.bf16.mxu0 0
        %971 = vmatpush1.bf16.msra.mxu0 0
        %972 = vmatprep.subr.bf16.mxu0 0
        %973 = vmatpush1.bf16.msra.mxu0 0
        %974 = vmatprep.subr.bf16.mxu0 0
        %975 = vmatpush1.bf16.msra.mxu0 0
        %976 = vmatprep.subr.bf16.mxu0 0
        %977 = vmatpush1.bf16.msra.mxu0 0
        %978 = vmatprep.subr.bf16.mxu0 0
        %979 = vmatpush1.bf16.msra.mxu0 0
        %980 = vmatprep.subr.bf16.mxu0 0
        %981 = vmatpush1.bf16.msra.mxu0 0
        %982 = vmatprep.subr.bf16.mxu0 0
        %983 = vmatpush1.bf16.msra.mxu0 0
        %984 = vmatprep.subr.bf16.mxu0 0
        %985 = vmatpush1.bf16.msra.mxu0 0
        %986 = vmatprep.subr.bf16.mxu0 0
        %987 = vmatpush1.bf16.msra.mxu0 0
        %988 = vmatprep.subr.bf16.mxu0 0
        %989 = vmatpush1.bf16.msra.mxu0 0
        %990 = vmatprep.subr.bf16.mxu0 0
        %991 = vmatpush1.bf16.msra.mxu0 0
        %992 = vmatprep.subr.bf16.mxu0 0
        %993 = vmatpush1.bf16.msra.mxu0 0
        %994 = vmatprep.mubr.bf16.mxu0 0
        %995 = vmatmul.mubr.bf16.gmra.mrb[0].mxu0 %v939
        %v996 = vpop.f32.mrb[0].mxu0
        %v997 = vadd.f32 0.0, %v996
        %v998 = vpop.f32.mrb[0].mxu0
        %v999 = vpop.f32.mrb[0].mxu0
        %v1000 = vadd.f32 0.0, %v999
        %v1001 = vpop.f32.mrb[0].mxu0
        %1002 = vmatprep.mubr.bf16.mxu0 0
        %1003 = vmatmul.mubr.bf16.gmra.mrb[0].mxu0 %v942
        %v1004 = vpop.f32.mrb[0].mxu0
        %v1005 = vadd.f32 0.0, %v1004
        %v1006 = vpop.f32.mrb[0].mxu0
        %v1007 = vpop.f32.mrb[0].mxu0
        %v1008 = vadd.f32 0.0, %v1007
        %v1009 = vpop.f32.mrb[0].mxu0
        %1010 = vmatprep.mubr.bf16.mxu0 0
        %1011 = vmatmul.mubr.bf16.gmra.mrb[0].mxu0 %v945
        %v1012 = vpop.f32.mrb[0].mxu0
        %v1013 = vadd.f32 0.0, %v1012
        %v1014 = vpop.f32.mrb[0].mxu0
        %v1015 = vpop.f32.mrb[0].mxu0
        %v1016 = vadd.f32 0.0, %v1015
        %v1017 = vpop.f32.mrb[0].mxu0
        %1018 = vmatprep.mubr.bf16.mxu0 0
        %1019 = vmatmul.mubr.bf16.gmra.mrb[0].mxu0 %v948
        %v1020 = vpop.f32.mrb[0].mxu0
        %v1021 = vadd.f32 0.0, %v1020
        %v1022 = vpop.f32.mrb[0].mxu0
        %v1023 = vpop.f32.mrb[0].mxu0
        %v1024 = vadd.f32 0.0, %v1023
        %v1025 = vpop.f32.mrb[0].mxu0
        %1026 = vmatprep.mubr.bf16.mxu0 0
        %1027 = vmatmul.mubr.bf16.gmra.mrb[0].mxu0 %v951
        %v1028 = vpop.f32.mrb[0].mxu0
        %v1029 = vadd.f32 0.0, %v1028
        %v1030 = vpop.f32.mrb[0].mxu0
        %v1031 = vpop.f32.mrb[0].mxu0
        %v1032 = vadd.f32 0.0, %v1031
        %v1033 = vpop.f32.mrb[0].mxu0
        %1034 = vmatprep.mubr.bf16.mxu0 0
        %1035 = vmatmul.mubr.bf16.gmra.mrb[0].mxu0 %v954
        %v1036 = vpop.f32.mrb[0].mxu0
        %v1037 = vadd.f32 0.0, %v1036
        %v1038 = vpop.f32.mrb[0].mxu0
        %v1039 = vpop.f32.mrb[0].mxu0
        %v1040 = vadd.f32 0.0, %v1039
        %v1041 = vpop.f32.mrb[0].mxu0
        %1042 = vmatprep.mubr.bf16.mxu0 0
        %1043 = vmatmul.mubr.bf16.gmra.mrb[0].mxu0 %v957
        %v1044 = vpop.f32.mrb[0].mxu0
        %v1045 = vadd.f32 0.0, %v1044
        %v1046 = vpop.f32.mrb[0].mxu0
        %v1047 = vpop.f32.mrb[0].mxu0
        %v1048 = vadd.f32 0.0, %v1047
        %v1049 = vpop.f32.mrb[0].mxu0
        %1050 = vdwg.mxu0
        %v1051 = vadd.f32 %v809, %v997
        %v1052 = vadd.f32 %v810, %v1000
        %v1053 = vadd.f32 %v811, %v1005
        %v1054 = vadd.f32 %v812, %v1008
        %v1055 = vadd.f32 %v813, %v1013
        %v1056 = vadd.f32 %v814, %v1016
        %v1057 = vadd.f32 %v815, %v1021
        %v1058 = vadd.f32 %v816, %v1024
        %v1059 = vadd.f32 %v817, %v1029
        %v1060 = vadd.f32 %v818, %v1032
        %v1061 = vadd.f32 %v819, %v1037
        %v1062 = vadd.f32 %v820, %v1040
        %v1063 = vadd.f32 %v821, %v1045
        %v1064 = vadd.f32 %v822, %v1048
        %v1065 = vld [vmem:[%s644] sm:$0xe]
        %s1066 = scalar_lea.vmem %s1, 10
        %v1067 = vld [vmem:[%s1066] sm:$0x3]
        %v1069 = vunpack.c.l.b16 %v1065
        %v1070 = vpack.c.b16 %v856, %v1069
        %v1071 = vrot.slane %v1070, 1
        %v1072 = vrot.slane %v871, 1
        %v1073 = vsel %vm498, %v1071, %v1072
        %v1074 = vrot.slane %v872, 1
        %v1075 = vsel %vm498, %v1072, %v1074
        %v1076 = vrot.slane %v873, 1
        %v1077 = vsel %vm498, %v1074, %v1076
        %v1078 = vrot.slane %v874, 1
        %v1079 = vsel %vm498, %v1076, %v1078
        %v1080 = vrot.slane %v875, 1
        %v1081 = vsel %vm498, %v1078, %v1080
        %v1082 = vrot.slane %v876, 1
        %v1083 = vsel %vm498, %v1080, %v1082
        %v1084 = vrot.slane %v877, 1
        %v1085 = vsel %vm498, %v1082, %v1084
        %v1087 = vsel %vm271, %v1073, 0
        %v1090 = vsel %vm271, %v1075, 0
        %v1093 = vsel %vm271, %v1077, 0
        %v1096 = vsel %vm271, %v1079, 0
        %v1099 = vsel %vm271, %v1081, 0
        %v1102 = vsel %vm271, %v1083, 0
        %v1105 = vsel %vm271, %v1085, 0
        %v1108 = vsel %vm293, %v1067, 0
        %1110 = vmatprep.subr.bf16.mxu0 0
        %1111 = vmatpush1.bf16.msra.mxu0 %v1108
        %1112 = vmatprep.subr.bf16.mxu0 0
        %1113 = vmatpush1.bf16.msra.mxu0 0
        %1114 = vmatprep.subr.bf16.mxu0 0
        %1115 = vmatpush1.bf16.msra.mxu0 0
        %1116 = vmatprep.subr.bf16.mxu0 0
        %1117 = vmatpush1.bf16.msra.mxu0 0
        %1118 = vmatprep.subr.bf16.mxu0 0
        %1119 = vmatpush1.bf16.msra.mxu0 0
        %1120 = vmatprep.subr.bf16.mxu0 0
        %1121 = vmatpush1.bf16.msra.mxu0 0
        %1122 = vmatprep.subr.bf16.mxu0 0
        %1123 = vmatpush1.bf16.msra.mxu0 0
        %1124 = vmatprep.subr.bf16.mxu0 0
        %1125 = vmatpush1.bf16.msra.mxu0 0
        %1126 = vmatprep.subr.bf16.mxu0 0
        %1127 = vmatpush1.bf16.msra.mxu0 0
        %1128 = vmatprep.subr.bf16.mxu0 0
        %1129 = vmatpush1.bf16.msra.mxu0 0
        %1130 = vmatprep.subr.bf16.mxu0 0
        %1131 = vmatpush1.bf16.msra.mxu0 0
        %1132 = vmatprep.subr.bf16.mxu0 0
        %1133 = vmatpush1.bf16.msra.mxu0 0
        %1134 = vmatprep.subr.bf16.mxu0 0
        %1135 = vmatpush1.bf16.msra.mxu0 0
        %1136 = vmatprep.subr.bf16.mxu0 0
        %1137 = vmatpush1.bf16.msra.mxu0 0
        %1138 = vmatprep.subr.bf16.mxu0 0
        %1139 = vmatpush1.bf16.msra.mxu0 0
        %1140 = vmatprep.subr.bf16.mxu0 0
        %1141 = vmatpush1.bf16.msra.mxu0 0
        %1142 = vmatprep.mubr.bf16.mxu0 0
        %1143 = vmatmul.mubr.bf16.gmra.mrb[0].mxu0 %v1087
        %v1144 = vpop.f32.mrb[0].mxu0
        %v1145 = vadd.f32 0.0, %v1144
        %v1146 = vpop.f32.mrb[0].mxu0
        %v1147 = vpop.f32.mrb[0].mxu0
        %v1148 = vadd.f32 0.0, %v1147
        %v1149 = vpop.f32.mrb[0].mxu0
        %1150 = vmatprep.mubr.bf16.mxu0 0
        %1151 = vmatmul.mubr.bf16.gmra.mrb[0].mxu0 %v1090
        %v1152 = vpop.f32.mrb[0].mxu0
        %v1153 = vadd.f32 0.0, %v1152
        %v1154 = vpop.f32.mrb[0].mxu0
        %v1155 = vpop.f32.mrb[0].mxu0
        %v1156 = vadd.f32 0.0, %v1155
        %v1157 = vpop.f32.mrb[0].mxu0
        %1158 = vmatprep.mubr.bf16.mxu0 0
        %1159 = vmatmul.mubr.bf16.gmra.mrb[0].mxu0 %v1093
        %v1160 = vpop.f32.mrb[0].mxu0
        %v1161 = vadd.f32 0.0, %v1160
        %v1162 = vpop.f32.mrb[0].mxu0
        %v1163 = vpop.f32.mrb[0].mxu0
        %v1164 = vadd.f32 0.0, %v1163
        %v1165 = vpop.f32.mrb[0].mxu0
        %1166 = vmatprep.mubr.bf16.mxu0 0
        %1167 = vmatmul.mubr.bf16.gmra.mrb[0].mxu0 %v1096
        %v1168 = vpop.f32.mrb[0].mxu0
        %v1169 = vadd.f32 0.0, %v1168
        %v1170 = vpop.f32.mrb[0].mxu0
        %v1171 = vpop.f32.mrb[0].mxu0
        %v1172 = vadd.f32 0.0, %v1171
        %v1173 = vpop.f32.mrb[0].mxu0
        %1174 = vmatprep.mubr.bf16.mxu0 0
        %1175 = vmatmul.mubr.bf16.gmra.mrb[0].mxu0 %v1099
        %v1176 = vpop.f32.mrb[0].mxu0
        %v1177 = vadd.f32 0.0, %v1176
        %v1178 = vpop.f32.mrb[0].mxu0
        %v1179 = vpop.f32.mrb[0].mxu0
        %v1180 = vadd.f32 0.0, %v1179
        %v1181 = vpop.f32.mrb[0].mxu0
        %1182 = vmatprep.mubr.bf16.mxu0 0
        %1183 = vmatmul.mubr.bf16.gmra.mrb[0].mxu0 %v1102
        %v1184 = vpop.f32.mrb[0].mxu0
        %v1185 = vadd.f32 0.0, %v1184
        %v1186 = vpop.f32.mrb[0].mxu0
        %v1187 = vpop.f32.mrb[0].mxu0
        %v1188 = vadd.f32 0.0, %v1187
        %v1189 = vpop.f32.mrb[0].mxu0
        %1190 = vmatprep.mubr.bf16.mxu0 0
        %1191 = vmatmul.mubr.bf16.gmra.mrb[0].mxu0 %v1105
        %v1192 = vpop.f32.mrb[0].mxu0
        %v1193 = vadd.f32 0.0, %v1192
        %v1194 = vpop.f32.mrb[0].mxu0
        %v1195 = vpop.f32.mrb[0].mxu0
        %v1196 = vadd.f32 0.0, %v1195
        %v1197 = vpop.f32.mrb[0].mxu0
        %1198 = vdwg.mxu0
        %v1199 = vadd.f32 %v1051, %v1145
        %v1200 = vadd.f32 %v1052, %v1148
        %v1201 = vadd.f32 %v1053, %v1153
        %v1202 = vadd.f32 %v1054, %v1156
        %v1203 = vadd.f32 %v1055, %v1161
        %v1204 = vadd.f32 %v1056, %v1164
        %v1205 = vadd.f32 %v1057, %v1169
        %v1206 = vadd.f32 %v1058, %v1172
        %v1207 = vadd.f32 %v1059, %v1177
        %v1208 = vadd.f32 %v1060, %v1180
        %v1209 = vadd.f32 %v1061, %v1185
        %v1210 = vadd.f32 %v1062, %v1188
        %v1211 = vadd.f32 %v1063, %v1193
        %v1212 = vadd.f32 %v1064, %v1196
        %s1213 = sadd.s32 %s146, 2
        %s1214 = smul.u32 %s1213, 15
        %s1215 = smul.addr %s1214, 4
        %s1216 = scalar_lea.vmem %s138, %s1215
        %v1217 = vld [vmem:[%s1216] sm:$0xf]
        %v1218 = vld [vmem:[%s1216 + $0x4] sm:$0xf]
        %v1219 = vld [vmem:[%s1216 + $0x8] sm:$0xf]
        %v1220 = vld [vmem:[%s1216 + $0xc] sm:$0xf]
        %v1221 = vld [vmem:[%s1216 + $0x10] sm:$0xf]
        %v1222 = vld [vmem:[%s1216 + $0x14] sm:$0xf]
        %v1223 = vld [vmem:[%s1216 + $0x18] sm:$0xf]
        %v1224 = vld [vmem:[%s1216 + $0x1c] sm:$0xf]
        %v1225 = vld [vmem:[%s1216 + $0x20] sm:$0xf]
        %v1226 = vld [vmem:[%s1216 + $0x24] sm:$0xf]
        %v1227 = vld [vmem:[%s1216 + $0x28] sm:$0xf]
        %v1228 = vld [vmem:[%s1216 + $0x2c] sm:$0xf]
        %v1229 = vld [vmem:[%s1216 + $0x30] sm:$0xf]
        %v1230 = vld [vmem:[%s1216 + $0x34] sm:$0xf]
        %s1231 = scalar_lea.vmem %s1, 12
        %v1232 = vld [vmem:[%s1231] sm:$0x3]
        %v1247 = vunpack.c.l.b16 %v1217
        %v1248 = vunpack.c.l.b16 %v1218
        %v1249 = vunpack.c.l.b16 %v1219
        %v1250 = vunpack.c.l.b16 %v1220
        %v1251 = vunpack.c.l.b16 %v1221
        %v1252 = vunpack.c.l.b16 %v1222
        %v1253 = vunpack.c.l.b16 %v1223
        %v1254 = vunpack.c.l.b16 %v1224
        %v1255 = vunpack.c.l.b16 %v1225
        %v1256 = vunpack.c.l.b16 %v1226
        %v1257 = vunpack.c.l.b16 %v1227
        %v1258 = vunpack.c.l.b16 %v1228
        %v1259 = vunpack.c.l.b16 %v1229
        %v1260 = vunpack.c.l.b16 %v1230
        %v1261 = vpack.c.b16 %v1248, %v1247
        %v1262 = vpack.c.b16 %v1250, %v1249
        %v1263 = vpack.c.b16 %v1252, %v1251
        %v1264 = vpack.c.b16 %v1254, %v1253
        %v1265 = vpack.c.b16 %v1256, %v1255
        %v1266 = vpack.c.b16 %v1258, %v1257
        %v1267 = vpack.c.b16 %v1260, %v1259
        %v1269 = vsel %vm271, %v1261, 0
        %v1272 = vsel %vm271, %v1262, 0
        %v1275 = vsel %vm271, %v1263, 0
        %v1278 = vsel %vm271, %v1264, 0
        %v1281 = vsel %vm271, %v1265, 0
        %v1284 = vsel %vm271, %v1266, 0
        %v1287 = vsel %vm271, %v1267, 0
        %v1290 = vsel %vm293, %v1232, 0
        %1292 = vmatprep.subr.bf16.mxu0 0
        %1293 = vmatpush1.bf16.msra.mxu0 %v1290
        %1294 = vmatprep.subr.bf16.mxu0 0
        %1295 = vmatpush1.bf16.msra.mxu0 0
        %1296 = vmatprep.subr.bf16.mxu0 0
        %1297 = vmatpush1.bf16.msra.mxu0 0
        %1298 = vmatprep.subr.bf16.mxu0 0
        %1299 = vmatpush1.bf16.msra.mxu0 0
        %1300 = vmatprep.subr.bf16.mxu0 0
        %1301 = vmatpush1.bf16.msra.mxu0 0
        %1302 = vmatprep.subr.bf16.mxu0 0
        %1303 = vmatpush1.bf16.msra.mxu0 0
        %1304 = vmatprep.subr.bf16.mxu0 0
        %1305 = vmatpush1.bf16.msra.mxu0 0
        %1306 = vmatprep.subr.bf16.mxu0 0
        %1307 = vmatpush1.bf16.msra.mxu0 0
        %1308 = vmatprep.subr.bf16.mxu0 0
        %1309 = vmatpush1.bf16.msra.mxu0 0
        %1310 = vmatprep.subr.bf16.mxu0 0
        %1311 = vmatpush1.bf16.msra.mxu0 0
        %1312 = vmatprep.subr.bf16.mxu0 0
        %1313 = vmatpush1.bf16.msra.mxu0 0
        %1314 = vmatprep.subr.bf16.mxu0 0
        %1315 = vmatpush1.bf16.msra.mxu0 0
        %1316 = vmatprep.subr.bf16.mxu0 0
        %1317 = vmatpush1.bf16.msra.mxu0 0
        %1318 = vmatprep.subr.bf16.mxu0 0
        %1319 = vmatpush1.bf16.msra.mxu0 0
        %1320 = vmatprep.subr.bf16.mxu0 0
        %1321 = vmatpush1.bf16.msra.mxu0 0
        %1322 = vmatprep.subr.bf16.mxu0 0
        %1323 = vmatpush1.bf16.msra.mxu0 0
        %1324 = vmatprep.mubr.bf16.mxu0 0
        %1325 = vmatmul.mubr.bf16.gmra.mrb[0].mxu0 %v1269
        %v1326 = vpop.f32.mrb[0].mxu0
        %v1327 = vadd.f32 0.0, %v1326
        %v1328 = vpop.f32.mrb[0].mxu0
        %v1329 = vpop.f32.mrb[0].mxu0
        %v1330 = vadd.f32 0.0, %v1329
        %v1331 = vpop.f32.mrb[0].mxu0
        %1332 = vmatprep.mubr.bf16.mxu0 0
        %1333 = vmatmul.mubr.bf16.gmra.mrb[0].mxu0 %v1272
        %v1334 = vpop.f32.mrb[0].mxu0
        %v1335 = vadd.f32 0.0, %v1334
        %v1336 = vpop.f32.mrb[0].mxu0
        %v1337 = vpop.f32.mrb[0].mxu0
        %v1338 = vadd.f32 0.0, %v1337
        %v1339 = vpop.f32.mrb[0].mxu0
        %1340 = vmatprep.mubr.bf16.mxu0 0
        %1341 = vmatmul.mubr.bf16.gmra.mrb[0].mxu0 %v1275
        %v1342 = vpop.f32.mrb[0].mxu0
        %v1343 = vadd.f32 0.0, %v1342
        %v1344 = vpop.f32.mrb[0].mxu0
        %v1345 = vpop.f32.mrb[0].mxu0
        %v1346 = vadd.f32 0.0, %v1345
        %v1347 = vpop.f32.mrb[0].mxu0
        %1348 = vmatprep.mubr.bf16.mxu0 0
        %1349 = vmatmul.mubr.bf16.gmra.mrb[0].mxu0 %v1278
        %v1350 = vpop.f32.mrb[0].mxu0
        %v1351 = vadd.f32 0.0, %v1350
        %v1352 = vpop.f32.mrb[0].mxu0
        %v1353 = vpop.f32.mrb[0].mxu0
        %v1354 = vadd.f32 0.0, %v1353
        %v1355 = vpop.f32.mrb[0].mxu0
        %1356 = vmatprep.mubr.bf16.mxu0 0
        %1357 = vmatmul.mubr.bf16.gmra.mrb[0].mxu0 %v1281
        %v1358 = vpop.f32.mrb[0].mxu0
        %v1359 = vadd.f32 0.0, %v1358
        %v1360 = vpop.f32.mrb[0].mxu0
        %v1361 = vpop.f32.mrb[0].mxu0
        %v1362 = vadd.f32 0.0, %v1361
        %v1363 = vpop.f32.mrb[0].mxu0
        %1364 = vmatprep.mubr.bf16.mxu0 0
        %1365 = vmatmul.mubr.bf16.gmra.mrb[0].mxu0 %v1284
        %v1366 = vpop.f32.mrb[0].mxu0
        %v1367 = vadd.f32 0.0, %v1366
        %v1368 = vpop.f32.mrb[0].mxu0
        %v1369 = vpop.f32.mrb[0].mxu0
        %v1370 = vadd.f32 0.0, %v1369
        %v1371 = vpop.f32.mrb[0].mxu0
        %1372 = vmatprep.mubr.bf16.mxu0 0
        %1373 = vmatmul.mubr.bf16.gmra.mrb[0].mxu0 %v1287
        %v1374 = vpop.f32.mrb[0].mxu0
        %v1375 = vadd.f32 0.0, %v1374
        %v1376 = vpop.f32.mrb[0].mxu0
        %v1377 = vpop.f32.mrb[0].mxu0
        %v1378 = vadd.f32 0.0, %v1377
        %v1379 = vpop.f32.mrb[0].mxu0
        %1380 = vdwg.mxu0
        %v1381 = vadd.f32 %v1199, %v1327
        %v1382 = vadd.f32 %v1200, %v1330
        %v1383 = vadd.f32 %v1201, %v1335
        %v1384 = vadd.f32 %v1202, %v1338
        %v1385 = vadd.f32 %v1203, %v1343
        %v1386 = vadd.f32 %v1204, %v1346
        %v1387 = vadd.f32 %v1205, %v1351
        %v1388 = vadd.f32 %v1206, %v1354
        %v1389 = vadd.f32 %v1207, %v1359
        %v1390 = vadd.f32 %v1208, %v1362
        %v1391 = vadd.f32 %v1209, %v1367
        %v1392 = vadd.f32 %v1210, %v1370
        %v1393 = vadd.f32 %v1211, %v1375
        %v1394 = vadd.f32 %v1212, %v1378
        %v1395 = vld [vmem:[%s1216] sm:$0xf]
        %v1396 = vld [vmem:[%s1216 + $0x4] sm:$0xf]
        %v1397 = vld [vmem:[%s1216 + $0x8] sm:$0xf]
        %v1398 = vld [vmem:[%s1216 + $0xc] sm:$0xf]
        %v1399 = vld [vmem:[%s1216 + $0x10] sm:$0xf]
        %v1400 = vld [vmem:[%s1216 + $0x14] sm:$0xf]
        %v1401 = vld [vmem:[%s1216 + $0x18] sm:$0xf]
        %v1402 = vld [vmem:[%s1216 + $0x1c] sm:$0xf]
        %v1403 = vld [vmem:[%s1216 + $0x20] sm:$0xf]
        %v1404 = vld [vmem:[%s1216 + $0x24] sm:$0xf]
        %v1405 = vld [vmem:[%s1216 + $0x28] sm:$0xf]
        %v1406 = vld [vmem:[%s1216 + $0x2c] sm:$0xf]
        %v1407 = vld [vmem:[%s1216 + $0x30] sm:$0xf]
        %v1408 = vld [vmem:[%s1216 + $0x34] sm:$0xf]
        %v1409 = vld [vmem:[%s1216 + $0x38] sm:$0x1]
        %s1410 = scalar_lea.vmem %s1, 14
        %v1411 = vld [vmem:[%s1410] sm:$0x3]
        %v1427 = vunpack.c.l.b16 %v1395
        %v1428 = vunpack.c.l.b16 %v1396
        %v1429 = vunpack.c.l.b16 %v1397
        %v1430 = vunpack.c.l.b16 %v1398
        %v1431 = vunpack.c.l.b16 %v1399
        %v1432 = vunpack.c.l.b16 %v1400
        %v1433 = vunpack.c.l.b16 %v1401
        %v1434 = vunpack.c.l.b16 %v1402
        %v1435 = vunpack.c.l.b16 %v1403
        %v1436 = vunpack.c.l.b16 %v1404
        %v1437 = vunpack.c.l.b16 %v1405
        %v1438 = vunpack.c.l.b16 %v1406
        %v1439 = vunpack.c.l.b16 %v1407
        %v1440 = vunpack.c.l.b16 %v1408
        %v1441 = vunpack.c.l.b16 %v1409
        %v1442 = vpack.c.b16 %v1428, %v1427
        %v1443 = vpack.c.b16 %v1430, %v1429
        %v1444 = vpack.c.b16 %v1432, %v1431
        %v1445 = vpack.c.b16 %v1434, %v1433
        %v1446 = vpack.c.b16 %v1436, %v1435
        %v1447 = vpack.c.b16 %v1438, %v1437
        %v1448 = vpack.c.b16 %v1440, %v1439
        %v1449 = vpack.c.b16 %v1441, %v1441
        %v1451 = vshrl.u32 %v1442, 16
        %v1453 = vshll.u32 %v1442, 16
        %v1455 = vrot.slane %v1453, 1
        %v1456 = vor.u32 %v1451, %v1455
        %v1458 = vshll.u32 %v1443, 16
        %v1460 = vrot.slane %v1458, 1
        %v1461 = vsel %vm210, %v1456, %v1460
        %v1462 = vshrl.u32 %v1443, 16
        %v1464 = vor.u32 %v1462, %v1460
        %v1466 = vshll.u32 %v1444, 16
        %v1468 = vrot.slane %v1466, 1
        %v1469 = vsel %vm210, %v1464, %v1468
        %v1470 = vshrl.u32 %v1444, 16
        %v1472 = vor.u32 %v1470, %v1468
        %v1474 = vshll.u32 %v1445, 16
        %v1476 = vrot.slane %v1474, 1
        %v1477 = vsel %vm210, %v1472, %v1476
        %v1478 = vshrl.u32 %v1445, 16
        %v1480 = vor.u32 %v1478, %v1476
        %v1482 = vshll.u32 %v1446, 16
        %v1484 = vrot.slane %v1482, 1
        %v1485 = vsel %vm210, %v1480, %v1484
        %v1486 = vshrl.u32 %v1446, 16
        %v1488 = vor.u32 %v1486, %v1484
        %v1490 = vshll.u32 %v1447, 16
        %v1492 = vrot.slane %v1490, 1
        %v1493 = vsel %vm210, %v1488, %v1492
        %v1494 = vshrl.u32 %v1447, 16
        %v1496 = vor.u32 %v1494, %v1492
        %v1498 = vshll.u32 %v1448, 16
        %v1500 = vrot.slane %v1498, 1
        %v1501 = vsel %vm210, %v1496, %v1500
        %v1502 = vshrl.u32 %v1448, 16
        %v1504 = vor.u32 %v1502, %v1500
        %v1506 = vshll.u32 %v1449, 16
        %v1508 = vrot.slane %v1506, 1
        %v1509 = vsel %vm210, %v1504, %v1508
        %v1511 = vsel %vm271, %v1461, 0
        %v1514 = vsel %vm271, %v1469, 0
        %v1517 = vsel %vm271, %v1477, 0
        %v1520 = vsel %vm271, %v1485, 0
        %v1523 = vsel %vm271, %v1493, 0
        %v1526 = vsel %vm271, %v1501, 0
        %v1529 = vsel %vm271, %v1509, 0
        %v1532 = vsel %vm293, %v1411, 0
        %1534 = vmatprep.subr.bf16.mxu0 0
        %1535 = vmatpush1.bf16.msra.mxu0 %v1532
        %1536 = vmatprep.subr.bf16.mxu0 0
        %1537 = vmatpush1.bf16.msra.mxu0 0
        %1538 = vmatprep.subr.bf16.mxu0 0
        %1539 = vmatpush1.bf16.msra.mxu0 0
        %1540 = vmatprep.subr.bf16.mxu0 0
        %1541 = vmatpush1.bf16.msra.mxu0 0
        %1542 = vmatprep.subr.bf16.mxu0 0
        %1543 = vmatpush1.bf16.msra.mxu0 0
        %1544 = vmatprep.subr.bf16.mxu0 0
        %1545 = vmatpush1.bf16.msra.mxu0 0
        %1546 = vmatprep.subr.bf16.mxu0 0
        %1547 = vmatpush1.bf16.msra.mxu0 0
        %1548 = vmatprep.subr.bf16.mxu0 0
        %1549 = vmatpush1.bf16.msra.mxu0 0
        %1550 = vmatprep.subr.bf16.mxu0 0
        %1551 = vmatpush1.bf16.msra.mxu0 0
        %1552 = vmatprep.subr.bf16.mxu0 0
        %1553 = vmatpush1.bf16.msra.mxu0 0
        %1554 = vmatprep.subr.bf16.mxu0 0
        %1555 = vmatpush1.bf16.msra.mxu0 0
        %1556 = vmatprep.subr.bf16.mxu0 0
        %1557 = vmatpush1.bf16.msra.mxu0 0
        %1558 = vmatprep.subr.bf16.mxu0 0
        %1559 = vmatpush1.bf16.msra.mxu0 0
        %1560 = vmatprep.subr.bf16.mxu0 0
        %1561 = vmatpush1.bf16.msra.mxu0 0
        %1562 = vmatprep.subr.bf16.mxu0 0
        %1563 = vmatpush1.bf16.msra.mxu0 0
        %1564 = vmatprep.subr.bf16.mxu0 0
        %1565 = vmatpush1.bf16.msra.mxu0 0
        %1566 = vmatprep.mubr.bf16.mxu0 0
        %1567 = vmatmul.mubr.bf16.gmra.mrb[0].mxu0 %v1511
        %v1568 = vpop.f32.mrb[0].mxu0
        %v1569 = vadd.f32 0.0, %v1568
        %v1570 = vpop.f32.mrb[0].mxu0
        %v1571 = vpop.f32.mrb[0].mxu0
        %v1572 = vadd.f32 0.0, %v1571
        %v1573 = vpop.f32.mrb[0].mxu0
        %1574 = vmatprep.mubr.bf16.mxu0 0
        %1575 = vmatmul.mubr.bf16.gmra.mrb[0].mxu0 %v1514
        %v1576 = vpop.f32.mrb[0].mxu0
        %v1577 = vadd.f32 0.0, %v1576
        %v1578 = vpop.f32.mrb[0].mxu0
        %v1579 = vpop.f32.mrb[0].mxu0
        %v1580 = vadd.f32 0.0, %v1579
        %v1581 = vpop.f32.mrb[0].mxu0
        %1582 = vmatprep.mubr.bf16.mxu0 0
        %1583 = vmatmul.mubr.bf16.gmra.mrb[0].mxu0 %v1517
        %v1584 = vpop.f32.mrb[0].mxu0
        %v1585 = vadd.f32 0.0, %v1584
        %v1586 = vpop.f32.mrb[0].mxu0
        %v1587 = vpop.f32.mrb[0].mxu0
        %v1588 = vadd.f32 0.0, %v1587
        %v1589 = vpop.f32.mrb[0].mxu0
        %1590 = vmatprep.mubr.bf16.mxu0 0
        %1591 = vmatmul.mubr.bf16.gmra.mrb[0].mxu0 %v1520
        %v1592 = vpop.f32.mrb[0].mxu0
        %v1593 = vadd.f32 0.0, %v1592
        %v1594 = vpop.f32.mrb[0].mxu0
        %v1595 = vpop.f32.mrb[0].mxu0
        %v1596 = vadd.f32 0.0, %v1595
        %v1597 = vpop.f32.mrb[0].mxu0
        %1598 = vmatprep.mubr.bf16.mxu0 0
        %1599 = vmatmul.mubr.bf16.gmra.mrb[0].mxu0 %v1523
        %v1600 = vpop.f32.mrb[0].mxu0
        %v1601 = vadd.f32 0.0, %v1600
        %v1602 = vpop.f32.mrb[0].mxu0
        %v1603 = vpop.f32.mrb[0].mxu0
        %v1604 = vadd.f32 0.0, %v1603
        %v1605 = vpop.f32.mrb[0].mxu0
        %1606 = vmatprep.mubr.bf16.mxu0 0
        %1607 = vmatmul.mubr.bf16.gmra.mrb[0].mxu0 %v1526
        %v1608 = vpop.f32.mrb[0].mxu0
        %v1609 = vadd.f32 0.0, %v1608
        %v1610 = vpop.f32.mrb[0].mxu0
        %v1611 = vpop.f32.mrb[0].mxu0
        %v1612 = vadd.f32 0.0, %v1611
        %v1613 = vpop.f32.mrb[0].mxu0
        %1614 = vmatprep.mubr.bf16.mxu0 0
        %1615 = vmatmul.mubr.bf16.gmra.mrb[0].mxu0 %v1529
        %v1616 = vpop.f32.mrb[0].mxu0
        %v1617 = vadd.f32 0.0, %v1616
        %v1618 = vpop.f32.mrb[0].mxu0
        %v1619 = vpop.f32.mrb[0].mxu0
        %v1620 = vadd.f32 0.0, %v1619
        %v1621 = vpop.f32.mrb[0].mxu0
        %1622 = vdwg.mxu0
        %v1623 = vadd.f32 %v1381, %v1569
        %v1624 = vadd.f32 %v1382, %v1572
        %v1625 = vadd.f32 %v1383, %v1577
        %v1626 = vadd.f32 %v1384, %v1580
        %v1627 = vadd.f32 %v1385, %v1585
        %v1628 = vadd.f32 %v1386, %v1588
        %v1629 = vadd.f32 %v1387, %v1593
        %v1630 = vadd.f32 %v1388, %v1596
        %v1631 = vadd.f32 %v1389, %v1601
        %v1632 = vadd.f32 %v1390, %v1604
        %v1633 = vadd.f32 %v1391, %v1609
        %v1634 = vadd.f32 %v1392, %v1612
        %v1635 = vadd.f32 %v1393, %v1617
        %v1636 = vadd.f32 %v1394, %v1620
        %v1637 = vld [vmem:[%s1216] sm:$0xe]
        %s1638 = scalar_lea.vmem %s1, 16
        %v1639 = vld [vmem:[%s1638] sm:$0x3]
        %v1641 = vunpack.c.l.b16 %v1637
        %v1642 = vpack.c.b16 %v1428, %v1641
        %v1643 = vrot.slane %v1642, 1
        %v1644 = vrot.slane %v1443, 1
        %v1645 = vsel %vm498, %v1643, %v1644
        %v1646 = vrot.slane %v1444, 1
        %v1647 = vsel %vm498, %v1644, %v1646
        %v1648 = vrot.slane %v1445, 1
        %v1649 = vsel %vm498, %v1646, %v1648
        %v1650 = vrot.slane %v1446, 1
        %v1651 = vsel %vm498, %v1648, %v1650
        %v1652 = vrot.slane %v1447, 1
        %v1653 = vsel %vm498, %v1650, %v1652
        %v1654 = vrot.slane %v1448, 1
        %v1655 = vsel %vm498, %v1652, %v1654
        %v1656 = vrot.slane %v1449, 1
        %v1657 = vsel %vm498, %v1654, %v1656
        %v1659 = vsel %vm271, %v1645, 0
        %v1662 = vsel %vm271, %v1647, 0
        %v1665 = vsel %vm271, %v1649, 0
        %v1668 = vsel %vm271, %v1651, 0
        %v1671 = vsel %vm271, %v1653, 0
        %v1674 = vsel %vm271, %v1655, 0
        %v1677 = vsel %vm271, %v1657, 0
        %v1680 = vsel %vm293, %v1639, 0
        %1682 = vmatprep.subr.bf16.mxu0 0
        %1683 = vmatpush1.bf16.msra.mxu0 %v1680
        %1684 = vmatprep.subr.bf16.mxu0 0
        %1685 = vmatpush1.bf16.msra.mxu0 0
        %1686 = vmatprep.subr.bf16.mxu0 0
        %1687 = vmatpush1.bf16.msra.mxu0 0
        %1688 = vmatprep.subr.bf16.mxu0 0
        %1689 = vmatpush1.bf16.msra.mxu0 0
        %1690 = vmatprep.subr.bf16.mxu0 0
        %1691 = vmatpush1.bf16.msra.mxu0 0
        %1692 = vmatprep.subr.bf16.mxu0 0
        %1693 = vmatpush1.bf16.msra.mxu0 0
        %1694 = vmatprep.subr.bf16.mxu0 0
        %1695 = vmatpush1.bf16.msra.mxu0 0
        %1696 = vmatprep.subr.bf16.mxu0 0
        %1697 = vmatpush1.bf16.msra.mxu0 0
        %1698 = vmatprep.subr.bf16.mxu0 0
        %1699 = vmatpush1.bf16.msra.mxu0 0
        %1700 = vmatprep.subr.bf16.mxu0 0
        %1701 = vmatpush1.bf16.msra.mxu0 0
        %1702 = vmatprep.subr.bf16.mxu0 0
        %1703 = vmatpush1.bf16.msra.mxu0 0
        %1704 = vmatprep.subr.bf16.mxu0 0
        %1705 = vmatpush1.bf16.msra.mxu0 0
        %1706 = vmatprep.subr.bf16.mxu0 0
        %1707 = vmatpush1.bf16.msra.mxu0 0
        %1708 = vmatprep.subr.bf16.mxu0 0
        %1709 = vmatpush1.bf16.msra.mxu0 0
        %1710 = vmatprep.subr.bf16.mxu0 0
        %1711 = vmatpush1.bf16.msra.mxu0 0
        %1712 = vmatprep.subr.bf16.mxu0 0
        %1713 = vmatpush1.bf16.msra.mxu0 0
        %1714 = vmatprep.mubr.bf16.mxu0 0
        %1715 = vmatmul.mubr.bf16.gmra.mrb[0].mxu0 %v1659
        %v1716 = vpop.f32.mrb[0].mxu0
        %v1717 = vadd.f32 0.0, %v1716
        %v1718 = vpop.f32.mrb[0].mxu0
        %v1719 = vpop.f32.mrb[0].mxu0
        %v1720 = vadd.f32 0.0, %v1719
        %v1721 = vpop.f32.mrb[0].mxu0
        %1722 = vmatprep.mubr.bf16.mxu0 0
        %1723 = vmatmul.mubr.bf16.gmra.mrb[0].mxu0 %v1662
        %v1724 = vpop.f32.mrb[0].mxu0
        %v1725 = vadd.f32 0.0, %v1724
        %v1726 = vpop.f32.mrb[0].mxu0
        %v1727 = vpop.f32.mrb[0].mxu0
        %v1728 = vadd.f32 0.0, %v1727
        %v1729 = vpop.f32.mrb[0].mxu0
        %1730 = vmatprep.mubr.bf16.mxu0 0
        %1731 = vmatmul.mubr.bf16.gmra.mrb[0].mxu0 %v1665
        %v1732 = vpop.f32.mrb[0].mxu0
        %v1733 = vadd.f32 0.0, %v1732
        %v1734 = vpop.f32.mrb[0].mxu0
        %v1735 = vpop.f32.mrb[0].mxu0
        %v1736 = vadd.f32 0.0, %v1735
        %v1737 = vpop.f32.mrb[0].mxu0
        %1738 = vmatprep.mubr.bf16.mxu0 0
        %1739 = vmatmul.mubr.bf16.gmra.mrb[0].mxu0 %v1668
        %v1740 = vpop.f32.mrb[0].mxu0
        %v1741 = vadd.f32 0.0, %v1740
        %v1742 = vpop.f32.mrb[0].mxu0
        %v1743 = vpop.f32.mrb[0].mxu0
        %v1744 = vadd.f32 0.0, %v1743
        %v1745 = vpop.f32.mrb[0].mxu0
        %1746 = vmatprep.mubr.bf16.mxu0 0
        %1747 = vmatmul.mubr.bf16.gmra.mrb[0].mxu0 %v1671
        %v1748 = vpop.f32.mrb[0].mxu0
        %v1749 = vadd.f32 0.0, %v1748
        %v1750 = vpop.f32.mrb[0].mxu0
        %v1751 = vpop.f32.mrb[0].mxu0
        %v1752 = vadd.f32 0.0, %v1751
        %v1753 = vpop.f32.mrb[0].mxu0
        %1754 = vmatprep.mubr.bf16.mxu0 0
        %1755 = vmatmul.mubr.bf16.gmra.mrb[0].mxu0 %v1674
        %v1756 = vpop.f32.mrb[0].mxu0
        %v1757 = vadd.f32 0.0, %v1756
        %v1758 = vpop.f32.mrb[0].mxu0
        %v1759 = vpop.f32.mrb[0].mxu0
        %v1760 = vadd.f32 0.0, %v1759
        %v1761 = vpop.f32.mrb[0].mxu0
        %1762 = vmatprep.mubr.bf16.mxu0 0
        %1763 = vmatmul.mubr.bf16.gmra.mrb[0].mxu0 %v1677
        %v1764 = vpop.f32.mrb[0].mxu0
        %v1765 = vadd.f32 0.0, %v1764
        %v1766 = vpop.f32.mrb[0].mxu0
        %v1767 = vpop.f32.mrb[0].mxu0
        %v1768 = vadd.f32 0.0, %v1767
        %v1769 = vpop.f32.mrb[0].mxu0
        %1770 = vdwg.mxu0
        %v1771 = vadd.f32 %v1623, %v1717
        %v1772 = vadd.f32 %v1624, %v1720
        %v1773 = vadd.f32 %v1625, %v1725
        %v1774 = vadd.f32 %v1626, %v1728
        %v1775 = vadd.f32 %v1627, %v1733
        %v1776 = vadd.f32 %v1628, %v1736
        %v1777 = vadd.f32 %v1629, %v1741
        %v1778 = vadd.f32 %v1630, %v1744
        %v1779 = vadd.f32 %v1631, %v1749
        %v1780 = vadd.f32 %v1632, %v1752
        %v1781 = vadd.f32 %v1633, %v1757
        %v1782 = vadd.f32 %v1634, %v1760
        %v1783 = vadd.f32 %v1635, %v1765
        %v1784 = vadd.f32 %v1636, %v1768
        %v1785 = vsub.f32 0.0, %v1771
        %v1786 = vsub.f32 0.0, %v1772
        %v1787 = vsub.f32 0.0, %v1773
        %v1788 = vsub.f32 0.0, %v1774
        %v1789 = vsub.f32 0.0, %v1775
        %v1790 = vsub.f32 0.0, %v1776
        %v1791 = vsub.f32 0.0, %v1777
        %v1792 = vsub.f32 0.0, %v1778
        %v1793 = vsub.f32 0.0, %v1779
        %v1794 = vsub.f32 0.0, %v1780
        %v1795 = vsub.f32 0.0, %v1781
        %v1796 = vsub.f32 0.0, %v1782
        %v1797 = vsub.f32 0.0, %v1783
        %v1798 = vsub.f32 0.0, %v1784
        %v1799 = vmul.f32 %v1785, 1.442695
        %v1800 = vpow.pop %v1799
        %v1801 = vmul.f32 %v1786, 1.442695
        %v1802 = vpow.pop %v1801
        %v1803 = vmul.f32 %v1787, 1.442695
        %v1804 = vpow.pop %v1803
        %v1805 = vmul.f32 %v1788, 1.442695
        %v1806 = vpow.pop %v1805
        %v1807 = vmul.f32 %v1789, 1.442695
        %v1808 = vpow.pop %v1807
        %v1809 = vmul.f32 %v1790, 1.442695
        %v1810 = vpow.pop %v1809
        %v1811 = vmul.f32 %v1791, 1.442695
        %v1812 = vpow.pop %v1811
        %v1813 = vmul.f32 %v1792, 1.442695
        %v1814 = vpow.pop %v1813
        %v1815 = vmul.f32 %v1793, 1.442695
        %v1816 = vpow.pop %v1815
        %v1817 = vmul.f32 %v1794, 1.442695
        %v1818 = vpow.pop %v1817
        %v1819 = vmul.f32 %v1795, 1.442695
        %v1820 = vpow.pop %v1819
        %v1821 = vmul.f32 %v1796, 1.442695
        %v1822 = vpow.pop %v1821
        %v1823 = vmul.f32 %v1797, 1.442695
        %v1824 = vpow.pop %v1823
        %v1825 = vmul.f32 %v1798, 1.442695
        %v1826 = vpow.pop %v1825
        %v1827 = vadd.f32 %v1800, 1.0
        %v1828 = vadd.f32 %v1802, 1.0
        %v1829 = vadd.f32 %v1804, 1.0
        %v1830 = vadd.f32 %v1806, 1.0
        %v1831 = vadd.f32 %v1808, 1.0
        %v1832 = vadd.f32 %v1810, 1.0
        %v1833 = vadd.f32 %v1812, 1.0
        %v1834 = vadd.f32 %v1814, 1.0
        %v1835 = vadd.f32 %v1816, 1.0
        %v1836 = vadd.f32 %v1818, 1.0
        %v1837 = vadd.f32 %v1820, 1.0
        %v1838 = vadd.f32 %v1822, 1.0
        %v1839 = vadd.f32 %v1824, 1.0
        %v1840 = vadd.f32 %v1826, 1.0
        %v1841 = vrcp.pop %v1827
        %v1842 = vrcp.pop %v1828
        %v1843 = vrcp.pop %v1829
        %v1844 = vrcp.pop %v1830
        %v1845 = vrcp.pop %v1831
        %v1846 = vrcp.pop %v1832
        %v1847 = vrcp.pop %v1833
        %v1848 = vrcp.pop %v1834
        %v1849 = vrcp.pop %v1835
        %v1850 = vrcp.pop %v1836
        %v1851 = vrcp.pop %v1837
        %v1852 = vrcp.pop %v1838
        %v1853 = vrcp.pop %v1839
        %v1854 = vrcp.pop %v1840
        %s1855 = smul.u32 %s146, 112
        %s1856 = scalar_lea.vmem %s143, %s1855
        %vm1857 = vcmask 97280
        %1858 = vst.msk [vmem:[%s1856] sm:$0xff] %vm1857, %v1841
        %1859 = vst.msk [vmem:[%s1856 + $0x8] sm:$0xff] %vm1857, %v1842
        %1860 = vst.msk [vmem:[%s1856 + $0x10] sm:$0xff] %vm1857, %v1843
        %1861 = vst.msk [vmem:[%s1856 + $0x18] sm:$0xff] %vm1857, %v1844
        %1862 = vst.msk [vmem:[%s1856 + $0x20] sm:$0xff] %vm1857, %v1845
        %1863 = vst.msk [vmem:[%s1856 + $0x28] sm:$0xff] %vm1857, %v1846
        %1864 = vst.msk [vmem:[%s1856 + $0x30] sm:$0xff] %vm1857, %v1847
        %1865 = vst.msk [vmem:[%s1856 + $0x38] sm:$0xff] %vm1857, %v1848
        %1866 = vst.msk [vmem:[%s1856 + $0x40] sm:$0xff] %vm1857, %v1849
        %1867 = vst.msk [vmem:[%s1856 + $0x48] sm:$0xff] %vm1857, %v1850
        %1868 = vst.msk [vmem:[%s1856 + $0x50] sm:$0xff] %vm1857, %v1851
        %1869 = vst.msk [vmem:[%s1856 + $0x58] sm:$0xff] %vm1857, %v1852
        %1870 = vst.msk [vmem:[%s1856 + $0x60] sm:$0xff] %vm1857, %v1853
        %1871 = vst.msk [vmem:[%s1856 + $0x68] sm:$0xff] %vm1857, %v1854
      $region33: #{decoder_forward.9} parent=27 // loop_footer
        %s150 = sadd.s32 1, %s146
      $region34: #{decoder_forward.9} parent=27 // loop_footer_branch
        %145 = sbr.rel target = $region30
      $region35: #{decoder_forward.9} parent=27 // loop_exit
        _
      %p1872 = scmp.lt.s32.totalorder %s13, 1
      %s1873 = scalar_select %p1872, %s13, 1
      %s1874 = smul.addr %s1873, 1568
      %s1875 = smul.addr %s1874, 8
      %s1876 = scalar_lea.vmem %s2, %s1875
      // Predicated region
      $region36: #{decoder_forward.9} parent=27 // pred_check
        %p1877 = pneg %p78
      $region37: #{decoder_forward.9} parent=27 // pred_check_branch
        %1879 = sbr.rel (%p1877) target = $region39
      $region38: #{decoder_forward.9} parent=27 // pred_region
        _
      $region39: #{decoder_forward.9} parent=27 // pred_fallthru
        _
    $region28: #{decoder_forward.9} parent=5 // pred_fallthru
      _
    %p1880 = scmp.le.s32.totalorder 2, %s8
    // Predicated region
    $region40: #{decoder_forward.9} parent=5 // pred_check
      %p1881 = pneg %p1880
    $region41: #{decoder_forward.9} parent=5 // pred_check_branch
      %1883 = sbr.rel (%p1881) target = $region43
    $region42: #{decoder_forward.9} parent=5 // pred_region
      %s1884 = ssub.s32 %s8, 2
      // Predicated region
      $region44: #{decoder_forward.9} parent=42 // pred_check
        %p1885 = pneg %p84
      $region45: #{decoder_forward.9} parent=42 // pred_check_branch
        %1887 = sbr.rel (%p1885) target = $region47
      $region46: #{decoder_forward.9} parent=42 // pred_region
        %p1888 = scmp.lt.s32.totalorder %s14, 1
        %s1889 = scalar_select %p1888, %s14, 1
        %s1890 = smul.addr %s1889, 1568
        %s1891 = smul.addr %s1890, 8
        %s1892 = scalar_lea.vmem %s2, %s1891
      $region47: #{decoder_forward.9} parent=42 // pred_fallthru
        _
    $region43: #{decoder_forward.9} parent=5 // pred_fallthru
      _
  $region6: #{decoder_forward.9} parent=0 // loop_footer
    %s12 = sadd.s32 1, %s8
  $region7: #{decoder_forward.9} parent=0 // loop_footer_branch
    %7 = sbr.rel target = $region3
  $region8: #{decoder_forward.9} parent=0 // loop_exit
    _

</llo_original>
